<compile_context>
chip_gen: v7x
topology: tpu7x:2x2x1
jax: 0.10.0
libtpu: 0.0.40
codegen_flags: <defaults>
</compile_context>

<pallas_src>
import numpy as np
import jax
import jax.numpy as jnp
from jax import lax
from jax.experimental import pallas as pl
from jax.experimental.pallas import tpu as pltpu

BOARD_X, BOARD_Y = 3, 3
HW = BOARD_X * BOARD_Y               # 9
ACTION_SIZE = BOARD_X * BOARD_Y + 1  # 10 (TicTacToe game convention)
NUM_CHANNELS = 32
EPS = 1e-5
HEAD_W = 128                         # lane-dense combined head width


# ----------------------------------------------------------------------------
# Pallas kernel: full forward for one batch tile.
# ----------------------------------------------------------------------------
def tictactoe_kernel(
    x_ref,            # (TILE_N, 9)        flattened board tile (bf16)
    m1_ref,           # (9, C*9)           conv1 as dense matmul, BN1-scale folded (bf16)
    b1_ref,           # (1, C*9)           BN1 shift (f32)
    m2_ref,           # (C*9, C*9)         conv2 as dense matmul, BN2-scale folded (bf16)
    b2_ref,           # (1, C*9)           BN2 shift (f32)
    w1_ref,           # (C*9, 1024)        fc1, fc_bn1-scale folded (bf16)
    fb1_ref,          # (1, 1024)          fc_bn1 shift (f32)
    w2_ref,           # (1024, 512)        fc2, fc_bn2-scale folded (bf16)
    fb2_ref,          # (1, 512)           fc_bn2 shift (f32)
    wh_ref,           # (512, 128)         [fc3 | fc4 | zero-pad] merged head (bf16)
    bh_ref,           # (1, 128)           merged head bias (f32)
    out_ref,          # out: (TILE_N, 128) [:,:A]=log_pi, [:,A]=tanh(v), rest 0
):
    # conv1 (3x3, pad 1, no bias) -> bn1 -> relu      (x is already bf16 [R9])
    h = jnp.dot(x_ref[...], m1_ref[...], preferred_element_type=jnp.float32)
    h = jnp.maximum(h + b1_ref[...], 0.0)

    # conv2 -> bn2 -> relu
    h = jnp.dot(h.astype(jnp.bfloat16), m2_ref[...], preferred_element_type=jnp.float32)
    h = jnp.maximum(h + b2_ref[...], 0.0)

    # fc1 -> fc_bn1 -> relu (dropout: eval mode -> identity)
    h = jnp.dot(h.astype(jnp.bfloat16), w1_ref[...], preferred_element_type=jnp.float32)
    h = jnp.maximum(h + fb1_ref[...], 0.0)

    # fc2 -> fc_bn2 -> relu (dropout: eval mode -> identity)
    h = jnp.dot(h.astype(jnp.bfloat16), w2_ref[...], preferred_element_type=jnp.float32)
    h = jnp.maximum(h + fb2_ref[...], 0.0)

    # merged heads: one lane-dense matmul
    head = jnp.dot(h.astype(jnp.bfloat16), wh_ref[...],
                   preferred_element_type=jnp.float32) + bh_ref[...]

    lane = lax.broadcasted_iota(jnp.int32, head.shape, 1)
    pi_mask = lane < ACTION_SIZE
    neg = jnp.float32(-1e30)

    # log_softmax over the first ACTION_SIZE lanes (max-shifted, f32).
    # [C1] mask the shifted logits BEFORE exp so dead lanes never produce inf.
    m = jnp.max(jnp.where(pi_mask, head, neg), axis=-1, keepdims=True)
    sh = jnp.where(pi_mask, head - m, neg)
    sumexp = jnp.sum(jnp.exp(sh), axis=-1, keepdims=True)
    logpi = sh - jnp.log(sumexp)

    # [R8] tanh only on the value lane: extract lane ACTION_SIZE with a masked
    # XLU reduce (free slot) and run a single tanh per row on the EUP.
    v_col = jnp.sum(jnp.where(lane == ACTION_SIZE, head, 0.0),
                    axis=-1, keepdims=True)
    v = jnp.tanh(v_col)

    out_ref[...] = jnp.where(pi_mask, logpi,
                             jnp.where(lane == ACTION_SIZE, v, 0.0))


# ----------------------------------------------------------------------------
# One-time parameter preparation (host side, outside the forward path).
# ----------------------------------------------------------------------------
def conv3x3_same_as_matrix(w):
    """w: (C_out, C_in, 3, 3) conv weight -> M of shape (C_in*HW, C_out*HW) so
    out_flat[n, co*HW + p] = sum_q in_flat[n, ci*HW + q] * M[ci*HW + q, co*HW + p]
    (row-major spatial order, zero padding at the border)."""
    w = np.asarray(w)
    c_out, c_in, kh, kw = w.shape
    M = np.zeros((c_in * HW, c_out * HW), dtype=np.float32)
    for co in range(c_out):
        for ci in range(c_in):
            for py in range(BOARD_Y):
                for px in range(BOARD_X):
                    p = py * BOARD_X + px
                    for ky in range(kh):
                        for kx in range(kw):
                            qy, qx = py + ky - 1, px + kx - 1
                            if 0 <= qy < BOARD_Y and 0 <= qx < BOARD_X:
                                q = qy * BOARD_X + qx
                                M[ci * HW + q, co * HW + p] = w[co, ci, ky, kx]
    return jnp.asarray(M)


def fold_bn(gamma, beta, mean, var):
    scale = gamma / jnp.sqrt(var + EPS)
    shift = beta - mean * scale
    return scale, shift


def prepare_params(p):
    """Build dense conv matrices, fold BN scales into weights, merge heads,
    and cast matmul weights to bf16.  Call once at parameter-load time."""
    m1 = conv3x3_same_as_matrix(p["W1"])            # (9, C*9)
    m2 = conv3x3_same_as_matrix(p["W2"])            # (C*9, C*9)

    s1, b1 = fold_bn(p["bn1_gamma"], p["bn1_beta"], p["bn1_mean"], p["bn1_var"])
    s2, b2 = fold_bn(p["bn2_gamma"], p["bn2_beta"], p["bn2_mean"], p["bn2_var"])
    s3, b3 = fold_bn(p["fbn1_gamma"], p["fbn1_beta"], p["fbn1_mean"], p["fbn1_var"])
    s4, b4 = fold_bn(p["fbn2_gamma"], p["fbn2_beta"], p["fbn2_mean"], p["fbn2_var"])

    # Broadcast per-channel conv BN over the 9 spatial positions (channel-major).
    c1s, c1b = jnp.repeat(s1, HW), jnp.repeat(b1, HW)
    c2s, c2b = jnp.repeat(s2, HW), jnp.repeat(b2, HW)

    # Fold BN scales into weight columns; cast matmul weights to bf16.
    m1f = (m1 * c1s[None, :]).astype(jnp.bfloat16)
    m2f = (m2 * c2s[None, :]).astype(jnp.bfloat16)
    w1f = (p["Wfc1"] * s3[None, :]).astype(jnp.bfloat16)
    w2f = (p["Wfc2"] * s4[None, :]).astype(jnp.bfloat16)

    # Merged, lane-dense (512, 128) head: cols [0:A)=fc3, col A=fc4, rest zero.
    wh = jnp.zeros((512, HEAD_W), jnp.float32)
    wh = wh.at[:, :ACTION_SIZE].set(p["Wfc3"]).at[:, ACTION_SIZE].set(p["Wfc4"][:, 0])
    bh = jnp.zeros((HEAD_W,), jnp.float32)
    bh = bh.at[:ACTION_SIZE].set(p["bfc3"]).at[ACTION_SIZE].set(p["bfc4"][0])

    return {
        "m1": m1f, "b1": c1b.reshape(1, -1).astype(jnp.float32),
        "m2": m2f, "b2": c2b.reshape(1, -1).astype(jnp.float32),
        "w1": w1f, "fb1": b3.reshape(1, -1).astype(jnp.float32),
        "w2": w2f, "fb2": b4.reshape(1, -1).astype(jnp.float32),
        "wh": wh.astype(jnp.bfloat16), "bh": bh.reshape(1, -1).astype(jnp.float32),
    }


# ----------------------------------------------------------------------------
# Forward wrapper (gridded over the batch; weights stay VMEM-resident).
# ----------------------------------------------------------------------------
def _round_up(x, m):
    return ((x + m - 1) // m) * m


def _select_tiling(n, max_tile):
    """Pick (tile_n, n_pad): tile_n multiple of 8, minimal padding [R9],
    and >= 2 grid steps whenever the batch allows it (megacore on v7x) [R2]."""
    n8 = _round_up(max(n, 1), 8)
    steps = -(-n8 // max_tile)                 # ceil div
    if steps < 2 and (n8 // 2) >= 8:
        steps = 2                              # [R2] give the 2nd TC work on v7x
    tile_n = _round_up(-(-n8 // steps), 8)
    n_pad = tile_n * steps
    return tile_n, n_pad


WEIGHT_ORDER = ("m1", "b1", "m2", "b2", "w1", "fb1", "w2", "fb2", "wh", "bh")


def _build_call(tile_n, n_pad, weight_args, single_buffer_weights):
    def const_spec(arr):
        # Constant index map: DMA'd once, stays VMEM-resident across the grid.
        if single_buffer_weights:
            return pl.BlockSpec(arr.shape, lambda i: (0,) * arr.ndim,
                                pipeline_mode=pl.Buffered(1))      # [R4]
        return pl.BlockSpec(arr.shape, lambda i: (0,) * arr.ndim)

    in_specs = [pl.BlockSpec((tile_n, HW), lambda i: (i, 0))]
    in_specs += [const_spec(a) for a in weight_args]

    return pl.pallas_call(
        tictactoe_kernel,
        out_shape=jax.ShapeDtypeStruct((n_pad, HEAD_W), jnp.float32),
        grid=(n_pad // tile_n,),
        in_specs=in_specs,
        out_specs=pl.BlockSpec((tile_n, HEAD_W), lambda i: (i, 0)),
        compiler_params=pltpu.CompilerParams(
            dimension_semantics=("parallel",),
            vmem_limit_bytes=32 << 20,                             # [R1]/[R3]
        ),
    )


def tictactoe_forward_pallas(x_boards, prep, max_tile=1024):
    """x_boards: (N, 3, 3) -> (log_pi (N, ACTION_SIZE), v (N, 1))."""
    N = x_boards.shape[0]
    tile_n, n_pad = _select_tiling(N, max_tile)

    # [R9] pre-cast to bf16 on the host ({-1,0,1} exact); pad only if needed.
    x_flat = x_boards.reshape(N, HW).astype(jnp.bfloat16)
    if n_pad != N:
        x_flat = jnp.pad(x_flat, ((0, n_pad - N), (0, 0)))

    weight_args = tuple(prep[k] for k in WEIGHT_ORDER)

    try:
        out = _build_call(tile_n, n_pad, weight_args, True)(x_flat, *weight_args)
    except Exception:
        # Fallback if this JAX build rejects pipeline_mode=pl.Buffered(1).
        out = _build_call(tile_n, n_pad, weight_args, False)(x_flat, *weight_args)

    logpi = out[:N, :ACTION_SIZE]
    v = out[:N, ACTION_SIZE:ACTION_SIZE + 1]
    return logpi, v


# ----------------------------------------------------------------------------
# Random parameters + pure-JAX f32 reference (mirrors PyTorch eval forward).
# ----------------------------------------------------------------------------
def make_params(key):
    C = NUM_CHANNELS
    ks = jax.random.split(key, 24)
    p = {}
    p["W1"] = jax.random.normal(ks[0], (C, 1, 3, 3), jnp.float32) * 0.2
    p["W2"] = jax.random.normal(ks[1], (C, C, 3, 3), jnp.float32) * 0.1
    for i, (name, dim) in enumerate([("bn1", C), ("bn2", C), ("fbn1", 1024), ("fbn2", 512)]):
        k0, k1, k2, k3 = jax.random.split(ks[2 + i], 4)
        p[f"{name}_gamma"] = jax.random.uniform(k0, (dim,), jnp.float32, 0.8, 1.2)
        p[f"{name}_beta"] = jax.random.normal(k1, (dim,), jnp.float32) * 0.1
        p[f"{name}_mean"] = jax.random.normal(k2, (dim,), jnp.float32) * 0.1
        p[f"{name}_var"] = jax.random.uniform(k3, (dim,), jnp.float32, 0.5, 1.5)
    p["Wfc1"] = jax.random.normal(ks[10], (C * HW, 1024), jnp.float32) * 0.05
    p["Wfc2"] = jax.random.normal(ks[11], (1024, 512), jnp.float32) * 0.05
    p["Wfc3"] = jax.random.normal(ks[12], (512, ACTION_SIZE), jnp.float32) * 0.05
    p["bfc3"] = jax.random.normal(ks[13], (ACTION_SIZE,), jnp.float32) * 0.1
    p["Wfc4"] = jax.random.normal(ks[14], (512, 1), jnp.float32) * 0.05
    p["bfc4"] = jax.random.normal(ks[15], (1,), jnp.float32) * 0.1
    return p


def tictactoe_forward_ref(x_boards, p):
    N = x_boards.shape[0]
    s = x_boards.reshape(N, 1, BOARD_X, BOARD_Y).astype(jnp.float32)

    def bn(x, name, conv):
        g, b = p[f"{name}_gamma"], p[f"{name}_beta"]
        m, v = p[f"{name}_mean"], p[f"{name}_var"]
        if conv:
            g, b, m, v = (t[None, :, None, None] for t in (g, b, m, v))
        return (x - m) / jnp.sqrt(v + EPS) * g + b

    dn = ("NCHW", "OIHW", "NCHW")
    h = lax.conv_general_dilated(s, p["W1"], (1, 1), "SAME", dimension_numbers=dn)
    h = jax.nn.relu(bn(h, "bn1", conv=True))
    h = lax.conv_general_dilated(h, p["W2"], (1, 1), "SAME", dimension_numbers=dn)
    h = jax.nn.relu(bn(h, "bn2", conv=True))
    h = h.reshape(N, -1)                       # channel-major, like torch .view
    h = jax.nn.relu(bn(h @ p["Wfc1"], "fbn1", conv=False))
    h = jax.nn.relu(bn(h @ p["Wfc2"], "fbn2", conv=False))
    pi = h @ p["Wfc3"] + p["bfc3"][None, :]
    v = h @ p["Wfc4"] + p["bfc4"][None, :]
    return jax.nn.log_softmax(pi, axis=-1), jnp.tanh(v)


if __name__ == "__main__":
    key = jax.random.PRNGKey(0)
    k_param, k_x1, k_x2 = jax.random.split(key, 3)
    params = make_params(k_param)
    prep = prepare_params(params)      # one-time: conv->matrix, BN fold, bf16 cast

    # bf16 matmul operands (f32 accumulation) -> slightly looser tolerance than pure f32
    TOL = 2e-2

    # Case 1: tiny batch (single grid step).
    N1 = 8
    x1 = jax.random.randint(k_x1, (N1, BOARD_X, BOARD_Y), -1, 2).astype(jnp.float32)
    logpi1, v1 = tictactoe_forward_pallas(x1, prep)
    jax.block_until_ready((logpi1, v1))
    logpi1_ref, v1_ref = tictactoe_forward_ref(x1, params)
    np.testing.assert_allclose(np.asarray(logpi1), np.asarray(logpi1_ref), rtol=TOL, atol=TOL)
    np.testing.assert_allclose(np.asarray(v1), np.asarray(v1_ref), rtol=TOL, atol=TOL)
    assert logpi1.shape == (N1, ACTION_SIZE) and v1.shape == (N1, 1)

    # Case 2: non-tile-aligned batch -> exercises padding + the >=2-step grid path.
    N2 = 24
    x2 = jax.random.randint(k_x2, (N2, BOARD_X, BOARD_Y), -1, 2).astype(jnp.float32)
    logpi2, v2 = tictactoe_forward_pallas(x2, prep)
    jax.block_until_ready((logpi2, v2))
    logpi2_ref, v2_ref = tictactoe_forward_ref(x2, params)
    np.testing.assert_allclose(np.asarray(logpi2), np.asarray(logpi2_ref), rtol=TOL, atol=TOL)
    np.testing.assert_allclose(np.asarray(v2), np.asarray(v2_ref), rtol=TOL, atol=TOL)
    assert logpi2.shape == (N2, ACTION_SIZE) and v2.shape == (N2, 1)

    print("KERNEL_OK")
</pallas_src>

<mosaic_0001>
module attributes {stable_mosaic.version = 11 : i64} {
  func.func @tictactoe_kernel(%arg0: i32, %arg1: memref<8x9xbf16, #tpu.memory_space<vmem>>, %arg2: memref<9x288xbf16, #tpu.memory_space<vmem>>, %arg3: memref<1x288xf32, #tpu.memory_space<vmem>>, %arg4: memref<288x288xbf16, #tpu.memory_space<vmem>>, %arg5: memref<1x288xf32, #tpu.memory_space<vmem>>, %arg6: memref<288x1024xbf16, #tpu.memory_space<vmem>>, %arg7: memref<1x1024xf32, #tpu.memory_space<vmem>>, %arg8: memref<1024x512xbf16, #tpu.memory_space<vmem>>, %arg9: memref<1x512xf32, #tpu.memory_space<vmem>>, %arg10: memref<512x128xbf16, #tpu.memory_space<vmem>>, %arg11: memref<1x128xf32, #tpu.memory_space<vmem>>, %arg12: memref<8x128xf32, #tpu.memory_space<vmem>>) attributes {dimension_semantics = [#tpu.dimension_semantics<parallel>], iteration_bounds = array<i64: 1>, scalar_prefetch = 0 : i64, scratch_operands = 0 : i64, tpu.core_type = #tpu.core_type<tc>, window_params = [{transform_indices = @transform_0, window_bounds = array<i64: 8, 9>}, {pipeline_mode = #tpu.pipeline_mode<synchronous>, transform_indices = @transform_1, window_bounds = array<i64: 9, 288>}, {pipeline_mode = #tpu.pipeline_mode<synchronous>, transform_indices = @transform_2, window_bounds = array<i64: 1, 288>}, {pipeline_mode = #tpu.pipeline_mode<synchronous>, transform_indices = @transform_3, window_bounds = array<i64: 288, 288>}, {pipeline_mode = #tpu.pipeline_mode<synchronous>, transform_indices = @transform_4, window_bounds = array<i64: 1, 288>}, {pipeline_mode = #tpu.pipeline_mode<synchronous>, transform_indices = @transform_5, window_bounds = array<i64: 288, 1024>}, {pipeline_mode = #tpu.pipeline_mode<synchronous>, transform_indices = @transform_6, window_bounds = array<i64: 1, 1024>}, {pipeline_mode = #tpu.pipeline_mode<synchronous>, transform_indices = @transform_7, window_bounds = array<i64: 1024, 512>}, {pipeline_mode = #tpu.pipeline_mode<synchronous>, transform_indices = @transform_8, window_bounds = array<i64: 1, 512>}, {pipeline_mode = #tpu.pipeline_mode<synchronous>, transform_indices = @transform_9, window_bounds = array<i64: 512, 128>}, {pipeline_mode = #tpu.pipeline_mode<synchronous>, transform_indices = @transform_10, window_bounds = array<i64: 1, 128>}, {transform_indices = @transform_11, window_bounds = array<i64: 8, 128>}]} {
    %c0 = arith.constant 0 : index
    %c0_0 = arith.constant 0 : index
    %0 = vector.load %arg1[%c0, %c0_0] : memref<8x9xbf16, #tpu.memory_space<vmem>>, vector<8x9xbf16>
    %c0_1 = arith.constant 0 : index
    %c0_2 = arith.constant 0 : index
    %1 = vector.load %arg2[%c0_1, %c0_2] : memref<9x288xbf16, #tpu.memory_space<vmem>>, vector<9x288xbf16>
    %cst = arith.constant dense<0.000000e+00> : vector<8x288xf32>
    %2 = tpu.matmul %0, %1, %cst {dimension_numbers = #tpu.dot_dimension_numbers<[1], [0], [0], [1], [0, 0, 1, 1], [], []>} : vector<8x9xbf16>, vector<9x288xbf16>, vector<8x288xf32> -> vector<8x288xf32>
    %c0_3 = arith.constant 0 : index
    %c0_4 = arith.constant 0 : index
    %3 = vector.load %arg3[%c0_3, %c0_4] : memref<1x288xf32, #tpu.memory_space<vmem>>, vector<1x288xf32>
    %4 = vector.broadcast %3 : vector<1x288xf32> to vector<8x288xf32>
    %5 = arith.addf %2, %4 : vector<8x288xf32>
    %cst_5 = arith.constant 0.000000e+00 : f32
    %6 = vector.broadcast %cst_5 : f32 to vector<8x288xf32>
    %7 = arith.maximumf %5, %6 : vector<8x288xf32>
    %8 = arith.truncf %7 : vector<8x288xf32> to vector<8x288xbf16>
    %c0_6 = arith.constant 0 : index
    %c0_7 = arith.constant 0 : index
    %9 = vector.load %arg4[%c0_6, %c0_7] : memref<288x288xbf16, #tpu.memory_space<vmem>>, vector<288x288xbf16>
    %cst_8 = arith.constant dense<0.000000e+00> : vector<8x288xf32>
    %10 = tpu.matmul %8, %9, %cst_8 {dimension_numbers = #tpu.dot_dimension_numbers<[1], [0], [0], [1], [0, 0, 1, 1], [], []>} : vector<8x288xbf16>, vector<288x288xbf16>, vector<8x288xf32> -> vector<8x288xf32>
    %c0_9 = arith.constant 0 : index
    %c0_10 = arith.constant 0 : index
    %11 = vector.load %arg5[%c0_9, %c0_10] : memref<1x288xf32, #tpu.memory_space<vmem>>, vector<1x288xf32>
    %12 = vector.broadcast %11 : vector<1x288xf32> to vector<8x288xf32>
    %13 = arith.addf %10, %12 : vector<8x288xf32>
    %cst_11 = arith.constant 0.000000e+00 : f32
    %14 = vector.broadcast %cst_11 : f32 to vector<8x288xf32>
    %15 = arith.maximumf %13, %14 : vector<8x288xf32>
    %16 = arith.truncf %15 : vector<8x288xf32> to vector<8x288xbf16>
    %c0_12 = arith.constant 0 : index
    %c0_13 = arith.constant 0 : index
    %17 = vector.load %arg6[%c0_12, %c0_13] : memref<288x1024xbf16, #tpu.memory_space<vmem>>, vector<288x1024xbf16>
    %cst_14 = arith.constant dense<0.000000e+00> : vector<8x1024xf32>
    %18 = tpu.matmul %16, %17, %cst_14 {dimension_numbers = #tpu.dot_dimension_numbers<[1], [0], [0], [1], [0, 0, 1, 1], [], []>} : vector<8x288xbf16>, vector<288x1024xbf16>, vector<8x1024xf32> -> vector<8x1024xf32>
    %c0_15 = arith.constant 0 : index
    %c0_16 = arith.constant 0 : index
    %19 = vector.load %arg7[%c0_15, %c0_16] : memref<1x1024xf32, #tpu.memory_space<vmem>>, vector<1x1024xf32>
    %20 = vector.broadcast %19 : vector<1x1024xf32> to vector<8x1024xf32>
    %21 = arith.addf %18, %20 : vector<8x1024xf32>
    %cst_17 = arith.constant 0.000000e+00 : f32
    %22 = vector.broadcast %cst_17 : f32 to vector<8x1024xf32>
    %23 = arith.maximumf %21, %22 : vector<8x1024xf32>
    %24 = arith.truncf %23 : vector<8x1024xf32> to vector<8x1024xbf16>
    %c0_18 = arith.constant 0 : index
    %c0_19 = arith.constant 0 : index
    %25 = vector.load %arg8[%c0_18, %c0_19] : memref<1024x512xbf16, #tpu.memory_space<vmem>>, vector<1024x512xbf16>
    %cst_20 = arith.constant dense<0.000000e+00> : vector<8x512xf32>
    %26 = tpu.matmul %24, %25, %cst_20 {dimension_numbers = #tpu.dot_dimension_numbers<[1], [0], [0], [1], [0, 0, 1, 1], [], []>} : vector<8x1024xbf16>, vector<1024x512xbf16>, vector<8x512xf32> -> vector<8x512xf32>
    %c0_21 = arith.constant 0 : index
    %c0_22 = arith.constant 0 : index
    %27 = vector.load %arg9[%c0_21, %c0_22] : memref<1x512xf32, #tpu.memory_space<vmem>>, vector<1x512xf32>
    %28 = vector.broadcast %27 : vector<1x512xf32> to vector<8x512xf32>
    %29 = arith.addf %26, %28 : vector<8x512xf32>
    %cst_23 = arith.constant 0.000000e+00 : f32
    %30 = vector.broadcast %cst_23 : f32 to vector<8x512xf32>
    %31 = arith.maximumf %29, %30 : vector<8x512xf32>
    %32 = arith.truncf %31 : vector<8x512xf32> to vector<8x512xbf16>
    %c0_24 = arith.constant 0 : index
    %c0_25 = arith.constant 0 : index
    %33 = vector.load %arg10[%c0_24, %c0_25] : memref<512x128xbf16, #tpu.memory_space<vmem>>, vector<512x128xbf16>
    %cst_26 = arith.constant dense<0.000000e+00> : vector<8x128xf32>
    %34 = tpu.matmul %32, %33, %cst_26 {dimension_numbers = #tpu.dot_dimension_numbers<[1], [0], [0], [1], [0, 0, 1, 1], [], []>} : vector<8x512xbf16>, vector<512x128xbf16>, vector<8x128xf32> -> vector<8x128xf32>
    %c0_27 = arith.constant 0 : index
    %c0_28 = arith.constant 0 : index
    %35 = vector.load %arg11[%c0_27, %c0_28] : memref<1x128xf32, #tpu.memory_space<vmem>>, vector<1x128xf32>
    %36 = vector.broadcast %35 : vector<1x128xf32> to vector<8x128xf32>
    %37 = arith.addf %34, %36 : vector<8x128xf32>
    %38 = tpu.iota {dimensions = array<i32: 1>} : vector<8x128xi32>
    %c10_i32 = arith.constant 10 : i32
    %39 = vector.broadcast %c10_i32 : i32 to vector<8x128xi32>
    %40 = arith.cmpi slt, %38, %39 : vector<8x128xi32>
    %cst_29 = arith.constant -1.000000e+30 : f32
    %41 = vector.broadcast %cst_29 : f32 to vector<8x128xf32>
    %42 = arith.select %40, %37, %41 : vector<8x128xi1>, vector<8x128xf32>
    %cst_30 = arith.constant dense<0xFF800000> : vector<8xf32>
    %43 = vector.multi_reduction <maximumf>, %42, %cst_30 [1] : vector<8x128xf32> to vector<8xf32>
    %44 = vector.shape_cast %43 : vector<8xf32> to vector<8x1xf32>
    %45 = vector.broadcast %44 : vector<8x1xf32> to vector<8x128xf32>
    %46 = arith.subf %37, %45 : vector<8x128xf32>
    %cst_31 = arith.constant -1.000000e+30 : f32
    %47 = vector.broadcast %cst_31 : f32 to vector<8x128xf32>
    %48 = arith.select %40, %46, %47 : vector<8x128xi1>, vector<8x128xf32>
    %49 = math.exp %48 : vector<8x128xf32>
    %cst_32 = arith.constant dense<0.000000e+00> : vector<8xf32>
    %50 = vector.multi_reduction <add>, %49, %cst_32 [1] : vector<8x128xf32> to vector<8xf32>
    %51 = vector.shape_cast %50 : vector<8xf32> to vector<8x1xf32>
    %52 = math.log %51 : vector<8x1xf32>
    %53 = vector.broadcast %52 : vector<8x1xf32> to vector<8x128xf32>
    %54 = arith.subf %48, %53 : vector<8x128xf32>
    %c10_i32_33 = arith.constant 10 : i32
    %55 = vector.broadcast %c10_i32_33 : i32 to vector<8x128xi32>
    %56 = arith.cmpi eq, %38, %55 : vector<8x128xi32>
    %cst_34 = arith.constant 0.000000e+00 : f32
    %57 = vector.broadcast %cst_34 : f32 to vector<8x128xf32>
    %58 = arith.select %56, %37, %57 : vector<8x128xi1>, vector<8x128xf32>
    %cst_35 = arith.constant dense<0.000000e+00> : vector<8xf32>
    %59 = vector.multi_reduction <add>, %58, %cst_35 [1] : vector<8x128xf32> to vector<8xf32>
    %60 = vector.shape_cast %59 : vector<8xf32> to vector<8x1xf32>
    %61 = math.tanh %60 : vector<8x1xf32>
    %c10_i32_36 = arith.constant 10 : i32
    %62 = vector.broadcast %c10_i32_36 : i32 to vector<8x128xi32>
    %63 = arith.cmpi eq, %38, %62 : vector<8x128xi32>
    %cst_37 = arith.constant 0.000000e+00 : f32
    %64 = vector.shape_cast %61 : vector<8x1xf32> to vector<8x1xf32>
    %65 = vector.broadcast %64 : vector<8x1xf32> to vector<8x128xf32>
    %66 = vector.broadcast %cst_37 : f32 to vector<8x128xf32>
    %67 = arith.select %63, %65, %66 : vector<8x128xi1>, vector<8x128xf32>
    %68 = arith.select %40, %54, %67 : vector<8x128xi1>, vector<8x128xf32>
    %c0_38 = arith.constant 0 : index
    %c0_39 = arith.constant 0 : index
    %69 = vector.load %arg12[%c0_38, %c0_39] : memref<8x128xf32, #tpu.memory_space<vmem>>, vector<8x128xf32>
    tpu.vector_store %arg12[%c0_38, %c0_39], %68 {strides = array<i32>} : memref<8x128xf32, #tpu.memory_space<vmem>>, vector<8x128xf32>,
    return
  }
  func.func @transform_0(%arg0: i32) -> (i32, i32) {
    %c0_i32 = arith.constant 0 : i32
    %c0_i32_0 = arith.constant 0 : i32
    return %arg0, %c0_i32 : i32, i32
  }
  func.func @transform_1(%arg0: i32) -> (i32, i32) {
    %c0_i32 = arith.constant 0 : i32
    %c0_i32_0 = arith.constant 0 : i32
    %c0_i32_1 = arith.constant 0 : i32
    return %c0_i32, %c0_i32_0 : i32, i32
  }
  func.func @transform_2(%arg0: i32) -> (i32, i32) {
    %c0_i32 = arith.constant 0 : i32
    %c0_i32_0 = arith.constant 0 : i32
    %c0_i32_1 = arith.constant 0 : i32
    return %c0_i32, %c0_i32_0 : i32, i32
  }
  func.func @transform_3(%arg0: i32) -> (i32, i32) {
    %c0_i32 = arith.constant 0 : i32
    %c0_i32_0 = arith.constant 0 : i32
    %c0_i32_1 = arith.constant 0 : i32
    return %c0_i32, %c0_i32_0 : i32, i32
  }
  func.func @transform_4(%arg0: i32) -> (i32, i32) {
    %c0_i32 = arith.constant 0 : i32
    %c0_i32_0 = arith.constant 0 : i32
    %c0_i32_1 = arith.constant 0 : i32
    return %c0_i32, %c0_i32_0 : i32, i32
  }
  func.func @transform_5(%arg0: i32) -> (i32, i32) {
    %c0_i32 = arith.constant 0 : i32
    %c0_i32_0 = arith.constant 0 : i32
    %c0_i32_1 = arith.constant 0 : i32
    return %c0_i32, %c0_i32_0 : i32, i32
  }
  func.func @transform_6(%arg0: i32) -> (i32, i32) {
    %c0_i32 = arith.constant 0 : i32
    %c0_i32_0 = arith.constant 0 : i32
    %c0_i32_1 = arith.constant 0 : i32
    return %c0_i32, %c0_i32_0 : i32, i32
  }
  func.func @transform_7(%arg0: i32) -> (i32, i32) {
    %c0_i32 = arith.constant 0 : i32
    %c0_i32_0 = arith.constant 0 : i32
    %c0_i32_1 = arith.constant 0 : i32
    return %c0_i32, %c0_i32_0 : i32, i32
  }
  func.func @transform_8(%arg0: i32) -> (i32, i32) {
    %c0_i32 = arith.constant 0 : i32
    %c0_i32_0 = arith.constant 0 : i32
    %c0_i32_1 = arith.constant 0 : i32
    return %c0_i32, %c0_i32_0 : i32, i32
  }
  func.func @transform_9(%arg0: i32) -> (i32, i32) {
    %c0_i32 = arith.constant 0 : i32
    %c0_i32_0 = arith.constant 0 : i32
    %c0_i32_1 = arith.constant 0 : i32
    return %c0_i32, %c0_i32_0 : i32, i32
  }
  func.func @transform_10(%arg0: i32) -> (i32, i32) {
    %c0_i32 = arith.constant 0 : i32
    %c0_i32_0 = arith.constant 0 : i32
    %c0_i32_1 = arith.constant 0 : i32
    return %c0_i32, %c0_i32_0 : i32, i32
  }
  func.func @transform_11(%arg0: i32) -> (i32, i32) {
    %c0_i32 = arith.constant 0 : i32
    %c0_i32_0 = arith.constant 0 : i32
    return %arg0, %c0_i32 : i32, i32
  }
}

module attributes {stable_mosaic.version = 11 : i64} {
  func.func @tictactoe_kernel(%arg0: i32, %arg1: memref<8x9xbf16, #tpu.memory_space<vmem>>, %arg2: memref<9x288xbf16, #tpu.memory_space<vmem>>, %arg3: memref<1x288xf32, #tpu.memory_space<vmem>>, %arg4: memref<288x288xbf16, #tpu.memory_space<vmem>>, %arg5: memref<1x288xf32, #tpu.memory_space<vmem>>, %arg6: memref<288x1024xbf16, #tpu.memory_space<vmem>>, %arg7: memref<1x1024xf32, #tpu.memory_space<vmem>>, %arg8: memref<1024x512xbf16, #tpu.memory_space<vmem>>, %arg9: memref<1x512xf32, #tpu.memory_space<vmem>>, %arg10: memref<512x128xbf16, #tpu.memory_space<vmem>>, %arg11: memref<1x128xf32, #tpu.memory_space<vmem>>, %arg12: memref<8x128xf32, #tpu.memory_space<vmem>>) attributes {dimension_semantics = [#tpu.dimension_semantics<parallel>], iteration_bounds = array<i64: 1>, scalar_prefetch = 0 : i64, scratch_operands = 0 : i64, tpu.core_type = #tpu.core_type<tc>, window_params = [{transform_indices = @transform_0, window_bounds = array<i64: 8, 9>}, {pipeline_mode = #tpu.pipeline_mode<synchronous>, transform_indices = @transform_1, window_bounds = array<i64: 9, 288>}, {pipeline_mode = #tpu.pipeline_mode<synchronous>, transform_indices = @transform_2, window_bounds = array<i64: 1, 288>}, {pipeline_mode = #tpu.pipeline_mode<synchronous>, transform_indices = @transform_3, window_bounds = array<i64: 288, 288>}, {pipeline_mode = #tpu.pipeline_mode<synchronous>, transform_indices = @transform_4, window_bounds = array<i64: 1, 288>}, {pipeline_mode = #tpu.pipeline_mode<synchronous>, transform_indices = @transform_5, window_bounds = array<i64: 288, 1024>}, {pipeline_mode = #tpu.pipeline_mode<synchronous>, transform_indices = @transform_6, window_bounds = array<i64: 1, 1024>}, {pipeline_mode = #tpu.pipeline_mode<synchronous>, transform_indices = @transform_7, window_bounds = array<i64: 1024, 512>}, {pipeline_mode = #tpu.pipeline_mode<synchronous>, transform_indices = @transform_8, window_bounds = array<i64: 1, 512>}, {pipeline_mode = #tpu.pipeline_mode<synchronous>, transform_indices = @transform_9, window_bounds = array<i64: 512, 128>}, {pipeline_mode = #tpu.pipeline_mode<synchronous>, transform_indices = @transform_10, window_bounds = array<i64: 1, 128>}, {transform_indices = @transform_11, window_bounds = array<i64: 8, 128>}]} {
    %c0 = arith.constant 0 : index
    %c0_0 = arith.constant 0 : index
    %0 = vector.load %arg1[%c0, %c0_0] : memref<8x9xbf16, #tpu.memory_space<vmem>>, vector<8x9xbf16>
    %c0_1 = arith.constant 0 : index
    %c0_2 = arith.constant 0 : index
    %1 = vector.load %arg2[%c0_1, %c0_2] : memref<9x288xbf16, #tpu.memory_space<vmem>>, vector<9x288xbf16>
    %cst = arith.constant dense<0.000000e+00> : vector<8x288xf32>
    %2 = tpu.matmul %0, %1, %cst {dimension_numbers = #tpu.dot_dimension_numbers<[1], [0], [0], [1], [0, 0, 1, 1], [], []>} : vector<8x9xbf16>, vector<9x288xbf16>, vector<8x288xf32> -> vector<8x288xf32>
    %c0_3 = arith.constant 0 : index
    %c0_4 = arith.constant 0 : index
    %3 = vector.load %arg3[%c0_3, %c0_4] : memref<1x288xf32, #tpu.memory_space<vmem>>, vector<1x288xf32>
    %4 = vector.broadcast %3 : vector<1x288xf32> to vector<8x288xf32>
    %5 = arith.addf %2, %4 : vector<8x288xf32>
    %cst_5 = arith.constant 0.000000e+00 : f32
    %6 = vector.broadcast %cst_5 : f32 to vector<8x288xf32>
    %7 = arith.maximumf %5, %6 : vector<8x288xf32>
    %8 = arith.truncf %7 : vector<8x288xf32> to vector<8x288xbf16>
    %c0_6 = arith.constant 0 : index
    %c0_7 = arith.constant 0 : index
    %9 = vector.load %arg4[%c0_6, %c0_7] : memref<288x288xbf16, #tpu.memory_space<vmem>>, vector<288x288xbf16>
    %cst_8 = arith.constant dense<0.000000e+00> : vector<8x288xf32>
    %10 = tpu.matmul %8, %9, %cst_8 {dimension_numbers = #tpu.dot_dimension_numbers<[1], [0], [0], [1], [0, 0, 1, 1], [], []>} : vector<8x288xbf16>, vector<288x288xbf16>, vector<8x288xf32> -> vector<8x288xf32>
    %c0_9 = arith.constant 0 : index
    %c0_10 = arith.constant 0 : index
    %11 = vector.load %arg5[%c0_9, %c0_10] : memref<1x288xf32, #tpu.memory_space<vmem>>, vector<1x288xf32>
    %12 = vector.broadcast %11 : vector<1x288xf32> to vector<8x288xf32>
    %13 = arith.addf %10, %12 : vector<8x288xf32>
    %cst_11 = arith.constant 0.000000e+00 : f32
    %14 = vector.broadcast %cst_11 : f32 to vector<8x288xf32>
    %15 = arith.maximumf %13, %14 : vector<8x288xf32>
    %16 = arith.truncf %15 : vector<8x288xf32> to vector<8x288xbf16>
    %c0_12 = arith.constant 0 : index
    %c0_13 = arith.constant 0 : index
    %17 = vector.load %arg6[%c0_12, %c0_13] : memref<288x1024xbf16, #tpu.memory_space<vmem>>, vector<288x1024xbf16>
    %cst_14 = arith.constant dense<0.000000e+00> : vector<8x1024xf32>
    %18 = tpu.matmul %16, %17, %cst_14 {dimension_numbers = #tpu.dot_dimension_numbers<[1], [0], [0], [1], [0, 0, 1, 1], [], []>} : vector<8x288xbf16>, vector<288x1024xbf16>, vector<8x1024xf32> -> vector<8x1024xf32>
    %c0_15 = arith.constant 0 : index
    %c0_16 = arith.constant 0 : index
    %19 = vector.load %arg7[%c0_15, %c0_16] : memref<1x1024xf32, #tpu.memory_space<vmem>>, vector<1x1024xf32>
    %20 = vector.broadcast %19 : vector<1x1024xf32> to vector<8x1024xf32>
    %21 = arith.addf %18, %20 : vector<8x1024xf32>
    %cst_17 = arith.constant 0.000000e+00 : f32
    %22 = vector.broadcast %cst_17 : f32 to vector<8x1024xf32>
    %23 = arith.maximumf %21, %22 : vector<8x1024xf32>
    %24 = arith.truncf %23 : vector<8x1024xf32> to vector<8x1024xbf16>
    %c0_18 = arith.constant 0 : index
    %c0_19 = arith.constant 0 : index
    %25 = vector.load %arg8[%c0_18, %c0_19] : memref<1024x512xbf16, #tpu.memory_space<vmem>>, vector<1024x512xbf16>
    %cst_20 = arith.constant dense<0.000000e+00> : vector<8x512xf32>
    %26 = tpu.matmul %24, %25, %cst_20 {dimension_numbers = #tpu.dot_dimension_numbers<[1], [0], [0], [1], [0, 0, 1, 1], [], []>} : vector<8x1024xbf16>, vector<1024x512xbf16>, vector<8x512xf32> -> vector<8x512xf32>
    %c0_21 = arith.constant 0 : index
    %c0_22 = arith.constant 0 : index
    %27 = vector.load %arg9[%c0_21, %c0_22] : memref<1x512xf32, #tpu.memory_space<vmem>>, vector<1x512xf32>
    %28 = vector.broadcast %27 : vector<1x512xf32> to vector<8x512xf32>
    %29 = arith.addf %26, %28 : vector<8x512xf32>
    %cst_23 = arith.constant 0.000000e+00 : f32
    %30 = vector.broadcast %cst_23 : f32 to vector<8x512xf32>
    %31 = arith.maximumf %29, %30 : vector<8x512xf32>
    %32 = arith.truncf %31 : vector<8x512xf32> to vector<8x512xbf16>
    %c0_24 = arith.constant 0 : index
    %c0_25 = arith.constant 0 : index
    %33 = vector.load %arg10[%c0_24, %c0_25] : memref<512x128xbf16, #tpu.memory_space<vmem>>, vector<512x128xbf16>
    %cst_26 = arith.constant dense<0.000000e+00> : vector<8x128xf32>
    %34 = tpu.matmul %32, %33, %cst_26 {dimension_numbers = #tpu.dot_dimension_numbers<[1], [0], [0], [1], [0, 0, 1, 1], [], []>} : vector<8x512xbf16>, vector<512x128xbf16>, vector<8x128xf32> -> vector<8x128xf32>
    %c0_27 = arith.constant 0 : index
    %c0_28 = arith.constant 0 : index
    %35 = vector.load %arg11[%c0_27, %c0_28] : memref<1x128xf32, #tpu.memory_space<vmem>>, vector<1x128xf32>
    %36 = vector.broadcast %35 : vector<1x128xf32> to vector<8x128xf32>
    %37 = arith.addf %34, %36 : vector<8x128xf32>
    %38 = tpu.iota {dimensions = array<i32: 1>} : vector<8x128xi32>
    %c10_i32 = arith.constant 10 : i32
    %39 = vector.broadcast %c10_i32 : i32 to vector<8x128xi32>
    %40 = arith.cmpi slt, %38, %39 : vector<8x128xi32>
    %cst_29 = arith.constant -1.000000e+30 : f32
    %41 = vector.broadcast %cst_29 : f32 to vector<8x128xf32>
    %42 = arith.select %40, %37, %41 : vector<8x128xi1>, vector<8x128xf32>
    %cst_30 = arith.constant dense<0xFF800000> : vector<8xf32>
    %43 = vector.multi_reduction <maximumf>, %42, %cst_30 [1] : vector<8x128xf32> to vector<8xf32>
    %44 = vector.shape_cast %43 : vector<8xf32> to vector<8x1xf32>
    %45 = vector.broadcast %44 : vector<8x1xf32> to vector<8x128xf32>
    %46 = arith.subf %37, %45 : vector<8x128xf32>
    %cst_31 = arith.constant -1.000000e+30 : f32
    %47 = vector.broadcast %cst_31 : f32 to vector<8x128xf32>
    %48 = arith.select %40, %46, %47 : vector<8x128xi1>, vector<8x128xf32>
    %49 = math.exp %48 : vector<8x128xf32>
    %cst_32 = arith.constant dense<0.000000e+00> : vector<8xf32>
    %50 = vector.multi_reduction <add>, %49, %cst_32 [1] : vector<8x128xf32> to vector<8xf32>
    %51 = vector.shape_cast %50 : vector<8xf32> to vector<8x1xf32>
    %52 = math.log %51 : vector<8x1xf32>
    %53 = vector.broadcast %52 : vector<8x1xf32> to vector<8x128xf32>
    %54 = arith.subf %48, %53 : vector<8x128xf32>
    %c10_i32_33 = arith.constant 10 : i32
    %55 = vector.broadcast %c10_i32_33 : i32 to vector<8x128xi32>
    %56 = arith.cmpi eq, %38, %55 : vector<8x128xi32>
    %cst_34 = arith.constant 0.000000e+00 : f32
    %57 = vector.broadcast %cst_34 : f32 to vector<8x128xf32>
    %58 = arith.select %56, %37, %57 : vector<8x128xi1>, vector<8x128xf32>
    %cst_35 = arith.constant dense<0.000000e+00> : vector<8xf32>
    %59 = vector.multi_reduction <add>, %58, %cst_35 [1] : vector<8x128xf32> to vector<8xf32>
    %60 = vector.shape_cast %59 : vector<8xf32> to vector<8x1xf32>
    %61 = math.tanh %60 : vector<8x1xf32>
    %c10_i32_36 = arith.constant 10 : i32
    %62 = vector.broadcast %c10_i32_36 : i32 to vector<8x128xi32>
    %63 = arith.cmpi eq, %38, %62 : vector<8x128xi32>
    %cst_37 = arith.constant 0.000000e+00 : f32
    %64 = vector.shape_cast %61 : vector<8x1xf32> to vector<8x1xf32>
    %65 = vector.broadcast %64 : vector<8x1xf32> to vector<8x128xf32>
    %66 = vector.broadcast %cst_37 : f32 to vector<8x128xf32>
    %67 = arith.select %63, %65, %66 : vector<8x128xi1>, vector<8x128xf32>
    %68 = arith.select %40, %54, %67 : vector<8x128xi1>, vector<8x128xf32>
    %c0_38 = arith.constant 0 : index
    %c0_39 = arith.constant 0 : index
    %69 = vector.load %arg12[%c0_38, %c0_39] : memref<8x128xf32, #tpu.memory_space<vmem>>, vector<8x128xf32>
    tpu.vector_store %arg12[%c0_38, %c0_39], %68 {strides = array<i32>} : memref<8x128xf32, #tpu.memory_space<vmem>>, vector<8x128xf32>,
    return
  }
  func.func @transform_0(%arg0: i32) -> (i32, i32) {
    %c0_i32 = arith.constant 0 : i32
    %c0_i32_0 = arith.constant 0 : i32
    return %arg0, %c0_i32 : i32, i32
  }
  func.func @transform_1(%arg0: i32) -> (i32, i32) {
    %c0_i32 = arith.constant 0 : i32
    %c0_i32_0 = arith.constant 0 : i32
    %c0_i32_1 = arith.constant 0 : i32
    return %c0_i32, %c0_i32_0 : i32, i32
  }
  func.func @transform_2(%arg0: i32) -> (i32, i32) {
    %c0_i32 = arith.constant 0 : i32
    %c0_i32_0 = arith.constant 0 : i32
    %c0_i32_1 = arith.constant 0 : i32
    return %c0_i32, %c0_i32_0 : i32, i32
  }
  func.func @transform_3(%arg0: i32) -> (i32, i32) {
    %c0_i32 = arith.constant 0 : i32
    %c0_i32_0 = arith.constant 0 : i32
    %c0_i32_1 = arith.constant 0 : i32
    return %c0_i32, %c0_i32_0 : i32, i32
  }
  func.func @transform_4(%arg0: i32) -> (i32, i32) {
    %c0_i32 = arith.constant 0 : i32
    %c0_i32_0 = arith.constant 0 : i32
    %c0_i32_1 = arith.constant 0 : i32
    return %c0_i32, %c0_i32_0 : i32, i32
  }
  func.func @transform_5(%arg0: i32) -> (i32, i32) {
    %c0_i32 = arith.constant 0 : i32
    %c0_i32_0 = arith.constant 0 : i32
    %c0_i32_1 = arith.constant 0 : i32
    return %c0_i32, %c0_i32_0 : i32, i32
  }
  func.func @transform_6(%arg0: i32) -> (i32, i32) {
    %c0_i32 = arith.constant 0 : i32
    %c0_i32_0 = arith.constant 0 : i32
    %c0_i32_1 = arith.constant 0 : i32
    return %c0_i32, %c0_i32_0 : i32, i32
  }
  func.func @transform_7(%arg0: i32) -> (i32, i32) {
    %c0_i32 = arith.constant 0 : i32
    %c0_i32_0 = arith.constant 0 : i32
    %c0_i32_1 = arith.constant 0 : i32
    return %c0_i32, %c0_i32_0 : i32, i32
  }
  func.func @transform_8(%arg0: i32) -> (i32, i32) {
    %c0_i32 = arith.constant 0 : i32
    %c0_i32_0 = arith.constant 0 : i32
    %c0_i32_1 = arith.constant 0 : i32
    return %c0_i32, %c0_i32_0 : i32, i32
  }
  func.func @transform_9(%arg0: i32) -> (i32, i32) {
    %c0_i32 = arith.constant 0 : i32
    %c0_i32_0 = arith.constant 0 : i32
    %c0_i32_1 = arith.constant 0 : i32
    return %c0_i32, %c0_i32_0 : i32, i32
  }
  func.func @transform_10(%arg0: i32) -> (i32, i32) {
    %c0_i32 = arith.constant 0 : i32
    %c0_i32_0 = arith.constant 0 : i32
    %c0_i32_1 = arith.constant 0 : i32
    return %c0_i32, %c0_i32_0 : i32, i32
  }
  func.func @transform_11(%arg0: i32) -> (i32, i32) {
    %c0_i32 = arith.constant 0 : i32
    %c0_i32_0 = arith.constant 0 : i32
    return %arg0, %c0_i32 : i32, i32
  }
}

</mosaic_0001>

<llo_original>
// kernel: tpu_custom_call.1
$region0: #{tpu_custom_call.1}
  #allocation0 [shape = 'u32[]', space=smem, size = 0x4, offset = 0x4, fixed_abs, tag = 'smem constant byte address 0x4 - core index']
  #allocation1 [shape = 'u32[144,128]{1,0:T(1,128)}', space=vmem, size = 0x12000, scoped, tag = 'internal scratch']
  %s0 = inlined_call_operand.hbm [shape: bf16[8,9], index: 0, kind: input, shape index: {}]
  %s1 = inlined_call_operand.hbm [shape: bf16[9,288], index: 1, kind: input, shape index: {}]
  %s2 = inlined_call_operand.vmem [shape: f32[1,288], index: 2, kind: input, shape index: {}]
  %s3 = inlined_call_operand.hbm [shape: bf16[288,288], index: 3, kind: input, shape index: {}]
  %s4 = inlined_call_operand.hbm [shape: f32[1,288], index: 4, kind: input, shape index: {}]
  %s5 = inlined_call_operand.hbm [shape: bf16[288,1024], index: 5, kind: input, shape index: {}]
  %s6 = inlined_call_operand.vmem [shape: f32[1,1024], index: 6, kind: input, shape index: {}]
  %s7 = inlined_call_operand.hbm [shape: bf16[1024,512], index: 7, kind: input, shape index: {}]
  %s8 = inlined_call_operand.vmem [shape: f32[1,512], index: 8, kind: input, shape index: {}]
  %s9 = inlined_call_operand.hbm [shape: bf16[512,128], index: 9, kind: input, shape index: {}]
  %s10 = inlined_call_operand.vmem [shape: f32[1,128], index: 10, kind: input, shape index: {}]
  %s11 = inlined_call_operand.hbm [shape: f32[8,128], index: 11, kind: output, shape index: {}]
  %s12 = sld [smem:[#allocation0]]
  $region82: #{tpu_custom_call.1} parent=0
    _
  %s14 = ssub.s32 1, %s12
  %s15 = scalar_select 0, %s14, %s12
  $region1: #{tpu_custom_call.1} parent=0
    #allocation2 [shape = 'u8[2048]{0}', space=vmem, size = 0x800, scoped, tag = 'input window, operand 0, single buffered']
    #allocation3 [shape = 's32[1]{0}', space=sflag, size = 0x4, scoped, tag = 'scoped memory for tpu_custom_call.1']
    #allocation4 [shape = 's32[1]{0}', space=sflag, size = 0x4, scoped, tag = 'scoped memory for tpu_custom_call.1']
    #allocation5 [shape = 'u8[12288]{0}', space=vmem, size = 0x3000, scoped, tag = 'input window, operand 1, single buffered']
    #allocation6 [shape = 's32[1]{0}', space=sflag, size = 0x4, scoped, tag = 'scoped memory for tpu_custom_call.1']
    #allocation7 [shape = 'u8[221184]{0}', space=vmem, size = 0x36000, scoped, tag = 'input window, operand 3, single buffered']
    #allocation8 [shape = 'u8[1536]{0}', space=vmem, size = 0x800, scoped, tag = 'input window, operand 4, single buffered']
    #allocation9 [shape = 's32[1]{0}', space=sflag, size = 0x4, scoped, tag = 'scoped memory for tpu_custom_call.1']
    #allocation10 [shape = 'u8[589824]{0}', space=vmem, size = 0x90000, scoped, tag = 'input window, operand 5, single buffered']
    #allocation11 [shape = 'u8[1048576]{0}', space=vmem, size = 0x100000, scoped, tag = 'input window, operand 7, single buffered']
    #allocation12 [shape = 's32[1]{0}', space=sflag, size = 0x4, scoped, tag = 'scoped memory for tpu_custom_call.1']
    #allocation13 [shape = 'u8[131072]{0}', space=vmem, size = 0x20000, scoped, tag = 'input window, operand 9, single buffered']
    #allocation14 [shape = 'u8[4096]{0}', space=vmem, size = 0x1000, scoped, tag = 'output window, operand 0, single buffered']
    %16 = vsyncpa [#allocation3], 0
    %17 = vsyncpa [#allocation6], 0
    %18 = vsyncpa [#allocation9], 0
    %19 = vsyncpa [#allocation12], 0
    %20 = vsyncpa [#allocation4], 0
    // Predicated region
    $region2: #{tpu_custom_call.1} parent=1 // pred_check
      _
    $region3: #{tpu_custom_call.1} parent=1 // pred_check_branch
      %22 = sbr.rel (0) target = $region5
    $region4: #{tpu_custom_call.1} parent=1 // pred_region
      %s24 = ssub.s32 64, 64
      %25 = vsyncadd [#allocation3], %s24
      %s27 = sshll.u32 [#allocation2], 4
      %s28 = int_to_ptr.vmem [resolvable:$true] %s27
      %30 = dma.hbm_to_vmem [thread:$0]  %s0, 64, %s28, [#allocation3]
    $region5: #{tpu_custom_call.1} parent=1 // pred_fallthru
      _
    // Predicated region
    $region6: #{tpu_custom_call.1} parent=1 // pred_check
      _
    $region7: #{tpu_custom_call.1} parent=1 // pred_check_branch
      %32 = sbr.rel (0) target = $region9
    $region8: #{tpu_custom_call.1} parent=1 // pred_region
      %s34 = ssub.s32 384, 384
      %35 = vsyncadd [#allocation6], %s34
      %s36 = sshll.u32 [#allocation5], 4
      %s37 = int_to_ptr.vmem [resolvable:$true] %s36
      %42 = dma.hbm_to_vmem [thread:$0]  %s1, 384, %s37, [#allocation6], 192, 192, 12
    $region9: #{tpu_custom_call.1} parent=1 // pred_fallthru
      _
    // Predicated region
    $region10: #{tpu_custom_call.1} parent=1 // pred_check
      _
    $region11: #{tpu_custom_call.1} parent=1 // pred_check_branch
      %44 = sbr.rel (0) target = $region13
    $region12: #{tpu_custom_call.1} parent=1 // pred_region
      _
    $region13: #{tpu_custom_call.1} parent=1 // pred_fallthru
      _
    // Predicated region
    $region14: #{tpu_custom_call.1} parent=1 // pred_check
      _
    $region15: #{tpu_custom_call.1} parent=1 // pred_check_branch
      %46 = sbr.rel (0) target = $region17
    $region16: #{tpu_custom_call.1} parent=1 // pred_region
      %s48 = ssub.s32 6912, 6912
      %49 = vsyncadd [#allocation6], %s48
      %s50 = sshll.u32 [#allocation7], 4
      %s51 = int_to_ptr.vmem [resolvable:$true] %s50
      %56 = dma.hbm_to_vmem [thread:$0]  %s3, 6912, %s51, [#allocation6], 192, 192, 12
    $region17: #{tpu_custom_call.1} parent=1 // pred_fallthru
      _
    // Predicated region
    $region18: #{tpu_custom_call.1} parent=1 // pred_check
      _
    $region19: #{tpu_custom_call.1} parent=1 // pred_check_branch
      %58 = sbr.rel (0) target = $region21
    $region20: #{tpu_custom_call.1} parent=1 // pred_region
      %s60 = ssub.s32 48, 48
      %61 = vsyncadd [#allocation9], %s60
      %s63 = sshll.u32 [#allocation8], 4
      %s64 = int_to_ptr.vmem [resolvable:$true] %s63
      %66 = dma.hbm_to_vmem [thread:$0]  %s4, 48, %s64, [#allocation9]
    $region21: #{tpu_custom_call.1} parent=1 // pred_fallthru
      _
    // Predicated region
    $region22: #{tpu_custom_call.1} parent=1 // pred_check
      _
    $region23: #{tpu_custom_call.1} parent=1 // pred_check_branch
      %68 = sbr.rel (0) target = $region25
    $region24: #{tpu_custom_call.1} parent=1 // pred_region
      %s70 = ssub.s32 18432, 18432
      %71 = vsyncadd [#allocation9], %s70
      %s72 = sshll.u32 [#allocation10], 4
      %s73 = int_to_ptr.vmem [resolvable:$true] %s72
      %78 = dma.hbm_to_vmem [thread:$0]  %s5, 18432, %s73, [#allocation9], 512, 512, 32
    $region25: #{tpu_custom_call.1} parent=1 // pred_fallthru
      _
    // Predicated region
    $region26: #{tpu_custom_call.1} parent=1 // pred_check
      _
    $region27: #{tpu_custom_call.1} parent=1 // pred_check_branch
      %80 = sbr.rel (0) target = $region29
    $region28: #{tpu_custom_call.1} parent=1 // pred_region
      _
    $region29: #{tpu_custom_call.1} parent=1 // pred_fallthru
      _
    // Predicated region
    $region30: #{tpu_custom_call.1} parent=1 // pred_check
      _
    $region31: #{tpu_custom_call.1} parent=1 // pred_check_branch
      %82 = sbr.rel (0) target = $region33
    $region32: #{tpu_custom_call.1} parent=1 // pred_region
      %s84 = ssub.s32 32768, 32768
      %85 = vsyncadd [#allocation12], %s84
      %s86 = sshll.u32 [#allocation11], 4
      %s87 = int_to_ptr.vmem [resolvable:$true] %s86
      %92 = dma.hbm_to_vmem [thread:$0]  %s7, 32768, %s87, [#allocation12], 256, 256, 16
    $region33: #{tpu_custom_call.1} parent=1 // pred_fallthru
      _
    // Predicated region
    $region34: #{tpu_custom_call.1} parent=1 // pred_check
      _
    $region35: #{tpu_custom_call.1} parent=1 // pred_check_branch
      %94 = sbr.rel (0) target = $region37
    $region36: #{tpu_custom_call.1} parent=1 // pred_region
      _
    $region37: #{tpu_custom_call.1} parent=1 // pred_fallthru
      _
    // Predicated region
    $region38: #{tpu_custom_call.1} parent=1 // pred_check
      _
    $region39: #{tpu_custom_call.1} parent=1 // pred_check_branch
      %96 = sbr.rel (0) target = $region41
    $region40: #{tpu_custom_call.1} parent=1 // pred_region
      %s98 = ssub.s32 4096, 4096
      %99 = vsyncadd [#allocation12], %s98
      %s100 = sshll.u32 [#allocation13], 4
      %s101 = int_to_ptr.vmem [resolvable:$true] %s100
      %106 = dma.hbm_to_vmem [thread:$0]  %s9, 4096, %s101, [#allocation12], 64, 64, 4
    $region41: #{tpu_custom_call.1} parent=1 // pred_fallthru
      _
    // Predicated region
    $region42: #{tpu_custom_call.1} parent=1 // pred_check
      _
    $region43: #{tpu_custom_call.1} parent=1 // pred_check_branch
      %108 = sbr.rel (0) target = $region45
    $region44: #{tpu_custom_call.1} parent=1 // pred_region
      _
    $region45: #{tpu_custom_call.1} parent=1 // pred_fallthru
      _
    // Predicated region
    $region46: #{tpu_custom_call.1} parent=1 // pred_check
      _
    $region47: #{tpu_custom_call.1} parent=1 // pred_check_branch
      %110 = sbr.rel (0) target = $region49
    $region48: #{tpu_custom_call.1} parent=1 // pred_region
      %111 = dma.done [#allocation3], 64
    $region49: #{tpu_custom_call.1} parent=1 // pred_fallthru
      _
    // Predicated region
    $region50: #{tpu_custom_call.1} parent=1 // pred_check
      _
    $region51: #{tpu_custom_call.1} parent=1 // pred_check_branch
      %113 = sbr.rel (0) target = $region53
    $region52: #{tpu_custom_call.1} parent=1 // pred_region
      %114 = dma.done [#allocation6], 384
    $region53: #{tpu_custom_call.1} parent=1 // pred_fallthru
      _
    // Predicated region
    $region54: #{tpu_custom_call.1} parent=1 // pred_check
      _
    $region55: #{tpu_custom_call.1} parent=1 // pred_check_branch
      %116 = sbr.rel (0) target = $region57
    $region56: #{tpu_custom_call.1} parent=1 // pred_region
      %117 = dma.done [#allocation6], 6912
    $region57: #{tpu_custom_call.1} parent=1 // pred_fallthru
      _
    // Predicated region
    $region58: #{tpu_custom_call.1} parent=1 // pred_check
      _
    $region59: #{tpu_custom_call.1} parent=1 // pred_check_branch
      %119 = sbr.rel (0) target = $region61
    $region60: #{tpu_custom_call.1} parent=1 // pred_region
      %120 = dma.done [#allocation9], 48
    $region61: #{tpu_custom_call.1} parent=1 // pred_fallthru
      _
    // Predicated region
    $region62: #{tpu_custom_call.1} parent=1 // pred_check
      _
    $region63: #{tpu_custom_call.1} parent=1 // pred_check_branch
      %122 = sbr.rel (0) target = $region65
    $region64: #{tpu_custom_call.1} parent=1 // pred_region
      %123 = dma.done [#allocation9], 18432
    $region65: #{tpu_custom_call.1} parent=1 // pred_fallthru
      _
    // Predicated region
    $region66: #{tpu_custom_call.1} parent=1 // pred_check
      _
    $region67: #{tpu_custom_call.1} parent=1 // pred_check_branch
      %125 = sbr.rel (0) target = $region69
    $region68: #{tpu_custom_call.1} parent=1 // pred_region
      %126 = dma.done [#allocation12], 32768
    $region69: #{tpu_custom_call.1} parent=1 // pred_fallthru
      _
    // Predicated region
    $region70: #{tpu_custom_call.1} parent=1 // pred_check
      _
    $region71: #{tpu_custom_call.1} parent=1 // pred_check_branch
      %128 = sbr.rel (0) target = $region73
    $region72: #{tpu_custom_call.1} parent=1 // pred_region
      %129 = dma.done [#allocation12], 4096
    $region73: #{tpu_custom_call.1} parent=1 // pred_fallthru
      _
    %v131 = vld [vmem:[#allocation2] sm:$0xf]
    %v132 = vld [vmem:[#allocation5] sm:$0xff]
    %v133 = vld [vmem:[#allocation5 + $0x8] sm:$0xf]
    %v134 = vld [vmem:[#allocation5 + $0xc] sm:$0x11]
    %v135 = vld [vmem:[#allocation5 + $0x14] sm:$0x1]
    %v136 = vld [vmem:[%s2] sm:$0x7]
    %v138 = vlaneseq
    %v139 = vshrl.u32 %v138, 7
    %v140 = vsub.s32 0, %v139
    %v141 = vrot.slane %v136, %v140
    %v142 = vlaneseq
    %v143 = vshrl.u32 %v142, 7
    %v144 = vsub.s32 1, %v143
    %v145 = vrot.slane %v136, %v144
    %v146 = vlaneseq
    %v147 = vshrl.u32 %v146, 7
    %v148 = vsub.s32 2, %v147
    %v149 = vrot.slane %v136, %v148
    %v157 = vunpack.c.l.b16 %v132
    %v158 = vunpack.c.h.b16 %v132
    %v159 = vunpack.c.l.b16 %v133
    %v160 = vunpack.c.l.b16 %v134
    %v161 = vunpack.c.h.b16 %v134
    %v162 = vunpack.c.l.b16 %v135
    %v163 = vpack.c.b16 %v160, %v157
    %v164 = vpack.c.b16 %v161, %v158
    %v165 = vpack.c.b16 %v162, %v159
    %vm166 = vcmask 72704
    %v168 = vsel %vm166, %v131, 0
    %vm170 = vcmask 1043456
    %vm171 = vcmask 1044480
    %v172 = vsel %vm170, 4294967295, 65535
    %v173 = vsel %vm171, %v172, 0
    %v175 = vand.u32 %v163, %v173
    %v178 = vand.u32 %v164, %v173
    %v181 = vand.u32 %v165, %v173
    %183 = vmatprep.subr.bf16.mxu0 %v178
    %184 = vmatpush1.bf16.msra.mxu0 %v175
    %185 = vmatprep.subr.bf16.mxu0 0
    %186 = vmatpush1.bf16.msra.mxu0 0
    %187 = vmatprep.subr.bf16.mxu0 0
    %188 = vmatpush1.bf16.msra.mxu0 0
    %189 = vmatprep.subr.bf16.mxu0 0
    %190 = vmatpush1.bf16.msra.mxu0 0
    %191 = vmatprep.subr.bf16.mxu0 0
    %192 = vmatpush1.bf16.msra.mxu0 0
    %193 = vmatprep.subr.bf16.mxu0 0
    %194 = vmatpush1.bf16.msra.mxu0 0
    %195 = vmatprep.subr.bf16.mxu0 0
    %196 = vmatpush1.bf16.msra.mxu0 0
    %197 = vmatprep.subr.bf16.mxu0 0
    %198 = vmatpush1.bf16.msra.mxu0 0
    %199 = vmatprep.subr.bf16.mxu0 0
    %200 = vmatpush1.bf16.msra.mxu0 0
    %201 = vmatprep.subr.bf16.mxu0 0
    %202 = vmatpush1.bf16.msra.mxu0 0
    %203 = vmatprep.subr.bf16.mxu0 0
    %204 = vmatpush1.bf16.msra.mxu0 0
    %205 = vmatprep.subr.bf16.mxu0 0
    %206 = vmatpush1.bf16.msra.mxu0 0
    %207 = vmatprep.subr.bf16.mxu0 0
    %208 = vmatpush1.bf16.msra.mxu0 0
    %209 = vmatprep.subr.bf16.mxu0 0
    %210 = vmatpush1.bf16.msra.mxu0 0
    %211 = vmatprep.subr.bf16.mxu0 0
    %212 = vmatpush1.bf16.msra.mxu0 0
    %213 = vmatprep.subr.bf16.mxu0 0
    %214 = vmatpush1.bf16.msra.mxu0 0
    %215 = vmatprep.mubr.bf16.mxu0 0
    %216 = vmatmul.mubr.bf16.gmra.mrb[0].mxu0 %v168
    %v217 = vpop.f32.mrb[0].mxu0
    %v218 = vadd.f32 %v141, %v217
    %v219 = vpop.f32.mrb[0].mxu0
    %v220 = vadd.f32 %v145, %v219
    %v221 = vpop.f32.mrb[0].mxu0
    %v222 = vpop.f32.mrb[0].mxu0
    %223 = vdwg.mxu0
    %224 = vmatprep.subr.bf16.mxu0 0
    %225 = vmatpush1.bf16.msra.mxu0 %v181
    %226 = vmatprep.subr.bf16.mxu0 0
    %227 = vmatpush1.bf16.msra.mxu0 0
    %228 = vmatprep.subr.bf16.mxu0 0
    %229 = vmatpush1.bf16.msra.mxu0 0
    %230 = vmatprep.subr.bf16.mxu0 0
    %231 = vmatpush1.bf16.msra.mxu0 0
    %232 = vmatprep.subr.bf16.mxu0 0
    %233 = vmatpush1.bf16.msra.mxu0 0
    %234 = vmatprep.subr.bf16.mxu0 0
    %235 = vmatpush1.bf16.msra.mxu0 0
    %236 = vmatprep.subr.bf16.mxu0 0
    %237 = vmatpush1.bf16.msra.mxu0 0
    %238 = vmatprep.subr.bf16.mxu0 0
    %239 = vmatpush1.bf16.msra.mxu0 0
    %240 = vmatprep.subr.bf16.mxu0 0
    %241 = vmatpush1.bf16.msra.mxu0 0
    %242 = vmatprep.subr.bf16.mxu0 0
    %243 = vmatpush1.bf16.msra.mxu0 0
    %244 = vmatprep.subr.bf16.mxu0 0
    %245 = vmatpush1.bf16.msra.mxu0 0
    %246 = vmatprep.subr.bf16.mxu0 0
    %247 = vmatpush1.bf16.msra.mxu0 0
    %248 = vmatprep.subr.bf16.mxu0 0
    %249 = vmatpush1.bf16.msra.mxu0 0
    %250 = vmatprep.subr.bf16.mxu0 0
    %251 = vmatpush1.bf16.msra.mxu0 0
    %252 = vmatprep.subr.bf16.mxu0 0
    %253 = vmatpush1.bf16.msra.mxu0 0
    %254 = vmatprep.subr.bf16.mxu0 0
    %255 = vmatpush1.bf16.msra.mxu0 0
    %256 = vmatprep.mubr.bf16.mxu0 0
    %257 = vmatmul.mubr.bf16.gmra.mrb[0].mxu0 %v168
    %v258 = vpop.f32.mrb[0].mxu0
    %v259 = vadd.f32 %v149, %v258
    %v260 = vpop.f32.mrb[0].mxu0
    %v261 = vpop.f32.mrb[0].mxu0
    %v262 = vpop.f32.mrb[0].mxu0
    %263 = vdwg.mxu0
    %v264 = vmax.f32 %v218, 0.0
    %v265 = vmax.f32 %v220, 0.0
    %v266 = vmax.f32 %v259, 0.0
    %v267 = vpack.c.bf16 %v264, %v264
    %v268 = vpack.c.bf16 %v265, %v265
    %v269 = vpack.c.bf16 %v266, %v266
    %v270 = vld [vmem:[#allocation7] sm:$0xff]
    %v271 = vld [vmem:[#allocation7 + $0x8] sm:$0xf]
    %v272 = vld [vmem:[#allocation7 + $0xc] sm:$0xff]
    %v273 = vld [vmem:[#allocation7 + $0x14] sm:$0xf]
    %v274 = vld [vmem:[#allocation7 + $0x18] sm:$0xff]
    %v275 = vld [vmem:[#allocation7 + $0x20] sm:$0xf]
    %v276 = vld [vmem:[#allocation7 + $0x24] sm:$0xff]
    %v277 = vld [vmem:[#allocation7 + $0x2c] sm:$0xf]
    %v278 = vld [vmem:[#allocation7 + $0x30] sm:$0xff]
    %v279 = vld [vmem:[#allocation7 + $0x38] sm:$0xf]
    %v280 = vld [vmem:[#allocation7 + $0x3c] sm:$0xff]
    %v281 = vld [vmem:[#allocation7 + $0x44] sm:$0xf]
    %v282 = vld [vmem:[#allocation7 + $0x48] sm:$0xff]
    %v283 = vld [vmem:[#allocation7 + $0x50] sm:$0xf]
    %v284 = vld [vmem:[#allocation7 + $0x54] sm:$0xff]
    %v285 = vld [vmem:[#allocation7 + $0x5c] sm:$0xf]
    %v286 = vld [vmem:[#allocation7 + $0x60] sm:$0xff]
    %v287 = vld [vmem:[#allocation7 + $0x68] sm:$0xf]
    %v288 = vld [vmem:[#allocation7 + $0x6c] sm:$0xff]
    %v289 = vld [vmem:[#allocation7 + $0x74] sm:$0xf]
    %v290 = vld [vmem:[#allocation7 + $0x78] sm:$0xff]
    %v291 = vld [vmem:[#allocation7 + $0x80] sm:$0xf]
    %v292 = vld [vmem:[#allocation7 + $0x84] sm:$0xff]
    %v293 = vld [vmem:[#allocation7 + $0x8c] sm:$0xf]
    %v294 = vld [vmem:[#allocation7 + $0x90] sm:$0xff]
    %v295 = vld [vmem:[#allocation7 + $0x98] sm:$0xf]
    %v296 = vld [vmem:[#allocation7 + $0x9c] sm:$0xff]
    %v297 = vld [vmem:[#allocation7 + $0xa4] sm:$0xf]
    %v298 = vld [vmem:[#allocation7 + $0xa8] sm:$0xff]
    %v299 = vld [vmem:[#allocation7 + $0xb0] sm:$0xf]
    %v300 = vld [vmem:[#allocation7 + $0xb4] sm:$0xff]
    %v301 = vld [vmem:[#allocation7 + $0xbc] sm:$0xf]
    %v302 = vld [vmem:[#allocation7 + $0xc0] sm:$0xff]
    %v303 = vld [vmem:[#allocation7 + $0xc8] sm:$0xf]
    %v304 = vld [vmem:[#allocation7 + $0xcc] sm:$0xff]
    %v305 = vld [vmem:[#allocation7 + $0xd4] sm:$0xf]
    %v306 = vld [vmem:[#allocation7 + $0xd8] sm:$0xff]
    %v307 = vld [vmem:[#allocation7 + $0xe0] sm:$0xf]
    %v308 = vld [vmem:[#allocation7 + $0xe4] sm:$0xff]
    %v309 = vld [vmem:[#allocation7 + $0xec] sm:$0xf]
    %v310 = vld [vmem:[#allocation7 + $0xf0] sm:$0xff]
    %v311 = vld [vmem:[#allocation7 + $0xf8] sm:$0xf]
    %v312 = vld [vmem:[#allocation7 + $0xfc] sm:$0xff]
    %v313 = vld [vmem:[#allocation7 + $0x104] sm:$0xf]
    %v314 = vld [vmem:[#allocation7 + $0x108] sm:$0xff]
    %v315 = vld [vmem:[#allocation7 + $0x110] sm:$0xf]
    %v316 = vld [vmem:[#allocation7 + $0x114] sm:$0xff]
    %v317 = vld [vmem:[#allocation7 + $0x11c] sm:$0xf]
    %v318 = vld [vmem:[#allocation7 + $0x120] sm:$0xff]
    %v319 = vld [vmem:[#allocation7 + $0x128] sm:$0xf]
    %v320 = vld [vmem:[#allocation7 + $0x12c] sm:$0xff]
    %v321 = vld [vmem:[#allocation7 + $0x134] sm:$0xf]
    %v322 = vld [vmem:[#allocation7 + $0x138] sm:$0xff]
    %v323 = vld [vmem:[#allocation7 + $0x140] sm:$0xf]
    %v324 = vld [vmem:[#allocation7 + $0x144] sm:$0xff]
    %v325 = vld [vmem:[#allocation7 + $0x14c] sm:$0xf]
    %v326 = vld [vmem:[#allocation7 + $0x150] sm:$0xff]
    %v327 = vld [vmem:[#allocation7 + $0x158] sm:$0xf]
    %v328 = vld [vmem:[#allocation7 + $0x15c] sm:$0xff]
    %v329 = vld [vmem:[#allocation7 + $0x164] sm:$0xf]
    %v330 = vld [vmem:[#allocation7 + $0x168] sm:$0xff]
    %v331 = vld [vmem:[#allocation7 + $0x170] sm:$0xf]
    %v332 = vld [vmem:[#allocation7 + $0x174] sm:$0xff]
    %v333 = vld [vmem:[#allocation7 + $0x17c] sm:$0xf]
    %v334 = vld [vmem:[#allocation7 + $0x180] sm:$0xff]
    %v335 = vld [vmem:[#allocation7 + $0x188] sm:$0xf]
    %v336 = vld [vmem:[#allocation7 + $0x18c] sm:$0xff]
    %v337 = vld [vmem:[#allocation7 + $0x194] sm:$0xf]
    %v338 = vld [vmem:[#allocation7 + $0x198] sm:$0xff]
    %v339 = vld [vmem:[#allocation7 + $0x1a0] sm:$0xf]
    %v340 = vld [vmem:[#allocation7 + $0x1a4] sm:$0xff]
    %v341 = vld [vmem:[#allocation7 + $0x1ac] sm:$0xf]
    %v342 = vld [vmem:[#allocation8] sm:$0x7]
    %v344 = vlaneseq
    %v345 = vshrl.u32 %v344, 7
    %v346 = vsub.s32 0, %v345
    %v347 = vrot.slane %v342, %v346
    %v348 = vlaneseq
    %v349 = vshrl.u32 %v348, 7
    %v350 = vsub.s32 1, %v349
    %v351 = vrot.slane %v342, %v350
    %v352 = vlaneseq
    %v353 = vshrl.u32 %v352, 7
    %v354 = vsub.s32 2, %v353
    %v355 = vrot.slane %v342, %v354
    %v431 = vunpack.c.l.b16 %v270
    %v432 = vunpack.c.h.b16 %v270
    %v433 = vunpack.c.l.b16 %v271
    %v434 = vunpack.c.l.b16 %v272
    %v435 = vunpack.c.h.b16 %v272
    %v436 = vunpack.c.l.b16 %v273
    %v437 = vunpack.c.l.b16 %v274
    %v438 = vunpack.c.h.b16 %v274
    %v439 = vunpack.c.l.b16 %v275
    %v440 = vunpack.c.l.b16 %v276
    %v441 = vunpack.c.h.b16 %v276
    %v442 = vunpack.c.l.b16 %v277
    %v443 = vunpack.c.l.b16 %v278
    %v444 = vunpack.c.h.b16 %v278
    %v445 = vunpack.c.l.b16 %v279
    %v446 = vunpack.c.l.b16 %v280
    %v447 = vunpack.c.h.b16 %v280
    %v448 = vunpack.c.l.b16 %v281
    %v449 = vunpack.c.l.b16 %v282
    %v450 = vunpack.c.h.b16 %v282
    %v451 = vunpack.c.l.b16 %v283
    %v452 = vunpack.c.l.b16 %v284
    %v453 = vunpack.c.h.b16 %v284
    %v454 = vunpack.c.l.b16 %v285
    %v455 = vunpack.c.l.b16 %v286
    %v456 = vunpack.c.h.b16 %v286
    %v457 = vunpack.c.l.b16 %v287
    %v458 = vunpack.c.l.b16 %v288
    %v459 = vunpack.c.h.b16 %v288
    %v460 = vunpack.c.l.b16 %v289
    %v461 = vunpack.c.l.b16 %v290
    %v462 = vunpack.c.h.b16 %v290
    %v463 = vunpack.c.l.b16 %v291
    %v464 = vunpack.c.l.b16 %v292
    %v465 = vunpack.c.h.b16 %v292
    %v466 = vunpack.c.l.b16 %v293
    %v467 = vunpack.c.l.b16 %v294
    %v468 = vunpack.c.h.b16 %v294
    %v469 = vunpack.c.l.b16 %v295
    %v470 = vunpack.c.l.b16 %v296
    %v471 = vunpack.c.h.b16 %v296
    %v472 = vunpack.c.l.b16 %v297
    %v473 = vunpack.c.l.b16 %v298
    %v474 = vunpack.c.h.b16 %v298
    %v475 = vunpack.c.l.b16 %v299
    %v476 = vunpack.c.l.b16 %v300
    %v477 = vunpack.c.h.b16 %v300
    %v478 = vunpack.c.l.b16 %v301
    %v479 = vunpack.c.l.b16 %v302
    %v480 = vunpack.c.h.b16 %v302
    %v481 = vunpack.c.l.b16 %v303
    %v482 = vunpack.c.l.b16 %v304
    %v483 = vunpack.c.h.b16 %v304
    %v484 = vunpack.c.l.b16 %v305
    %v485 = vunpack.c.l.b16 %v306
    %v486 = vunpack.c.h.b16 %v306
    %v487 = vunpack.c.l.b16 %v307
    %v488 = vunpack.c.l.b16 %v308
    %v489 = vunpack.c.h.b16 %v308
    %v490 = vunpack.c.l.b16 %v309
    %v491 = vunpack.c.l.b16 %v310
    %v492 = vunpack.c.h.b16 %v310
    %v493 = vunpack.c.l.b16 %v311
    %v494 = vunpack.c.l.b16 %v312
    %v495 = vunpack.c.h.b16 %v312
    %v496 = vunpack.c.l.b16 %v313
    %v497 = vunpack.c.l.b16 %v314
    %v498 = vunpack.c.h.b16 %v314
    %v499 = vunpack.c.l.b16 %v315
    %v500 = vunpack.c.l.b16 %v316
    %v501 = vunpack.c.h.b16 %v316
    %v502 = vunpack.c.l.b16 %v317
    %v503 = vunpack.c.l.b16 %v318
    %v504 = vunpack.c.h.b16 %v318
    %v505 = vunpack.c.l.b16 %v319
    %v506 = vunpack.c.l.b16 %v320
    %v507 = vunpack.c.h.b16 %v320
    %v508 = vunpack.c.l.b16 %v321
    %v509 = vunpack.c.l.b16 %v322
    %v510 = vunpack.c.h.b16 %v322
    %v511 = vunpack.c.l.b16 %v323
    %v512 = vunpack.c.l.b16 %v324
    %v513 = vunpack.c.h.b16 %v324
    %v514 = vunpack.c.l.b16 %v325
    %v515 = vunpack.c.l.b16 %v326
    %v516 = vunpack.c.h.b16 %v326
    %v517 = vunpack.c.l.b16 %v327
    %v518 = vunpack.c.l.b16 %v328
    %v519 = vunpack.c.h.b16 %v328
    %v520 = vunpack.c.l.b16 %v329
    %v521 = vunpack.c.l.b16 %v330
    %v522 = vunpack.c.h.b16 %v330
    %v523 = vunpack.c.l.b16 %v331
    %v524 = vunpack.c.l.b16 %v332
    %v525 = vunpack.c.h.b16 %v332
    %v526 = vunpack.c.l.b16 %v333
    %v527 = vunpack.c.l.b16 %v334
    %v528 = vunpack.c.h.b16 %v334
    %v529 = vunpack.c.l.b16 %v335
    %v530 = vunpack.c.l.b16 %v336
    %v531 = vunpack.c.h.b16 %v336
    %v532 = vunpack.c.l.b16 %v337
    %v533 = vunpack.c.l.b16 %v338
    %v534 = vunpack.c.h.b16 %v338
    %v535 = vunpack.c.l.b16 %v339
    %v536 = vunpack.c.l.b16 %v340
    %v537 = vunpack.c.h.b16 %v340
    %v538 = vunpack.c.l.b16 %v341
    %v539 = vpack.c.b16 %v434, %v431
    %v540 = vpack.c.b16 %v435, %v432
    %v541 = vpack.c.b16 %v436, %v433
    %v542 = vpack.c.b16 %v440, %v437
    %v543 = vpack.c.b16 %v441, %v438
    %v544 = vpack.c.b16 %v442, %v439
    %v545 = vpack.c.b16 %v446, %v443
    %v546 = vpack.c.b16 %v447, %v444
    %v547 = vpack.c.b16 %v448, %v445
    %v548 = vpack.c.b16 %v452, %v449
    %v549 = vpack.c.b16 %v453, %v450
    %v550 = vpack.c.b16 %v454, %v451
    %v551 = vpack.c.b16 %v458, %v455
    %v552 = vpack.c.b16 %v459, %v456
    %v553 = vpack.c.b16 %v460, %v457
    %v554 = vpack.c.b16 %v464, %v461
    %v555 = vpack.c.b16 %v465, %v462
    %v556 = vpack.c.b16 %v466, %v463
    %v557 = vpack.c.b16 %v470, %v467
    %v558 = vpack.c.b16 %v471, %v468
    %v559 = vpack.c.b16 %v472, %v469
    %v560 = vpack.c.b16 %v476, %v473
    %v561 = vpack.c.b16 %v477, %v474
    %v562 = vpack.c.b16 %v478, %v475
    %v563 = vpack.c.b16 %v482, %v479
    %v564 = vpack.c.b16 %v483, %v480
    %v565 = vpack.c.b16 %v484, %v481
    %v566 = vpack.c.b16 %v488, %v485
    %v567 = vpack.c.b16 %v489, %v486
    %v568 = vpack.c.b16 %v490, %v487
    %v569 = vpack.c.b16 %v494, %v491
    %v570 = vpack.c.b16 %v495, %v492
    %v571 = vpack.c.b16 %v496, %v493
    %v572 = vpack.c.b16 %v500, %v497
    %v573 = vpack.c.b16 %v501, %v498
    %v574 = vpack.c.b16 %v502, %v499
    %v575 = vpack.c.b16 %v506, %v503
    %v576 = vpack.c.b16 %v507, %v504
    %v577 = vpack.c.b16 %v508, %v505
    %v578 = vpack.c.b16 %v512, %v509
    %v579 = vpack.c.b16 %v513, %v510
    %v580 = vpack.c.b16 %v514, %v511
    %v581 = vpack.c.b16 %v518, %v515
    %v582 = vpack.c.b16 %v519, %v516
    %v583 = vpack.c.b16 %v520, %v517
    %v584 = vpack.c.b16 %v524, %v521
    %v585 = vpack.c.b16 %v525, %v522
    %v586 = vpack.c.b16 %v526, %v523
    %v587 = vpack.c.b16 %v530, %v527
    %v588 = vpack.c.b16 %v531, %v528
    %v589 = vpack.c.b16 %v532, %v529
    %v590 = vpack.c.b16 %v536, %v533
    %v591 = vpack.c.b16 %v537, %v534
    %v592 = vpack.c.b16 %v538, %v535
    %vm647 = vcmask 261120
    %v649 = vsel %vm647, %v269, 0
    %651 = vmatprep.subr.bf16.mxu0 %v540
    %652 = vmatpush1.bf16.msra.mxu0 %v539
    %653 = vmatprep.subr.bf16.mxu0 %v543
    %654 = vmatpush1.bf16.msra.mxu0 %v542
    %655 = vmatprep.subr.bf16.mxu0 %v546
    %656 = vmatpush1.bf16.msra.mxu0 %v545
    %657 = vmatprep.subr.bf16.mxu0 %v549
    %658 = vmatpush1.bf16.msra.mxu0 %v548
    %659 = vmatprep.subr.bf16.mxu0 %v552
    %660 = vmatpush1.bf16.msra.mxu0 %v551
    %661 = vmatprep.subr.bf16.mxu0 %v555
    %662 = vmatpush1.bf16.msra.mxu0 %v554
    %663 = vmatprep.subr.bf16.mxu0 %v558
    %664 = vmatpush1.bf16.msra.mxu0 %v557
    %665 = vmatprep.subr.bf16.mxu0 %v561
    %666 = vmatpush1.bf16.msra.mxu0 %v560
    %667 = vmatprep.subr.bf16.mxu0 %v564
    %668 = vmatpush1.bf16.msra.mxu0 %v563
    %669 = vmatprep.subr.bf16.mxu0 %v567
    %670 = vmatpush1.bf16.msra.mxu0 %v566
    %671 = vmatprep.subr.bf16.mxu0 %v570
    %672 = vmatpush1.bf16.msra.mxu0 %v569
    %673 = vmatprep.subr.bf16.mxu0 %v573
    %674 = vmatpush1.bf16.msra.mxu0 %v572
    %675 = vmatprep.subr.bf16.mxu0 %v576
    %676 = vmatpush1.bf16.msra.mxu0 %v575
    %677 = vmatprep.subr.bf16.mxu0 %v579
    %678 = vmatpush1.bf16.msra.mxu0 %v578
    %679 = vmatprep.subr.bf16.mxu0 %v582
    %680 = vmatpush1.bf16.msra.mxu0 %v581
    %681 = vmatprep.subr.bf16.mxu0 %v585
    %682 = vmatpush1.bf16.msra.mxu0 %v584
    %683 = vmatprep.mubr.bf16.mxu0 %v268
    %684 = vmatmul.mubr.bf16.gmra.mrb[0].mxu0 %v267
    %v685 = vpop.f32.mrb[0].mxu0
    %v686 = vadd.f32 %v347, %v685
    %v687 = vpop.f32.mrb[0].mxu0
    %v688 = vadd.f32 %v351, %v687
    %v689 = vpop.f32.mrb[0].mxu0
    %v690 = vpop.f32.mrb[0].mxu0
    %691 = vdwg.mxu0
    %692 = vmatprep.subr.bf16.mxu0 %v588
    %693 = vmatpush1.bf16.msra.mxu0 %v587
    %694 = vmatprep.subr.bf16.mxu0 %v591
    %695 = vmatpush1.bf16.msra.mxu0 %v590
    %696 = vmatprep.subr.bf16.mxu0 0
    %697 = vmatpush1.bf16.msra.mxu0 0
    %698 = vmatprep.subr.bf16.mxu0 0
    %699 = vmatpush1.bf16.msra.mxu0 0
    %700 = vmatprep.subr.bf16.mxu0 0
    %701 = vmatpush1.bf16.msra.mxu0 0
    %702 = vmatprep.subr.bf16.mxu0 0
    %703 = vmatpush1.bf16.msra.mxu0 0
    %704 = vmatprep.subr.bf16.mxu0 0
    %705 = vmatpush1.bf16.msra.mxu0 0
    %706 = vmatprep.subr.bf16.mxu0 0
    %707 = vmatpush1.bf16.msra.mxu0 0
    %708 = vmatprep.subr.bf16.mxu0 0
    %709 = vmatpush1.bf16.msra.mxu0 0
    %710 = vmatprep.subr.bf16.mxu0 0
    %711 = vmatpush1.bf16.msra.mxu0 0
    %712 = vmatprep.subr.bf16.mxu0 0
    %713 = vmatpush1.bf16.msra.mxu0 0
    %714 = vmatprep.subr.bf16.mxu0 0
    %715 = vmatpush1.bf16.msra.mxu0 0
    %716 = vmatprep.subr.bf16.mxu0 0
    %717 = vmatpush1.bf16.msra.mxu0 0
    %718 = vmatprep.subr.bf16.mxu0 0
    %719 = vmatpush1.bf16.msra.mxu0 0
    %720 = vmatprep.subr.bf16.mxu0 0
    %721 = vmatpush1.bf16.msra.mxu0 0
    %722 = vmatprep.subr.bf16.mxu0 0
    %723 = vmatpush1.bf16.msra.mxu0 0
    %724 = vmatprep.mubr.bf16.mxu0 0
    %725 = vmatmul.mubr.bf16.gmra.mrb[0].mxu0 %v649
    %v726 = vpop.f32.mrb[0].mxu0
    %v727 = vadd.f32 %v686, %v726
    %v728 = vpop.f32.mrb[0].mxu0
    %v729 = vadd.f32 %v688, %v728
    %v730 = vpop.f32.mrb[0].mxu0
    %v731 = vpop.f32.mrb[0].mxu0
    %732 = vdwg.mxu0
    %733 = vmatprep.subr.bf16.mxu0 0
    %734 = vmatpush1.bf16.msra.mxu0 %v541
    %735 = vmatprep.subr.bf16.mxu0 0
    %736 = vmatpush1.bf16.msra.mxu0 %v544
    %737 = vmatprep.subr.bf16.mxu0 0
    %738 = vmatpush1.bf16.msra.mxu0 %v547
    %739 = vmatprep.subr.bf16.mxu0 0
    %740 = vmatpush1.bf16.msra.mxu0 %v550
    %741 = vmatprep.subr.bf16.mxu0 0
    %742 = vmatpush1.bf16.msra.mxu0 %v553
    %743 = vmatprep.subr.bf16.mxu0 0
    %744 = vmatpush1.bf16.msra.mxu0 %v556
    %745 = vmatprep.subr.bf16.mxu0 0
    %746 = vmatpush1.bf16.msra.mxu0 %v559
    %747 = vmatprep.subr.bf16.mxu0 0
    %748 = vmatpush1.bf16.msra.mxu0 %v562
    %749 = vmatprep.subr.bf16.mxu0 0
    %750 = vmatpush1.bf16.msra.mxu0 %v565
    %751 = vmatprep.subr.bf16.mxu0 0
    %752 = vmatpush1.bf16.msra.mxu0 %v568
    %753 = vmatprep.subr.bf16.mxu0 0
    %754 = vmatpush1.bf16.msra.mxu0 %v571
    %755 = vmatprep.subr.bf16.mxu0 0
    %756 = vmatpush1.bf16.msra.mxu0 %v574
    %757 = vmatprep.subr.bf16.mxu0 0
    %758 = vmatpush1.bf16.msra.mxu0 %v577
    %759 = vmatprep.subr.bf16.mxu0 0
    %760 = vmatpush1.bf16.msra.mxu0 %v580
    %761 = vmatprep.subr.bf16.mxu0 0
    %762 = vmatpush1.bf16.msra.mxu0 %v583
    %763 = vmatprep.subr.bf16.mxu0 0
    %764 = vmatpush1.bf16.msra.mxu0 %v586
    %765 = vmatprep.mubr.bf16.mxu0 %v268
    %766 = vmatmul.mubr.bf16.gmra.mrb[0].mxu0 %v267
    %v767 = vpop.f32.mrb[0].mxu0
    %v768 = vadd.f32 %v355, %v767
    %v769 = vpop.f32.mrb[0].mxu0
    %v770 = vpop.f32.mrb[0].mxu0
    %v771 = vpop.f32.mrb[0].mxu0
    %772 = vdwg.mxu0
    %773 = vmatprep.subr.bf16.mxu0 0
    %774 = vmatpush1.bf16.msra.mxu0 %v589
    %775 = vmatprep.subr.bf16.mxu0 0
    %776 = vmatpush1.bf16.msra.mxu0 %v592
    %777 = vmatprep.subr.bf16.mxu0 0
    %778 = vmatpush1.bf16.msra.mxu0 0
    %779 = vmatprep.subr.bf16.mxu0 0
    %780 = vmatpush1.bf16.msra.mxu0 0
    %781 = vmatprep.subr.bf16.mxu0 0
    %782 = vmatpush1.bf16.msra.mxu0 0
    %783 = vmatprep.subr.bf16.mxu0 0
    %784 = vmatpush1.bf16.msra.mxu0 0
    %785 = vmatprep.subr.bf16.mxu0 0
    %786 = vmatpush1.bf16.msra.mxu0 0
    %787 = vmatprep.subr.bf16.mxu0 0
    %788 = vmatpush1.bf16.msra.mxu0 0
    %789 = vmatprep.subr.bf16.mxu0 0
    %790 = vmatpush1.bf16.msra.mxu0 0
    %791 = vmatprep.subr.bf16.mxu0 0
    %792 = vmatpush1.bf16.msra.mxu0 0
    %793 = vmatprep.subr.bf16.mxu0 0
    %794 = vmatpush1.bf16.msra.mxu0 0
    %795 = vmatprep.subr.bf16.mxu0 0
    %796 = vmatpush1.bf16.msra.mxu0 0
    %797 = vmatprep.subr.bf16.mxu0 0
    %798 = vmatpush1.bf16.msra.mxu0 0
    %799 = vmatprep.subr.bf16.mxu0 0
    %800 = vmatpush1.bf16.msra.mxu0 0
    %801 = vmatprep.subr.bf16.mxu0 0
    %802 = vmatpush1.bf16.msra.mxu0 0
    %803 = vmatprep.subr.bf16.mxu0 0
    %804 = vmatpush1.bf16.msra.mxu0 0
    %805 = vmatprep.mubr.bf16.mxu0 0
    %806 = vmatmul.mubr.bf16.gmra.mrb[0].mxu0 %v649
    %v807 = vpop.f32.mrb[0].mxu0
    %v808 = vadd.f32 %v768, %v807
    %v809 = vpop.f32.mrb[0].mxu0
    %v810 = vpop.f32.mrb[0].mxu0
    %v811 = vpop.f32.mrb[0].mxu0
    %812 = vdwg.mxu0
    %v813 = vmax.f32 %v727, 0.0
    %v814 = vmax.f32 %v729, 0.0
    %v815 = vmax.f32 %v808, 0.0
    %v816 = vpack.c.bf16 %v813, %v813
    %v817 = vpack.c.bf16 %v814, %v814
    %v818 = vpack.c.bf16 %v815, %v815
    %v819 = vld [vmem:[#allocation10] sm:$0xff]
    %v820 = vld [vmem:[#allocation10 + $0x8] sm:$0xff]
    %v821 = vld [vmem:[#allocation10 + $0x10] sm:$0xff]
    %v822 = vld [vmem:[#allocation10 + $0x18] sm:$0xff]
    %v823 = vld [vmem:[#allocation10 + $0x20] sm:$0xff]
    %v824 = vld [vmem:[#allocation10 + $0x28] sm:$0xff]
    %v825 = vld [vmem:[#allocation10 + $0x30] sm:$0xff]
    %v826 = vld [vmem:[#allocation10 + $0x38] sm:$0xff]
    %v827 = vld [vmem:[#allocation10 + $0x40] sm:$0xff]
    %v828 = vld [vmem:[#allocation10 + $0x48] sm:$0xff]
    %v829 = vld [vmem:[#allocation10 + $0x50] sm:$0xff]
    %v830 = vld [vmem:[#allocation10 + $0x58] sm:$0xff]
    %v831 = vld [vmem:[#allocation10 + $0x60] sm:$0xff]
    %v832 = vld [vmem:[#allocation10 + $0x68] sm:$0xff]
    %v833 = vld [vmem:[#allocation10 + $0x70] sm:$0xff]
    %v834 = vld [vmem:[#allocation10 + $0x78] sm:$0xff]
    %v835 = vld [vmem:[#allocation10 + $0x80] sm:$0xff]
    %v836 = vld [vmem:[#allocation10 + $0x88] sm:$0xff]
    %v837 = vld [vmem:[#allocation10 + $0x90] sm:$0xff]
    %v838 = vld [vmem:[#allocation10 + $0x98] sm:$0xff]
    %v839 = vld [vmem:[#allocation10 + $0xa0] sm:$0xff]
    %v840 = vld [vmem:[#allocation10 + $0xa8] sm:$0xff]
    %v841 = vld [vmem:[#allocation10 + $0xb0] sm:$0xff]
    %v842 = vld [vmem:[#allocation10 + $0xb8] sm:$0xff]
    %v843 = vld [vmem:[#allocation10 + $0xc0] sm:$0xff]
    %v844 = vld [vmem:[#allocation10 + $0xc8] sm:$0xff]
    %v845 = vld [vmem:[#allocation10 + $0xd0] sm:$0xff]
    %v846 = vld [vmem:[#allocation10 + $0xd8] sm:$0xff]
    %v847 = vld [vmem:[#allocation10 + $0xe0] sm:$0xff]
    %v848 = vld [vmem:[#allocation10 + $0xe8] sm:$0xff]
    %v849 = vld [vmem:[#allocation10 + $0xf0] sm:$0xff]
    %v850 = vld [vmem:[#allocation10 + $0xf8] sm:$0xff]
    %v851 = vld [vmem:[#allocation10 + $0x100] sm:$0xff]
    %v852 = vld [vmem:[#allocation10 + $0x108] sm:$0xff]
    %v853 = vld [vmem:[#allocation10 + $0x110] sm:$0xff]
    %v854 = vld [vmem:[#allocation10 + $0x118] sm:$0xff]
    %v855 = vld [vmem:[#allocation10 + $0x120] sm:$0xff]
    %v856 = vld [vmem:[#allocation10 + $0x128] sm:$0xff]
    %v857 = vld [vmem:[#allocation10 + $0x130] sm:$0xff]
    %v858 = vld [vmem:[#allocation10 + $0x138] sm:$0xff]
    %v859 = vld [vmem:[#allocation10 + $0x140] sm:$0xff]
    %v860 = vld [vmem:[#allocation10 + $0x148] sm:$0xff]
    %v861 = vld [vmem:[#allocation10 + $0x150] sm:$0xff]
    %v862 = vld [vmem:[#allocation10 + $0x158] sm:$0xff]
    %v863 = vld [vmem:[#allocation10 + $0x160] sm:$0xff]
    %v864 = vld [vmem:[#allocation10 + $0x168] sm:$0xff]
    %v865 = vld [vmem:[#allocation10 + $0x170] sm:$0xff]
    %v866 = vld [vmem:[#allocation10 + $0x178] sm:$0xff]
    %v867 = vld [vmem:[#allocation10 + $0x180] sm:$0xff]
    %v868 = vld [vmem:[#allocation10 + $0x188] sm:$0xff]
    %v869 = vld [vmem:[#allocation10 + $0x190] sm:$0xff]
    %v870 = vld [vmem:[#allocation10 + $0x198] sm:$0xff]
    %v871 = vld [vmem:[#allocation10 + $0x1a0] sm:$0xff]
    %v872 = vld [vmem:[#allocation10 + $0x1a8] sm:$0xff]
    %v873 = vld [vmem:[#allocation10 + $0x1b0] sm:$0xff]
    %v874 = vld [vmem:[#allocation10 + $0x1b8] sm:$0xff]
    %v875 = vld [vmem:[#allocation10 + $0x1c0] sm:$0xff]
    %v876 = vld [vmem:[#allocation10 + $0x1c8] sm:$0xff]
    %v877 = vld [vmem:[#allocation10 + $0x1d0] sm:$0xff]
    %v878 = vld [vmem:[#allocation10 + $0x1d8] sm:$0xff]
    %v879 = vld [vmem:[#allocation10 + $0x1e0] sm:$0xff]
    %v880 = vld [vmem:[#allocation10 + $0x1e8] sm:$0xff]
    %v881 = vld [vmem:[#allocation10 + $0x1f0] sm:$0xff]
    %v882 = vld [vmem:[#allocation10 + $0x1f8] sm:$0xff]
    %v883 = vld [vmem:[#allocation10 + $0x200] sm:$0xff]
    %v884 = vld [vmem:[#allocation10 + $0x208] sm:$0xff]
    %v885 = vld [vmem:[#allocation10 + $0x210] sm:$0xff]
    %v886 = vld [vmem:[#allocation10 + $0x218] sm:$0xff]
    %v887 = vld [vmem:[#allocation10 + $0x220] sm:$0xff]
    %v888 = vld [vmem:[#allocation10 + $0x228] sm:$0xff]
    %v889 = vld [vmem:[#allocation10 + $0x230] sm:$0xff]
    %v890 = vld [vmem:[#allocation10 + $0x238] sm:$0xff]
    %v891 = vld [vmem:[#allocation10 + $0x240] sm:$0xff]
    %v892 = vld [vmem:[#allocation10 + $0x248] sm:$0xff]
    %v893 = vld [vmem:[#allocation10 + $0x250] sm:$0xff]
    %v894 = vld [vmem:[#allocation10 + $0x258] sm:$0xff]
    %v895 = vld [vmem:[#allocation10 + $0x260] sm:$0xff]
    %v896 = vld [vmem:[#allocation10 + $0x268] sm:$0xff]
    %v897 = vld [vmem:[#allocation10 + $0x270] sm:$0xff]
    %v898 = vld [vmem:[#allocation10 + $0x278] sm:$0xff]
    %v899 = vld [vmem:[#allocation10 + $0x280] sm:$0xff]
    %v900 = vld [vmem:[#allocation10 + $0x288] sm:$0xff]
    %v901 = vld [vmem:[#allocation10 + $0x290] sm:$0xff]
    %v902 = vld [vmem:[#allocation10 + $0x298] sm:$0xff]
    %v903 = vld [vmem:[#allocation10 + $0x2a0] sm:$0xff]
    %v904 = vld [vmem:[#allocation10 + $0x2a8] sm:$0xff]
    %v905 = vld [vmem:[#allocation10 + $0x2b0] sm:$0xff]
    %v906 = vld [vmem:[#allocation10 + $0x2b8] sm:$0xff]
    %v907 = vld [vmem:[#allocation10 + $0x2c0] sm:$0xff]
    %v908 = vld [vmem:[#allocation10 + $0x2c8] sm:$0xff]
    %v909 = vld [vmem:[#allocation10 + $0x2d0] sm:$0xff]
    %v910 = vld [vmem:[#allocation10 + $0x2d8] sm:$0xff]
    %v911 = vld [vmem:[#allocation10 + $0x2e0] sm:$0xff]
    %v912 = vld [vmem:[#allocation10 + $0x2e8] sm:$0xff]
    %v913 = vld [vmem:[#allocation10 + $0x2f0] sm:$0xff]
    %v914 = vld [vmem:[#allocation10 + $0x2f8] sm:$0xff]
    %v915 = vld [vmem:[#allocation10 + $0x300] sm:$0xff]
    %v916 = vld [vmem:[#allocation10 + $0x308] sm:$0xff]
    %v917 = vld [vmem:[#allocation10 + $0x310] sm:$0xff]
    %v918 = vld [vmem:[#allocation10 + $0x318] sm:$0xff]
    %v919 = vld [vmem:[#allocation10 + $0x320] sm:$0xff]
    %v920 = vld [vmem:[#allocation10 + $0x328] sm:$0xff]
    %v921 = vld [vmem:[#allocation10 + $0x330] sm:$0xff]
    %v922 = vld [vmem:[#allocation10 + $0x338] sm:$0xff]
    %v923 = vld [vmem:[#allocation10 + $0x340] sm:$0xff]
    %v924 = vld [vmem:[#allocation10 + $0x348] sm:$0xff]
    %v925 = vld [vmem:[#allocation10 + $0x350] sm:$0xff]
    %v926 = vld [vmem:[#allocation10 + $0x358] sm:$0xff]
    %v927 = vld [vmem:[#allocation10 + $0x360] sm:$0xff]
    %v928 = vld [vmem:[#allocation10 + $0x368] sm:$0xff]
    %v929 = vld [vmem:[#allocation10 + $0x370] sm:$0xff]
    %v930 = vld [vmem:[#allocation10 + $0x378] sm:$0xff]
    %v931 = vld [vmem:[#allocation10 + $0x380] sm:$0xff]
    %v932 = vld [vmem:[#allocation10 + $0x388] sm:$0xff]
    %v933 = vld [vmem:[#allocation10 + $0x390] sm:$0xff]
    %v934 = vld [vmem:[#allocation10 + $0x398] sm:$0xff]
    %v935 = vld [vmem:[#allocation10 + $0x3a0] sm:$0xff]
    %v936 = vld [vmem:[#allocation10 + $0x3a8] sm:$0xff]
    %v937 = vld [vmem:[#allocation10 + $0x3b0] sm:$0xff]
    %v938 = vld [vmem:[#allocation10 + $0x3b8] sm:$0xff]
    %v939 = vld [vmem:[#allocation10 + $0x3c0] sm:$0xff]
    %v940 = vld [vmem:[#allocation10 + $0x3c8] sm:$0xff]
    %v941 = vld [vmem:[#allocation10 + $0x3d0] sm:$0xff]
    %v942 = vld [vmem:[#allocation10 + $0x3d8] sm:$0xff]
    %v943 = vld [vmem:[#allocation10 + $0x3e0] sm:$0xff]
    %v944 = vld [vmem:[#allocation10 + $0x3e8] sm:$0xff]
    %v945 = vld [vmem:[#allocation10 + $0x3f0] sm:$0xff]
    %v946 = vld [vmem:[#allocation10 + $0x3f8] sm:$0xff]
    %v947 = vld [vmem:[#allocation10 + $0x400] sm:$0xff]
    %v948 = vld [vmem:[#allocation10 + $0x408] sm:$0xff]
    %v949 = vld [vmem:[#allocation10 + $0x410] sm:$0xff]
    %v950 = vld [vmem:[#allocation10 + $0x418] sm:$0xff]
    %v951 = vld [vmem:[#allocation10 + $0x420] sm:$0xff]
    %v952 = vld [vmem:[#allocation10 + $0x428] sm:$0xff]
    %v953 = vld [vmem:[#allocation10 + $0x430] sm:$0xff]
    %v954 = vld [vmem:[#allocation10 + $0x438] sm:$0xff]
    %v955 = vld [vmem:[#allocation10 + $0x440] sm:$0xff]
    %v956 = vld [vmem:[#allocation10 + $0x448] sm:$0xff]
    %v957 = vld [vmem:[#allocation10 + $0x450] sm:$0xff]
    %v958 = vld [vmem:[#allocation10 + $0x458] sm:$0xff]
    %v959 = vld [vmem:[#allocation10 + $0x460] sm:$0xff]
    %v960 = vld [vmem:[#allocation10 + $0x468] sm:$0xff]
    %v961 = vld [vmem:[#allocation10 + $0x470] sm:$0xff]
    %v962 = vld [vmem:[#allocation10 + $0x478] sm:$0xff]
    %v963 = vld [vmem:[%s6] sm:$0xff]
    %v965 = vlaneseq
    %v966 = vshrl.u32 %v965, 7
    %v967 = vsub.s32 0, %v966
    %v968 = vrot.slane %v963, %v967
    %v969 = vlaneseq
    %v970 = vshrl.u32 %v969, 7
    %v971 = vsub.s32 1, %v970
    %v972 = vrot.slane %v963, %v971
    %v973 = vlaneseq
    %v974 = vshrl.u32 %v973, 7
    %v975 = vsub.s32 2, %v974
    %v976 = vrot.slane %v963, %v975
    %v977 = vlaneseq
    %v978 = vshrl.u32 %v977, 7
    %v979 = vsub.s32 3, %v978
    %v980 = vrot.slane %v963, %v979
    %v981 = vlaneseq
    %v982 = vshrl.u32 %v981, 7
    %v983 = vsub.s32 4, %v982
    %v984 = vrot.slane %v963, %v983
    %v985 = vlaneseq
    %v986 = vshrl.u32 %v985, 7
    %v987 = vsub.s32 5, %v986
    %v988 = vrot.slane %v963, %v987
    %v989 = vlaneseq
    %v990 = vshrl.u32 %v989, 7
    %v991 = vsub.s32 6, %v990
    %v992 = vrot.slane %v963, %v991
    %v993 = vlaneseq
    %v994 = vshrl.u32 %v993, 7
    %v995 = vsub.s32 7, %v994
    %v996 = vrot.slane %v963, %v995
    %v1149 = vunpack.c.l.b16 %v819
    %v1150 = vunpack.c.h.b16 %v819
    %v1151 = vunpack.c.l.b16 %v820
    %v1152 = vunpack.c.h.b16 %v820
    %v1153 = vunpack.c.l.b16 %v821
    %v1154 = vunpack.c.h.b16 %v821
    %v1155 = vunpack.c.l.b16 %v822
    %v1156 = vunpack.c.h.b16 %v822
    %v1157 = vunpack.c.l.b16 %v823
    %v1158 = vunpack.c.h.b16 %v823
    %v1159 = vunpack.c.l.b16 %v824
    %v1160 = vunpack.c.h.b16 %v824
    %v1161 = vunpack.c.l.b16 %v825
    %v1162 = vunpack.c.h.b16 %v825
    %v1163 = vunpack.c.l.b16 %v826
    %v1164 = vunpack.c.h.b16 %v826
    %v1165 = vunpack.c.l.b16 %v827
    %v1166 = vunpack.c.h.b16 %v827
    %v1167 = vunpack.c.l.b16 %v828
    %v1168 = vunpack.c.h.b16 %v828
    %v1169 = vunpack.c.l.b16 %v829
    %v1170 = vunpack.c.h.b16 %v829
    %v1171 = vunpack.c.l.b16 %v830
    %v1172 = vunpack.c.h.b16 %v830
    %v1173 = vunpack.c.l.b16 %v831
    %v1174 = vunpack.c.h.b16 %v831
    %v1175 = vunpack.c.l.b16 %v832
    %v1176 = vunpack.c.h.b16 %v832
    %v1177 = vunpack.c.l.b16 %v833
    %v1178 = vunpack.c.h.b16 %v833
    %v1179 = vunpack.c.l.b16 %v834
    %v1180 = vunpack.c.h.b16 %v834
    %v1181 = vunpack.c.l.b16 %v835
    %v1182 = vunpack.c.h.b16 %v835
    %v1183 = vunpack.c.l.b16 %v836
    %v1184 = vunpack.c.h.b16 %v836
    %v1185 = vunpack.c.l.b16 %v837
    %v1186 = vunpack.c.h.b16 %v837
    %v1187 = vunpack.c.l.b16 %v838
    %v1188 = vunpack.c.h.b16 %v838
    %v1189 = vunpack.c.l.b16 %v839
    %v1190 = vunpack.c.h.b16 %v839
    %v1191 = vunpack.c.l.b16 %v840
    %v1192 = vunpack.c.h.b16 %v840
    %v1193 = vunpack.c.l.b16 %v841
    %v1194 = vunpack.c.h.b16 %v841
    %v1195 = vunpack.c.l.b16 %v842
    %v1196 = vunpack.c.h.b16 %v842
    %v1197 = vunpack.c.l.b16 %v843
    %v1198 = vunpack.c.h.b16 %v843
    %v1199 = vunpack.c.l.b16 %v844
    %v1200 = vunpack.c.h.b16 %v844
    %v1201 = vunpack.c.l.b16 %v845
    %v1202 = vunpack.c.h.b16 %v845
    %v1203 = vunpack.c.l.b16 %v846
    %v1204 = vunpack.c.h.b16 %v846
    %v1205 = vunpack.c.l.b16 %v847
    %v1206 = vunpack.c.h.b16 %v847
    %v1207 = vunpack.c.l.b16 %v848
    %v1208 = vunpack.c.h.b16 %v848
    %v1209 = vunpack.c.l.b16 %v849
    %v1210 = vunpack.c.h.b16 %v849
    %v1211 = vunpack.c.l.b16 %v850
    %v1212 = vunpack.c.h.b16 %v850
    %v1213 = vunpack.c.l.b16 %v851
    %v1214 = vunpack.c.h.b16 %v851
    %v1215 = vunpack.c.l.b16 %v852
    %v1216 = vunpack.c.h.b16 %v852
    %v1217 = vunpack.c.l.b16 %v853
    %v1218 = vunpack.c.h.b16 %v853
    %v1219 = vunpack.c.l.b16 %v854
    %v1220 = vunpack.c.h.b16 %v854
    %v1221 = vunpack.c.l.b16 %v855
    %v1222 = vunpack.c.h.b16 %v855
    %v1223 = vunpack.c.l.b16 %v856
    %v1224 = vunpack.c.h.b16 %v856
    %v1225 = vunpack.c.l.b16 %v857
    %v1226 = vunpack.c.h.b16 %v857
    %v1227 = vunpack.c.l.b16 %v858
    %v1228 = vunpack.c.h.b16 %v858
    %v1229 = vunpack.c.l.b16 %v859
    %v1230 = vunpack.c.h.b16 %v859
    %v1231 = vunpack.c.l.b16 %v860
    %v1232 = vunpack.c.h.b16 %v860
    %v1233 = vunpack.c.l.b16 %v861
    %v1234 = vunpack.c.h.b16 %v861
    %v1235 = vunpack.c.l.b16 %v862
    %v1236 = vunpack.c.h.b16 %v862
    %v1237 = vunpack.c.l.b16 %v863
    %v1238 = vunpack.c.h.b16 %v863
    %v1239 = vunpack.c.l.b16 %v864
    %v1240 = vunpack.c.h.b16 %v864
    %v1241 = vunpack.c.l.b16 %v865
    %v1242 = vunpack.c.h.b16 %v865
    %v1243 = vunpack.c.l.b16 %v866
    %v1244 = vunpack.c.h.b16 %v866
    %v1245 = vunpack.c.l.b16 %v867
    %v1246 = vunpack.c.h.b16 %v867
    %v1247 = vunpack.c.l.b16 %v868
    %v1248 = vunpack.c.h.b16 %v868
    %v1249 = vunpack.c.l.b16 %v869
    %v1250 = vunpack.c.h.b16 %v869
    %v1251 = vunpack.c.l.b16 %v870
    %v1252 = vunpack.c.h.b16 %v870
    %v1253 = vunpack.c.l.b16 %v871
    %v1254 = vunpack.c.h.b16 %v871
    %v1255 = vunpack.c.l.b16 %v872
    %v1256 = vunpack.c.h.b16 %v872
    %v1257 = vunpack.c.l.b16 %v873
    %v1258 = vunpack.c.h.b16 %v873
    %v1259 = vunpack.c.l.b16 %v874
    %v1260 = vunpack.c.h.b16 %v874
    %v1261 = vunpack.c.l.b16 %v875
    %v1262 = vunpack.c.h.b16 %v875
    %v1263 = vunpack.c.l.b16 %v876
    %v1264 = vunpack.c.h.b16 %v876
    %v1265 = vunpack.c.l.b16 %v877
    %v1266 = vunpack.c.h.b16 %v877
    %v1267 = vunpack.c.l.b16 %v878
    %v1268 = vunpack.c.h.b16 %v878
    %v1269 = vunpack.c.l.b16 %v879
    %v1270 = vunpack.c.h.b16 %v879
    %v1271 = vunpack.c.l.b16 %v880
    %v1272 = vunpack.c.h.b16 %v880
    %v1273 = vunpack.c.l.b16 %v881
    %v1274 = vunpack.c.h.b16 %v881
    %v1275 = vunpack.c.l.b16 %v882
    %v1276 = vunpack.c.h.b16 %v882
    %v1277 = vunpack.c.l.b16 %v883
    %v1278 = vunpack.c.h.b16 %v883
    %v1279 = vunpack.c.l.b16 %v884
    %v1280 = vunpack.c.h.b16 %v884
    %v1281 = vunpack.c.l.b16 %v885
    %v1282 = vunpack.c.h.b16 %v885
    %v1283 = vunpack.c.l.b16 %v886
    %v1284 = vunpack.c.h.b16 %v886
    %v1285 = vunpack.c.l.b16 %v887
    %v1286 = vunpack.c.h.b16 %v887
    %v1287 = vunpack.c.l.b16 %v888
    %v1288 = vunpack.c.h.b16 %v888
    %v1289 = vunpack.c.l.b16 %v889
    %v1290 = vunpack.c.h.b16 %v889
    %v1291 = vunpack.c.l.b16 %v890
    %v1292 = vunpack.c.h.b16 %v890
    %v1293 = vunpack.c.l.b16 %v891
    %v1294 = vunpack.c.h.b16 %v891
    %v1295 = vunpack.c.l.b16 %v892
    %v1296 = vunpack.c.h.b16 %v892
    %v1297 = vunpack.c.l.b16 %v893
    %v1298 = vunpack.c.h.b16 %v893
    %v1299 = vunpack.c.l.b16 %v894
    %v1300 = vunpack.c.h.b16 %v894
    %v1301 = vunpack.c.l.b16 %v895
    %v1302 = vunpack.c.h.b16 %v895
    %v1303 = vunpack.c.l.b16 %v896
    %v1304 = vunpack.c.h.b16 %v896
    %v1305 = vunpack.c.l.b16 %v897
    %v1306 = vunpack.c.h.b16 %v897
    %v1307 = vunpack.c.l.b16 %v898
    %v1308 = vunpack.c.h.b16 %v898
    %v1309 = vunpack.c.l.b16 %v899
    %v1310 = vunpack.c.h.b16 %v899
    %v1311 = vunpack.c.l.b16 %v900
    %v1312 = vunpack.c.h.b16 %v900
    %v1313 = vunpack.c.l.b16 %v901
    %v1314 = vunpack.c.h.b16 %v901
    %v1315 = vunpack.c.l.b16 %v902
    %v1316 = vunpack.c.h.b16 %v902
    %v1317 = vunpack.c.l.b16 %v903
    %v1318 = vunpack.c.h.b16 %v903
    %v1319 = vunpack.c.l.b16 %v904
    %v1320 = vunpack.c.h.b16 %v904
    %v1321 = vunpack.c.l.b16 %v905
    %v1322 = vunpack.c.h.b16 %v905
    %v1323 = vunpack.c.l.b16 %v906
    %v1324 = vunpack.c.h.b16 %v906
    %v1325 = vunpack.c.l.b16 %v907
    %v1326 = vunpack.c.h.b16 %v907
    %v1327 = vunpack.c.l.b16 %v908
    %v1328 = vunpack.c.h.b16 %v908
    %v1329 = vunpack.c.l.b16 %v909
    %v1330 = vunpack.c.h.b16 %v909
    %v1331 = vunpack.c.l.b16 %v910
    %v1332 = vunpack.c.h.b16 %v910
    %v1333 = vunpack.c.l.b16 %v911
    %v1334 = vunpack.c.h.b16 %v911
    %v1335 = vunpack.c.l.b16 %v912
    %v1336 = vunpack.c.h.b16 %v912
    %v1337 = vunpack.c.l.b16 %v913
    %v1338 = vunpack.c.h.b16 %v913
    %v1339 = vunpack.c.l.b16 %v914
    %v1340 = vunpack.c.h.b16 %v914
    %v1341 = vunpack.c.l.b16 %v915
    %v1342 = vunpack.c.h.b16 %v915
    %v1343 = vunpack.c.l.b16 %v916
    %v1344 = vunpack.c.h.b16 %v916
    %v1345 = vunpack.c.l.b16 %v917
    %v1346 = vunpack.c.h.b16 %v917
    %v1347 = vunpack.c.l.b16 %v918
    %v1348 = vunpack.c.h.b16 %v918
    %v1349 = vunpack.c.l.b16 %v919
    %v1350 = vunpack.c.h.b16 %v919
    %v1351 = vunpack.c.l.b16 %v920
    %v1352 = vunpack.c.h.b16 %v920
    %v1353 = vunpack.c.l.b16 %v921
    %v1354 = vunpack.c.h.b16 %v921
    %v1355 = vunpack.c.l.b16 %v922
    %v1356 = vunpack.c.h.b16 %v922
    %v1357 = vunpack.c.l.b16 %v923
    %v1358 = vunpack.c.h.b16 %v923
    %v1359 = vunpack.c.l.b16 %v924
    %v1360 = vunpack.c.h.b16 %v924
    %v1361 = vunpack.c.l.b16 %v925
    %v1362 = vunpack.c.h.b16 %v925
    %v1363 = vunpack.c.l.b16 %v926
    %v1364 = vunpack.c.h.b16 %v926
    %v1365 = vunpack.c.l.b16 %v927
    %v1366 = vunpack.c.h.b16 %v927
    %v1367 = vunpack.c.l.b16 %v928
    %v1368 = vunpack.c.h.b16 %v928
    %v1369 = vunpack.c.l.b16 %v929
    %v1370 = vunpack.c.h.b16 %v929
    %v1371 = vunpack.c.l.b16 %v930
    %v1372 = vunpack.c.h.b16 %v930
    %v1373 = vunpack.c.l.b16 %v931
    %v1374 = vunpack.c.h.b16 %v931
    %v1375 = vunpack.c.l.b16 %v932
    %v1376 = vunpack.c.h.b16 %v932
    %v1377 = vunpack.c.l.b16 %v933
    %v1378 = vunpack.c.h.b16 %v933
    %v1379 = vunpack.c.l.b16 %v934
    %v1380 = vunpack.c.h.b16 %v934
    %v1381 = vunpack.c.l.b16 %v935
    %v1382 = vunpack.c.h.b16 %v935
    %v1383 = vunpack.c.l.b16 %v936
    %v1384 = vunpack.c.h.b16 %v936
    %v1385 = vunpack.c.l.b16 %v937
    %v1386 = vunpack.c.h.b16 %v937
    %v1387 = vunpack.c.l.b16 %v938
    %v1388 = vunpack.c.h.b16 %v938
    %v1389 = vunpack.c.l.b16 %v939
    %v1390 = vunpack.c.h.b16 %v939
    %v1391 = vunpack.c.l.b16 %v940
    %v1392 = vunpack.c.h.b16 %v940
    %v1393 = vunpack.c.l.b16 %v941
    %v1394 = vunpack.c.h.b16 %v941
    %v1395 = vunpack.c.l.b16 %v942
    %v1396 = vunpack.c.h.b16 %v942
    %v1397 = vunpack.c.l.b16 %v943
    %v1398 = vunpack.c.h.b16 %v943
    %v1399 = vunpack.c.l.b16 %v944
    %v1400 = vunpack.c.h.b16 %v944
    %v1401 = vunpack.c.l.b16 %v945
    %v1402 = vunpack.c.h.b16 %v945
    %v1403 = vunpack.c.l.b16 %v946
    %v1404 = vunpack.c.h.b16 %v946
    %v1405 = vunpack.c.l.b16 %v947
    %v1406 = vunpack.c.h.b16 %v947
    %v1407 = vunpack.c.l.b16 %v948
    %v1408 = vunpack.c.h.b16 %v948
    %v1409 = vunpack.c.l.b16 %v949
    %v1410 = vunpack.c.h.b16 %v949
    %v1411 = vunpack.c.l.b16 %v950
    %v1412 = vunpack.c.h.b16 %v950
    %v1413 = vunpack.c.l.b16 %v951
    %v1414 = vunpack.c.h.b16 %v951
    %v1415 = vunpack.c.l.b16 %v952
    %v1416 = vunpack.c.h.b16 %v952
    %v1417 = vunpack.c.l.b16 %v953
    %v1418 = vunpack.c.h.b16 %v953
    %v1419 = vunpack.c.l.b16 %v954
    %v1420 = vunpack.c.h.b16 %v954
    %v1421 = vunpack.c.l.b16 %v955
    %v1422 = vunpack.c.h.b16 %v955
    %v1423 = vunpack.c.l.b16 %v956
    %v1424 = vunpack.c.h.b16 %v956
    %v1425 = vunpack.c.l.b16 %v957
    %v1426 = vunpack.c.h.b16 %v957
    %v1427 = vunpack.c.l.b16 %v958
    %v1428 = vunpack.c.h.b16 %v958
    %v1429 = vunpack.c.l.b16 %v959
    %v1430 = vunpack.c.h.b16 %v959
    %v1431 = vunpack.c.l.b16 %v960
    %v1432 = vunpack.c.h.b16 %v960
    %v1433 = vunpack.c.l.b16 %v961
    %v1434 = vunpack.c.h.b16 %v961
    %v1435 = vunpack.c.l.b16 %v962
    %v1436 = vunpack.c.h.b16 %v962
    %v1437 = vpack.c.b16 %v1157, %v1149
    %v1438 = vpack.c.b16 %v1158, %v1150
    %v1439 = vpack.c.b16 %v1159, %v1151
    %v1440 = vpack.c.b16 %v1160, %v1152
    %v1441 = vpack.c.b16 %v1161, %v1153
    %v1442 = vpack.c.b16 %v1162, %v1154
    %v1443 = vpack.c.b16 %v1163, %v1155
    %v1444 = vpack.c.b16 %v1164, %v1156
    %v1445 = vpack.c.b16 %v1173, %v1165
    %v1446 = vpack.c.b16 %v1174, %v1166
    %v1447 = vpack.c.b16 %v1175, %v1167
    %v1448 = vpack.c.b16 %v1176, %v1168
    %v1449 = vpack.c.b16 %v1177, %v1169
    %v1450 = vpack.c.b16 %v1178, %v1170
    %v1451 = vpack.c.b16 %v1179, %v1171
    %v1452 = vpack.c.b16 %v1180, %v1172
    %v1453 = vpack.c.b16 %v1189, %v1181
    %v1454 = vpack.c.b16 %v1190, %v1182
    %v1455 = vpack.c.b16 %v1191, %v1183
    %v1456 = vpack.c.b16 %v1192, %v1184
    %v1457 = vpack.c.b16 %v1193, %v1185
    %v1458 = vpack.c.b16 %v1194, %v1186
    %v1459 = vpack.c.b16 %v1195, %v1187
    %v1460 = vpack.c.b16 %v1196, %v1188
    %v1461 = vpack.c.b16 %v1205, %v1197
    %v1462 = vpack.c.b16 %v1206, %v1198
    %v1463 = vpack.c.b16 %v1207, %v1199
    %v1464 = vpack.c.b16 %v1208, %v1200
    %v1465 = vpack.c.b16 %v1209, %v1201
    %v1466 = vpack.c.b16 %v1210, %v1202
    %v1467 = vpack.c.b16 %v1211, %v1203
    %v1468 = vpack.c.b16 %v1212, %v1204
    %v1469 = vpack.c.b16 %v1221, %v1213
    %v1470 = vpack.c.b16 %v1222, %v1214
    %v1471 = vpack.c.b16 %v1223, %v1215
    %v1472 = vpack.c.b16 %v1224, %v1216
    %v1473 = vpack.c.b16 %v1225, %v1217
    %v1474 = vpack.c.b16 %v1226, %v1218
    %v1475 = vpack.c.b16 %v1227, %v1219
    %v1476 = vpack.c.b16 %v1228, %v1220
    %v1477 = vpack.c.b16 %v1237, %v1229
    %v1478 = vpack.c.b16 %v1238, %v1230
    %v1479 = vpack.c.b16 %v1239, %v1231
    %v1480 = vpack.c.b16 %v1240, %v1232
    %v1481 = vpack.c.b16 %v1241, %v1233
    %v1482 = vpack.c.b16 %v1242, %v1234
    %v1483 = vpack.c.b16 %v1243, %v1235
    %v1484 = vpack.c.b16 %v1244, %v1236
    %v1485 = vpack.c.b16 %v1253, %v1245
    %v1486 = vpack.c.b16 %v1254, %v1246
    %v1487 = vpack.c.b16 %v1255, %v1247
    %v1488 = vpack.c.b16 %v1256, %v1248
    %v1489 = vpack.c.b16 %v1257, %v1249
    %v1490 = vpack.c.b16 %v1258, %v1250
    %v1491 = vpack.c.b16 %v1259, %v1251
    %v1492 = vpack.c.b16 %v1260, %v1252
    %v1493 = vpack.c.b16 %v1269, %v1261
    %v1494 = vpack.c.b16 %v1270, %v1262
    %v1495 = vpack.c.b16 %v1271, %v1263
    %v1496 = vpack.c.b16 %v1272, %v1264
    %v1497 = vpack.c.b16 %v1273, %v1265
    %v1498 = vpack.c.b16 %v1274, %v1266
    %v1499 = vpack.c.b16 %v1275, %v1267
    %v1500 = vpack.c.b16 %v1276, %v1268
    %v1501 = vpack.c.b16 %v1285, %v1277
    %v1502 = vpack.c.b16 %v1286, %v1278
    %v1503 = vpack.c.b16 %v1287, %v1279
    %v1504 = vpack.c.b16 %v1288, %v1280
    %v1505 = vpack.c.b16 %v1289, %v1281
    %v1506 = vpack.c.b16 %v1290, %v1282
    %v1507 = vpack.c.b16 %v1291, %v1283
    %v1508 = vpack.c.b16 %v1292, %v1284
    %v1509 = vpack.c.b16 %v1301, %v1293
    %v1510 = vpack.c.b16 %v1302, %v1294
    %v1511 = vpack.c.b16 %v1303, %v1295
    %v1512 = vpack.c.b16 %v1304, %v1296
    %v1513 = vpack.c.b16 %v1305, %v1297
    %v1514 = vpack.c.b16 %v1306, %v1298
    %v1515 = vpack.c.b16 %v1307, %v1299
    %v1516 = vpack.c.b16 %v1308, %v1300
    %v1517 = vpack.c.b16 %v1317, %v1309
    %v1518 = vpack.c.b16 %v1318, %v1310
    %v1519 = vpack.c.b16 %v1319, %v1311
    %v1520 = vpack.c.b16 %v1320, %v1312
    %v1521 = vpack.c.b16 %v1321, %v1313
    %v1522 = vpack.c.b16 %v1322, %v1314
    %v1523 = vpack.c.b16 %v1323, %v1315
    %v1524 = vpack.c.b16 %v1324, %v1316
    %v1525 = vpack.c.b16 %v1333, %v1325
    %v1526 = vpack.c.b16 %v1334, %v1326
    %v1527 = vpack.c.b16 %v1335, %v1327
    %v1528 = vpack.c.b16 %v1336, %v1328
    %v1529 = vpack.c.b16 %v1337, %v1329
    %v1530 = vpack.c.b16 %v1338, %v1330
    %v1531 = vpack.c.b16 %v1339, %v1331
    %v1532 = vpack.c.b16 %v1340, %v1332
    %v1533 = vpack.c.b16 %v1349, %v1341
    %v1534 = vpack.c.b16 %v1350, %v1342
    %v1535 = vpack.c.b16 %v1351, %v1343
    %v1536 = vpack.c.b16 %v1352, %v1344
    %v1537 = vpack.c.b16 %v1353, %v1345
    %v1538 = vpack.c.b16 %v1354, %v1346
    %v1539 = vpack.c.b16 %v1355, %v1347
    %v1540 = vpack.c.b16 %v1356, %v1348
    %v1541 = vpack.c.b16 %v1365, %v1357
    %v1542 = vpack.c.b16 %v1366, %v1358
    %v1543 = vpack.c.b16 %v1367, %v1359
    %v1544 = vpack.c.b16 %v1368, %v1360
    %v1545 = vpack.c.b16 %v1369, %v1361
    %v1546 = vpack.c.b16 %v1370, %v1362
    %v1547 = vpack.c.b16 %v1371, %v1363
    %v1548 = vpack.c.b16 %v1372, %v1364
    %v1549 = vpack.c.b16 %v1381, %v1373
    %v1550 = vpack.c.b16 %v1382, %v1374
    %v1551 = vpack.c.b16 %v1383, %v1375
    %v1552 = vpack.c.b16 %v1384, %v1376
    %v1553 = vpack.c.b16 %v1385, %v1377
    %v1554 = vpack.c.b16 %v1386, %v1378
    %v1555 = vpack.c.b16 %v1387, %v1379
    %v1556 = vpack.c.b16 %v1388, %v1380
    %v1557 = vpack.c.b16 %v1397, %v1389
    %v1558 = vpack.c.b16 %v1398, %v1390
    %v1559 = vpack.c.b16 %v1399, %v1391
    %v1560 = vpack.c.b16 %v1400, %v1392
    %v1561 = vpack.c.b16 %v1401, %v1393
    %v1562 = vpack.c.b16 %v1402, %v1394
    %v1563 = vpack.c.b16 %v1403, %v1395
    %v1564 = vpack.c.b16 %v1404, %v1396
    %v1565 = vpack.c.b16 %v1413, %v1405
    %v1566 = vpack.c.b16 %v1414, %v1406
    %v1567 = vpack.c.b16 %v1415, %v1407
    %v1568 = vpack.c.b16 %v1416, %v1408
    %v1569 = vpack.c.b16 %v1417, %v1409
    %v1570 = vpack.c.b16 %v1418, %v1410
    %v1571 = vpack.c.b16 %v1419, %v1411
    %v1572 = vpack.c.b16 %v1420, %v1412
    %v1573 = vpack.c.b16 %v1429, %v1421
    %v1574 = vpack.c.b16 %v1430, %v1422
    %v1575 = vpack.c.b16 %v1431, %v1423
    %v1576 = vpack.c.b16 %v1432, %v1424
    %v1577 = vpack.c.b16 %v1433, %v1425
    %v1578 = vpack.c.b16 %v1434, %v1426
    %v1579 = vpack.c.b16 %v1435, %v1427
    %v1580 = vpack.c.b16 %v1436, %v1428
    %v1726 = vsel %vm647, %v818, 0
    %1728 = vmatprep.subr.bf16.mxu0 %v1438
    %1729 = vmatpush1.bf16.msra.mxu0 %v1437
    %1730 = vmatprep.subr.bf16.mxu0 %v1446
    %1731 = vmatpush1.bf16.msra.mxu0 %v1445
    %1732 = vmatprep.subr.bf16.mxu0 %v1454
    %1733 = vmatpush1.bf16.msra.mxu0 %v1453
    %1734 = vmatprep.subr.bf16.mxu0 %v1462
    %1735 = vmatpush1.bf16.msra.mxu0 %v1461
    %1736 = vmatprep.subr.bf16.mxu0 %v1470
    %1737 = vmatpush1.bf16.msra.mxu0 %v1469
    %1738 = vmatprep.subr.bf16.mxu0 %v1478
    %1739 = vmatpush1.bf16.msra.mxu0 %v1477
    %1740 = vmatprep.subr.bf16.mxu0 %v1486
    %1741 = vmatpush1.bf16.msra.mxu0 %v1485
    %1742 = vmatprep.subr.bf16.mxu0 %v1494
    %1743 = vmatpush1.bf16.msra.mxu0 %v1493
    %1744 = vmatprep.subr.bf16.mxu0 %v1502
    %1745 = vmatpush1.bf16.msra.mxu0 %v1501
    %1746 = vmatprep.subr.bf16.mxu0 %v1510
    %1747 = vmatpush1.bf16.msra.mxu0 %v1509
    %1748 = vmatprep.subr.bf16.mxu0 %v1518
    %1749 = vmatpush1.bf16.msra.mxu0 %v1517
    %1750 = vmatprep.subr.bf16.mxu0 %v1526
    %1751 = vmatpush1.bf16.msra.mxu0 %v1525
    %1752 = vmatprep.subr.bf16.mxu0 %v1534
    %1753 = vmatpush1.bf16.msra.mxu0 %v1533
    %1754 = vmatprep.subr.bf16.mxu0 %v1542
    %1755 = vmatpush1.bf16.msra.mxu0 %v1541
    %1756 = vmatprep.subr.bf16.mxu0 %v1550
    %1757 = vmatpush1.bf16.msra.mxu0 %v1549
    %1758 = vmatprep.subr.bf16.mxu0 %v1558
    %1759 = vmatpush1.bf16.msra.mxu0 %v1557
    %1760 = vmatprep.mubr.bf16.mxu0 %v817
    %1761 = vmatmul.mubr.bf16.gmra.mrb[0].mxu0 %v816
    %v1762 = vpop.f32.mrb[0].mxu0
    %v1763 = vadd.f32 %v968, %v1762
    %v1764 = vpop.f32.mrb[0].mxu0
    %v1765 = vadd.f32 %v972, %v1764
    %v1766 = vpop.f32.mrb[0].mxu0
    %v1767 = vpop.f32.mrb[0].mxu0
    %1768 = vdwg.mxu0
    %1769 = vmatprep.subr.bf16.mxu0 %v1566
    %1770 = vmatpush1.bf16.msra.mxu0 %v1565
    %1771 = vmatprep.subr.bf16.mxu0 %v1574
    %1772 = vmatpush1.bf16.msra.mxu0 %v1573
    %1773 = vmatprep.subr.bf16.mxu0 0
    %1774 = vmatpush1.bf16.msra.mxu0 0
    %1775 = vmatprep.subr.bf16.mxu0 0
    %1776 = vmatpush1.bf16.msra.mxu0 0
    %1777 = vmatprep.subr.bf16.mxu0 0
    %1778 = vmatpush1.bf16.msra.mxu0 0
    %1779 = vmatprep.subr.bf16.mxu0 0
    %1780 = vmatpush1.bf16.msra.mxu0 0
    %1781 = vmatprep.subr.bf16.mxu0 0
    %1782 = vmatpush1.bf16.msra.mxu0 0
    %1783 = vmatprep.subr.bf16.mxu0 0
    %1784 = vmatpush1.bf16.msra.mxu0 0
    %1785 = vmatprep.subr.bf16.mxu0 0
    %1786 = vmatpush1.bf16.msra.mxu0 0
    %1787 = vmatprep.subr.bf16.mxu0 0
    %1788 = vmatpush1.bf16.msra.mxu0 0
    %1789 = vmatprep.subr.bf16.mxu0 0
    %1790 = vmatpush1.bf16.msra.mxu0 0
    %1791 = vmatprep.subr.bf16.mxu0 0
    %1792 = vmatpush1.bf16.msra.mxu0 0
    %1793 = vmatprep.subr.bf16.mxu0 0
    %1794 = vmatpush1.bf16.msra.mxu0 0
    %1795 = vmatprep.subr.bf16.mxu0 0
    %1796 = vmatpush1.bf16.msra.mxu0 0
    %1797 = vmatprep.subr.bf16.mxu0 0
    %1798 = vmatpush1.bf16.msra.mxu0 0
    %1799 = vmatprep.subr.bf16.mxu0 0
    %1800 = vmatpush1.bf16.msra.mxu0 0
    %1801 = vmatprep.mubr.bf16.mxu0 0
    %1802 = vmatmul.mubr.bf16.gmra.mrb[0].mxu0 %v1726
    %v1803 = vpop.f32.mrb[0].mxu0
    %v1804 = vadd.f32 %v1763, %v1803
    %v1805 = vpop.f32.mrb[0].mxu0
    %v1806 = vadd.f32 %v1765, %v1805
    %v1807 = vpop.f32.mrb[0].mxu0
    %v1808 = vpop.f32.mrb[0].mxu0
    %1809 = vdwg.mxu0
    %1810 = vmatprep.subr.bf16.mxu0 %v1440
    %1811 = vmatpush1.bf16.msra.mxu0 %v1439
    %1812 = vmatprep.subr.bf16.mxu0 %v1448
    %1813 = vmatpush1.bf16.msra.mxu0 %v1447
    %1814 = vmatprep.subr.bf16.mxu0 %v1456
    %1815 = vmatpush1.bf16.msra.mxu0 %v1455
    %1816 = vmatprep.subr.bf16.mxu0 %v1464
    %1817 = vmatpush1.bf16.msra.mxu0 %v1463
    %1818 = vmatprep.subr.bf16.mxu0 %v1472
    %1819 = vmatpush1.bf16.msra.mxu0 %v1471
    %1820 = vmatprep.subr.bf16.mxu0 %v1480
    %1821 = vmatpush1.bf16.msra.mxu0 %v1479
    %1822 = vmatprep.subr.bf16.mxu0 %v1488
    %1823 = vmatpush1.bf16.msra.mxu0 %v1487
    %1824 = vmatprep.subr.bf16.mxu0 %v1496
    %1825 = vmatpush1.bf16.msra.mxu0 %v1495
    %1826 = vmatprep.subr.bf16.mxu0 %v1504
    %1827 = vmatpush1.bf16.msra.mxu0 %v1503
    %1828 = vmatprep.subr.bf16.mxu0 %v1512
    %1829 = vmatpush1.bf16.msra.mxu0 %v1511
    %1830 = vmatprep.subr.bf16.mxu0 %v1520
    %1831 = vmatpush1.bf16.msra.mxu0 %v1519
    %1832 = vmatprep.subr.bf16.mxu0 %v1528
    %1833 = vmatpush1.bf16.msra.mxu0 %v1527
    %1834 = vmatprep.subr.bf16.mxu0 %v1536
    %1835 = vmatpush1.bf16.msra.mxu0 %v1535
    %1836 = vmatprep.subr.bf16.mxu0 %v1544
    %1837 = vmatpush1.bf16.msra.mxu0 %v1543
    %1838 = vmatprep.subr.bf16.mxu0 %v1552
    %1839 = vmatpush1.bf16.msra.mxu0 %v1551
    %1840 = vmatprep.subr.bf16.mxu0 %v1560
    %1841 = vmatpush1.bf16.msra.mxu0 %v1559
    %1842 = vmatprep.mubr.bf16.mxu0 %v817
    %1843 = vmatmul.mubr.bf16.gmra.mrb[0].mxu0 %v816
    %v1844 = vpop.f32.mrb[0].mxu0
    %v1845 = vadd.f32 %v976, %v1844
    %v1846 = vpop.f32.mrb[0].mxu0
    %v1847 = vadd.f32 %v980, %v1846
    %v1848 = vpop.f32.mrb[0].mxu0
    %v1849 = vpop.f32.mrb[0].mxu0
    %1850 = vdwg.mxu0
    %1851 = vmatprep.subr.bf16.mxu0 %v1568
    %1852 = vmatpush1.bf16.msra.mxu0 %v1567
    %1853 = vmatprep.subr.bf16.mxu0 %v1576
    %1854 = vmatpush1.bf16.msra.mxu0 %v1575
    %1855 = vmatprep.subr.bf16.mxu0 0
    %1856 = vmatpush1.bf16.msra.mxu0 0
    %1857 = vmatprep.subr.bf16.mxu0 0
    %1858 = vmatpush1.bf16.msra.mxu0 0
    %1859 = vmatprep.subr.bf16.mxu0 0
    %1860 = vmatpush1.bf16.msra.mxu0 0
    %1861 = vmatprep.subr.bf16.mxu0 0
    %1862 = vmatpush1.bf16.msra.mxu0 0
    %1863 = vmatprep.subr.bf16.mxu0 0
    %1864 = vmatpush1.bf16.msra.mxu0 0
    %1865 = vmatprep.subr.bf16.mxu0 0
    %1866 = vmatpush1.bf16.msra.mxu0 0
    %1867 = vmatprep.subr.bf16.mxu0 0
    %1868 = vmatpush1.bf16.msra.mxu0 0
    %1869 = vmatprep.subr.bf16.mxu0 0
    %1870 = vmatpush1.bf16.msra.mxu0 0
    %1871 = vmatprep.subr.bf16.mxu0 0
    %1872 = vmatpush1.bf16.msra.mxu0 0
    %1873 = vmatprep.subr.bf16.mxu0 0
    %1874 = vmatpush1.bf16.msra.mxu0 0
    %1875 = vmatprep.subr.bf16.mxu0 0
    %1876 = vmatpush1.bf16.msra.mxu0 0
    %1877 = vmatprep.subr.bf16.mxu0 0
    %1878 = vmatpush1.bf16.msra.mxu0 0
    %1879 = vmatprep.subr.bf16.mxu0 0
    %1880 = vmatpush1.bf16.msra.mxu0 0
    %1881 = vmatprep.subr.bf16.mxu0 0
    %1882 = vmatpush1.bf16.msra.mxu0 0
    %1883 = vmatprep.mubr.bf16.mxu0 0
    %1884 = vmatmul.mubr.bf16.gmra.mrb[0].mxu0 %v1726
    %v1885 = vpop.f32.mrb[0].mxu0
    %v1886 = vadd.f32 %v1845, %v1885
    %v1887 = vpop.f32.mrb[0].mxu0
    %v1888 = vadd.f32 %v1847, %v1887
    %v1889 = vpop.f32.mrb[0].mxu0
    %v1890 = vpop.f32.mrb[0].mxu0
    %1891 = vdwg.mxu0
    %1892 = vmatprep.subr.bf16.mxu0 %v1442
    %1893 = vmatpush1.bf16.msra.mxu0 %v1441
    %1894 = vmatprep.subr.bf16.mxu0 %v1450
    %1895 = vmatpush1.bf16.msra.mxu0 %v1449
    %1896 = vmatprep.subr.bf16.mxu0 %v1458
    %1897 = vmatpush1.bf16.msra.mxu0 %v1457
    %1898 = vmatprep.subr.bf16.mxu0 %v1466
    %1899 = vmatpush1.bf16.msra.mxu0 %v1465
    %1900 = vmatprep.subr.bf16.mxu0 %v1474
    %1901 = vmatpush1.bf16.msra.mxu0 %v1473
    %1902 = vmatprep.subr.bf16.mxu0 %v1482
    %1903 = vmatpush1.bf16.msra.mxu0 %v1481
    %1904 = vmatprep.subr.bf16.mxu0 %v1490
    %1905 = vmatpush1.bf16.msra.mxu0 %v1489
    %1906 = vmatprep.subr.bf16.mxu0 %v1498
    %1907 = vmatpush1.bf16.msra.mxu0 %v1497
    %1908 = vmatprep.subr.bf16.mxu0 %v1506
    %1909 = vmatpush1.bf16.msra.mxu0 %v1505
    %1910 = vmatprep.subr.bf16.mxu0 %v1514
    %1911 = vmatpush1.bf16.msra.mxu0 %v1513
    %1912 = vmatprep.subr.bf16.mxu0 %v1522
    %1913 = vmatpush1.bf16.msra.mxu0 %v1521
    %1914 = vmatprep.subr.bf16.mxu0 %v1530
    %1915 = vmatpush1.bf16.msra.mxu0 %v1529
    %1916 = vmatprep.subr.bf16.mxu0 %v1538
    %1917 = vmatpush1.bf16.msra.mxu0 %v1537
    %1918 = vmatprep.subr.bf16.mxu0 %v1546
    %1919 = vmatpush1.bf16.msra.mxu0 %v1545
    %1920 = vmatprep.subr.bf16.mxu0 %v1554
    %1921 = vmatpush1.bf16.msra.mxu0 %v1553
    %1922 = vmatprep.subr.bf16.mxu0 %v1562
    %1923 = vmatpush1.bf16.msra.mxu0 %v1561
    %1924 = vmatprep.mubr.bf16.mxu0 %v817
    %1925 = vmatmul.mubr.bf16.gmra.mrb[0].mxu0 %v816
    %v1926 = vpop.f32.mrb[0].mxu0
    %v1927 = vadd.f32 %v984, %v1926
    %v1928 = vpop.f32.mrb[0].mxu0
    %v1929 = vadd.f32 %v988, %v1928
    %v1930 = vpop.f32.mrb[0].mxu0
    %v1931 = vpop.f32.mrb[0].mxu0
    %1932 = vdwg.mxu0
    %1933 = vmatprep.subr.bf16.mxu0 %v1570
    %1934 = vmatpush1.bf16.msra.mxu0 %v1569
    %1935 = vmatprep.subr.bf16.mxu0 %v1578
    %1936 = vmatpush1.bf16.msra.mxu0 %v1577
    %1937 = vmatprep.subr.bf16.mxu0 0
    %1938 = vmatpush1.bf16.msra.mxu0 0
    %1939 = vmatprep.subr.bf16.mxu0 0
    %1940 = vmatpush1.bf16.msra.mxu0 0
    %1941 = vmatprep.subr.bf16.mxu0 0
    %1942 = vmatpush1.bf16.msra.mxu0 0
    %1943 = vmatprep.subr.bf16.mxu0 0
    %1944 = vmatpush1.bf16.msra.mxu0 0
    %1945 = vmatprep.subr.bf16.mxu0 0
    %1946 = vmatpush1.bf16.msra.mxu0 0
    %1947 = vmatprep.subr.bf16.mxu0 0
    %1948 = vmatpush1.bf16.msra.mxu0 0
    %1949 = vmatprep.subr.bf16.mxu0 0
    %1950 = vmatpush1.bf16.msra.mxu0 0
    %1951 = vmatprep.subr.bf16.mxu0 0
    %1952 = vmatpush1.bf16.msra.mxu0 0
    %1953 = vmatprep.subr.bf16.mxu0 0
    %1954 = vmatpush1.bf16.msra.mxu0 0
    %1955 = vmatprep.subr.bf16.mxu0 0
    %1956 = vmatpush1.bf16.msra.mxu0 0
    %1957 = vmatprep.subr.bf16.mxu0 0
    %1958 = vmatpush1.bf16.msra.mxu0 0
    %1959 = vmatprep.subr.bf16.mxu0 0
    %1960 = vmatpush1.bf16.msra.mxu0 0
    %1961 = vmatprep.subr.bf16.mxu0 0
    %1962 = vmatpush1.bf16.msra.mxu0 0
    %1963 = vmatprep.subr.bf16.mxu0 0
    %1964 = vmatpush1.bf16.msra.mxu0 0
    %1965 = vmatprep.mubr.bf16.mxu0 0
    %1966 = vmatmul.mubr.bf16.gmra.mrb[0].mxu0 %v1726
    %v1967 = vpop.f32.mrb[0].mxu0
    %v1968 = vadd.f32 %v1927, %v1967
    %v1969 = vpop.f32.mrb[0].mxu0
    %v1970 = vadd.f32 %v1929, %v1969
    %v1971 = vpop.f32.mrb[0].mxu0
    %v1972 = vpop.f32.mrb[0].mxu0
    %1973 = vdwg.mxu0
    %1974 = vmatprep.subr.bf16.mxu0 %v1444
    %1975 = vmatpush1.bf16.msra.mxu0 %v1443
    %1976 = vmatprep.subr.bf16.mxu0 %v1452
    %1977 = vmatpush1.bf16.msra.mxu0 %v1451
    %1978 = vmatprep.subr.bf16.mxu0 %v1460
    %1979 = vmatpush1.bf16.msra.mxu0 %v1459
    %1980 = vmatprep.subr.bf16.mxu0 %v1468
    %1981 = vmatpush1.bf16.msra.mxu0 %v1467
    %1982 = vmatprep.subr.bf16.mxu0 %v1476
    %1983 = vmatpush1.bf16.msra.mxu0 %v1475
    %1984 = vmatprep.subr.bf16.mxu0 %v1484
    %1985 = vmatpush1.bf16.msra.mxu0 %v1483
    %1986 = vmatprep.subr.bf16.mxu0 %v1492
    %1987 = vmatpush1.bf16.msra.mxu0 %v1491
    %1988 = vmatprep.subr.bf16.mxu0 %v1500
    %1989 = vmatpush1.bf16.msra.mxu0 %v1499
    %1990 = vmatprep.subr.bf16.mxu0 %v1508
    %1991 = vmatpush1.bf16.msra.mxu0 %v1507
    %1992 = vmatprep.subr.bf16.mxu0 %v1516
    %1993 = vmatpush1.bf16.msra.mxu0 %v1515
    %1994 = vmatprep.subr.bf16.mxu0 %v1524
    %1995 = vmatpush1.bf16.msra.mxu0 %v1523
    %1996 = vmatprep.subr.bf16.mxu0 %v1532
    %1997 = vmatpush1.bf16.msra.mxu0 %v1531
    %1998 = vmatprep.subr.bf16.mxu0 %v1540
    %1999 = vmatpush1.bf16.msra.mxu0 %v1539
    %2000 = vmatprep.subr.bf16.mxu0 %v1548
    %2001 = vmatpush1.bf16.msra.mxu0 %v1547
    %2002 = vmatprep.subr.bf16.mxu0 %v1556
    %2003 = vmatpush1.bf16.msra.mxu0 %v1555
    %2004 = vmatprep.subr.bf16.mxu0 %v1564
    %2005 = vmatpush1.bf16.msra.mxu0 %v1563
    %2006 = vmatprep.mubr.bf16.mxu0 %v817
    %2007 = vmatmul.mubr.bf16.gmra.mrb[0].mxu0 %v816
    %v2008 = vpop.f32.mrb[0].mxu0
    %v2009 = vadd.f32 %v992, %v2008
    %v2010 = vpop.f32.mrb[0].mxu0
    %v2011 = vadd.f32 %v996, %v2010
    %v2012 = vpop.f32.mrb[0].mxu0
    %v2013 = vpop.f32.mrb[0].mxu0
    %2014 = vdwg.mxu0
    %2015 = vmatprep.subr.bf16.mxu0 %v1572
    %2016 = vmatpush1.bf16.msra.mxu0 %v1571
    %2017 = vmatprep.subr.bf16.mxu0 %v1580
    %2018 = vmatpush1.bf16.msra.mxu0 %v1579
    %2019 = vmatprep.subr.bf16.mxu0 0
    %2020 = vmatpush1.bf16.msra.mxu0 0
    %2021 = vmatprep.subr.bf16.mxu0 0
    %2022 = vmatpush1.bf16.msra.mxu0 0
    %2023 = vmatprep.subr.bf16.mxu0 0
    %2024 = vmatpush1.bf16.msra.mxu0 0
    %2025 = vmatprep.subr.bf16.mxu0 0
    %2026 = vmatpush1.bf16.msra.mxu0 0
    %2027 = vmatprep.subr.bf16.mxu0 0
    %2028 = vmatpush1.bf16.msra.mxu0 0
    %2029 = vmatprep.subr.bf16.mxu0 0
    %2030 = vmatpush1.bf16.msra.mxu0 0
    %2031 = vmatprep.subr.bf16.mxu0 0
    %2032 = vmatpush1.bf16.msra.mxu0 0
    %2033 = vmatprep.subr.bf16.mxu0 0
    %2034 = vmatpush1.bf16.msra.mxu0 0
    %2035 = vmatprep.subr.bf16.mxu0 0
    %2036 = vmatpush1.bf16.msra.mxu0 0
    %2037 = vmatprep.subr.bf16.mxu0 0
    %2038 = vmatpush1.bf16.msra.mxu0 0
    %2039 = vmatprep.subr.bf16.mxu0 0
    %2040 = vmatpush1.bf16.msra.mxu0 0
    %2041 = vmatprep.subr.bf16.mxu0 0
    %2042 = vmatpush1.bf16.msra.mxu0 0
    %2043 = vmatprep.subr.bf16.mxu0 0
    %2044 = vmatpush1.bf16.msra.mxu0 0
    %2045 = vmatprep.subr.bf16.mxu0 0
    %2046 = vmatpush1.bf16.msra.mxu0 0
    %2047 = vmatprep.mubr.bf16.mxu0 0
    %2048 = vmatmul.mubr.bf16.gmra.mrb[0].mxu0 %v1726
    %v2049 = vpop.f32.mrb[0].mxu0
    %v2050 = vadd.f32 %v2009, %v2049
    %v2051 = vpop.f32.mrb[0].mxu0
    %v2052 = vadd.f32 %v2011, %v2051
    %v2053 = vpop.f32.mrb[0].mxu0
    %v2054 = vpop.f32.mrb[0].mxu0
    %2055 = vdwg.mxu0
    %v2056 = vmax.f32 %v1804, 0.0
    %v2057 = vmax.f32 %v1806, 0.0
    %v2058 = vmax.f32 %v1886, 0.0
    %v2059 = vmax.f32 %v1888, 0.0
    %v2060 = vmax.f32 %v1968, 0.0
    %v2061 = vmax.f32 %v1970, 0.0
    %v2062 = vmax.f32 %v2050, 0.0
    %v2063 = vmax.f32 %v2052, 0.0
    %v2064 = vpack.c.bf16 %v2056, %v2056
    %v2065 = vpack.c.bf16 %v2057, %v2057
    %v2066 = vpack.c.bf16 %v2058, %v2058
    %v2067 = vpack.c.bf16 %v2059, %v2059
    %v2068 = vpack.c.bf16 %v2060, %v2060
    %v2069 = vpack.c.bf16 %v2061, %v2061
    %v2070 = vpack.c.bf16 %v2062, %v2062
    %v2071 = vpack.c.bf16 %v2063, %v2063
    %v2072 = vld [vmem:[#allocation11] sm:$0xff]
    %v2073 = vld [vmem:[#allocation11 + $0x8] sm:$0xff]
    %v2074 = vld [vmem:[#allocation11 + $0x10] sm:$0xff]
    %v2075 = vld [vmem:[#allocation11 + $0x18] sm:$0xff]
    %v2076 = vld [vmem:[#allocation11 + $0x20] sm:$0xff]
    %v2077 = vld [vmem:[#allocation11 + $0x28] sm:$0xff]
    %v2078 = vld [vmem:[#allocation11 + $0x30] sm:$0xff]
    %v2079 = vld [vmem:[#allocation11 + $0x38] sm:$0xff]
    %v2080 = vld [vmem:[#allocation11 + $0x40] sm:$0xff]
    %v2081 = vld [vmem:[#allocation11 + $0x48] sm:$0xff]
    %v2082 = vld [vmem:[#allocation11 + $0x50] sm:$0xff]
    %v2083 = vld [vmem:[#allocation11 + $0x58] sm:$0xff]
    %v2084 = vld [vmem:[#allocation11 + $0x60] sm:$0xff]
    %v2085 = vld [vmem:[#allocation11 + $0x68] sm:$0xff]
    %v2086 = vld [vmem:[#allocation11 + $0x70] sm:$0xff]
    %v2087 = vld [vmem:[#allocation11 + $0x78] sm:$0xff]
    %v2088 = vld [vmem:[#allocation11 + $0x80] sm:$0xff]
    %v2089 = vld [vmem:[#allocation11 + $0x88] sm:$0xff]
    %v2090 = vld [vmem:[#allocation11 + $0x90] sm:$0xff]
    %v2091 = vld [vmem:[#allocation11 + $0x98] sm:$0xff]
    %v2092 = vld [vmem:[#allocation11 + $0xa0] sm:$0xff]
    %v2093 = vld [vmem:[#allocation11 + $0xa8] sm:$0xff]
    %v2094 = vld [vmem:[#allocation11 + $0xb0] sm:$0xff]
    %v2095 = vld [vmem:[#allocation11 + $0xb8] sm:$0xff]
    %v2096 = vld [vmem:[#allocation11 + $0xc0] sm:$0xff]
    %v2097 = vld [vmem:[#allocation11 + $0xc8] sm:$0xff]
    %v2098 = vld [vmem:[#allocation11 + $0xd0] sm:$0xff]
    %v2099 = vld [vmem:[#allocation11 + $0xd8] sm:$0xff]
    %v2100 = vld [vmem:[#allocation11 + $0xe0] sm:$0xff]
    %v2101 = vld [vmem:[#allocation11 + $0xe8] sm:$0xff]
    %v2102 = vld [vmem:[#allocation11 + $0xf0] sm:$0xff]
    %v2103 = vld [vmem:[#allocation11 + $0xf8] sm:$0xff]
    %v2104 = vld [vmem:[#allocation11 + $0x100] sm:$0xff]
    %v2105 = vld [vmem:[#allocation11 + $0x108] sm:$0xff]
    %v2106 = vld [vmem:[#allocation11 + $0x110] sm:$0xff]
    %v2107 = vld [vmem:[#allocation11 + $0x118] sm:$0xff]
    %v2108 = vld [vmem:[#allocation11 + $0x120] sm:$0xff]
    %v2109 = vld [vmem:[#allocation11 + $0x128] sm:$0xff]
    %v2110 = vld [vmem:[#allocation11 + $0x130] sm:$0xff]
    %v2111 = vld [vmem:[#allocation11 + $0x138] sm:$0xff]
    %v2112 = vld [vmem:[#allocation11 + $0x140] sm:$0xff]
    %v2113 = vld [vmem:[#allocation11 + $0x148] sm:$0xff]
    %v2114 = vld [vmem:[#allocation11 + $0x150] sm:$0xff]
    %v2115 = vld [vmem:[#allocation11 + $0x158] sm:$0xff]
    %v2116 = vld [vmem:[#allocation11 + $0x160] sm:$0xff]
    %v2117 = vld [vmem:[#allocation11 + $0x168] sm:$0xff]
    %v2118 = vld [vmem:[#allocation11 + $0x170] sm:$0xff]
    %v2119 = vld [vmem:[#allocation11 + $0x178] sm:$0xff]
    %v2120 = vld [vmem:[#allocation11 + $0x180] sm:$0xff]
    %v2121 = vld [vmem:[#allocation11 + $0x188] sm:$0xff]
    %v2122 = vld [vmem:[#allocation11 + $0x190] sm:$0xff]
    %v2123 = vld [vmem:[#allocation11 + $0x198] sm:$0xff]
    %v2124 = vld [vmem:[#allocation11 + $0x1a0] sm:$0xff]
    %v2125 = vld [vmem:[#allocation11 + $0x1a8] sm:$0xff]
    %v2126 = vld [vmem:[#allocation11 + $0x1b0] sm:$0xff]
    %v2127 = vld [vmem:[#allocation11 + $0x1b8] sm:$0xff]
    %v2128 = vld [vmem:[#allocation11 + $0x1c0] sm:$0xff]
    %v2129 = vld [vmem:[#allocation11 + $0x1c8] sm:$0xff]
    %v2130 = vld [vmem:[#allocation11 + $0x1d0] sm:$0xff]
    %v2131 = vld [vmem:[#allocation11 + $0x1d8] sm:$0xff]
    %v2132 = vld [vmem:[#allocation11 + $0x1e0] sm:$0xff]
    %v2133 = vld [vmem:[#allocation11 + $0x1e8] sm:$0xff]
    %v2134 = vld [vmem:[#allocation11 + $0x1f0] sm:$0xff]
    %v2135 = vld [vmem:[#allocation11 + $0x1f8] sm:$0xff]
    %v2136 = vld [vmem:[#allocation11 + $0x200] sm:$0xff]
    %v2137 = vld [vmem:[#allocation11 + $0x208] sm:$0xff]
    %v2138 = vld [vmem:[#allocation11 + $0x210] sm:$0xff]
    %v2139 = vld [vmem:[#allocation11 + $0x218] sm:$0xff]
    %v2140 = vld [vmem:[#allocation11 + $0x220] sm:$0xff]
    %v2141 = vld [vmem:[#allocation11 + $0x228] sm:$0xff]
    %v2142 = vld [vmem:[#allocation11 + $0x230] sm:$0xff]
    %v2143 = vld [vmem:[#allocation11 + $0x238] sm:$0xff]
    %v2144 = vld [vmem:[#allocation11 + $0x240] sm:$0xff]
    %v2145 = vld [vmem:[#allocation11 + $0x248] sm:$0xff]
    %v2146 = vld [vmem:[#allocation11 + $0x250] sm:$0xff]
    %v2147 = vld [vmem:[#allocation11 + $0x258] sm:$0xff]
    %v2148 = vld [vmem:[#allocation11 + $0x260] sm:$0xff]
    %v2149 = vld [vmem:[#allocation11 + $0x268] sm:$0xff]
    %v2150 = vld [vmem:[#allocation11 + $0x270] sm:$0xff]
    %v2151 = vld [vmem:[#allocation11 + $0x278] sm:$0xff]
    %v2152 = vld [vmem:[#allocation11 + $0x280] sm:$0xff]
    %v2153 = vld [vmem:[#allocation11 + $0x288] sm:$0xff]
    %v2154 = vld [vmem:[#allocation11 + $0x290] sm:$0xff]
    %v2155 = vld [vmem:[#allocation11 + $0x298] sm:$0xff]
    %v2156 = vld [vmem:[#allocation11 + $0x2a0] sm:$0xff]
    %v2157 = vld [vmem:[#allocation11 + $0x2a8] sm:$0xff]
    %v2158 = vld [vmem:[#allocation11 + $0x2b0] sm:$0xff]
    %v2159 = vld [vmem:[#allocation11 + $0x2b8] sm:$0xff]
    %v2160 = vld [vmem:[#allocation11 + $0x2c0] sm:$0xff]
    %v2161 = vld [vmem:[#allocation11 + $0x2c8] sm:$0xff]
    %v2162 = vld [vmem:[#allocation11 + $0x2d0] sm:$0xff]
    %v2163 = vld [vmem:[#allocation11 + $0x2d8] sm:$0xff]
    %v2164 = vld [vmem:[#allocation11 + $0x2e0] sm:$0xff]
    %v2165 = vld [vmem:[#allocation11 + $0x2e8] sm:$0xff]
    %v2166 = vld [vmem:[#allocation11 + $0x2f0] sm:$0xff]
    %v2167 = vld [vmem:[#allocation11 + $0x2f8] sm:$0xff]
    %v2168 = vld [vmem:[#allocation11 + $0x300] sm:$0xff]
    %v2169 = vld [vmem:[#allocation11 + $0x308] sm:$0xff]
    %v2170 = vld [vmem:[#allocation11 + $0x310] sm:$0xff]
    %v2171 = vld [vmem:[#allocation11 + $0x318] sm:$0xff]
    %v2172 = vld [vmem:[#allocation11 + $0x320] sm:$0xff]
    %v2173 = vld [vmem:[#allocation11 + $0x328] sm:$0xff]
    %v2174 = vld [vmem:[#allocation11 + $0x330] sm:$0xff]
    %v2175 = vld [vmem:[#allocation11 + $0x338] sm:$0xff]
    %v2176 = vld [vmem:[#allocation11 + $0x340] sm:$0xff]
    %v2177 = vld [vmem:[#allocation11 + $0x348] sm:$0xff]
    %v2178 = vld [vmem:[#allocation11 + $0x350] sm:$0xff]
    %v2179 = vld [vmem:[#allocation11 + $0x358] sm:$0xff]
    %v2180 = vld [vmem:[#allocation11 + $0x360] sm:$0xff]
    %v2181 = vld [vmem:[#allocation11 + $0x368] sm:$0xff]
    %v2182 = vld [vmem:[#allocation11 + $0x370] sm:$0xff]
    %v2183 = vld [vmem:[#allocation11 + $0x378] sm:$0xff]
    %v2184 = vld [vmem:[#allocation11 + $0x380] sm:$0xff]
    %v2185 = vld [vmem:[#allocation11 + $0x388] sm:$0xff]
    %v2186 = vld [vmem:[#allocation11 + $0x390] sm:$0xff]
    %v2187 = vld [vmem:[#allocation11 + $0x398] sm:$0xff]
    %v2188 = vld [vmem:[#allocation11 + $0x3a0] sm:$0xff]
    %v2189 = vld [vmem:[#allocation11 + $0x3a8] sm:$0xff]
    %v2190 = vld [vmem:[#allocation11 + $0x3b0] sm:$0xff]
    %v2191 = vld [vmem:[#allocation11 + $0x3b8] sm:$0xff]
    %v2192 = vld [vmem:[#allocation11 + $0x3c0] sm:$0xff]
    %v2193 = vld [vmem:[#allocation11 + $0x3c8] sm:$0xff]
    %v2194 = vld [vmem:[#allocation11 + $0x3d0] sm:$0xff]
    %v2195 = vld [vmem:[#allocation11 + $0x3d8] sm:$0xff]
    %v2196 = vld [vmem:[#allocation11 + $0x3e0] sm:$0xff]
    %v2197 = vld [vmem:[#allocation11 + $0x3e8] sm:$0xff]
    %v2198 = vld [vmem:[#allocation11 + $0x3f0] sm:$0xff]
    %v2199 = vld [vmem:[#allocation11 + $0x3f8] sm:$0xff]
    %v2200 = vld [vmem:[#allocation11 + $0x400] sm:$0xff]
    %v2201 = vld [vmem:[#allocation11 + $0x408] sm:$0xff]
    %v2202 = vld [vmem:[#allocation11 + $0x410] sm:$0xff]
    %v2203 = vld [vmem:[#allocation11 + $0x418] sm:$0xff]
    %v2204 = vld [vmem:[#allocation11 + $0x420] sm:$0xff]
    %v2205 = vld [vmem:[#allocation11 + $0x428] sm:$0xff]
    %v2206 = vld [vmem:[#allocation11 + $0x430] sm:$0xff]
    %v2207 = vld [vmem:[#allocation11 + $0x438] sm:$0xff]
    %v2208 = vld [vmem:[#allocation11 + $0x440] sm:$0xff]
    %v2209 = vld [vmem:[#allocation11 + $0x448] sm:$0xff]
    %v2210 = vld [vmem:[#allocation11 + $0x450] sm:$0xff]
    %v2211 = vld [vmem:[#allocation11 + $0x458] sm:$0xff]
    %v2212 = vld [vmem:[#allocation11 + $0x460] sm:$0xff]
    %v2213 = vld [vmem:[#allocation11 + $0x468] sm:$0xff]
    %v2214 = vld [vmem:[#allocation11 + $0x470] sm:$0xff]
    %v2215 = vld [vmem:[#allocation11 + $0x478] sm:$0xff]
    %v2216 = vld [vmem:[#allocation11 + $0x480] sm:$0xff]
    %v2217 = vld [vmem:[#allocation11 + $0x488] sm:$0xff]
    %v2218 = vld [vmem:[#allocation11 + $0x490] sm:$0xff]
    %v2219 = vld [vmem:[#allocation11 + $0x498] sm:$0xff]
    %v2220 = vld [vmem:[#allocation11 + $0x4a0] sm:$0xff]
    %v2221 = vld [vmem:[#allocation11 + $0x4a8] sm:$0xff]
    %v2222 = vld [vmem:[#allocation11 + $0x4b0] sm:$0xff]
    %v2223 = vld [vmem:[#allocation11 + $0x4b8] sm:$0xff]
    %v2224 = vld [vmem:[#allocation11 + $0x4c0] sm:$0xff]
    %v2225 = vld [vmem:[#allocation11 + $0x4c8] sm:$0xff]
    %v2226 = vld [vmem:[#allocation11 + $0x4d0] sm:$0xff]
    %v2227 = vld [vmem:[#allocation11 + $0x4d8] sm:$0xff]
    %v2228 = vld [vmem:[#allocation11 + $0x4e0] sm:$0xff]
    %v2229 = vld [vmem:[#allocation11 + $0x4e8] sm:$0xff]
    %v2230 = vld [vmem:[#allocation11 + $0x4f0] sm:$0xff]
    %v2231 = vld [vmem:[#allocation11 + $0x4f8] sm:$0xff]
    %v2232 = vld [vmem:[#allocation11 + $0x500] sm:$0xff]
    %v2233 = vld [vmem:[#allocation11 + $0x508] sm:$0xff]
    %v2234 = vld [vmem:[#allocation11 + $0x510] sm:$0xff]
    %v2235 = vld [vmem:[#allocation11 + $0x518] sm:$0xff]
    %v2236 = vld [vmem:[#allocation11 + $0x520] sm:$0xff]
    %v2237 = vld [vmem:[#allocation11 + $0x528] sm:$0xff]
    %v2238 = vld [vmem:[#allocation11 + $0x530] sm:$0xff]
    %v2239 = vld [vmem:[#allocation11 + $0x538] sm:$0xff]
    %v2240 = vld [vmem:[#allocation11 + $0x540] sm:$0xff]
    %v2241 = vld [vmem:[#allocation11 + $0x548] sm:$0xff]
    %v2242 = vld [vmem:[#allocation11 + $0x550] sm:$0xff]
    %v2243 = vld [vmem:[#allocation11 + $0x558] sm:$0xff]
    %v2244 = vld [vmem:[#allocation11 + $0x560] sm:$0xff]
    %v2245 = vld [vmem:[#allocation11 + $0x568] sm:$0xff]
    %v2246 = vld [vmem:[#allocation11 + $0x570] sm:$0xff]
    %v2247 = vld [vmem:[#allocation11 + $0x578] sm:$0xff]
    %v2248 = vld [vmem:[#allocation11 + $0x580] sm:$0xff]
    %v2249 = vld [vmem:[#allocation11 + $0x588] sm:$0xff]
    %v2250 = vld [vmem:[#allocation11 + $0x590] sm:$0xff]
    %v2251 = vld [vmem:[#allocation11 + $0x598] sm:$0xff]
    %v2252 = vld [vmem:[#allocation11 + $0x5a0] sm:$0xff]
    %v2253 = vld [vmem:[#allocation11 + $0x5a8] sm:$0xff]
    %v2254 = vld [vmem:[#allocation11 + $0x5b0] sm:$0xff]
    %v2255 = vld [vmem:[#allocation11 + $0x5b8] sm:$0xff]
    %v2256 = vld [vmem:[#allocation11 + $0x5c0] sm:$0xff]
    %v2257 = vld [vmem:[#allocation11 + $0x5c8] sm:$0xff]
    %v2258 = vld [vmem:[#allocation11 + $0x5d0] sm:$0xff]
    %v2259 = vld [vmem:[#allocation11 + $0x5d8] sm:$0xff]
    %v2260 = vld [vmem:[#allocation11 + $0x5e0] sm:$0xff]
    %v2261 = vld [vmem:[#allocation11 + $0x5e8] sm:$0xff]
    %v2262 = vld [vmem:[#allocation11 + $0x5f0] sm:$0xff]
    %v2263 = vld [vmem:[#allocation11 + $0x5f8] sm:$0xff]
    %v2264 = vld [vmem:[#allocation11 + $0x600] sm:$0xff]
    %v2265 = vld [vmem:[#allocation11 + $0x608] sm:$0xff]
    %v2266 = vld [vmem:[#allocation11 + $0x610] sm:$0xff]
    %v2267 = vld [vmem:[#allocation11 + $0x618] sm:$0xff]
    %v2268 = vld [vmem:[#allocation11 + $0x620] sm:$0xff]
    %v2269 = vld [vmem:[#allocation11 + $0x628] sm:$0xff]
    %v2270 = vld [vmem:[#allocation11 + $0x630] sm:$0xff]
    %v2271 = vld [vmem:[#allocation11 + $0x638] sm:$0xff]
    %v2272 = vld [vmem:[#allocation11 + $0x640] sm:$0xff]
    %v2273 = vld [vmem:[#allocation11 + $0x648] sm:$0xff]
    %v2274 = vld [vmem:[#allocation11 + $0x650] sm:$0xff]
    %v2275 = vld [vmem:[#allocation11 + $0x658] sm:$0xff]
    %v2276 = vld [vmem:[#allocation11 + $0x660] sm:$0xff]
    %v2277 = vld [vmem:[#allocation11 + $0x668] sm:$0xff]
    %v2278 = vld [vmem:[#allocation11 + $0x670] sm:$0xff]
    %v2279 = vld [vmem:[#allocation11 + $0x678] sm:$0xff]
    %v2280 = vld [vmem:[#allocation11 + $0x680] sm:$0xff]
    %v2281 = vld [vmem:[#allocation11 + $0x688] sm:$0xff]
    %v2282 = vld [vmem:[#allocation11 + $0x690] sm:$0xff]
    %v2283 = vld [vmem:[#allocation11 + $0x698] sm:$0xff]
    %v2284 = vld [vmem:[#allocation11 + $0x6a0] sm:$0xff]
    %v2285 = vld [vmem:[#allocation11 + $0x6a8] sm:$0xff]
    %v2286 = vld [vmem:[#allocation11 + $0x6b0] sm:$0xff]
    %v2287 = vld [vmem:[#allocation11 + $0x6b8] sm:$0xff]
    %v2288 = vld [vmem:[#allocation11 + $0x6c0] sm:$0xff]
    %v2289 = vld [vmem:[#allocation11 + $0x6c8] sm:$0xff]
    %v2290 = vld [vmem:[#allocation11 + $0x6d0] sm:$0xff]
    %v2291 = vld [vmem:[#allocation11 + $0x6d8] sm:$0xff]
    %v2292 = vld [vmem:[#allocation11 + $0x6e0] sm:$0xff]
    %v2293 = vld [vmem:[#allocation11 + $0x6e8] sm:$0xff]
    %v2294 = vld [vmem:[#allocation11 + $0x6f0] sm:$0xff]
    %v2295 = vld [vmem:[#allocation11 + $0x6f8] sm:$0xff]
    %v2296 = vld [vmem:[#allocation11 + $0x700] sm:$0xff]
    %v2297 = vld [vmem:[#allocation11 + $0x708] sm:$0xff]
    %v2298 = vld [vmem:[#allocation11 + $0x710] sm:$0xff]
    %v2299 = vld [vmem:[#allocation11 + $0x718] sm:$0xff]
    %v2300 = vld [vmem:[#allocation11 + $0x720] sm:$0xff]
    %v2301 = vld [vmem:[#allocation11 + $0x728] sm:$0xff]
    %v2302 = vld [vmem:[#allocation11 + $0x730] sm:$0xff]
    %v2303 = vld [vmem:[#allocation11 + $0x738] sm:$0xff]
    %v2304 = vld [vmem:[#allocation11 + $0x740] sm:$0xff]
    %v2305 = vld [vmem:[#allocation11 + $0x748] sm:$0xff]
    %v2306 = vld [vmem:[#allocation11 + $0x750] sm:$0xff]
    %v2307 = vld [vmem:[#allocation11 + $0x758] sm:$0xff]
    %v2308 = vld [vmem:[#allocation11 + $0x760] sm:$0xff]
    %v2309 = vld [vmem:[#allocation11 + $0x768] sm:$0xff]
    %v2310 = vld [vmem:[#allocation11 + $0x770] sm:$0xff]
    %v2311 = vld [vmem:[#allocation11 + $0x778] sm:$0xff]
    %v2312 = vld [vmem:[#allocation11 + $0x780] sm:$0xff]
    %v2313 = vld [vmem:[#allocation11 + $0x788] sm:$0xff]
    %v2314 = vld [vmem:[#allocation11 + $0x790] sm:$0xff]
    %v2315 = vld [vmem:[#allocation11 + $0x798] sm:$0xff]
    %v2316 = vld [vmem:[#allocation11 + $0x7a0] sm:$0xff]
    %v2317 = vld [vmem:[#allocation11 + $0x7a8] sm:$0xff]
    %v2318 = vld [vmem:[#allocation11 + $0x7b0] sm:$0xff]
    %v2319 = vld [vmem:[#allocation11 + $0x7b8] sm:$0xff]
    %v2320 = vld [vmem:[#allocation11 + $0x7c0] sm:$0xff]
    %v2321 = vld [vmem:[#allocation11 + $0x7c8] sm:$0xff]
    %v2322 = vld [vmem:[#allocation11 + $0x7d0] sm:$0xff]
    %v2323 = vld [vmem:[#allocation11 + $0x7d8] sm:$0xff]
    %v2324 = vld [vmem:[#allocation11 + $0x7e0] sm:$0xff]
    %v2325 = vld [vmem:[#allocation11 + $0x7e8] sm:$0xff]
    %v2326 = vld [vmem:[#allocation11 + $0x7f0] sm:$0xff]
    %v2327 = vld [vmem:[#allocation11 + $0x7f8] sm:$0xff]
    %v2328 = vld [vmem:[%s8] sm:$0xf]
    %v2330 = vlaneseq
    %v2331 = vshrl.u32 %v2330, 7
    %v2332 = vsub.s32 0, %v2331
    %v2333 = vrot.slane %v2328, %v2332
    %v2334 = vlaneseq
    %v2335 = vshrl.u32 %v2334, 7
    %v2336 = vsub.s32 1, %v2335
    %v2337 = vrot.slane %v2328, %v2336
    %v2338 = vlaneseq
    %v2339 = vshrl.u32 %v2338, 7
    %v2340 = vsub.s32 2, %v2339
    %v2341 = vrot.slane %v2328, %v2340
    %v2342 = vlaneseq
    %v2343 = vshrl.u32 %v2342, 7
    %v2344 = vsub.s32 3, %v2343
    %v2345 = vrot.slane %v2328, %v2344
    %v2606 = vunpack.c.l.b16 %v2072
    %v2607 = vunpack.c.h.b16 %v2072
    %v2608 = vunpack.c.l.b16 %v2073
    %v2609 = vunpack.c.h.b16 %v2073
    %v2610 = vunpack.c.l.b16 %v2074
    %v2611 = vunpack.c.h.b16 %v2074
    %v2612 = vunpack.c.l.b16 %v2075
    %v2613 = vunpack.c.h.b16 %v2075
    %v2614 = vunpack.c.l.b16 %v2076
    %v2615 = vunpack.c.h.b16 %v2076
    %v2616 = vunpack.c.l.b16 %v2077
    %v2617 = vunpack.c.h.b16 %v2077
    %v2618 = vunpack.c.l.b16 %v2078
    %v2619 = vunpack.c.h.b16 %v2078
    %v2620 = vunpack.c.l.b16 %v2079
    %v2621 = vunpack.c.h.b16 %v2079
    %v2622 = vunpack.c.l.b16 %v2080
    %v2623 = vunpack.c.h.b16 %v2080
    %v2624 = vunpack.c.l.b16 %v2081
    %v2625 = vunpack.c.h.b16 %v2081
    %v2626 = vunpack.c.l.b16 %v2082
    %v2627 = vunpack.c.h.b16 %v2082
    %v2628 = vunpack.c.l.b16 %v2083
    %v2629 = vunpack.c.h.b16 %v2083
    %v2630 = vunpack.c.l.b16 %v2084
    %v2631 = vunpack.c.h.b16 %v2084
    %v2632 = vunpack.c.l.b16 %v2085
    %v2633 = vunpack.c.h.b16 %v2085
    %v2634 = vunpack.c.l.b16 %v2086
    %v2635 = vunpack.c.h.b16 %v2086
    %v2636 = vunpack.c.l.b16 %v2087
    %v2637 = vunpack.c.h.b16 %v2087
    %v2638 = vunpack.c.l.b16 %v2088
    %v2639 = vunpack.c.h.b16 %v2088
    %v2640 = vunpack.c.l.b16 %v2089
    %v2641 = vunpack.c.h.b16 %v2089
    %v2642 = vunpack.c.l.b16 %v2090
    %v2643 = vunpack.c.h.b16 %v2090
    %v2644 = vunpack.c.l.b16 %v2091
    %v2645 = vunpack.c.h.b16 %v2091
    %v2646 = vunpack.c.l.b16 %v2092
    %v2647 = vunpack.c.h.b16 %v2092
    %v2648 = vunpack.c.l.b16 %v2093
    %v2649 = vunpack.c.h.b16 %v2093
    %v2650 = vunpack.c.l.b16 %v2094
    %v2651 = vunpack.c.h.b16 %v2094
    %v2652 = vunpack.c.l.b16 %v2095
    %v2653 = vunpack.c.h.b16 %v2095
    %v2654 = vunpack.c.l.b16 %v2096
    %v2655 = vunpack.c.h.b16 %v2096
    %v2656 = vunpack.c.l.b16 %v2097
    %v2657 = vunpack.c.h.b16 %v2097
    %v2658 = vunpack.c.l.b16 %v2098
    %v2659 = vunpack.c.h.b16 %v2098
    %v2660 = vunpack.c.l.b16 %v2099
    %v2661 = vunpack.c.h.b16 %v2099
    %v2662 = vunpack.c.l.b16 %v2100
    %v2663 = vunpack.c.h.b16 %v2100
    %v2664 = vunpack.c.l.b16 %v2101
    %v2665 = vunpack.c.h.b16 %v2101
    %v2666 = vunpack.c.l.b16 %v2102
    %v2667 = vunpack.c.h.b16 %v2102
    %v2668 = vunpack.c.l.b16 %v2103
    %v2669 = vunpack.c.h.b16 %v2103
    %v2670 = vunpack.c.l.b16 %v2104
    %v2671 = vunpack.c.h.b16 %v2104
    %v2672 = vunpack.c.l.b16 %v2105
    %v2673 = vunpack.c.h.b16 %v2105
    %v2674 = vunpack.c.l.b16 %v2106
    %v2675 = vunpack.c.h.b16 %v2106
    %v2676 = vunpack.c.l.b16 %v2107
    %v2677 = vunpack.c.h.b16 %v2107
    %v2678 = vunpack.c.l.b16 %v2108
    %v2679 = vunpack.c.h.b16 %v2108
    %v2680 = vunpack.c.l.b16 %v2109
    %v2681 = vunpack.c.h.b16 %v2109
    %v2682 = vunpack.c.l.b16 %v2110
    %v2683 = vunpack.c.h.b16 %v2110
    %v2684 = vunpack.c.l.b16 %v2111
    %v2685 = vunpack.c.h.b16 %v2111
    %v2686 = vunpack.c.l.b16 %v2112
    %v2687 = vunpack.c.h.b16 %v2112
    %v2688 = vunpack.c.l.b16 %v2113
    %v2689 = vunpack.c.h.b16 %v2113
    %v2690 = vunpack.c.l.b16 %v2114
    %v2691 = vunpack.c.h.b16 %v2114
    %v2692 = vunpack.c.l.b16 %v2115
    %v2693 = vunpack.c.h.b16 %v2115
    %v2694 = vunpack.c.l.b16 %v2116
    %v2695 = vunpack.c.h.b16 %v2116
    %v2696 = vunpack.c.l.b16 %v2117
    %v2697 = vunpack.c.h.b16 %v2117
    %v2698 = vunpack.c.l.b16 %v2118
    %v2699 = vunpack.c.h.b16 %v2118
    %v2700 = vunpack.c.l.b16 %v2119
    %v2701 = vunpack.c.h.b16 %v2119
    %v2702 = vunpack.c.l.b16 %v2120
    %v2703 = vunpack.c.h.b16 %v2120
    %v2704 = vunpack.c.l.b16 %v2121
    %v2705 = vunpack.c.h.b16 %v2121
    %v2706 = vunpack.c.l.b16 %v2122
    %v2707 = vunpack.c.h.b16 %v2122
    %v2708 = vunpack.c.l.b16 %v2123
    %v2709 = vunpack.c.h.b16 %v2123
    %v2710 = vunpack.c.l.b16 %v2124
    %v2711 = vunpack.c.h.b16 %v2124
    %v2712 = vunpack.c.l.b16 %v2125
    %v2713 = vunpack.c.h.b16 %v2125
    %v2714 = vunpack.c.l.b16 %v2126
    %v2715 = vunpack.c.h.b16 %v2126
    %v2716 = vunpack.c.l.b16 %v2127
    %v2717 = vunpack.c.h.b16 %v2127
    %v2718 = vunpack.c.l.b16 %v2128
    %v2719 = vunpack.c.h.b16 %v2128
    %v2720 = vunpack.c.l.b16 %v2129
    %v2721 = vunpack.c.h.b16 %v2129
    %v2722 = vunpack.c.l.b16 %v2130
    %v2723 = vunpack.c.h.b16 %v2130
    %v2724 = vunpack.c.l.b16 %v2131
    %v2725 = vunpack.c.h.b16 %v2131
    %v2726 = vunpack.c.l.b16 %v2132
    %v2727 = vunpack.c.h.b16 %v2132
    %v2728 = vunpack.c.l.b16 %v2133
    %v2729 = vunpack.c.h.b16 %v2133
    %v2730 = vunpack.c.l.b16 %v2134
    %v2731 = vunpack.c.h.b16 %v2134
    %v2732 = vunpack.c.l.b16 %v2135
    %v2733 = vunpack.c.h.b16 %v2135
    %v2734 = vunpack.c.l.b16 %v2136
    %v2735 = vunpack.c.h.b16 %v2136
    %v2736 = vunpack.c.l.b16 %v2137
    %v2737 = vunpack.c.h.b16 %v2137
    %v2738 = vunpack.c.l.b16 %v2138
    %v2739 = vunpack.c.h.b16 %v2138
    %v2740 = vunpack.c.l.b16 %v2139
    %v2741 = vunpack.c.h.b16 %v2139
    %v2742 = vunpack.c.l.b16 %v2140
    %v2743 = vunpack.c.h.b16 %v2140
    %v2744 = vunpack.c.l.b16 %v2141
    %v2745 = vunpack.c.h.b16 %v2141
    %v2746 = vunpack.c.l.b16 %v2142
    %v2747 = vunpack.c.h.b16 %v2142
    %v2748 = vunpack.c.l.b16 %v2143
    %v2749 = vunpack.c.h.b16 %v2143
    %v2750 = vunpack.c.l.b16 %v2144
    %v2751 = vunpack.c.h.b16 %v2144
    %v2752 = vunpack.c.l.b16 %v2145
    %v2753 = vunpack.c.h.b16 %v2145
    %v2754 = vunpack.c.l.b16 %v2146
    %v2755 = vunpack.c.h.b16 %v2146
    %v2756 = vunpack.c.l.b16 %v2147
    %v2757 = vunpack.c.h.b16 %v2147
    %v2758 = vunpack.c.l.b16 %v2148
    %v2759 = vunpack.c.h.b16 %v2148
    %v2760 = vunpack.c.l.b16 %v2149
    %v2761 = vunpack.c.h.b16 %v2149
    %v2762 = vunpack.c.l.b16 %v2150
    %v2763 = vunpack.c.h.b16 %v2150
    %v2764 = vunpack.c.l.b16 %v2151
    %v2765 = vunpack.c.h.b16 %v2151
    %v2766 = vunpack.c.l.b16 %v2152
    %v2767 = vunpack.c.h.b16 %v2152
    %v2768 = vunpack.c.l.b16 %v2153
    %v2769 = vunpack.c.h.b16 %v2153
    %v2770 = vunpack.c.l.b16 %v2154
    %v2771 = vunpack.c.h.b16 %v2154
    %v2772 = vunpack.c.l.b16 %v2155
    %v2773 = vunpack.c.h.b16 %v2155
    %v2774 = vunpack.c.l.b16 %v2156
    %v2775 = vunpack.c.h.b16 %v2156
    %v2776 = vunpack.c.l.b16 %v2157
    %v2777 = vunpack.c.h.b16 %v2157
    %v2778 = vunpack.c.l.b16 %v2158
    %v2779 = vunpack.c.h.b16 %v2158
    %v2780 = vunpack.c.l.b16 %v2159
    %v2781 = vunpack.c.h.b16 %v2159
    %v2782 = vunpack.c.l.b16 %v2160
    %v2783 = vunpack.c.h.b16 %v2160
    %v2784 = vunpack.c.l.b16 %v2161
    %v2785 = vunpack.c.h.b16 %v2161
    %v2786 = vunpack.c.l.b16 %v2162
    %v2787 = vunpack.c.h.b16 %v2162
    %v2788 = vunpack.c.l.b16 %v2163
    %v2789 = vunpack.c.h.b16 %v2163
    %v2790 = vunpack.c.l.b16 %v2164
    %v2791 = vunpack.c.h.b16 %v2164
    %v2792 = vunpack.c.l.b16 %v2165
    %v2793 = vunpack.c.h.b16 %v2165
    %v2794 = vunpack.c.l.b16 %v2166
    %v2795 = vunpack.c.h.b16 %v2166
    %v2796 = vunpack.c.l.b16 %v2167
    %v2797 = vunpack.c.h.b16 %v2167
    %v2798 = vunpack.c.l.b16 %v2168
    %v2799 = vunpack.c.h.b16 %v2168
    %v2800 = vunpack.c.l.b16 %v2169
    %v2801 = vunpack.c.h.b16 %v2169
    %v2802 = vunpack.c.l.b16 %v2170
    %v2803 = vunpack.c.h.b16 %v2170
    %v2804 = vunpack.c.l.b16 %v2171
    %v2805 = vunpack.c.h.b16 %v2171
    %v2806 = vunpack.c.l.b16 %v2172
    %v2807 = vunpack.c.h.b16 %v2172
    %v2808 = vunpack.c.l.b16 %v2173
    %v2809 = vunpack.c.h.b16 %v2173
    %v2810 = vunpack.c.l.b16 %v2174
    %v2811 = vunpack.c.h.b16 %v2174
    %v2812 = vunpack.c.l.b16 %v2175
    %v2813 = vunpack.c.h.b16 %v2175
    %v2814 = vunpack.c.l.b16 %v2176
    %v2815 = vunpack.c.h.b16 %v2176
    %v2816 = vunpack.c.l.b16 %v2177
    %v2817 = vunpack.c.h.b16 %v2177
    %v2818 = vunpack.c.l.b16 %v2178
    %v2819 = vunpack.c.h.b16 %v2178
    %v2820 = vunpack.c.l.b16 %v2179
    %v2821 = vunpack.c.h.b16 %v2179
    %v2822 = vunpack.c.l.b16 %v2180
    %v2823 = vunpack.c.h.b16 %v2180
    %v2824 = vunpack.c.l.b16 %v2181
    %v2825 = vunpack.c.h.b16 %v2181
    %v2826 = vunpack.c.l.b16 %v2182
    %v2827 = vunpack.c.h.b16 %v2182
    %v2828 = vunpack.c.l.b16 %v2183
    %v2829 = vunpack.c.h.b16 %v2183
    %v2830 = vunpack.c.l.b16 %v2184
    %v2831 = vunpack.c.h.b16 %v2184
    %v2832 = vunpack.c.l.b16 %v2185
    %v2833 = vunpack.c.h.b16 %v2185
    %v2834 = vunpack.c.l.b16 %v2186
    %v2835 = vunpack.c.h.b16 %v2186
    %v2836 = vunpack.c.l.b16 %v2187
    %v2837 = vunpack.c.h.b16 %v2187
    %v2838 = vunpack.c.l.b16 %v2188
    %v2839 = vunpack.c.h.b16 %v2188
    %v2840 = vunpack.c.l.b16 %v2189
    %v2841 = vunpack.c.h.b16 %v2189
    %v2842 = vunpack.c.l.b16 %v2190
    %v2843 = vunpack.c.h.b16 %v2190
    %v2844 = vunpack.c.l.b16 %v2191
    %v2845 = vunpack.c.h.b16 %v2191
    %v2846 = vunpack.c.l.b16 %v2192
    %v2847 = vunpack.c.h.b16 %v2192
    %v2848 = vunpack.c.l.b16 %v2193
    %v2849 = vunpack.c.h.b16 %v2193
    %v2850 = vunpack.c.l.b16 %v2194
    %v2851 = vunpack.c.h.b16 %v2194
    %v2852 = vunpack.c.l.b16 %v2195
    %v2853 = vunpack.c.h.b16 %v2195
    %v2854 = vunpack.c.l.b16 %v2196
    %v2855 = vunpack.c.h.b16 %v2196
    %v2856 = vunpack.c.l.b16 %v2197
    %v2857 = vunpack.c.h.b16 %v2197
    %v2858 = vunpack.c.l.b16 %v2198
    %v2859 = vunpack.c.h.b16 %v2198
    %v2860 = vunpack.c.l.b16 %v2199
    %v2861 = vunpack.c.h.b16 %v2199
    %v2862 = vunpack.c.l.b16 %v2200
    %v2863 = vunpack.c.h.b16 %v2200
    %v2864 = vunpack.c.l.b16 %v2201
    %v2865 = vunpack.c.h.b16 %v2201
    %v2866 = vunpack.c.l.b16 %v2202
    %v2867 = vunpack.c.h.b16 %v2202
    %v2868 = vunpack.c.l.b16 %v2203
    %v2869 = vunpack.c.h.b16 %v2203
    %v2870 = vunpack.c.l.b16 %v2204
    %v2871 = vunpack.c.h.b16 %v2204
    %v2872 = vunpack.c.l.b16 %v2205
    %v2873 = vunpack.c.h.b16 %v2205
    %v2874 = vunpack.c.l.b16 %v2206
    %v2875 = vunpack.c.h.b16 %v2206
    %v2876 = vunpack.c.l.b16 %v2207
    %v2877 = vunpack.c.h.b16 %v2207
    %v2878 = vunpack.c.l.b16 %v2208
    %v2879 = vunpack.c.h.b16 %v2208
    %v2880 = vunpack.c.l.b16 %v2209
    %v2881 = vunpack.c.h.b16 %v2209
    %v2882 = vunpack.c.l.b16 %v2210
    %v2883 = vunpack.c.h.b16 %v2210
    %v2884 = vunpack.c.l.b16 %v2211
    %v2885 = vunpack.c.h.b16 %v2211
    %v2886 = vunpack.c.l.b16 %v2212
    %v2887 = vunpack.c.h.b16 %v2212
    %v2888 = vunpack.c.l.b16 %v2213
    %v2889 = vunpack.c.h.b16 %v2213
    %v2890 = vunpack.c.l.b16 %v2214
    %v2891 = vunpack.c.h.b16 %v2214
    %v2892 = vunpack.c.l.b16 %v2215
    %v2893 = vunpack.c.h.b16 %v2215
    %v2894 = vunpack.c.l.b16 %v2216
    %v2895 = vunpack.c.h.b16 %v2216
    %v2896 = vunpack.c.l.b16 %v2217
    %v2897 = vunpack.c.h.b16 %v2217
    %v2898 = vunpack.c.l.b16 %v2218
    %v2899 = vunpack.c.h.b16 %v2218
    %v2900 = vunpack.c.l.b16 %v2219
    %v2901 = vunpack.c.h.b16 %v2219
    %v2902 = vunpack.c.l.b16 %v2220
    %v2903 = vunpack.c.h.b16 %v2220
    %v2904 = vunpack.c.l.b16 %v2221
    %v2905 = vunpack.c.h.b16 %v2221
    %v2906 = vunpack.c.l.b16 %v2222
    %v2907 = vunpack.c.h.b16 %v2222
    %v2908 = vunpack.c.l.b16 %v2223
    %v2909 = vunpack.c.h.b16 %v2223
    %v2910 = vunpack.c.l.b16 %v2224
    %v2911 = vunpack.c.h.b16 %v2224
    %v2912 = vunpack.c.l.b16 %v2225
    %v2913 = vunpack.c.h.b16 %v2225
    %v2914 = vunpack.c.l.b16 %v2226
    %v2915 = vunpack.c.h.b16 %v2226
    %v2916 = vunpack.c.l.b16 %v2227
    %v2917 = vunpack.c.h.b16 %v2227
    %v2918 = vunpack.c.l.b16 %v2228
    %v2919 = vunpack.c.h.b16 %v2228
    %v2920 = vunpack.c.l.b16 %v2229
    %v2921 = vunpack.c.h.b16 %v2229
    %v2922 = vunpack.c.l.b16 %v2230
    %v2923 = vunpack.c.h.b16 %v2230
    %v2924 = vunpack.c.l.b16 %v2231
    %v2925 = vunpack.c.h.b16 %v2231
    %v2926 = vunpack.c.l.b16 %v2232
    %v2927 = vunpack.c.h.b16 %v2232
    %v2928 = vunpack.c.l.b16 %v2233
    %v2929 = vunpack.c.h.b16 %v2233
    %v2930 = vunpack.c.l.b16 %v2234
    %v2931 = vunpack.c.h.b16 %v2234
    %v2932 = vunpack.c.l.b16 %v2235
    %v2933 = vunpack.c.h.b16 %v2235
    %v2934 = vunpack.c.l.b16 %v2236
    %v2935 = vunpack.c.h.b16 %v2236
    %v2936 = vunpack.c.l.b16 %v2237
    %v2937 = vunpack.c.h.b16 %v2237
    %v2938 = vunpack.c.l.b16 %v2238
    %v2939 = vunpack.c.h.b16 %v2238
    %v2940 = vunpack.c.l.b16 %v2239
    %v2941 = vunpack.c.h.b16 %v2239
    %v2942 = vunpack.c.l.b16 %v2240
    %v2943 = vunpack.c.h.b16 %v2240
    %v2944 = vunpack.c.l.b16 %v2241
    %v2945 = vunpack.c.h.b16 %v2241
    %v2946 = vunpack.c.l.b16 %v2242
    %v2947 = vunpack.c.h.b16 %v2242
    %v2948 = vunpack.c.l.b16 %v2243
    %v2949 = vunpack.c.h.b16 %v2243
    %v2950 = vunpack.c.l.b16 %v2244
    %v2951 = vunpack.c.h.b16 %v2244
    %v2952 = vunpack.c.l.b16 %v2245
    %v2953 = vunpack.c.h.b16 %v2245
    %v2954 = vunpack.c.l.b16 %v2246
    %v2955 = vunpack.c.h.b16 %v2246
    %v2956 = vunpack.c.l.b16 %v2247
    %v2957 = vunpack.c.h.b16 %v2247
    %v2958 = vunpack.c.l.b16 %v2248
    %v2959 = vunpack.c.h.b16 %v2248
    %v2960 = vunpack.c.l.b16 %v2249
    %v2961 = vunpack.c.h.b16 %v2249
    %v2962 = vunpack.c.l.b16 %v2250
    %v2963 = vunpack.c.h.b16 %v2250
    %v2964 = vunpack.c.l.b16 %v2251
    %v2965 = vunpack.c.h.b16 %v2251
    %v2966 = vunpack.c.l.b16 %v2252
    %v2967 = vunpack.c.h.b16 %v2252
    %v2968 = vunpack.c.l.b16 %v2253
    %v2969 = vunpack.c.h.b16 %v2253
    %v2970 = vunpack.c.l.b16 %v2254
    %v2971 = vunpack.c.h.b16 %v2254
    %v2972 = vunpack.c.l.b16 %v2255
    %v2973 = vunpack.c.h.b16 %v2255
    %v2974 = vunpack.c.l.b16 %v2256
    %v2975 = vunpack.c.h.b16 %v2256
    %v2976 = vunpack.c.l.b16 %v2257
    %v2977 = vunpack.c.h.b16 %v2257
    %v2978 = vunpack.c.l.b16 %v2258
    %v2979 = vunpack.c.h.b16 %v2258
    %v2980 = vunpack.c.l.b16 %v2259
    %v2981 = vunpack.c.h.b16 %v2259
    %v2982 = vunpack.c.l.b16 %v2260
    %v2983 = vunpack.c.h.b16 %v2260
    %v2984 = vunpack.c.l.b16 %v2261
    %v2985 = vunpack.c.h.b16 %v2261
    %v2986 = vunpack.c.l.b16 %v2262
    %v2987 = vunpack.c.h.b16 %v2262
    %v2988 = vunpack.c.l.b16 %v2263
    %v2989 = vunpack.c.h.b16 %v2263
    %v2990 = vunpack.c.l.b16 %v2264
    %v2991 = vunpack.c.h.b16 %v2264
    %v2992 = vunpack.c.l.b16 %v2265
    %v2993 = vunpack.c.h.b16 %v2265
    %v2994 = vunpack.c.l.b16 %v2266
    %v2995 = vunpack.c.h.b16 %v2266
    %v2996 = vunpack.c.l.b16 %v2267
    %v2997 = vunpack.c.h.b16 %v2267
    %v2998 = vunpack.c.l.b16 %v2268
    %v2999 = vunpack.c.h.b16 %v2268
    %v3000 = vunpack.c.l.b16 %v2269
    %v3001 = vunpack.c.h.b16 %v2269
    %v3002 = vunpack.c.l.b16 %v2270
    %v3003 = vunpack.c.h.b16 %v2270
    %v3004 = vunpack.c.l.b16 %v2271
    %v3005 = vunpack.c.h.b16 %v2271
    %v3006 = vunpack.c.l.b16 %v2272
    %v3007 = vunpack.c.h.b16 %v2272
    %v3008 = vunpack.c.l.b16 %v2273
    %v3009 = vunpack.c.h.b16 %v2273
    %v3010 = vunpack.c.l.b16 %v2274
    %v3011 = vunpack.c.h.b16 %v2274
    %v3012 = vunpack.c.l.b16 %v2275
    %v3013 = vunpack.c.h.b16 %v2275
    %v3014 = vunpack.c.l.b16 %v2276
    %v3015 = vunpack.c.h.b16 %v2276
    %v3016 = vunpack.c.l.b16 %v2277
    %v3017 = vunpack.c.h.b16 %v2277
    %v3018 = vunpack.c.l.b16 %v2278
    %v3019 = vunpack.c.h.b16 %v2278
    %v3020 = vunpack.c.l.b16 %v2279
    %v3021 = vunpack.c.h.b16 %v2279
    %v3022 = vunpack.c.l.b16 %v2280
    %v3023 = vunpack.c.h.b16 %v2280
    %v3024 = vunpack.c.l.b16 %v2281
    %v3025 = vunpack.c.h.b16 %v2281
    %v3026 = vunpack.c.l.b16 %v2282
    %v3027 = vunpack.c.h.b16 %v2282
    %v3028 = vunpack.c.l.b16 %v2283
    %v3029 = vunpack.c.h.b16 %v2283
    %v3030 = vunpack.c.l.b16 %v2284
    %v3031 = vunpack.c.h.b16 %v2284
    %v3032 = vunpack.c.l.b16 %v2285
    %v3033 = vunpack.c.h.b16 %v2285
    %v3034 = vunpack.c.l.b16 %v2286
    %v3035 = vunpack.c.h.b16 %v2286
    %v3036 = vunpack.c.l.b16 %v2287
    %v3037 = vunpack.c.h.b16 %v2287
    %v3038 = vunpack.c.l.b16 %v2288
    %v3039 = vunpack.c.h.b16 %v2288
    %v3040 = vunpack.c.l.b16 %v2289
    %v3041 = vunpack.c.h.b16 %v2289
    %v3042 = vunpack.c.l.b16 %v2290
    %v3043 = vunpack.c.h.b16 %v2290
    %v3044 = vunpack.c.l.b16 %v2291
    %v3045 = vunpack.c.h.b16 %v2291
    %v3046 = vunpack.c.l.b16 %v2292
    %v3047 = vunpack.c.h.b16 %v2292
    %v3048 = vunpack.c.l.b16 %v2293
    %v3049 = vunpack.c.h.b16 %v2293
    %v3050 = vunpack.c.l.b16 %v2294
    %v3051 = vunpack.c.h.b16 %v2294
    %v3052 = vunpack.c.l.b16 %v2295
    %v3053 = vunpack.c.h.b16 %v2295
    %v3054 = vunpack.c.l.b16 %v2296
    %v3055 = vunpack.c.h.b16 %v2296
    %v3056 = vunpack.c.l.b16 %v2297
    %v3057 = vunpack.c.h.b16 %v2297
    %v3058 = vunpack.c.l.b16 %v2298
    %v3059 = vunpack.c.h.b16 %v2298
    %v3060 = vunpack.c.l.b16 %v2299
    %v3061 = vunpack.c.h.b16 %v2299
    %v3062 = vunpack.c.l.b16 %v2300
    %v3063 = vunpack.c.h.b16 %v2300
    %v3064 = vunpack.c.l.b16 %v2301
    %v3065 = vunpack.c.h.b16 %v2301
    %v3066 = vunpack.c.l.b16 %v2302
    %v3067 = vunpack.c.h.b16 %v2302
    %v3068 = vunpack.c.l.b16 %v2303
    %v3069 = vunpack.c.h.b16 %v2303
    %v3070 = vunpack.c.l.b16 %v2304
    %v3071 = vunpack.c.h.b16 %v2304
    %v3072 = vunpack.c.l.b16 %v2305
    %v3073 = vunpack.c.h.b16 %v2305
    %v3074 = vunpack.c.l.b16 %v2306
    %v3075 = vunpack.c.h.b16 %v2306
    %v3076 = vunpack.c.l.b16 %v2307
    %v3077 = vunpack.c.h.b16 %v2307
    %v3078 = vunpack.c.l.b16 %v2308
    %v3079 = vunpack.c.h.b16 %v2308
    %v3080 = vunpack.c.l.b16 %v2309
    %v3081 = vunpack.c.h.b16 %v2309
    %v3082 = vunpack.c.l.b16 %v2310
    %v3083 = vunpack.c.h.b16 %v2310
    %v3084 = vunpack.c.l.b16 %v2311
    %v3085 = vunpack.c.h.b16 %v2311
    %v3086 = vunpack.c.l.b16 %v2312
    %v3087 = vunpack.c.h.b16 %v2312
    %v3088 = vunpack.c.l.b16 %v2313
    %v3089 = vunpack.c.h.b16 %v2313
    %v3090 = vunpack.c.l.b16 %v2314
    %v3091 = vunpack.c.h.b16 %v2314
    %v3092 = vunpack.c.l.b16 %v2315
    %v3093 = vunpack.c.h.b16 %v2315
    %v3094 = vunpack.c.l.b16 %v2316
    %v3095 = vunpack.c.h.b16 %v2316
    %v3096 = vunpack.c.l.b16 %v2317
    %v3097 = vunpack.c.h.b16 %v2317
    %v3098 = vunpack.c.l.b16 %v2318
    %v3099 = vunpack.c.h.b16 %v2318
    %v3100 = vunpack.c.l.b16 %v2319
    %v3101 = vunpack.c.h.b16 %v2319
    %v3102 = vunpack.c.l.b16 %v2320
    %v3103 = vunpack.c.h.b16 %v2320
    %v3104 = vunpack.c.l.b16 %v2321
    %v3105 = vunpack.c.h.b16 %v2321
    %v3106 = vunpack.c.l.b16 %v2322
    %v3107 = vunpack.c.h.b16 %v2322
    %v3108 = vunpack.c.l.b16 %v2323
    %v3109 = vunpack.c.h.b16 %v2323
    %v3110 = vunpack.c.l.b16 %v2324
    %v3111 = vunpack.c.h.b16 %v2324
    %v3112 = vunpack.c.l.b16 %v2325
    %v3113 = vunpack.c.h.b16 %v2325
    %v3114 = vunpack.c.l.b16 %v2326
    %v3115 = vunpack.c.h.b16 %v2326
    %v3116 = vunpack.c.l.b16 %v2327
    %v3117 = vunpack.c.h.b16 %v2327
    %v3118 = vpack.c.b16 %v2610, %v2606
    %v3119 = vpack.c.b16 %v2611, %v2607
    %v3120 = vpack.c.b16 %v2612, %v2608
    %v3121 = vpack.c.b16 %v2613, %v2609
    %v3122 = vpack.c.b16 %v2618, %v2614
    %v3123 = vpack.c.b16 %v2619, %v2615
    %v3124 = vpack.c.b16 %v2620, %v2616
    %v3125 = vpack.c.b16 %v2621, %v2617
    %v3126 = vpack.c.b16 %v2626, %v2622
    %v3127 = vpack.c.b16 %v2627, %v2623
    %v3128 = vpack.c.b16 %v2628, %v2624
    %v3129 = vpack.c.b16 %v2629, %v2625
    %v3130 = vpack.c.b16 %v2634, %v2630
    %v3131 = vpack.c.b16 %v2635, %v2631
    %v3132 = vpack.c.b16 %v2636, %v2632
    %v3133 = vpack.c.b16 %v2637, %v2633
    %v3134 = vpack.c.b16 %v2642, %v2638
    %v3135 = vpack.c.b16 %v2643, %v2639
    %v3136 = vpack.c.b16 %v2644, %v2640
    %v3137 = vpack.c.b16 %v2645, %v2641
    %v3138 = vpack.c.b16 %v2650, %v2646
    %v3139 = vpack.c.b16 %v2651, %v2647
    %v3140 = vpack.c.b16 %v2652, %v2648
    %v3141 = vpack.c.b16 %v2653, %v2649
    %v3142 = vpack.c.b16 %v2658, %v2654
    %v3143 = vpack.c.b16 %v2659, %v2655
    %v3144 = vpack.c.b16 %v2660, %v2656
    %v3145 = vpack.c.b16 %v2661, %v2657
    %v3146 = vpack.c.b16 %v2666, %v2662
    %v3147 = vpack.c.b16 %v2667, %v2663
    %v3148 = vpack.c.b16 %v2668, %v2664
    %v3149 = vpack.c.b16 %v2669, %v2665
    %v3150 = vpack.c.b16 %v2674, %v2670
    %v3151 = vpack.c.b16 %v2675, %v2671
    %v3152 = vpack.c.b16 %v2676, %v2672
    %v3153 = vpack.c.b16 %v2677, %v2673
    %v3154 = vpack.c.b16 %v2682, %v2678
    %v3155 = vpack.c.b16 %v2683, %v2679
    %v3156 = vpack.c.b16 %v2684, %v2680
    %v3157 = vpack.c.b16 %v2685, %v2681
    %v3158 = vpack.c.b16 %v2690, %v2686
    %v3159 = vpack.c.b16 %v2691, %v2687
    %v3160 = vpack.c.b16 %v2692, %v2688
    %v3161 = vpack.c.b16 %v2693, %v2689
    %v3162 = vpack.c.b16 %v2698, %v2694
    %v3163 = vpack.c.b16 %v2699, %v2695
    %v3164 = vpack.c.b16 %v2700, %v2696
    %v3165 = vpack.c.b16 %v2701, %v2697
    %v3166 = vpack.c.b16 %v2706, %v2702
    %v3167 = vpack.c.b16 %v2707, %v2703
    %v3168 = vpack.c.b16 %v2708, %v2704
    %v3169 = vpack.c.b16 %v2709, %v2705
    %v3170 = vpack.c.b16 %v2714, %v2710
    %v3171 = vpack.c.b16 %v2715, %v2711
    %v3172 = vpack.c.b16 %v2716, %v2712
    %v3173 = vpack.c.b16 %v2717, %v2713
    %v3174 = vpack.c.b16 %v2722, %v2718
    %v3175 = vpack.c.b16 %v2723, %v2719
    %v3176 = vpack.c.b16 %v2724, %v2720
    %v3177 = vpack.c.b16 %v2725, %v2721
    %v3178 = vpack.c.b16 %v2730, %v2726
    %v3179 = vpack.c.b16 %v2731, %v2727
    %v3180 = vpack.c.b16 %v2732, %v2728
    %v3181 = vpack.c.b16 %v2733, %v2729
    %v3182 = vpack.c.b16 %v2738, %v2734
    %v3183 = vpack.c.b16 %v2739, %v2735
    %v3184 = vpack.c.b16 %v2740, %v2736
    %v3185 = vpack.c.b16 %v2741, %v2737
    %v3186 = vpack.c.b16 %v2746, %v2742
    %v3187 = vpack.c.b16 %v2747, %v2743
    %v3188 = vpack.c.b16 %v2748, %v2744
    %v3189 = vpack.c.b16 %v2749, %v2745
    %v3190 = vpack.c.b16 %v2754, %v2750
    %v3191 = vpack.c.b16 %v2755, %v2751
    %v3192 = vpack.c.b16 %v2756, %v2752
    %v3193 = vpack.c.b16 %v2757, %v2753
    %v3194 = vpack.c.b16 %v2762, %v2758
    %v3195 = vpack.c.b16 %v2763, %v2759
    %v3196 = vpack.c.b16 %v2764, %v2760
    %v3197 = vpack.c.b16 %v2765, %v2761
    %v3198 = vpack.c.b16 %v2770, %v2766
    %v3199 = vpack.c.b16 %v2771, %v2767
    %v3200 = vpack.c.b16 %v2772, %v2768
    %v3201 = vpack.c.b16 %v2773, %v2769
    %v3202 = vpack.c.b16 %v2778, %v2774
    %v3203 = vpack.c.b16 %v2779, %v2775
    %v3204 = vpack.c.b16 %v2780, %v2776
    %v3205 = vpack.c.b16 %v2781, %v2777
    %v3206 = vpack.c.b16 %v2786, %v2782
    %v3207 = vpack.c.b16 %v2787, %v2783
    %v3208 = vpack.c.b16 %v2788, %v2784
    %v3209 = vpack.c.b16 %v2789, %v2785
    %v3210 = vpack.c.b16 %v2794, %v2790
    %v3211 = vpack.c.b16 %v2795, %v2791
    %v3212 = vpack.c.b16 %v2796, %v2792
    %v3213 = vpack.c.b16 %v2797, %v2793
    %v3214 = vpack.c.b16 %v2802, %v2798
    %v3215 = vpack.c.b16 %v2803, %v2799
    %v3216 = vpack.c.b16 %v2804, %v2800
    %v3217 = vpack.c.b16 %v2805, %v2801
    %v3218 = vpack.c.b16 %v2810, %v2806
    %v3219 = vpack.c.b16 %v2811, %v2807
    %v3220 = vpack.c.b16 %v2812, %v2808
    %v3221 = vpack.c.b16 %v2813, %v2809
    %v3222 = vpack.c.b16 %v2818, %v2814
    %v3223 = vpack.c.b16 %v2819, %v2815
    %v3224 = vpack.c.b16 %v2820, %v2816
    %v3225 = vpack.c.b16 %v2821, %v2817
    %v3226 = vpack.c.b16 %v2826, %v2822
    %v3227 = vpack.c.b16 %v2827, %v2823
    %v3228 = vpack.c.b16 %v2828, %v2824
    %v3229 = vpack.c.b16 %v2829, %v2825
    %v3230 = vpack.c.b16 %v2834, %v2830
    %v3231 = vpack.c.b16 %v2835, %v2831
    %v3232 = vpack.c.b16 %v2836, %v2832
    %v3233 = vpack.c.b16 %v2837, %v2833
    %v3234 = vpack.c.b16 %v2842, %v2838
    %v3235 = vpack.c.b16 %v2843, %v2839
    %v3236 = vpack.c.b16 %v2844, %v2840
    %v3237 = vpack.c.b16 %v2845, %v2841
    %v3238 = vpack.c.b16 %v2850, %v2846
    %v3239 = vpack.c.b16 %v2851, %v2847
    %v3240 = vpack.c.b16 %v2852, %v2848
    %v3241 = vpack.c.b16 %v2853, %v2849
    %v3242 = vpack.c.b16 %v2858, %v2854
    %v3243 = vpack.c.b16 %v2859, %v2855
    %v3244 = vpack.c.b16 %v2860, %v2856
    %v3245 = vpack.c.b16 %v2861, %v2857
    %v3246 = vpack.c.b16 %v2866, %v2862
    %v3247 = vpack.c.b16 %v2867, %v2863
    %v3248 = vpack.c.b16 %v2868, %v2864
    %v3249 = vpack.c.b16 %v2869, %v2865
    %v3250 = vpack.c.b16 %v2874, %v2870
    %v3251 = vpack.c.b16 %v2875, %v2871
    %v3252 = vpack.c.b16 %v2876, %v2872
    %v3253 = vpack.c.b16 %v2877, %v2873
    %v3254 = vpack.c.b16 %v2882, %v2878
    %v3255 = vpack.c.b16 %v2883, %v2879
    %v3256 = vpack.c.b16 %v2884, %v2880
    %v3257 = vpack.c.b16 %v2885, %v2881
    %v3258 = vpack.c.b16 %v2890, %v2886
    %v3259 = vpack.c.b16 %v2891, %v2887
    %v3260 = vpack.c.b16 %v2892, %v2888
    %v3261 = vpack.c.b16 %v2893, %v2889
    %v3262 = vpack.c.b16 %v2898, %v2894
    %v3263 = vpack.c.b16 %v2899, %v2895
    %v3264 = vpack.c.b16 %v2900, %v2896
    %v3265 = vpack.c.b16 %v2901, %v2897
    %v3266 = vpack.c.b16 %v2906, %v2902
    %v3267 = vpack.c.b16 %v2907, %v2903
    %v3268 = vpack.c.b16 %v2908, %v2904
    %v3269 = vpack.c.b16 %v2909, %v2905
    %v3270 = vpack.c.b16 %v2914, %v2910
    %v3271 = vpack.c.b16 %v2915, %v2911
    %v3272 = vpack.c.b16 %v2916, %v2912
    %v3273 = vpack.c.b16 %v2917, %v2913
    %v3274 = vpack.c.b16 %v2922, %v2918
    %v3275 = vpack.c.b16 %v2923, %v2919
    %v3276 = vpack.c.b16 %v2924, %v2920
    %v3277 = vpack.c.b16 %v2925, %v2921
    %v3278 = vpack.c.b16 %v2930, %v2926
    %v3279 = vpack.c.b16 %v2931, %v2927
    %v3280 = vpack.c.b16 %v2932, %v2928
    %v3281 = vpack.c.b16 %v2933, %v2929
    %v3282 = vpack.c.b16 %v2938, %v2934
    %v3283 = vpack.c.b16 %v2939, %v2935
    %v3284 = vpack.c.b16 %v2940, %v2936
    %v3285 = vpack.c.b16 %v2941, %v2937
    %v3286 = vpack.c.b16 %v2946, %v2942
    %v3287 = vpack.c.b16 %v2947, %v2943
    %v3288 = vpack.c.b16 %v2948, %v2944
    %v3289 = vpack.c.b16 %v2949, %v2945
    %v3290 = vpack.c.b16 %v2954, %v2950
    %v3291 = vpack.c.b16 %v2955, %v2951
    %v3292 = vpack.c.b16 %v2956, %v2952
    %v3293 = vpack.c.b16 %v2957, %v2953
    %v3294 = vpack.c.b16 %v2962, %v2958
    %v3295 = vpack.c.b16 %v2963, %v2959
    %v3296 = vpack.c.b16 %v2964, %v2960
    %v3297 = vpack.c.b16 %v2965, %v2961
    %v3298 = vpack.c.b16 %v2970, %v2966
    %v3299 = vpack.c.b16 %v2971, %v2967
    %v3300 = vpack.c.b16 %v2972, %v2968
    %v3301 = vpack.c.b16 %v2973, %v2969
    %v3302 = vpack.c.b16 %v2978, %v2974
    %v3303 = vpack.c.b16 %v2979, %v2975
    %v3304 = vpack.c.b16 %v2980, %v2976
    %v3305 = vpack.c.b16 %v2981, %v2977
    %v3306 = vpack.c.b16 %v2986, %v2982
    %v3307 = vpack.c.b16 %v2987, %v2983
    %v3308 = vpack.c.b16 %v2988, %v2984
    %v3309 = vpack.c.b16 %v2989, %v2985
    %v3310 = vpack.c.b16 %v2994, %v2990
    %v3311 = vpack.c.b16 %v2995, %v2991
    %v3312 = vpack.c.b16 %v2996, %v2992
    %v3313 = vpack.c.b16 %v2997, %v2993
    %v3314 = vpack.c.b16 %v3002, %v2998
    %v3315 = vpack.c.b16 %v3003, %v2999
    %v3316 = vpack.c.b16 %v3004, %v3000
    %v3317 = vpack.c.b16 %v3005, %v3001
    %v3318 = vpack.c.b16 %v3010, %v3006
    %v3319 = vpack.c.b16 %v3011, %v3007
    %v3320 = vpack.c.b16 %v3012, %v3008
    %v3321 = vpack.c.b16 %v3013, %v3009
    %v3322 = vpack.c.b16 %v3018, %v3014
    %v3323 = vpack.c.b16 %v3019, %v3015
    %v3324 = vpack.c.b16 %v3020, %v3016
    %v3325 = vpack.c.b16 %v3021, %v3017
    %v3326 = vpack.c.b16 %v3026, %v3022
    %v3327 = vpack.c.b16 %v3027, %v3023
    %v3328 = vpack.c.b16 %v3028, %v3024
    %v3329 = vpack.c.b16 %v3029, %v3025
    %v3330 = vpack.c.b16 %v3034, %v3030
    %v3331 = vpack.c.b16 %v3035, %v3031
    %v3332 = vpack.c.b16 %v3036, %v3032
    %v3333 = vpack.c.b16 %v3037, %v3033
    %v3334 = vpack.c.b16 %v3042, %v3038
    %v3335 = vpack.c.b16 %v3043, %v3039
    %v3336 = vpack.c.b16 %v3044, %v3040
    %v3337 = vpack.c.b16 %v3045, %v3041
    %v3338 = vpack.c.b16 %v3050, %v3046
    %v3339 = vpack.c.b16 %v3051, %v3047
    %v3340 = vpack.c.b16 %v3052, %v3048
    %v3341 = vpack.c.b16 %v3053, %v3049
    %v3342 = vpack.c.b16 %v3058, %v3054
    %v3343 = vpack.c.b16 %v3059, %v3055
    %v3344 = vpack.c.b16 %v3060, %v3056
    %v3345 = vpack.c.b16 %v3061, %v3057
    %v3346 = vpack.c.b16 %v3066, %v3062
    %v3347 = vpack.c.b16 %v3067, %v3063
    %v3348 = vpack.c.b16 %v3068, %v3064
    %v3349 = vpack.c.b16 %v3069, %v3065
    %v3350 = vpack.c.b16 %v3074, %v3070
    %v3351 = vpack.c.b16 %v3075, %v3071
    %v3352 = vpack.c.b16 %v3076, %v3072
    %v3353 = vpack.c.b16 %v3077, %v3073
    %v3354 = vpack.c.b16 %v3082, %v3078
    %v3355 = vpack.c.b16 %v3083, %v3079
    %v3356 = vpack.c.b16 %v3084, %v3080
    %v3357 = vpack.c.b16 %v3085, %v3081
    %v3358 = vpack.c.b16 %v3090, %v3086
    %v3359 = vpack.c.b16 %v3091, %v3087
    %v3360 = vpack.c.b16 %v3092, %v3088
    %v3361 = vpack.c.b16 %v3093, %v3089
    %v3362 = vpack.c.b16 %v3098, %v3094
    %v3363 = vpack.c.b16 %v3099, %v3095
    %v3364 = vpack.c.b16 %v3100, %v3096
    %v3365 = vpack.c.b16 %v3101, %v3097
    %v3366 = vpack.c.b16 %v3106, %v3102
    %v3367 = vpack.c.b16 %v3107, %v3103
    %v3368 = vpack.c.b16 %v3108, %v3104
    %v3369 = vpack.c.b16 %v3109, %v3105
    %v3370 = vpack.c.b16 %v3114, %v3110
    %v3371 = vpack.c.b16 %v3115, %v3111
    %v3372 = vpack.c.b16 %v3116, %v3112
    %v3373 = vpack.c.b16 %v3117, %v3113
    %3630 = vmatprep.subr.bf16.mxu0 %v3119
    %3631 = vmatpush1.bf16.msra.mxu0 %v3118
    %3632 = vmatprep.subr.bf16.mxu0 %v3123
    %3633 = vmatpush1.bf16.msra.mxu0 %v3122
    %3634 = vmatprep.subr.bf16.mxu0 %v3127
    %3635 = vmatpush1.bf16.msra.mxu0 %v3126
    %3636 = vmatprep.subr.bf16.mxu0 %v3131
    %3637 = vmatpush1.bf16.msra.mxu0 %v3130
    %3638 = vmatprep.subr.bf16.mxu0 %v3135
    %3639 = vmatpush1.bf16.msra.mxu0 %v3134
    %3640 = vmatprep.subr.bf16.mxu0 %v3139
    %3641 = vmatpush1.bf16.msra.mxu0 %v3138
    %3642 = vmatprep.subr.bf16.mxu0 %v3143
    %3643 = vmatpush1.bf16.msra.mxu0 %v3142
    %3644 = vmatprep.subr.bf16.mxu0 %v3147
    %3645 = vmatpush1.bf16.msra.mxu0 %v3146
    %3646 = vmatprep.subr.bf16.mxu0 %v3151
    %3647 = vmatpush1.bf16.msra.mxu0 %v3150
    %3648 = vmatprep.subr.bf16.mxu0 %v3155
    %3649 = vmatpush1.bf16.msra.mxu0 %v3154
    %3650 = vmatprep.subr.bf16.mxu0 %v3159
    %3651 = vmatpush1.bf16.msra.mxu0 %v3158
    %3652 = vmatprep.subr.bf16.mxu0 %v3163
    %3653 = vmatpush1.bf16.msra.mxu0 %v3162
    %3654 = vmatprep.subr.bf16.mxu0 %v3167
    %3655 = vmatpush1.bf16.msra.mxu0 %v3166
    %3656 = vmatprep.subr.bf16.mxu0 %v3171
    %3657 = vmatpush1.bf16.msra.mxu0 %v3170
    %3658 = vmatprep.subr.bf16.mxu0 %v3175
    %3659 = vmatpush1.bf16.msra.mxu0 %v3174
    %3660 = vmatprep.subr.bf16.mxu0 %v3179
    %3661 = vmatpush1.bf16.msra.mxu0 %v3178
    %3662 = vmatprep.mubr.bf16.mxu0 %v2065
    %3663 = vmatmul.mubr.bf16.gmra.mrb[0].mxu0 %v2064
    %v3664 = vpop.f32.mrb[0].mxu0
    %v3665 = vadd.f32 %v2333, %v3664
    %v3666 = vpop.f32.mrb[0].mxu0
    %v3667 = vadd.f32 %v2337, %v3666
    %v3668 = vpop.f32.mrb[0].mxu0
    %v3669 = vpop.f32.mrb[0].mxu0
    %3670 = vdwg.mxu0
    %3671 = vmatprep.subr.bf16.mxu0 %v3183
    %3672 = vmatpush1.bf16.msra.mxu0 %v3182
    %3673 = vmatprep.subr.bf16.mxu0 %v3187
    %3674 = vmatpush1.bf16.msra.mxu0 %v3186
    %3675 = vmatprep.subr.bf16.mxu0 %v3191
    %3676 = vmatpush1.bf16.msra.mxu0 %v3190
    %3677 = vmatprep.subr.bf16.mxu0 %v3195
    %3678 = vmatpush1.bf16.msra.mxu0 %v3194
    %3679 = vmatprep.subr.bf16.mxu0 %v3199
    %3680 = vmatpush1.bf16.msra.mxu0 %v3198
    %3681 = vmatprep.subr.bf16.mxu0 %v3203
    %3682 = vmatpush1.bf16.msra.mxu0 %v3202
    %3683 = vmatprep.subr.bf16.mxu0 %v3207
    %3684 = vmatpush1.bf16.msra.mxu0 %v3206
    %3685 = vmatprep.subr.bf16.mxu0 %v3211
    %3686 = vmatpush1.bf16.msra.mxu0 %v3210
    %3687 = vmatprep.subr.bf16.mxu0 %v3215
    %3688 = vmatpush1.bf16.msra.mxu0 %v3214
    %3689 = vmatprep.subr.bf16.mxu0 %v3219
    %3690 = vmatpush1.bf16.msra.mxu0 %v3218
    %3691 = vmatprep.subr.bf16.mxu0 %v3223
    %3692 = vmatpush1.bf16.msra.mxu0 %v3222
    %3693 = vmatprep.subr.bf16.mxu0 %v3227
    %3694 = vmatpush1.bf16.msra.mxu0 %v3226
    %3695 = vmatprep.subr.bf16.mxu0 %v3231
    %3696 = vmatpush1.bf16.msra.mxu0 %v3230
    %3697 = vmatprep.subr.bf16.mxu0 %v3235
    %3698 = vmatpush1.bf16.msra.mxu0 %v3234
    %3699 = vmatprep.subr.bf16.mxu0 %v3239
    %3700 = vmatpush1.bf16.msra.mxu0 %v3238
    %3701 = vmatprep.subr.bf16.mxu0 %v3243
    %3702 = vmatpush1.bf16.msra.mxu0 %v3242
    %3703 = vmatprep.mubr.bf16.mxu0 %v2067
    %3704 = vmatmul.mubr.bf16.gmra.mrb[0].mxu0 %v2066
    %v3705 = vpop.f32.mrb[0].mxu0
    %v3706 = vadd.f32 %v3665, %v3705
    %v3707 = vpop.f32.mrb[0].mxu0
    %v3708 = vadd.f32 %v3667, %v3707
    %v3709 = vpop.f32.mrb[0].mxu0
    %v3710 = vpop.f32.mrb[0].mxu0
    %3711 = vdwg.mxu0
    %3712 = vmatprep.subr.bf16.mxu0 %v3247
    %3713 = vmatpush1.bf16.msra.mxu0 %v3246
    %3714 = vmatprep.subr.bf16.mxu0 %v3251
    %3715 = vmatpush1.bf16.msra.mxu0 %v3250
    %3716 = vmatprep.subr.bf16.mxu0 %v3255
    %3717 = vmatpush1.bf16.msra.mxu0 %v3254
    %3718 = vmatprep.subr.bf16.mxu0 %v3259
    %3719 = vmatpush1.bf16.msra.mxu0 %v3258
    %3720 = vmatprep.subr.bf16.mxu0 %v3263
    %3721 = vmatpush1.bf16.msra.mxu0 %v3262
    %3722 = vmatprep.subr.bf16.mxu0 %v3267
    %3723 = vmatpush1.bf16.msra.mxu0 %v3266
    %3724 = vmatprep.subr.bf16.mxu0 %v3271
    %3725 = vmatpush1.bf16.msra.mxu0 %v3270
    %3726 = vmatprep.subr.bf16.mxu0 %v3275
    %3727 = vmatpush1.bf16.msra.mxu0 %v3274
    %3728 = vmatprep.subr.bf16.mxu0 %v3279
    %3729 = vmatpush1.bf16.msra.mxu0 %v3278
    %3730 = vmatprep.subr.bf16.mxu0 %v3283
    %3731 = vmatpush1.bf16.msra.mxu0 %v3282
    %3732 = vmatprep.subr.bf16.mxu0 %v3287
    %3733 = vmatpush1.bf16.msra.mxu0 %v3286
    %3734 = vmatprep.subr.bf16.mxu0 %v3291
    %3735 = vmatpush1.bf16.msra.mxu0 %v3290
    %3736 = vmatprep.subr.bf16.mxu0 %v3295
    %3737 = vmatpush1.bf16.msra.mxu0 %v3294
    %3738 = vmatprep.subr.bf16.mxu0 %v3299
    %3739 = vmatpush1.bf16.msra.mxu0 %v3298
    %3740 = vmatprep.subr.bf16.mxu0 %v3303
    %3741 = vmatpush1.bf16.msra.mxu0 %v3302
    %3742 = vmatprep.subr.bf16.mxu0 %v3307
    %3743 = vmatpush1.bf16.msra.mxu0 %v3306
    %3744 = vmatprep.mubr.bf16.mxu0 %v2069
    %3745 = vmatmul.mubr.bf16.gmra.mrb[0].mxu0 %v2068
    %v3746 = vpop.f32.mrb[0].mxu0
    %v3747 = vadd.f32 %v3706, %v3746
    %v3748 = vpop.f32.mrb[0].mxu0
    %v3749 = vadd.f32 %v3708, %v3748
    %v3750 = vpop.f32.mrb[0].mxu0
    %v3751 = vpop.f32.mrb[0].mxu0
    %3752 = vdwg.mxu0
    %3753 = vmatprep.subr.bf16.mxu0 %v3311
    %3754 = vmatpush1.bf16.msra.mxu0 %v3310
    %3755 = vmatprep.subr.bf16.mxu0 %v3315
    %3756 = vmatpush1.bf16.msra.mxu0 %v3314
    %3757 = vmatprep.subr.bf16.mxu0 %v3319
    %3758 = vmatpush1.bf16.msra.mxu0 %v3318
    %3759 = vmatprep.subr.bf16.mxu0 %v3323
    %3760 = vmatpush1.bf16.msra.mxu0 %v3322
    %3761 = vmatprep.subr.bf16.mxu0 %v3327
    %3762 = vmatpush1.bf16.msra.mxu0 %v3326
    %3763 = vmatprep.subr.bf16.mxu0 %v3331
    %3764 = vmatpush1.bf16.msra.mxu0 %v3330
    %3765 = vmatprep.subr.bf16.mxu0 %v3335
    %3766 = vmatpush1.bf16.msra.mxu0 %v3334
    %3767 = vmatprep.subr.bf16.mxu0 %v3339
    %3768 = vmatpush1.bf16.msra.mxu0 %v3338
    %3769 = vmatprep.subr.bf16.mxu0 %v3343
    %3770 = vmatpush1.bf16.msra.mxu0 %v3342
    %3771 = vmatprep.subr.bf16.mxu0 %v3347
    %3772 = vmatpush1.bf16.msra.mxu0 %v3346
    %3773 = vmatprep.subr.bf16.mxu0 %v3351
    %3774 = vmatpush1.bf16.msra.mxu0 %v3350
    %3775 = vmatprep.subr.bf16.mxu0 %v3355
    %3776 = vmatpush1.bf16.msra.mxu0 %v3354
    %3777 = vmatprep.subr.bf16.mxu0 %v3359
    %3778 = vmatpush1.bf16.msra.mxu0 %v3358
    %3779 = vmatprep.subr.bf16.mxu0 %v3363
    %3780 = vmatpush1.bf16.msra.mxu0 %v3362
    %3781 = vmatprep.subr.bf16.mxu0 %v3367
    %3782 = vmatpush1.bf16.msra.mxu0 %v3366
    %3783 = vmatprep.subr.bf16.mxu0 %v3371
    %3784 = vmatpush1.bf16.msra.mxu0 %v3370
    %3785 = vmatprep.mubr.bf16.mxu0 %v2071
    %3786 = vmatmul.mubr.bf16.gmra.mrb[0].mxu0 %v2070
    %v3787 = vpop.f32.mrb[0].mxu0
    %v3788 = vadd.f32 %v3747, %v3787
    %v3789 = vpop.f32.mrb[0].mxu0
    %v3790 = vadd.f32 %v3749, %v3789
    %v3791 = vpop.f32.mrb[0].mxu0
    %v3792 = vpop.f32.mrb[0].mxu0
    %3793 = vdwg.mxu0
    %3794 = vmatprep.subr.bf16.mxu0 %v3121
    %3795 = vmatpush1.bf16.msra.mxu0 %v3120
    %3796 = vmatprep.subr.bf16.mxu0 %v3125
    %3797 = vmatpush1.bf16.msra.mxu0 %v3124
    %3798 = vmatprep.subr.bf16.mxu0 %v3129
    %3799 = vmatpush1.bf16.msra.mxu0 %v3128
    %3800 = vmatprep.subr.bf16.mxu0 %v3133
    %3801 = vmatpush1.bf16.msra.mxu0 %v3132
    %3802 = vmatprep.subr.bf16.mxu0 %v3137
    %3803 = vmatpush1.bf16.msra.mxu0 %v3136
    %3804 = vmatprep.subr.bf16.mxu0 %v3141
    %3805 = vmatpush1.bf16.msra.mxu0 %v3140
    %3806 = vmatprep.subr.bf16.mxu0 %v3145
    %3807 = vmatpush1.bf16.msra.mxu0 %v3144
    %3808 = vmatprep.subr.bf16.mxu0 %v3149
    %3809 = vmatpush1.bf16.msra.mxu0 %v3148
    %3810 = vmatprep.subr.bf16.mxu0 %v3153
    %3811 = vmatpush1.bf16.msra.mxu0 %v3152
    %3812 = vmatprep.subr.bf16.mxu0 %v3157
    %3813 = vmatpush1.bf16.msra.mxu0 %v3156
    %3814 = vmatprep.subr.bf16.mxu0 %v3161
    %3815 = vmatpush1.bf16.msra.mxu0 %v3160
    %3816 = vmatprep.subr.bf16.mxu0 %v3165
    %3817 = vmatpush1.bf16.msra.mxu0 %v3164
    %3818 = vmatprep.subr.bf16.mxu0 %v3169
    %3819 = vmatpush1.bf16.msra.mxu0 %v3168
    %3820 = vmatprep.subr.bf16.mxu0 %v3173
    %3821 = vmatpush1.bf16.msra.mxu0 %v3172
    %3822 = vmatprep.subr.bf16.mxu0 %v3177
    %3823 = vmatpush1.bf16.msra.mxu0 %v3176
    %3824 = vmatprep.subr.bf16.mxu0 %v3181
    %3825 = vmatpush1.bf16.msra.mxu0 %v3180
    %3826 = vmatprep.mubr.bf16.mxu0 %v2065
    %3827 = vmatmul.mubr.bf16.gmra.mrb[0].mxu0 %v2064
    %v3828 = vpop.f32.mrb[0].mxu0
    %v3829 = vadd.f32 %v2341, %v3828
    %v3830 = vpop.f32.mrb[0].mxu0
    %v3831 = vadd.f32 %v2345, %v3830
    %v3832 = vpop.f32.mrb[0].mxu0
    %v3833 = vpop.f32.mrb[0].mxu0
    %3834 = vdwg.mxu0
    %3835 = vmatprep.subr.bf16.mxu0 %v3185
    %3836 = vmatpush1.bf16.msra.mxu0 %v3184
    %3837 = vmatprep.subr.bf16.mxu0 %v3189
    %3838 = vmatpush1.bf16.msra.mxu0 %v3188
    %3839 = vmatprep.subr.bf16.mxu0 %v3193
    %3840 = vmatpush1.bf16.msra.mxu0 %v3192
    %3841 = vmatprep.subr.bf16.mxu0 %v3197
    %3842 = vmatpush1.bf16.msra.mxu0 %v3196
    %3843 = vmatprep.subr.bf16.mxu0 %v3201
    %3844 = vmatpush1.bf16.msra.mxu0 %v3200
    %3845 = vmatprep.subr.bf16.mxu0 %v3205
    %3846 = vmatpush1.bf16.msra.mxu0 %v3204
    %3847 = vmatprep.subr.bf16.mxu0 %v3209
    %3848 = vmatpush1.bf16.msra.mxu0 %v3208
    %3849 = vmatprep.subr.bf16.mxu0 %v3213
    %3850 = vmatpush1.bf16.msra.mxu0 %v3212
    %3851 = vmatprep.subr.bf16.mxu0 %v3217
    %3852 = vmatpush1.bf16.msra.mxu0 %v3216
    %3853 = vmatprep.subr.bf16.mxu0 %v3221
    %3854 = vmatpush1.bf16.msra.mxu0 %v3220
    %3855 = vmatprep.subr.bf16.mxu0 %v3225
    %3856 = vmatpush1.bf16.msra.mxu0 %v3224
    %3857 = vmatprep.subr.bf16.mxu0 %v3229
    %3858 = vmatpush1.bf16.msra.mxu0 %v3228
    %3859 = vmatprep.subr.bf16.mxu0 %v3233
    %3860 = vmatpush1.bf16.msra.mxu0 %v3232
    %3861 = vmatprep.subr.bf16.mxu0 %v3237
    %3862 = vmatpush1.bf16.msra.mxu0 %v3236
    %3863 = vmatprep.subr.bf16.mxu0 %v3241
    %3864 = vmatpush1.bf16.msra.mxu0 %v3240
    %3865 = vmatprep.subr.bf16.mxu0 %v3245
    %3866 = vmatpush1.bf16.msra.mxu0 %v3244
    %3867 = vmatprep.mubr.bf16.mxu0 %v2067
    %3868 = vmatmul.mubr.bf16.gmra.mrb[0].mxu0 %v2066
    %v3869 = vpop.f32.mrb[0].mxu0
    %v3870 = vadd.f32 %v3829, %v3869
    %v3871 = vpop.f32.mrb[0].mxu0
    %v3872 = vadd.f32 %v3831, %v3871
    %v3873 = vpop.f32.mrb[0].mxu0
    %v3874 = vpop.f32.mrb[0].mxu0
    %3875 = vdwg.mxu0
    %3876 = vmatprep.subr.bf16.mxu0 %v3249
    %3877 = vmatpush1.bf16.msra.mxu0 %v3248
    %3878 = vmatprep.subr.bf16.mxu0 %v3253
    %3879 = vmatpush1.bf16.msra.mxu0 %v3252
    %3880 = vmatprep.subr.bf16.mxu0 %v3257
    %3881 = vmatpush1.bf16.msra.mxu0 %v3256
    %3882 = vmatprep.subr.bf16.mxu0 %v3261
    %3883 = vmatpush1.bf16.msra.mxu0 %v3260
    %3884 = vmatprep.subr.bf16.mxu0 %v3265
    %3885 = vmatpush1.bf16.msra.mxu0 %v3264
    %3886 = vmatprep.subr.bf16.mxu0 %v3269
    %3887 = vmatpush1.bf16.msra.mxu0 %v3268
    %3888 = vmatprep.subr.bf16.mxu0 %v3273
    %3889 = vmatpush1.bf16.msra.mxu0 %v3272
    %3890 = vmatprep.subr.bf16.mxu0 %v3277
    %3891 = vmatpush1.bf16.msra.mxu0 %v3276
    %3892 = vmatprep.subr.bf16.mxu0 %v3281
    %3893 = vmatpush1.bf16.msra.mxu0 %v3280
    %3894 = vmatprep.subr.bf16.mxu0 %v3285
    %3895 = vmatpush1.bf16.msra.mxu0 %v3284
    %3896 = vmatprep.subr.bf16.mxu0 %v3289
    %3897 = vmatpush1.bf16.msra.mxu0 %v3288
    %3898 = vmatprep.subr.bf16.mxu0 %v3293
    %3899 = vmatpush1.bf16.msra.mxu0 %v3292
    %3900 = vmatprep.subr.bf16.mxu0 %v3297
    %3901 = vmatpush1.bf16.msra.mxu0 %v3296
    %3902 = vmatprep.subr.bf16.mxu0 %v3301
    %3903 = vmatpush1.bf16.msra.mxu0 %v3300
    %3904 = vmatprep.subr.bf16.mxu0 %v3305
    %3905 = vmatpush1.bf16.msra.mxu0 %v3304
    %3906 = vmatprep.subr.bf16.mxu0 %v3309
    %3907 = vmatpush1.bf16.msra.mxu0 %v3308
    %3908 = vmatprep.mubr.bf16.mxu0 %v2069
    %3909 = vmatmul.mubr.bf16.gmra.mrb[0].mxu0 %v2068
    %v3910 = vpop.f32.mrb[0].mxu0
    %v3911 = vadd.f32 %v3870, %v3910
    %v3912 = vpop.f32.mrb[0].mxu0
    %v3913 = vadd.f32 %v3872, %v3912
    %v3914 = vpop.f32.mrb[0].mxu0
    %v3915 = vpop.f32.mrb[0].mxu0
    %3916 = vdwg.mxu0
    %3917 = vmatprep.subr.bf16.mxu0 %v3313
    %3918 = vmatpush1.bf16.msra.mxu0 %v3312
    %3919 = vmatprep.subr.bf16.mxu0 %v3317
    %3920 = vmatpush1.bf16.msra.mxu0 %v3316
    %3921 = vmatprep.subr.bf16.mxu0 %v3321
    %3922 = vmatpush1.bf16.msra.mxu0 %v3320
    %3923 = vmatprep.subr.bf16.mxu0 %v3325
    %3924 = vmatpush1.bf16.msra.mxu0 %v3324
    %3925 = vmatprep.subr.bf16.mxu0 %v3329
    %3926 = vmatpush1.bf16.msra.mxu0 %v3328
    %3927 = vmatprep.subr.bf16.mxu0 %v3333
    %3928 = vmatpush1.bf16.msra.mxu0 %v3332
    %3929 = vmatprep.subr.bf16.mxu0 %v3337
    %3930 = vmatpush1.bf16.msra.mxu0 %v3336
    %3931 = vmatprep.subr.bf16.mxu0 %v3341
    %3932 = vmatpush1.bf16.msra.mxu0 %v3340
    %3933 = vmatprep.subr.bf16.mxu0 %v3345
    %3934 = vmatpush1.bf16.msra.mxu0 %v3344
    %3935 = vmatprep.subr.bf16.mxu0 %v3349
    %3936 = vmatpush1.bf16.msra.mxu0 %v3348
    %3937 = vmatprep.subr.bf16.mxu0 %v3353
    %3938 = vmatpush1.bf16.msra.mxu0 %v3352
    %3939 = vmatprep.subr.bf16.mxu0 %v3357
    %3940 = vmatpush1.bf16.msra.mxu0 %v3356
    %3941 = vmatprep.subr.bf16.mxu0 %v3361
    %3942 = vmatpush1.bf16.msra.mxu0 %v3360
    %3943 = vmatprep.subr.bf16.mxu0 %v3365
    %3944 = vmatpush1.bf16.msra.mxu0 %v3364
    %3945 = vmatprep.subr.bf16.mxu0 %v3369
    %3946 = vmatpush1.bf16.msra.mxu0 %v3368
    %3947 = vmatprep.subr.bf16.mxu0 %v3373
    %3948 = vmatpush1.bf16.msra.mxu0 %v3372
    %3949 = vmatprep.mubr.bf16.mxu0 %v2071
    %3950 = vmatmul.mubr.bf16.gmra.mrb[0].mxu0 %v2070
    %v3951 = vpop.f32.mrb[0].mxu0
    %v3952 = vadd.f32 %v3911, %v3951
    %v3953 = vpop.f32.mrb[0].mxu0
    %v3954 = vadd.f32 %v3913, %v3953
    %v3955 = vpop.f32.mrb[0].mxu0
    %v3956 = vpop.f32.mrb[0].mxu0
    %3957 = vdwg.mxu0
    %v3958 = vmax.f32 %v3788, 0.0
    %v3959 = vmax.f32 %v3790, 0.0
    %v3960 = vmax.f32 %v3952, 0.0
    %v3961 = vmax.f32 %v3954, 0.0
    %v3962 = vpack.c.bf16 %v3958, %v3958
    %v3963 = vpack.c.bf16 %v3959, %v3959
    %v3964 = vpack.c.bf16 %v3960, %v3960
    %v3965 = vpack.c.bf16 %v3961, %v3961
    %v3966 = vld [vmem:[#allocation13] sm:$0xf]
    %v3967 = vld [vmem:[#allocation13 + $0x4] sm:$0xf]
    %v3968 = vld [vmem:[#allocation13 + $0x8] sm:$0xf]
    %v3969 = vld [vmem:[#allocation13 + $0xc] sm:$0xf]
    %v3970 = vld [vmem:[#allocation13 + $0x10] sm:$0xf]
    %v3971 = vld [vmem:[#allocation13 + $0x14] sm:$0xf]
    %v3972 = vld [vmem:[#allocation13 + $0x18] sm:$0xf]
    %v3973 = vld [vmem:[#allocation13 + $0x1c] sm:$0xf]
    %v3974 = vld [vmem:[#allocation13 + $0x20] sm:$0xf]
    %v3975 = vld [vmem:[#allocation13 + $0x24] sm:$0xf]
    %v3976 = vld [vmem:[#allocation13 + $0x28] sm:$0xf]
    %v3977 = vld [vmem:[#allocation13 + $0x2c] sm:$0xf]
    %v3978 = vld [vmem:[#allocation13 + $0x30] sm:$0xf]
    %v3979 = vld [vmem:[#allocation13 + $0x34] sm:$0xf]
    %v3980 = vld [vmem:[#allocation13 + $0x38] sm:$0xf]
    %v3981 = vld [vmem:[#allocation13 + $0x3c] sm:$0xf]
    %v3982 = vld [vmem:[#allocation13 + $0x40] sm:$0xf]
    %v3983 = vld [vmem:[#allocation13 + $0x44] sm:$0xf]
    %v3984 = vld [vmem:[#allocation13 + $0x48] sm:$0xf]
    %v3985 = vld [vmem:[#allocation13 + $0x4c] sm:$0xf]
    %v3986 = vld [vmem:[#allocation13 + $0x50] sm:$0xf]
    %v3987 = vld [vmem:[#allocation13 + $0x54] sm:$0xf]
    %v3988 = vld [vmem:[#allocation13 + $0x58] sm:$0xf]
    %v3989 = vld [vmem:[#allocation13 + $0x5c] sm:$0xf]
    %v3990 = vld [vmem:[#allocation13 + $0x60] sm:$0xf]
    %v3991 = vld [vmem:[#allocation13 + $0x64] sm:$0xf]
    %v3992 = vld [vmem:[#allocation13 + $0x68] sm:$0xf]
    %v3993 = vld [vmem:[#allocation13 + $0x6c] sm:$0xf]
    %v3994 = vld [vmem:[#allocation13 + $0x70] sm:$0xf]
    %v3995 = vld [vmem:[#allocation13 + $0x74] sm:$0xf]
    %v3996 = vld [vmem:[#allocation13 + $0x78] sm:$0xf]
    %v3997 = vld [vmem:[#allocation13 + $0x7c] sm:$0xf]
    %v3998 = vld [vmem:[#allocation13 + $0x80] sm:$0xf]
    %v3999 = vld [vmem:[#allocation13 + $0x84] sm:$0xf]
    %v4000 = vld [vmem:[#allocation13 + $0x88] sm:$0xf]
    %v4001 = vld [vmem:[#allocation13 + $0x8c] sm:$0xf]
    %v4002 = vld [vmem:[#allocation13 + $0x90] sm:$0xf]
    %v4003 = vld [vmem:[#allocation13 + $0x94] sm:$0xf]
    %v4004 = vld [vmem:[#allocation13 + $0x98] sm:$0xf]
    %v4005 = vld [vmem:[#allocation13 + $0x9c] sm:$0xf]
    %v4006 = vld [vmem:[#allocation13 + $0xa0] sm:$0xf]
    %v4007 = vld [vmem:[#allocation13 + $0xa4] sm:$0xf]
    %v4008 = vld [vmem:[#allocation13 + $0xa8] sm:$0xf]
    %v4009 = vld [vmem:[#allocation13 + $0xac] sm:$0xf]
    %v4010 = vld [vmem:[#allocation13 + $0xb0] sm:$0xf]
    %v4011 = vld [vmem:[#allocation13 + $0xb4] sm:$0xf]
    %v4012 = vld [vmem:[#allocation13 + $0xb8] sm:$0xf]
    %v4013 = vld [vmem:[#allocation13 + $0xbc] sm:$0xf]
    %v4014 = vld [vmem:[#allocation13 + $0xc0] sm:$0xf]
    %v4015 = vld [vmem:[#allocation13 + $0xc4] sm:$0xf]
    %v4016 = vld [vmem:[#allocation13 + $0xc8] sm:$0xf]
    %v4017 = vld [vmem:[#allocation13 + $0xcc] sm:$0xf]
    %v4018 = vld [vmem:[#allocation13 + $0xd0] sm:$0xf]
    %v4019 = vld [vmem:[#allocation13 + $0xd4] sm:$0xf]
    %v4020 = vld [vmem:[#allocation13 + $0xd8] sm:$0xf]
    %v4021 = vld [vmem:[#allocation13 + $0xdc] sm:$0xf]
    %v4022 = vld [vmem:[#allocation13 + $0xe0] sm:$0xf]
    %v4023 = vld [vmem:[#allocation13 + $0xe4] sm:$0xf]
    %v4024 = vld [vmem:[#allocation13 + $0xe8] sm:$0xf]
    %v4025 = vld [vmem:[#allocation13 + $0xec] sm:$0xf]
    %v4026 = vld [vmem:[#allocation13 + $0xf0] sm:$0xf]
    %v4027 = vld [vmem:[#allocation13 + $0xf4] sm:$0xf]
    %v4028 = vld [vmem:[#allocation13 + $0xf8] sm:$0xf]
    %v4029 = vld [vmem:[#allocation13 + $0xfc] sm:$0xf]
    %v4030 = vld [vmem:[%s10] sm:$0x1]
    %v4032 = vlaneseq
    %v4033 = vshrl.u32 %v4032, 7
    %v4034 = vsub.s32 0, %v4033
    %v4035 = vrot.slane %v4030, %v4034
    %v4101 = vunpack.c.l.b16 %v3966
    %v4102 = vunpack.c.l.b16 %v3967
    %v4103 = vunpack.c.l.b16 %v3968
    %v4104 = vunpack.c.l.b16 %v3969
    %v4105 = vunpack.c.l.b16 %v3970
    %v4106 = vunpack.c.l.b16 %v3971
    %v4107 = vunpack.c.l.b16 %v3972
    %v4108 = vunpack.c.l.b16 %v3973
    %v4109 = vunpack.c.l.b16 %v3974
    %v4110 = vunpack.c.l.b16 %v3975
    %v4111 = vunpack.c.l.b16 %v3976
    %v4112 = vunpack.c.l.b16 %v3977
    %v4113 = vunpack.c.l.b16 %v3978
    %v4114 = vunpack.c.l.b16 %v3979
    %v4115 = vunpack.c.l.b16 %v3980
    %v4116 = vunpack.c.l.b16 %v3981
    %v4117 = vunpack.c.l.b16 %v3982
    %v4118 = vunpack.c.l.b16 %v3983
    %v4119 = vunpack.c.l.b16 %v3984
    %v4120 = vunpack.c.l.b16 %v3985
    %v4121 = vunpack.c.l.b16 %v3986
    %v4122 = vunpack.c.l.b16 %v3987
    %v4123 = vunpack.c.l.b16 %v3988
    %v4124 = vunpack.c.l.b16 %v3989
    %v4125 = vunpack.c.l.b16 %v3990
    %v4126 = vunpack.c.l.b16 %v3991
    %v4127 = vunpack.c.l.b16 %v3992
    %v4128 = vunpack.c.l.b16 %v3993
    %v4129 = vunpack.c.l.b16 %v3994
    %v4130 = vunpack.c.l.b16 %v3995
    %v4131 = vunpack.c.l.b16 %v3996
    %v4132 = vunpack.c.l.b16 %v3997
    %v4133 = vunpack.c.l.b16 %v3998
    %v4134 = vunpack.c.l.b16 %v3999
    %v4135 = vunpack.c.l.b16 %v4000
    %v4136 = vunpack.c.l.b16 %v4001
    %v4137 = vunpack.c.l.b16 %v4002
    %v4138 = vunpack.c.l.b16 %v4003
    %v4139 = vunpack.c.l.b16 %v4004
    %v4140 = vunpack.c.l.b16 %v4005
    %v4141 = vunpack.c.l.b16 %v4006
    %v4142 = vunpack.c.l.b16 %v4007
    %v4143 = vunpack.c.l.b16 %v4008
    %v4144 = vunpack.c.l.b16 %v4009
    %v4145 = vunpack.c.l.b16 %v4010
    %v4146 = vunpack.c.l.b16 %v4011
    %v4147 = vunpack.c.l.b16 %v4012
    %v4148 = vunpack.c.l.b16 %v4013
    %v4149 = vunpack.c.l.b16 %v4014
    %v4150 = vunpack.c.l.b16 %v4015
    %v4151 = vunpack.c.l.b16 %v4016
    %v4152 = vunpack.c.l.b16 %v4017
    %v4153 = vunpack.c.l.b16 %v4018
    %v4154 = vunpack.c.l.b16 %v4019
    %v4155 = vunpack.c.l.b16 %v4020
    %v4156 = vunpack.c.l.b16 %v4021
    %v4157 = vunpack.c.l.b16 %v4022
    %v4158 = vunpack.c.l.b16 %v4023
    %v4159 = vunpack.c.l.b16 %v4024
    %v4160 = vunpack.c.l.b16 %v4025
    %v4161 = vunpack.c.l.b16 %v4026
    %v4162 = vunpack.c.l.b16 %v4027
    %v4163 = vunpack.c.l.b16 %v4028
    %v4164 = vunpack.c.l.b16 %v4029
    %v4165 = vpack.c.b16 %v4102, %v4101
    %v4166 = vpack.c.b16 %v4104, %v4103
    %v4167 = vpack.c.b16 %v4106, %v4105
    %v4168 = vpack.c.b16 %v4108, %v4107
    %v4169 = vpack.c.b16 %v4110, %v4109
    %v4170 = vpack.c.b16 %v4112, %v4111
    %v4171 = vpack.c.b16 %v4114, %v4113
    %v4172 = vpack.c.b16 %v4116, %v4115
    %v4173 = vpack.c.b16 %v4118, %v4117
    %v4174 = vpack.c.b16 %v4120, %v4119
    %v4175 = vpack.c.b16 %v4122, %v4121
    %v4176 = vpack.c.b16 %v4124, %v4123
    %v4177 = vpack.c.b16 %v4126, %v4125
    %v4178 = vpack.c.b16 %v4128, %v4127
    %v4179 = vpack.c.b16 %v4130, %v4129
    %v4180 = vpack.c.b16 %v4132, %v4131
    %v4181 = vpack.c.b16 %v4134, %v4133
    %v4182 = vpack.c.b16 %v4136, %v4135
    %v4183 = vpack.c.b16 %v4138, %v4137
    %v4184 = vpack.c.b16 %v4140, %v4139
    %v4185 = vpack.c.b16 %v4142, %v4141
    %v4186 = vpack.c.b16 %v4144, %v4143
    %v4187 = vpack.c.b16 %v4146, %v4145
    %v4188 = vpack.c.b16 %v4148, %v4147
    %v4189 = vpack.c.b16 %v4150, %v4149
    %v4190 = vpack.c.b16 %v4152, %v4151
    %v4191 = vpack.c.b16 %v4154, %v4153
    %v4192 = vpack.c.b16 %v4156, %v4155
    %v4193 = vpack.c.b16 %v4158, %v4157
    %v4194 = vpack.c.b16 %v4160, %v4159
    %v4195 = vpack.c.b16 %v4162, %v4161
    %v4196 = vpack.c.b16 %v4164, %v4163
    %4229 = vmatprep.subr.bf16.mxu0 0
    %4230 = vmatpush1.bf16.msra.mxu0 %v4165
    %4231 = vmatprep.subr.bf16.mxu0 0
    %4232 = vmatpush1.bf16.msra.mxu0 %v4166
    %4233 = vmatprep.subr.bf16.mxu0 0
    %4234 = vmatpush1.bf16.msra.mxu0 %v4167
    %4235 = vmatprep.subr.bf16.mxu0 0
    %4236 = vmatpush1.bf16.msra.mxu0 %v4168
    %4237 = vmatprep.subr.bf16.mxu0 0
    %4238 = vmatpush1.bf16.msra.mxu0 %v4169
    %4239 = vmatprep.subr.bf16.mxu0 0
    %4240 = vmatpush1.bf16.msra.mxu0 %v4170
    %4241 = vmatprep.subr.bf16.mxu0 0
    %4242 = vmatpush1.bf16.msra.mxu0 %v4171
    %4243 = vmatprep.subr.bf16.mxu0 0
    %4244 = vmatpush1.bf16.msra.mxu0 %v4172
    %4245 = vmatprep.subr.bf16.mxu0 0
    %4246 = vmatpush1.bf16.msra.mxu0 %v4173
    %4247 = vmatprep.subr.bf16.mxu0 0
    %4248 = vmatpush1.bf16.msra.mxu0 %v4174
    %4249 = vmatprep.subr.bf16.mxu0 0
    %4250 = vmatpush1.bf16.msra.mxu0 %v4175
    %4251 = vmatprep.subr.bf16.mxu0 0
    %4252 = vmatpush1.bf16.msra.mxu0 %v4176
    %4253 = vmatprep.subr.bf16.mxu0 0
    %4254 = vmatpush1.bf16.msra.mxu0 %v4177
    %4255 = vmatprep.subr.bf16.mxu0 0
    %4256 = vmatpush1.bf16.msra.mxu0 %v4178
    %4257 = vmatprep.subr.bf16.mxu0 0
    %4258 = vmatpush1.bf16.msra.mxu0 %v4179
    %4259 = vmatprep.subr.bf16.mxu0 0
    %4260 = vmatpush1.bf16.msra.mxu0 %v4180
    %4261 = vmatprep.mubr.bf16.mxu0 %v3963
    %4262 = vmatmul.mubr.bf16.gmra.mrb[0].mxu0 %v3962
    %v4263 = vpop.f32.mrb[0].mxu0
    %v4264 = vadd.f32 %v4035, %v4263
    %v4265 = vpop.f32.mrb[0].mxu0
    %v4266 = vpop.f32.mrb[0].mxu0
    %v4267 = vpop.f32.mrb[0].mxu0
    %4268 = vdwg.mxu0
    %4269 = vmatprep.subr.bf16.mxu0 0
    %4270 = vmatpush1.bf16.msra.mxu0 %v4181
    %4271 = vmatprep.subr.bf16.mxu0 0
    %4272 = vmatpush1.bf16.msra.mxu0 %v4182
    %4273 = vmatprep.subr.bf16.mxu0 0
    %4274 = vmatpush1.bf16.msra.mxu0 %v4183
    %4275 = vmatprep.subr.bf16.mxu0 0
    %4276 = vmatpush1.bf16.msra.mxu0 %v4184
    %4277 = vmatprep.subr.bf16.mxu0 0
    %4278 = vmatpush1.bf16.msra.mxu0 %v4185
    %4279 = vmatprep.subr.bf16.mxu0 0
    %4280 = vmatpush1.bf16.msra.mxu0 %v4186
    %4281 = vmatprep.subr.bf16.mxu0 0
    %4282 = vmatpush1.bf16.msra.mxu0 %v4187
    %4283 = vmatprep.subr.bf16.mxu0 0
    %4284 = vmatpush1.bf16.msra.mxu0 %v4188
    %4285 = vmatprep.subr.bf16.mxu0 0
    %4286 = vmatpush1.bf16.msra.mxu0 %v4189
    %4287 = vmatprep.subr.bf16.mxu0 0
    %4288 = vmatpush1.bf16.msra.mxu0 %v4190
    %4289 = vmatprep.subr.bf16.mxu0 0
    %4290 = vmatpush1.bf16.msra.mxu0 %v4191
    %4291 = vmatprep.subr.bf16.mxu0 0
    %4292 = vmatpush1.bf16.msra.mxu0 %v4192
    %4293 = vmatprep.subr.bf16.mxu0 0
    %4294 = vmatpush1.bf16.msra.mxu0 %v4193
    %4295 = vmatprep.subr.bf16.mxu0 0
    %4296 = vmatpush1.bf16.msra.mxu0 %v4194
    %4297 = vmatprep.subr.bf16.mxu0 0
    %4298 = vmatpush1.bf16.msra.mxu0 %v4195
    %4299 = vmatprep.subr.bf16.mxu0 0
    %4300 = vmatpush1.bf16.msra.mxu0 %v4196
    %4301 = vmatprep.mubr.bf16.mxu0 %v3965
    %4302 = vmatmul.mubr.bf16.gmra.mrb[0].mxu0 %v3964
    %v4303 = vpop.f32.mrb[0].mxu0
    %v4304 = vadd.f32 %v4264, %v4303
    %v4305 = vpop.f32.mrb[0].mxu0
    %v4306 = vpop.f32.mrb[0].mxu0
    %v4307 = vpop.f32.mrb[0].mxu0
    %4308 = vdwg.mxu0
    %v4309 = vlaneseq
    %v4310 = vand.u32 %v4309, 127
    %vm4311 = vcmp.lt.s32.totalorder %v4310, 10
    %v4312 = vsel %vm4311, %v4304, -1e+30
    %4313 = vmax.xlane.f32.xlu0 %v4312
    %v4314 = vpop.xlane.xlu0 %4313
    %v4315 = vsub.f32 %v4304, %v4314
    %v4316 = vsel %vm4311, %v4315, -1e+30
    %v4317 = vmul.f32 %v4316, 1.442695
    %v4318 = vpow.pop %v4317
    %4319 = vadd.xlane.f32.xlu0 %v4318
    %v4320 = vpop.xlane.xlu0 %4319
    %v4321 = vlog2.pop %v4320
    %v4322 = vmul.f32 %v4321, 0.6931472
    %v4323 = vsub.f32 %v4316, %v4322
    %vm4324 = vcmp.eq.s32.totalorder %v4310, 10
    %v4325 = vsel %vm4324, %v4304, 0.0
    %4326 = vadd.xlane.f32.xlu0 %v4325
    %v4327 = vpop.xlane.xlu0 %4326
    %v4328 = vtanh.pop %v4327
    %v4329 = vsel %vm4324, %v4328, 0.0
    %v4330 = vsel %vm4311, %v4323, %v4329
    %4331 = vst [vmem:[#allocation14] sm:$0xff] %v4330
    // Predicated region
    $region74: #{tpu_custom_call.1} parent=1 // pred_check
      _
    $region75: #{tpu_custom_call.1} parent=1 // pred_check_branch
      %4333 = sbr.rel (0) target = $region77
    $region76: #{tpu_custom_call.1} parent=1 // pred_region
      %s4335 = ssub.s32 128, 128
      %4336 = vsyncadd [#allocation4], %s4335
      %s4338 = sshll.u32 [#allocation14], 4
      %s4339 = int_to_ptr.vmem [resolvable:$true] %s4338
      %4341 = dma.vmem_to_hbm [thread:$0]  %s4339, 128, %s11, [#allocation4]
    $region77: #{tpu_custom_call.1} parent=1 // pred_fallthru
      _
    // Predicated region
    $region78: #{tpu_custom_call.1} parent=1 // pred_check
      _
    $region79: #{tpu_custom_call.1} parent=1 // pred_check_branch
      %4343 = sbr.rel (0) target = $region81
    $region80: #{tpu_custom_call.1} parent=1 // pred_region
      %4344 = dma.done [#allocation4], 128
    $region81: #{tpu_custom_call.1} parent=1 // pred_fallthru
      _
    %4345 = vsyncpa [#allocation3], 1
    %4346 = vsyncpa [#allocation6], 1
    %4347 = vsyncpa [#allocation9], 1
    %4348 = vsyncpa [#allocation12], 1
    %4349 = vsyncpa [#allocation4], 1

// kernel: tpu_custom_call.1
$region0: #{tpu_custom_call.1}
  #allocation0 [shape = 'u32[]', space=smem, size = 0x4, offset = 0x4, fixed_abs, tag = 'smem constant byte address 0x4 - core index']
  #allocation1 [shape = 'u32[144,128]{1,0:T(1,128)}', space=vmem, size = 0x12000, scoped, tag = 'internal scratch']
  %s0 = inlined_call_operand.hbm [shape: bf16[8,9], index: 0, kind: input, shape index: {}]
  %s1 = inlined_call_operand.hbm [shape: bf16[9,288], index: 1, kind: input, shape index: {}]
  %s2 = inlined_call_operand.vmem [shape: f32[1,288], index: 2, kind: input, shape index: {}]
  %s3 = inlined_call_operand.hbm [shape: bf16[288,288], index: 3, kind: input, shape index: {}]
  %s4 = inlined_call_operand.hbm [shape: f32[1,288], index: 4, kind: input, shape index: {}]
  %s5 = inlined_call_operand.hbm [shape: bf16[288,1024], index: 5, kind: input, shape index: {}]
  %s6 = inlined_call_operand.vmem [shape: f32[1,1024], index: 6, kind: input, shape index: {}]
  %s7 = inlined_call_operand.hbm [shape: bf16[1024,512], index: 7, kind: input, shape index: {}]
  %s8 = inlined_call_operand.vmem [shape: f32[1,512], index: 8, kind: input, shape index: {}]
  %s9 = inlined_call_operand.hbm [shape: bf16[512,128], index: 9, kind: input, shape index: {}]
  %s10 = inlined_call_operand.vmem [shape: f32[1,128], index: 10, kind: input, shape index: {}]
  %s11 = inlined_call_operand.hbm [shape: f32[8,128], index: 11, kind: output, shape index: {}]
  %s12 = sld [smem:[#allocation0]]
  $region82: #{tpu_custom_call.1} parent=0
    _
  %s14 = ssub.s32 1, %s12
  %s15 = scalar_select 0, %s14, %s12
  $region1: #{tpu_custom_call.1} parent=0
    #allocation2 [shape = 'u8[2048]{0}', space=vmem, size = 0x800, scoped, tag = 'input window, operand 0, single buffered']
    #allocation3 [shape = 's32[1]{0}', space=sflag, size = 0x4, scoped, tag = 'scoped memory for tpu_custom_call.1']
    #allocation4 [shape = 's32[1]{0}', space=sflag, size = 0x4, scoped, tag = 'scoped memory for tpu_custom_call.1']
    #allocation5 [shape = 'u8[12288]{0}', space=vmem, size = 0x3000, scoped, tag = 'input window, operand 1, single buffered']
    #allocation6 [shape = 's32[1]{0}', space=sflag, size = 0x4, scoped, tag = 'scoped memory for tpu_custom_call.1']
    #allocation7 [shape = 'u8[221184]{0}', space=vmem, size = 0x36000, scoped, tag = 'input window, operand 3, single buffered']
    #allocation8 [shape = 'u8[1536]{0}', space=vmem, size = 0x800, scoped, tag = 'input window, operand 4, single buffered']
    #allocation9 [shape = 's32[1]{0}', space=sflag, size = 0x4, scoped, tag = 'scoped memory for tpu_custom_call.1']
    #allocation10 [shape = 'u8[589824]{0}', space=vmem, size = 0x90000, scoped, tag = 'input window, operand 5, single buffered']
    #allocation11 [shape = 'u8[1048576]{0}', space=vmem, size = 0x100000, scoped, tag = 'input window, operand 7, single buffered']
    #allocation12 [shape = 's32[1]{0}', space=sflag, size = 0x4, scoped, tag = 'scoped memory for tpu_custom_call.1']
    #allocation13 [shape = 'u8[131072]{0}', space=vmem, size = 0x20000, scoped, tag = 'input window, operand 9, single buffered']
    #allocation14 [shape = 'u8[4096]{0}', space=vmem, size = 0x1000, scoped, tag = 'output window, operand 0, single buffered']
    %16 = vsyncpa [#allocation3], 0
    %17 = vsyncpa [#allocation6], 0
    %18 = vsyncpa [#allocation9], 0
    %19 = vsyncpa [#allocation12], 0
    %20 = vsyncpa [#allocation4], 0
    // Predicated region
    $region2: #{tpu_custom_call.1} parent=1 // pred_check
      _
    $region3: #{tpu_custom_call.1} parent=1 // pred_check_branch
      %22 = sbr.rel (0) target = $region5
    $region4: #{tpu_custom_call.1} parent=1 // pred_region
      %s24 = ssub.s32 64, 64
      %25 = vsyncadd [#allocation3], %s24
      %s27 = sshll.u32 [#allocation2], 4
      %s28 = int_to_ptr.vmem [resolvable:$true] %s27
      %30 = dma.hbm_to_vmem [thread:$0]  %s0, 64, %s28, [#allocation3]
    $region5: #{tpu_custom_call.1} parent=1 // pred_fallthru
      _
    // Predicated region
    $region6: #{tpu_custom_call.1} parent=1 // pred_check
      _
    $region7: #{tpu_custom_call.1} parent=1 // pred_check_branch
      %32 = sbr.rel (0) target = $region9
    $region8: #{tpu_custom_call.1} parent=1 // pred_region
      %s34 = ssub.s32 384, 384
      %35 = vsyncadd [#allocation6], %s34
      %s36 = sshll.u32 [#allocation5], 4
      %s37 = int_to_ptr.vmem [resolvable:$true] %s36
      %42 = dma.hbm_to_vmem [thread:$0]  %s1, 384, %s37, [#allocation6], 192, 192, 12
    $region9: #{tpu_custom_call.1} parent=1 // pred_fallthru
      _
    // Predicated region
    $region10: #{tpu_custom_call.1} parent=1 // pred_check
      _
    $region11: #{tpu_custom_call.1} parent=1 // pred_check_branch
      %44 = sbr.rel (0) target = $region13
    $region12: #{tpu_custom_call.1} parent=1 // pred_region
      _
    $region13: #{tpu_custom_call.1} parent=1 // pred_fallthru
      _
    // Predicated region
    $region14: #{tpu_custom_call.1} parent=1 // pred_check
      _
    $region15: #{tpu_custom_call.1} parent=1 // pred_check_branch
      %46 = sbr.rel (0) target = $region17
    $region16: #{tpu_custom_call.1} parent=1 // pred_region
      %s48 = ssub.s32 6912, 6912
      %49 = vsyncadd [#allocation6], %s48
      %s50 = sshll.u32 [#allocation7], 4
      %s51 = int_to_ptr.vmem [resolvable:$true] %s50
      %56 = dma.hbm_to_vmem [thread:$0]  %s3, 6912, %s51, [#allocation6], 192, 192, 12
    $region17: #{tpu_custom_call.1} parent=1 // pred_fallthru
      _
    // Predicated region
    $region18: #{tpu_custom_call.1} parent=1 // pred_check
      _
    $region19: #{tpu_custom_call.1} parent=1 // pred_check_branch
      %58 = sbr.rel (0) target = $region21
    $region20: #{tpu_custom_call.1} parent=1 // pred_region
      %s60 = ssub.s32 48, 48
      %61 = vsyncadd [#allocation9], %s60
      %s63 = sshll.u32 [#allocation8], 4
      %s64 = int_to_ptr.vmem [resolvable:$true] %s63
      %66 = dma.hbm_to_vmem [thread:$0]  %s4, 48, %s64, [#allocation9]
    $region21: #{tpu_custom_call.1} parent=1 // pred_fallthru
      _
    // Predicated region
    $region22: #{tpu_custom_call.1} parent=1 // pred_check
      _
    $region23: #{tpu_custom_call.1} parent=1 // pred_check_branch
      %68 = sbr.rel (0) target = $region25
    $region24: #{tpu_custom_call.1} parent=1 // pred_region
      %s70 = ssub.s32 18432, 18432
      %71 = vsyncadd [#allocation9], %s70
      %s72 = sshll.u32 [#allocation10], 4
      %s73 = int_to_ptr.vmem [resolvable:$true] %s72
      %78 = dma.hbm_to_vmem [thread:$0]  %s5, 18432, %s73, [#allocation9], 512, 512, 32
    $region25: #{tpu_custom_call.1} parent=1 // pred_fallthru
      _
    // Predicated region
    $region26: #{tpu_custom_call.1} parent=1 // pred_check
      _
    $region27: #{tpu_custom_call.1} parent=1 // pred_check_branch
      %80 = sbr.rel (0) target = $region29
    $region28: #{tpu_custom_call.1} parent=1 // pred_region
      _
    $region29: #{tpu_custom_call.1} parent=1 // pred_fallthru
      _
    // Predicated region
    $region30: #{tpu_custom_call.1} parent=1 // pred_check
      _
    $region31: #{tpu_custom_call.1} parent=1 // pred_check_branch
      %82 = sbr.rel (0) target = $region33
    $region32: #{tpu_custom_call.1} parent=1 // pred_region
      %s84 = ssub.s32 32768, 32768
      %85 = vsyncadd [#allocation12], %s84
      %s86 = sshll.u32 [#allocation11], 4
      %s87 = int_to_ptr.vmem [resolvable:$true] %s86
      %92 = dma.hbm_to_vmem [thread:$0]  %s7, 32768, %s87, [#allocation12], 256, 256, 16
    $region33: #{tpu_custom_call.1} parent=1 // pred_fallthru
      _
    // Predicated region
    $region34: #{tpu_custom_call.1} parent=1 // pred_check
      _
    $region35: #{tpu_custom_call.1} parent=1 // pred_check_branch
      %94 = sbr.rel (0) target = $region37
    $region36: #{tpu_custom_call.1} parent=1 // pred_region
      _
    $region37: #{tpu_custom_call.1} parent=1 // pred_fallthru
      _
    // Predicated region
    $region38: #{tpu_custom_call.1} parent=1 // pred_check
      _
    $region39: #{tpu_custom_call.1} parent=1 // pred_check_branch
      %96 = sbr.rel (0) target = $region41
    $region40: #{tpu_custom_call.1} parent=1 // pred_region
      %s98 = ssub.s32 4096, 4096
      %99 = vsyncadd [#allocation12], %s98
      %s100 = sshll.u32 [#allocation13], 4
      %s101 = int_to_ptr.vmem [resolvable:$true] %s100
      %106 = dma.hbm_to_vmem [thread:$0]  %s9, 4096, %s101, [#allocation12], 64, 64, 4
    $region41: #{tpu_custom_call.1} parent=1 // pred_fallthru
      _
    // Predicated region
    $region42: #{tpu_custom_call.1} parent=1 // pred_check
      _
    $region43: #{tpu_custom_call.1} parent=1 // pred_check_branch
      %108 = sbr.rel (0) target = $region45
    $region44: #{tpu_custom_call.1} parent=1 // pred_region
      _
    $region45: #{tpu_custom_call.1} parent=1 // pred_fallthru
      _
    // Predicated region
    $region46: #{tpu_custom_call.1} parent=1 // pred_check
      _
    $region47: #{tpu_custom_call.1} parent=1 // pred_check_branch
      %110 = sbr.rel (0) target = $region49
    $region48: #{tpu_custom_call.1} parent=1 // pred_region
      %111 = dma.done [#allocation3], 64
    $region49: #{tpu_custom_call.1} parent=1 // pred_fallthru
      _
    // Predicated region
    $region50: #{tpu_custom_call.1} parent=1 // pred_check
      _
    $region51: #{tpu_custom_call.1} parent=1 // pred_check_branch
      %113 = sbr.rel (0) target = $region53
    $region52: #{tpu_custom_call.1} parent=1 // pred_region
      %114 = dma.done [#allocation6], 384
    $region53: #{tpu_custom_call.1} parent=1 // pred_fallthru
      _
    // Predicated region
    $region54: #{tpu_custom_call.1} parent=1 // pred_check
      _
    $region55: #{tpu_custom_call.1} parent=1 // pred_check_branch
      %116 = sbr.rel (0) target = $region57
    $region56: #{tpu_custom_call.1} parent=1 // pred_region
      %117 = dma.done [#allocation6], 6912
    $region57: #{tpu_custom_call.1} parent=1 // pred_fallthru
      _
    // Predicated region
    $region58: #{tpu_custom_call.1} parent=1 // pred_check
      _
    $region59: #{tpu_custom_call.1} parent=1 // pred_check_branch
      %119 = sbr.rel (0) target = $region61
    $region60: #{tpu_custom_call.1} parent=1 // pred_region
      %120 = dma.done [#allocation9], 48
    $region61: #{tpu_custom_call.1} parent=1 // pred_fallthru
      _
    // Predicated region
    $region62: #{tpu_custom_call.1} parent=1 // pred_check
      _
    $region63: #{tpu_custom_call.1} parent=1 // pred_check_branch
      %122 = sbr.rel (0) target = $region65
    $region64: #{tpu_custom_call.1} parent=1 // pred_region
      %123 = dma.done [#allocation9], 18432
    $region65: #{tpu_custom_call.1} parent=1 // pred_fallthru
      _
    // Predicated region
    $region66: #{tpu_custom_call.1} parent=1 // pred_check
      _
    $region67: #{tpu_custom_call.1} parent=1 // pred_check_branch
      %125 = sbr.rel (0) target = $region69
    $region68: #{tpu_custom_call.1} parent=1 // pred_region
      %126 = dma.done [#allocation12], 32768
    $region69: #{tpu_custom_call.1} parent=1 // pred_fallthru
      _
    // Predicated region
    $region70: #{tpu_custom_call.1} parent=1 // pred_check
      _
    $region71: #{tpu_custom_call.1} parent=1 // pred_check_branch
      %128 = sbr.rel (0) target = $region73
    $region72: #{tpu_custom_call.1} parent=1 // pred_region
      %129 = dma.done [#allocation12], 4096
    $region73: #{tpu_custom_call.1} parent=1 // pred_fallthru
      _
    %v131 = vld [vmem:[#allocation2] sm:$0xf]
    %v132 = vld [vmem:[#allocation5] sm:$0xff]
    %v133 = vld [vmem:[#allocation5 + $0x8] sm:$0xf]
    %v134 = vld [vmem:[#allocation5 + $0xc] sm:$0x11]
    %v135 = vld [vmem:[#allocation5 + $0x14] sm:$0x1]
    %v136 = vld [vmem:[%s2] sm:$0x7]
    %v138 = vlaneseq
    %v139 = vshrl.u32 %v138, 7
    %v140 = vsub.s32 0, %v139
    %v141 = vrot.slane %v136, %v140
    %v142 = vlaneseq
    %v143 = vshrl.u32 %v142, 7
    %v144 = vsub.s32 1, %v143
    %v145 = vrot.slane %v136, %v144
    %v146 = vlaneseq
    %v147 = vshrl.u32 %v146, 7
    %v148 = vsub.s32 2, %v147
    %v149 = vrot.slane %v136, %v148
    %v157 = vunpack.c.l.b16 %v132
    %v158 = vunpack.c.h.b16 %v132
    %v159 = vunpack.c.l.b16 %v133
    %v160 = vunpack.c.l.b16 %v134
    %v161 = vunpack.c.h.b16 %v134
    %v162 = vunpack.c.l.b16 %v135
    %v163 = vpack.c.b16 %v160, %v157
    %v164 = vpack.c.b16 %v161, %v158
    %v165 = vpack.c.b16 %v162, %v159
    %vm166 = vcmask 72704
    %v168 = vsel %vm166, %v131, 0
    %vm170 = vcmask 1043456
    %vm171 = vcmask 1044480
    %v172 = vsel %vm170, 4294967295, 65535
    %v173 = vsel %vm171, %v172, 0
    %v175 = vand.u32 %v163, %v173
    %v178 = vand.u32 %v164, %v173
    %v181 = vand.u32 %v165, %v173
    %183 = vmatprep.subr.bf16.mxu0 %v178
    %184 = vmatpush1.bf16.msra.mxu0 %v175
    %185 = vmatprep.subr.bf16.mxu0 0
    %186 = vmatpush1.bf16.msra.mxu0 0
    %187 = vmatprep.subr.bf16.mxu0 0
    %188 = vmatpush1.bf16.msra.mxu0 0
    %189 = vmatprep.subr.bf16.mxu0 0
    %190 = vmatpush1.bf16.msra.mxu0 0
    %191 = vmatprep.subr.bf16.mxu0 0
    %192 = vmatpush1.bf16.msra.mxu0 0
    %193 = vmatprep.subr.bf16.mxu0 0
    %194 = vmatpush1.bf16.msra.mxu0 0
    %195 = vmatprep.subr.bf16.mxu0 0
    %196 = vmatpush1.bf16.msra.mxu0 0
    %197 = vmatprep.subr.bf16.mxu0 0
    %198 = vmatpush1.bf16.msra.mxu0 0
    %199 = vmatprep.subr.bf16.mxu0 0
    %200 = vmatpush1.bf16.msra.mxu0 0
    %201 = vmatprep.subr.bf16.mxu0 0
    %202 = vmatpush1.bf16.msra.mxu0 0
    %203 = vmatprep.subr.bf16.mxu0 0
    %204 = vmatpush1.bf16.msra.mxu0 0
    %205 = vmatprep.subr.bf16.mxu0 0
    %206 = vmatpush1.bf16.msra.mxu0 0
    %207 = vmatprep.subr.bf16.mxu0 0
    %208 = vmatpush1.bf16.msra.mxu0 0
    %209 = vmatprep.subr.bf16.mxu0 0
    %210 = vmatpush1.bf16.msra.mxu0 0
    %211 = vmatprep.subr.bf16.mxu0 0
    %212 = vmatpush1.bf16.msra.mxu0 0
    %213 = vmatprep.subr.bf16.mxu0 0
    %214 = vmatpush1.bf16.msra.mxu0 0
    %215 = vmatprep.mubr.bf16.mxu0 0
    %216 = vmatmul.mubr.bf16.gmra.mrb[0].mxu0 %v168
    %v217 = vpop.f32.mrb[0].mxu0
    %v218 = vadd.f32 %v141, %v217
    %v219 = vpop.f32.mrb[0].mxu0
    %v220 = vadd.f32 %v145, %v219
    %v221 = vpop.f32.mrb[0].mxu0
    %v222 = vpop.f32.mrb[0].mxu0
    %223 = vdwg.mxu0
    %224 = vmatprep.subr.bf16.mxu0 0
    %225 = vmatpush1.bf16.msra.mxu0 %v181
    %226 = vmatprep.subr.bf16.mxu0 0
    %227 = vmatpush1.bf16.msra.mxu0 0
    %228 = vmatprep.subr.bf16.mxu0 0
    %229 = vmatpush1.bf16.msra.mxu0 0
    %230 = vmatprep.subr.bf16.mxu0 0
    %231 = vmatpush1.bf16.msra.mxu0 0
    %232 = vmatprep.subr.bf16.mxu0 0
    %233 = vmatpush1.bf16.msra.mxu0 0
    %234 = vmatprep.subr.bf16.mxu0 0
    %235 = vmatpush1.bf16.msra.mxu0 0
    %236 = vmatprep.subr.bf16.mxu0 0
    %237 = vmatpush1.bf16.msra.mxu0 0
    %238 = vmatprep.subr.bf16.mxu0 0
    %239 = vmatpush1.bf16.msra.mxu0 0
    %240 = vmatprep.subr.bf16.mxu0 0
    %241 = vmatpush1.bf16.msra.mxu0 0
    %242 = vmatprep.subr.bf16.mxu0 0
    %243 = vmatpush1.bf16.msra.mxu0 0
    %244 = vmatprep.subr.bf16.mxu0 0
    %245 = vmatpush1.bf16.msra.mxu0 0
    %246 = vmatprep.subr.bf16.mxu0 0
    %247 = vmatpush1.bf16.msra.mxu0 0
    %248 = vmatprep.subr.bf16.mxu0 0
    %249 = vmatpush1.bf16.msra.mxu0 0
    %250 = vmatprep.subr.bf16.mxu0 0
    %251 = vmatpush1.bf16.msra.mxu0 0
    %252 = vmatprep.subr.bf16.mxu0 0
    %253 = vmatpush1.bf16.msra.mxu0 0
    %254 = vmatprep.subr.bf16.mxu0 0
    %255 = vmatpush1.bf16.msra.mxu0 0
    %256 = vmatprep.mubr.bf16.mxu0 0
    %257 = vmatmul.mubr.bf16.gmra.mrb[0].mxu0 %v168
    %v258 = vpop.f32.mrb[0].mxu0
    %v259 = vadd.f32 %v149, %v258
    %v260 = vpop.f32.mrb[0].mxu0
    %v261 = vpop.f32.mrb[0].mxu0
    %v262 = vpop.f32.mrb[0].mxu0
    %263 = vdwg.mxu0
    %v264 = vmax.f32 %v218, 0.0
    %v265 = vmax.f32 %v220, 0.0
    %v266 = vmax.f32 %v259, 0.0
    %v267 = vpack.c.bf16 %v264, %v264
    %v268 = vpack.c.bf16 %v265, %v265
    %v269 = vpack.c.bf16 %v266, %v266
    %v270 = vld [vmem:[#allocation7] sm:$0xff]
    %v271 = vld [vmem:[#allocation7 + $0x8] sm:$0xf]
    %v272 = vld [vmem:[#allocation7 + $0xc] sm:$0xff]
    %v273 = vld [vmem:[#allocation7 + $0x14] sm:$0xf]
    %v274 = vld [vmem:[#allocation7 + $0x18] sm:$0xff]
    %v275 = vld [vmem:[#allocation7 + $0x20] sm:$0xf]
    %v276 = vld [vmem:[#allocation7 + $0x24] sm:$0xff]
    %v277 = vld [vmem:[#allocation7 + $0x2c] sm:$0xf]
    %v278 = vld [vmem:[#allocation7 + $0x30] sm:$0xff]
    %v279 = vld [vmem:[#allocation7 + $0x38] sm:$0xf]
    %v280 = vld [vmem:[#allocation7 + $0x3c] sm:$0xff]
    %v281 = vld [vmem:[#allocation7 + $0x44] sm:$0xf]
    %v282 = vld [vmem:[#allocation7 + $0x48] sm:$0xff]
    %v283 = vld [vmem:[#allocation7 + $0x50] sm:$0xf]
    %v284 = vld [vmem:[#allocation7 + $0x54] sm:$0xff]
    %v285 = vld [vmem:[#allocation7 + $0x5c] sm:$0xf]
    %v286 = vld [vmem:[#allocation7 + $0x60] sm:$0xff]
    %v287 = vld [vmem:[#allocation7 + $0x68] sm:$0xf]
    %v288 = vld [vmem:[#allocation7 + $0x6c] sm:$0xff]
    %v289 = vld [vmem:[#allocation7 + $0x74] sm:$0xf]
    %v290 = vld [vmem:[#allocation7 + $0x78] sm:$0xff]
    %v291 = vld [vmem:[#allocation7 + $0x80] sm:$0xf]
    %v292 = vld [vmem:[#allocation7 + $0x84] sm:$0xff]
    %v293 = vld [vmem:[#allocation7 + $0x8c] sm:$0xf]
    %v294 = vld [vmem:[#allocation7 + $0x90] sm:$0xff]
    %v295 = vld [vmem:[#allocation7 + $0x98] sm:$0xf]
    %v296 = vld [vmem:[#allocation7 + $0x9c] sm:$0xff]
    %v297 = vld [vmem:[#allocation7 + $0xa4] sm:$0xf]
    %v298 = vld [vmem:[#allocation7 + $0xa8] sm:$0xff]
    %v299 = vld [vmem:[#allocation7 + $0xb0] sm:$0xf]
    %v300 = vld [vmem:[#allocation7 + $0xb4] sm:$0xff]
    %v301 = vld [vmem:[#allocation7 + $0xbc] sm:$0xf]
    %v302 = vld [vmem:[#allocation7 + $0xc0] sm:$0xff]
    %v303 = vld [vmem:[#allocation7 + $0xc8] sm:$0xf]
    %v304 = vld [vmem:[#allocation7 + $0xcc] sm:$0xff]
    %v305 = vld [vmem:[#allocation7 + $0xd4] sm:$0xf]
    %v306 = vld [vmem:[#allocation7 + $0xd8] sm:$0xff]
    %v307 = vld [vmem:[#allocation7 + $0xe0] sm:$0xf]
    %v308 = vld [vmem:[#allocation7 + $0xe4] sm:$0xff]
    %v309 = vld [vmem:[#allocation7 + $0xec] sm:$0xf]
    %v310 = vld [vmem:[#allocation7 + $0xf0] sm:$0xff]
    %v311 = vld [vmem:[#allocation7 + $0xf8] sm:$0xf]
    %v312 = vld [vmem:[#allocation7 + $0xfc] sm:$0xff]
    %v313 = vld [vmem:[#allocation7 + $0x104] sm:$0xf]
    %v314 = vld [vmem:[#allocation7 + $0x108] sm:$0xff]
    %v315 = vld [vmem:[#allocation7 + $0x110] sm:$0xf]
    %v316 = vld [vmem:[#allocation7 + $0x114] sm:$0xff]
    %v317 = vld [vmem:[#allocation7 + $0x11c] sm:$0xf]
    %v318 = vld [vmem:[#allocation7 + $0x120] sm:$0xff]
    %v319 = vld [vmem:[#allocation7 + $0x128] sm:$0xf]
    %v320 = vld [vmem:[#allocation7 + $0x12c] sm:$0xff]
    %v321 = vld [vmem:[#allocation7 + $0x134] sm:$0xf]
    %v322 = vld [vmem:[#allocation7 + $0x138] sm:$0xff]
    %v323 = vld [vmem:[#allocation7 + $0x140] sm:$0xf]
    %v324 = vld [vmem:[#allocation7 + $0x144] sm:$0xff]
    %v325 = vld [vmem:[#allocation7 + $0x14c] sm:$0xf]
    %v326 = vld [vmem:[#allocation7 + $0x150] sm:$0xff]
    %v327 = vld [vmem:[#allocation7 + $0x158] sm:$0xf]
    %v328 = vld [vmem:[#allocation7 + $0x15c] sm:$0xff]
    %v329 = vld [vmem:[#allocation7 + $0x164] sm:$0xf]
    %v330 = vld [vmem:[#allocation7 + $0x168] sm:$0xff]
    %v331 = vld [vmem:[#allocation7 + $0x170] sm:$0xf]
    %v332 = vld [vmem:[#allocation7 + $0x174] sm:$0xff]
    %v333 = vld [vmem:[#allocation7 + $0x17c] sm:$0xf]
    %v334 = vld [vmem:[#allocation7 + $0x180] sm:$0xff]
    %v335 = vld [vmem:[#allocation7 + $0x188] sm:$0xf]
    %v336 = vld [vmem:[#allocation7 + $0x18c] sm:$0xff]
    %v337 = vld [vmem:[#allocation7 + $0x194] sm:$0xf]
    %v338 = vld [vmem:[#allocation7 + $0x198] sm:$0xff]
    %v339 = vld [vmem:[#allocation7 + $0x1a0] sm:$0xf]
    %v340 = vld [vmem:[#allocation7 + $0x1a4] sm:$0xff]
    %v341 = vld [vmem:[#allocation7 + $0x1ac] sm:$0xf]
    %v342 = vld [vmem:[#allocation8] sm:$0x7]
    %v344 = vlaneseq
    %v345 = vshrl.u32 %v344, 7
    %v346 = vsub.s32 0, %v345
    %v347 = vrot.slane %v342, %v346
    %v348 = vlaneseq
    %v349 = vshrl.u32 %v348, 7
    %v350 = vsub.s32 1, %v349
    %v351 = vrot.slane %v342, %v350
    %v352 = vlaneseq
    %v353 = vshrl.u32 %v352, 7
    %v354 = vsub.s32 2, %v353
    %v355 = vrot.slane %v342, %v354
    %v431 = vunpack.c.l.b16 %v270
    %v432 = vunpack.c.h.b16 %v270
    %v433 = vunpack.c.l.b16 %v271
    %v434 = vunpack.c.l.b16 %v272
    %v435 = vunpack.c.h.b16 %v272
    %v436 = vunpack.c.l.b16 %v273
    %v437 = vunpack.c.l.b16 %v274
    %v438 = vunpack.c.h.b16 %v274
    %v439 = vunpack.c.l.b16 %v275
    %v440 = vunpack.c.l.b16 %v276
    %v441 = vunpack.c.h.b16 %v276
    %v442 = vunpack.c.l.b16 %v277
    %v443 = vunpack.c.l.b16 %v278
    %v444 = vunpack.c.h.b16 %v278
    %v445 = vunpack.c.l.b16 %v279
    %v446 = vunpack.c.l.b16 %v280
    %v447 = vunpack.c.h.b16 %v280
    %v448 = vunpack.c.l.b16 %v281
    %v449 = vunpack.c.l.b16 %v282
    %v450 = vunpack.c.h.b16 %v282
    %v451 = vunpack.c.l.b16 %v283
    %v452 = vunpack.c.l.b16 %v284
    %v453 = vunpack.c.h.b16 %v284
    %v454 = vunpack.c.l.b16 %v285
    %v455 = vunpack.c.l.b16 %v286
    %v456 = vunpack.c.h.b16 %v286
    %v457 = vunpack.c.l.b16 %v287
    %v458 = vunpack.c.l.b16 %v288
    %v459 = vunpack.c.h.b16 %v288
    %v460 = vunpack.c.l.b16 %v289
    %v461 = vunpack.c.l.b16 %v290
    %v462 = vunpack.c.h.b16 %v290
    %v463 = vunpack.c.l.b16 %v291
    %v464 = vunpack.c.l.b16 %v292
    %v465 = vunpack.c.h.b16 %v292
    %v466 = vunpack.c.l.b16 %v293
    %v467 = vunpack.c.l.b16 %v294
    %v468 = vunpack.c.h.b16 %v294
    %v469 = vunpack.c.l.b16 %v295
    %v470 = vunpack.c.l.b16 %v296
    %v471 = vunpack.c.h.b16 %v296
    %v472 = vunpack.c.l.b16 %v297
    %v473 = vunpack.c.l.b16 %v298
    %v474 = vunpack.c.h.b16 %v298
    %v475 = vunpack.c.l.b16 %v299
    %v476 = vunpack.c.l.b16 %v300
    %v477 = vunpack.c.h.b16 %v300
    %v478 = vunpack.c.l.b16 %v301
    %v479 = vunpack.c.l.b16 %v302
    %v480 = vunpack.c.h.b16 %v302
    %v481 = vunpack.c.l.b16 %v303
    %v482 = vunpack.c.l.b16 %v304
    %v483 = vunpack.c.h.b16 %v304
    %v484 = vunpack.c.l.b16 %v305
    %v485 = vunpack.c.l.b16 %v306
    %v486 = vunpack.c.h.b16 %v306
    %v487 = vunpack.c.l.b16 %v307
    %v488 = vunpack.c.l.b16 %v308
    %v489 = vunpack.c.h.b16 %v308
    %v490 = vunpack.c.l.b16 %v309
    %v491 = vunpack.c.l.b16 %v310
    %v492 = vunpack.c.h.b16 %v310
    %v493 = vunpack.c.l.b16 %v311
    %v494 = vunpack.c.l.b16 %v312
    %v495 = vunpack.c.h.b16 %v312
    %v496 = vunpack.c.l.b16 %v313
    %v497 = vunpack.c.l.b16 %v314
    %v498 = vunpack.c.h.b16 %v314
    %v499 = vunpack.c.l.b16 %v315
    %v500 = vunpack.c.l.b16 %v316
    %v501 = vunpack.c.h.b16 %v316
    %v502 = vunpack.c.l.b16 %v317
    %v503 = vunpack.c.l.b16 %v318
    %v504 = vunpack.c.h.b16 %v318
    %v505 = vunpack.c.l.b16 %v319
    %v506 = vunpack.c.l.b16 %v320
    %v507 = vunpack.c.h.b16 %v320
    %v508 = vunpack.c.l.b16 %v321
    %v509 = vunpack.c.l.b16 %v322
    %v510 = vunpack.c.h.b16 %v322
    %v511 = vunpack.c.l.b16 %v323
    %v512 = vunpack.c.l.b16 %v324
    %v513 = vunpack.c.h.b16 %v324
    %v514 = vunpack.c.l.b16 %v325
    %v515 = vunpack.c.l.b16 %v326
    %v516 = vunpack.c.h.b16 %v326
    %v517 = vunpack.c.l.b16 %v327
    %v518 = vunpack.c.l.b16 %v328
    %v519 = vunpack.c.h.b16 %v328
    %v520 = vunpack.c.l.b16 %v329
    %v521 = vunpack.c.l.b16 %v330
    %v522 = vunpack.c.h.b16 %v330
    %v523 = vunpack.c.l.b16 %v331
    %v524 = vunpack.c.l.b16 %v332
    %v525 = vunpack.c.h.b16 %v332
    %v526 = vunpack.c.l.b16 %v333
    %v527 = vunpack.c.l.b16 %v334
    %v528 = vunpack.c.h.b16 %v334
    %v529 = vunpack.c.l.b16 %v335
    %v530 = vunpack.c.l.b16 %v336
    %v531 = vunpack.c.h.b16 %v336
    %v532 = vunpack.c.l.b16 %v337
    %v533 = vunpack.c.l.b16 %v338
    %v534 = vunpack.c.h.b16 %v338
    %v535 = vunpack.c.l.b16 %v339
    %v536 = vunpack.c.l.b16 %v340
    %v537 = vunpack.c.h.b16 %v340
    %v538 = vunpack.c.l.b16 %v341
    %v539 = vpack.c.b16 %v434, %v431
    %v540 = vpack.c.b16 %v435, %v432
    %v541 = vpack.c.b16 %v436, %v433
    %v542 = vpack.c.b16 %v440, %v437
    %v543 = vpack.c.b16 %v441, %v438
    %v544 = vpack.c.b16 %v442, %v439
    %v545 = vpack.c.b16 %v446, %v443
    %v546 = vpack.c.b16 %v447, %v444
    %v547 = vpack.c.b16 %v448, %v445
    %v548 = vpack.c.b16 %v452, %v449
    %v549 = vpack.c.b16 %v453, %v450
    %v550 = vpack.c.b16 %v454, %v451
    %v551 = vpack.c.b16 %v458, %v455
    %v552 = vpack.c.b16 %v459, %v456
    %v553 = vpack.c.b16 %v460, %v457
    %v554 = vpack.c.b16 %v464, %v461
    %v555 = vpack.c.b16 %v465, %v462
    %v556 = vpack.c.b16 %v466, %v463
    %v557 = vpack.c.b16 %v470, %v467
    %v558 = vpack.c.b16 %v471, %v468
    %v559 = vpack.c.b16 %v472, %v469
    %v560 = vpack.c.b16 %v476, %v473
    %v561 = vpack.c.b16 %v477, %v474
    %v562 = vpack.c.b16 %v478, %v475
    %v563 = vpack.c.b16 %v482, %v479
    %v564 = vpack.c.b16 %v483, %v480
    %v565 = vpack.c.b16 %v484, %v481
    %v566 = vpack.c.b16 %v488, %v485
    %v567 = vpack.c.b16 %v489, %v486
    %v568 = vpack.c.b16 %v490, %v487
    %v569 = vpack.c.b16 %v494, %v491
    %v570 = vpack.c.b16 %v495, %v492
    %v571 = vpack.c.b16 %v496, %v493
    %v572 = vpack.c.b16 %v500, %v497
    %v573 = vpack.c.b16 %v501, %v498
    %v574 = vpack.c.b16 %v502, %v499
    %v575 = vpack.c.b16 %v506, %v503
    %v576 = vpack.c.b16 %v507, %v504
    %v577 = vpack.c.b16 %v508, %v505
    %v578 = vpack.c.b16 %v512, %v509
    %v579 = vpack.c.b16 %v513, %v510
    %v580 = vpack.c.b16 %v514, %v511
    %v581 = vpack.c.b16 %v518, %v515
    %v582 = vpack.c.b16 %v519, %v516
    %v583 = vpack.c.b16 %v520, %v517
    %v584 = vpack.c.b16 %v524, %v521
    %v585 = vpack.c.b16 %v525, %v522
    %v586 = vpack.c.b16 %v526, %v523
    %v587 = vpack.c.b16 %v530, %v527
    %v588 = vpack.c.b16 %v531, %v528
    %v589 = vpack.c.b16 %v532, %v529
    %v590 = vpack.c.b16 %v536, %v533
    %v591 = vpack.c.b16 %v537, %v534
    %v592 = vpack.c.b16 %v538, %v535
    %vm647 = vcmask 261120
    %v649 = vsel %vm647, %v269, 0
    %651 = vmatprep.subr.bf16.mxu0 %v540
    %652 = vmatpush1.bf16.msra.mxu0 %v539
    %653 = vmatprep.subr.bf16.mxu0 %v543
    %654 = vmatpush1.bf16.msra.mxu0 %v542
    %655 = vmatprep.subr.bf16.mxu0 %v546
    %656 = vmatpush1.bf16.msra.mxu0 %v545
    %657 = vmatprep.subr.bf16.mxu0 %v549
    %658 = vmatpush1.bf16.msra.mxu0 %v548
    %659 = vmatprep.subr.bf16.mxu0 %v552
    %660 = vmatpush1.bf16.msra.mxu0 %v551
    %661 = vmatprep.subr.bf16.mxu0 %v555
    %662 = vmatpush1.bf16.msra.mxu0 %v554
    %663 = vmatprep.subr.bf16.mxu0 %v558
    %664 = vmatpush1.bf16.msra.mxu0 %v557
    %665 = vmatprep.subr.bf16.mxu0 %v561
    %666 = vmatpush1.bf16.msra.mxu0 %v560
    %667 = vmatprep.subr.bf16.mxu0 %v564
    %668 = vmatpush1.bf16.msra.mxu0 %v563
    %669 = vmatprep.subr.bf16.mxu0 %v567
    %670 = vmatpush1.bf16.msra.mxu0 %v566
    %671 = vmatprep.subr.bf16.mxu0 %v570
    %672 = vmatpush1.bf16.msra.mxu0 %v569
    %673 = vmatprep.subr.bf16.mxu0 %v573
    %674 = vmatpush1.bf16.msra.mxu0 %v572
    %675 = vmatprep.subr.bf16.mxu0 %v576
    %676 = vmatpush1.bf16.msra.mxu0 %v575
    %677 = vmatprep.subr.bf16.mxu0 %v579
    %678 = vmatpush1.bf16.msra.mxu0 %v578
    %679 = vmatprep.subr.bf16.mxu0 %v582
    %680 = vmatpush1.bf16.msra.mxu0 %v581
    %681 = vmatprep.subr.bf16.mxu0 %v585
    %682 = vmatpush1.bf16.msra.mxu0 %v584
    %683 = vmatprep.mubr.bf16.mxu0 %v268
    %684 = vmatmul.mubr.bf16.gmra.mrb[0].mxu0 %v267
    %v685 = vpop.f32.mrb[0].mxu0
    %v686 = vadd.f32 %v347, %v685
    %v687 = vpop.f32.mrb[0].mxu0
    %v688 = vadd.f32 %v351, %v687
    %v689 = vpop.f32.mrb[0].mxu0
    %v690 = vpop.f32.mrb[0].mxu0
    %691 = vdwg.mxu0
    %692 = vmatprep.subr.bf16.mxu0 %v588
    %693 = vmatpush1.bf16.msra.mxu0 %v587
    %694 = vmatprep.subr.bf16.mxu0 %v591
    %695 = vmatpush1.bf16.msra.mxu0 %v590
    %696 = vmatprep.subr.bf16.mxu0 0
    %697 = vmatpush1.bf16.msra.mxu0 0
    %698 = vmatprep.subr.bf16.mxu0 0
    %699 = vmatpush1.bf16.msra.mxu0 0
    %700 = vmatprep.subr.bf16.mxu0 0
    %701 = vmatpush1.bf16.msra.mxu0 0
    %702 = vmatprep.subr.bf16.mxu0 0
    %703 = vmatpush1.bf16.msra.mxu0 0
    %704 = vmatprep.subr.bf16.mxu0 0
    %705 = vmatpush1.bf16.msra.mxu0 0
    %706 = vmatprep.subr.bf16.mxu0 0
    %707 = vmatpush1.bf16.msra.mxu0 0
    %708 = vmatprep.subr.bf16.mxu0 0
    %709 = vmatpush1.bf16.msra.mxu0 0
    %710 = vmatprep.subr.bf16.mxu0 0
    %711 = vmatpush1.bf16.msra.mxu0 0
    %712 = vmatprep.subr.bf16.mxu0 0
    %713 = vmatpush1.bf16.msra.mxu0 0
    %714 = vmatprep.subr.bf16.mxu0 0
    %715 = vmatpush1.bf16.msra.mxu0 0
    %716 = vmatprep.subr.bf16.mxu0 0
    %717 = vmatpush1.bf16.msra.mxu0 0
    %718 = vmatprep.subr.bf16.mxu0 0
    %719 = vmatpush1.bf16.msra.mxu0 0
    %720 = vmatprep.subr.bf16.mxu0 0
    %721 = vmatpush1.bf16.msra.mxu0 0
    %722 = vmatprep.subr.bf16.mxu0 0
    %723 = vmatpush1.bf16.msra.mxu0 0
    %724 = vmatprep.mubr.bf16.mxu0 0
    %725 = vmatmul.mubr.bf16.gmra.mrb[0].mxu0 %v649
    %v726 = vpop.f32.mrb[0].mxu0
    %v727 = vadd.f32 %v686, %v726
    %v728 = vpop.f32.mrb[0].mxu0
    %v729 = vadd.f32 %v688, %v728
    %v730 = vpop.f32.mrb[0].mxu0
    %v731 = vpop.f32.mrb[0].mxu0
    %732 = vdwg.mxu0
    %733 = vmatprep.subr.bf16.mxu0 0
    %734 = vmatpush1.bf16.msra.mxu0 %v541
    %735 = vmatprep.subr.bf16.mxu0 0
    %736 = vmatpush1.bf16.msra.mxu0 %v544
    %737 = vmatprep.subr.bf16.mxu0 0
    %738 = vmatpush1.bf16.msra.mxu0 %v547
    %739 = vmatprep.subr.bf16.mxu0 0
    %740 = vmatpush1.bf16.msra.mxu0 %v550
    %741 = vmatprep.subr.bf16.mxu0 0
    %742 = vmatpush1.bf16.msra.mxu0 %v553
    %743 = vmatprep.subr.bf16.mxu0 0
    %744 = vmatpush1.bf16.msra.mxu0 %v556
    %745 = vmatprep.subr.bf16.mxu0 0
    %746 = vmatpush1.bf16.msra.mxu0 %v559
    %747 = vmatprep.subr.bf16.mxu0 0
    %748 = vmatpush1.bf16.msra.mxu0 %v562
    %749 = vmatprep.subr.bf16.mxu0 0
    %750 = vmatpush1.bf16.msra.mxu0 %v565
    %751 = vmatprep.subr.bf16.mxu0 0
    %752 = vmatpush1.bf16.msra.mxu0 %v568
    %753 = vmatprep.subr.bf16.mxu0 0
    %754 = vmatpush1.bf16.msra.mxu0 %v571
    %755 = vmatprep.subr.bf16.mxu0 0
    %756 = vmatpush1.bf16.msra.mxu0 %v574
    %757 = vmatprep.subr.bf16.mxu0 0
    %758 = vmatpush1.bf16.msra.mxu0 %v577
    %759 = vmatprep.subr.bf16.mxu0 0
    %760 = vmatpush1.bf16.msra.mxu0 %v580
    %761 = vmatprep.subr.bf16.mxu0 0
    %762 = vmatpush1.bf16.msra.mxu0 %v583
    %763 = vmatprep.subr.bf16.mxu0 0
    %764 = vmatpush1.bf16.msra.mxu0 %v586
    %765 = vmatprep.mubr.bf16.mxu0 %v268
    %766 = vmatmul.mubr.bf16.gmra.mrb[0].mxu0 %v267
    %v767 = vpop.f32.mrb[0].mxu0
    %v768 = vadd.f32 %v355, %v767
    %v769 = vpop.f32.mrb[0].mxu0
    %v770 = vpop.f32.mrb[0].mxu0
    %v771 = vpop.f32.mrb[0].mxu0
    %772 = vdwg.mxu0
    %773 = vmatprep.subr.bf16.mxu0 0
    %774 = vmatpush1.bf16.msra.mxu0 %v589
    %775 = vmatprep.subr.bf16.mxu0 0
    %776 = vmatpush1.bf16.msra.mxu0 %v592
    %777 = vmatprep.subr.bf16.mxu0 0
    %778 = vmatpush1.bf16.msra.mxu0 0
    %779 = vmatprep.subr.bf16.mxu0 0
    %780 = vmatpush1.bf16.msra.mxu0 0
    %781 = vmatprep.subr.bf16.mxu0 0
    %782 = vmatpush1.bf16.msra.mxu0 0
    %783 = vmatprep.subr.bf16.mxu0 0
    %784 = vmatpush1.bf16.msra.mxu0 0
    %785 = vmatprep.subr.bf16.mxu0 0
    %786 = vmatpush1.bf16.msra.mxu0 0
    %787 = vmatprep.subr.bf16.mxu0 0
    %788 = vmatpush1.bf16.msra.mxu0 0
    %789 = vmatprep.subr.bf16.mxu0 0
    %790 = vmatpush1.bf16.msra.mxu0 0
    %791 = vmatprep.subr.bf16.mxu0 0
    %792 = vmatpush1.bf16.msra.mxu0 0
    %793 = vmatprep.subr.bf16.mxu0 0
    %794 = vmatpush1.bf16.msra.mxu0 0
    %795 = vmatprep.subr.bf16.mxu0 0
    %796 = vmatpush1.bf16.msra.mxu0 0
    %797 = vmatprep.subr.bf16.mxu0 0
    %798 = vmatpush1.bf16.msra.mxu0 0
    %799 = vmatprep.subr.bf16.mxu0 0
    %800 = vmatpush1.bf16.msra.mxu0 0
    %801 = vmatprep.subr.bf16.mxu0 0
    %802 = vmatpush1.bf16.msra.mxu0 0
    %803 = vmatprep.subr.bf16.mxu0 0
    %804 = vmatpush1.bf16.msra.mxu0 0
    %805 = vmatprep.mubr.bf16.mxu0 0
    %806 = vmatmul.mubr.bf16.gmra.mrb[0].mxu0 %v649
    %v807 = vpop.f32.mrb[0].mxu0
    %v808 = vadd.f32 %v768, %v807
    %v809 = vpop.f32.mrb[0].mxu0
    %v810 = vpop.f32.mrb[0].mxu0
    %v811 = vpop.f32.mrb[0].mxu0
    %812 = vdwg.mxu0
    %v813 = vmax.f32 %v727, 0.0
    %v814 = vmax.f32 %v729, 0.0
    %v815 = vmax.f32 %v808, 0.0
    %v816 = vpack.c.bf16 %v813, %v813
    %v817 = vpack.c.bf16 %v814, %v814
    %v818 = vpack.c.bf16 %v815, %v815
    %v819 = vld [vmem:[#allocation10] sm:$0xff]
    %v820 = vld [vmem:[#allocation10 + $0x8] sm:$0xff]
    %v821 = vld [vmem:[#allocation10 + $0x10] sm:$0xff]
    %v822 = vld [vmem:[#allocation10 + $0x18] sm:$0xff]
    %v823 = vld [vmem:[#allocation10 + $0x20] sm:$0xff]
    %v824 = vld [vmem:[#allocation10 + $0x28] sm:$0xff]
    %v825 = vld [vmem:[#allocation10 + $0x30] sm:$0xff]
    %v826 = vld [vmem:[#allocation10 + $0x38] sm:$0xff]
    %v827 = vld [vmem:[#allocation10 + $0x40] sm:$0xff]
    %v828 = vld [vmem:[#allocation10 + $0x48] sm:$0xff]
    %v829 = vld [vmem:[#allocation10 + $0x50] sm:$0xff]
    %v830 = vld [vmem:[#allocation10 + $0x58] sm:$0xff]
    %v831 = vld [vmem:[#allocation10 + $0x60] sm:$0xff]
    %v832 = vld [vmem:[#allocation10 + $0x68] sm:$0xff]
    %v833 = vld [vmem:[#allocation10 + $0x70] sm:$0xff]
    %v834 = vld [vmem:[#allocation10 + $0x78] sm:$0xff]
    %v835 = vld [vmem:[#allocation10 + $0x80] sm:$0xff]
    %v836 = vld [vmem:[#allocation10 + $0x88] sm:$0xff]
    %v837 = vld [vmem:[#allocation10 + $0x90] sm:$0xff]
    %v838 = vld [vmem:[#allocation10 + $0x98] sm:$0xff]
    %v839 = vld [vmem:[#allocation10 + $0xa0] sm:$0xff]
    %v840 = vld [vmem:[#allocation10 + $0xa8] sm:$0xff]
    %v841 = vld [vmem:[#allocation10 + $0xb0] sm:$0xff]
    %v842 = vld [vmem:[#allocation10 + $0xb8] sm:$0xff]
    %v843 = vld [vmem:[#allocation10 + $0xc0] sm:$0xff]
    %v844 = vld [vmem:[#allocation10 + $0xc8] sm:$0xff]
    %v845 = vld [vmem:[#allocation10 + $0xd0] sm:$0xff]
    %v846 = vld [vmem:[#allocation10 + $0xd8] sm:$0xff]
    %v847 = vld [vmem:[#allocation10 + $0xe0] sm:$0xff]
    %v848 = vld [vmem:[#allocation10 + $0xe8] sm:$0xff]
    %v849 = vld [vmem:[#allocation10 + $0xf0] sm:$0xff]
    %v850 = vld [vmem:[#allocation10 + $0xf8] sm:$0xff]
    %v851 = vld [vmem:[#allocation10 + $0x100] sm:$0xff]
    %v852 = vld [vmem:[#allocation10 + $0x108] sm:$0xff]
    %v853 = vld [vmem:[#allocation10 + $0x110] sm:$0xff]
    %v854 = vld [vmem:[#allocation10 + $0x118] sm:$0xff]
    %v855 = vld [vmem:[#allocation10 + $0x120] sm:$0xff]
    %v856 = vld [vmem:[#allocation10 + $0x128] sm:$0xff]
    %v857 = vld [vmem:[#allocation10 + $0x130] sm:$0xff]
    %v858 = vld [vmem:[#allocation10 + $0x138] sm:$0xff]
    %v859 = vld [vmem:[#allocation10 + $0x140] sm:$0xff]
    %v860 = vld [vmem:[#allocation10 + $0x148] sm:$0xff]
    %v861 = vld [vmem:[#allocation10 + $0x150] sm:$0xff]
    %v862 = vld [vmem:[#allocation10 + $0x158] sm:$0xff]
    %v863 = vld [vmem:[#allocation10 + $0x160] sm:$0xff]
    %v864 = vld [vmem:[#allocation10 + $0x168] sm:$0xff]
    %v865 = vld [vmem:[#allocation10 + $0x170] sm:$0xff]
    %v866 = vld [vmem:[#allocation10 + $0x178] sm:$0xff]
    %v867 = vld [vmem:[#allocation10 + $0x180] sm:$0xff]
    %v868 = vld [vmem:[#allocation10 + $0x188] sm:$0xff]
    %v869 = vld [vmem:[#allocation10 + $0x190] sm:$0xff]
    %v870 = vld [vmem:[#allocation10 + $0x198] sm:$0xff]
    %v871 = vld [vmem:[#allocation10 + $0x1a0] sm:$0xff]
    %v872 = vld [vmem:[#allocation10 + $0x1a8] sm:$0xff]
    %v873 = vld [vmem:[#allocation10 + $0x1b0] sm:$0xff]
    %v874 = vld [vmem:[#allocation10 + $0x1b8] sm:$0xff]
    %v875 = vld [vmem:[#allocation10 + $0x1c0] sm:$0xff]
    %v876 = vld [vmem:[#allocation10 + $0x1c8] sm:$0xff]
    %v877 = vld [vmem:[#allocation10 + $0x1d0] sm:$0xff]
    %v878 = vld [vmem:[#allocation10 + $0x1d8] sm:$0xff]
    %v879 = vld [vmem:[#allocation10 + $0x1e0] sm:$0xff]
    %v880 = vld [vmem:[#allocation10 + $0x1e8] sm:$0xff]
    %v881 = vld [vmem:[#allocation10 + $0x1f0] sm:$0xff]
    %v882 = vld [vmem:[#allocation10 + $0x1f8] sm:$0xff]
    %v883 = vld [vmem:[#allocation10 + $0x200] sm:$0xff]
    %v884 = vld [vmem:[#allocation10 + $0x208] sm:$0xff]
    %v885 = vld [vmem:[#allocation10 + $0x210] sm:$0xff]
    %v886 = vld [vmem:[#allocation10 + $0x218] sm:$0xff]
    %v887 = vld [vmem:[#allocation10 + $0x220] sm:$0xff]
    %v888 = vld [vmem:[#allocation10 + $0x228] sm:$0xff]
    %v889 = vld [vmem:[#allocation10 + $0x230] sm:$0xff]
    %v890 = vld [vmem:[#allocation10 + $0x238] sm:$0xff]
    %v891 = vld [vmem:[#allocation10 + $0x240] sm:$0xff]
    %v892 = vld [vmem:[#allocation10 + $0x248] sm:$0xff]
    %v893 = vld [vmem:[#allocation10 + $0x250] sm:$0xff]
    %v894 = vld [vmem:[#allocation10 + $0x258] sm:$0xff]
    %v895 = vld [vmem:[#allocation10 + $0x260] sm:$0xff]
    %v896 = vld [vmem:[#allocation10 + $0x268] sm:$0xff]
    %v897 = vld [vmem:[#allocation10 + $0x270] sm:$0xff]
    %v898 = vld [vmem:[#allocation10 + $0x278] sm:$0xff]
    %v899 = vld [vmem:[#allocation10 + $0x280] sm:$0xff]
    %v900 = vld [vmem:[#allocation10 + $0x288] sm:$0xff]
    %v901 = vld [vmem:[#allocation10 + $0x290] sm:$0xff]
    %v902 = vld [vmem:[#allocation10 + $0x298] sm:$0xff]
    %v903 = vld [vmem:[#allocation10 + $0x2a0] sm:$0xff]
    %v904 = vld [vmem:[#allocation10 + $0x2a8] sm:$0xff]
    %v905 = vld [vmem:[#allocation10 + $0x2b0] sm:$0xff]
    %v906 = vld [vmem:[#allocation10 + $0x2b8] sm:$0xff]
    %v907 = vld [vmem:[#allocation10 + $0x2c0] sm:$0xff]
    %v908 = vld [vmem:[#allocation10 + $0x2c8] sm:$0xff]
    %v909 = vld [vmem:[#allocation10 + $0x2d0] sm:$0xff]
    %v910 = vld [vmem:[#allocation10 + $0x2d8] sm:$0xff]
    %v911 = vld [vmem:[#allocation10 + $0x2e0] sm:$0xff]
    %v912 = vld [vmem:[#allocation10 + $0x2e8] sm:$0xff]
    %v913 = vld [vmem:[#allocation10 + $0x2f0] sm:$0xff]
    %v914 = vld [vmem:[#allocation10 + $0x2f8] sm:$0xff]
    %v915 = vld [vmem:[#allocation10 + $0x300] sm:$0xff]
    %v916 = vld [vmem:[#allocation10 + $0x308] sm:$0xff]
    %v917 = vld [vmem:[#allocation10 + $0x310] sm:$0xff]
    %v918 = vld [vmem:[#allocation10 + $0x318] sm:$0xff]
    %v919 = vld [vmem:[#allocation10 + $0x320] sm:$0xff]
    %v920 = vld [vmem:[#allocation10 + $0x328] sm:$0xff]
    %v921 = vld [vmem:[#allocation10 + $0x330] sm:$0xff]
    %v922 = vld [vmem:[#allocation10 + $0x338] sm:$0xff]
    %v923 = vld [vmem:[#allocation10 + $0x340] sm:$0xff]
    %v924 = vld [vmem:[#allocation10 + $0x348] sm:$0xff]
    %v925 = vld [vmem:[#allocation10 + $0x350] sm:$0xff]
    %v926 = vld [vmem:[#allocation10 + $0x358] sm:$0xff]
    %v927 = vld [vmem:[#allocation10 + $0x360] sm:$0xff]
    %v928 = vld [vmem:[#allocation10 + $0x368] sm:$0xff]
    %v929 = vld [vmem:[#allocation10 + $0x370] sm:$0xff]
    %v930 = vld [vmem:[#allocation10 + $0x378] sm:$0xff]
    %v931 = vld [vmem:[#allocation10 + $0x380] sm:$0xff]
    %v932 = vld [vmem:[#allocation10 + $0x388] sm:$0xff]
    %v933 = vld [vmem:[#allocation10 + $0x390] sm:$0xff]
    %v934 = vld [vmem:[#allocation10 + $0x398] sm:$0xff]
    %v935 = vld [vmem:[#allocation10 + $0x3a0] sm:$0xff]
    %v936 = vld [vmem:[#allocation10 + $0x3a8] sm:$0xff]
    %v937 = vld [vmem:[#allocation10 + $0x3b0] sm:$0xff]
    %v938 = vld [vmem:[#allocation10 + $0x3b8] sm:$0xff]
    %v939 = vld [vmem:[#allocation10 + $0x3c0] sm:$0xff]
    %v940 = vld [vmem:[#allocation10 + $0x3c8] sm:$0xff]
    %v941 = vld [vmem:[#allocation10 + $0x3d0] sm:$0xff]
    %v942 = vld [vmem:[#allocation10 + $0x3d8] sm:$0xff]
    %v943 = vld [vmem:[#allocation10 + $0x3e0] sm:$0xff]
    %v944 = vld [vmem:[#allocation10 + $0x3e8] sm:$0xff]
    %v945 = vld [vmem:[#allocation10 + $0x3f0] sm:$0xff]
    %v946 = vld [vmem:[#allocation10 + $0x3f8] sm:$0xff]
    %v947 = vld [vmem:[#allocation10 + $0x400] sm:$0xff]
    %v948 = vld [vmem:[#allocation10 + $0x408] sm:$0xff]
    %v949 = vld [vmem:[#allocation10 + $0x410] sm:$0xff]
    %v950 = vld [vmem:[#allocation10 + $0x418] sm:$0xff]
    %v951 = vld [vmem:[#allocation10 + $0x420] sm:$0xff]
    %v952 = vld [vmem:[#allocation10 + $0x428] sm:$0xff]
    %v953 = vld [vmem:[#allocation10 + $0x430] sm:$0xff]
    %v954 = vld [vmem:[#allocation10 + $0x438] sm:$0xff]
    %v955 = vld [vmem:[#allocation10 + $0x440] sm:$0xff]
    %v956 = vld [vmem:[#allocation10 + $0x448] sm:$0xff]
    %v957 = vld [vmem:[#allocation10 + $0x450] sm:$0xff]
    %v958 = vld [vmem:[#allocation10 + $0x458] sm:$0xff]
    %v959 = vld [vmem:[#allocation10 + $0x460] sm:$0xff]
    %v960 = vld [vmem:[#allocation10 + $0x468] sm:$0xff]
    %v961 = vld [vmem:[#allocation10 + $0x470] sm:$0xff]
    %v962 = vld [vmem:[#allocation10 + $0x478] sm:$0xff]
    %v963 = vld [vmem:[%s6] sm:$0xff]
    %v965 = vlaneseq
    %v966 = vshrl.u32 %v965, 7
    %v967 = vsub.s32 0, %v966
    %v968 = vrot.slane %v963, %v967
    %v969 = vlaneseq
    %v970 = vshrl.u32 %v969, 7
    %v971 = vsub.s32 1, %v970
    %v972 = vrot.slane %v963, %v971
    %v973 = vlaneseq
    %v974 = vshrl.u32 %v973, 7
    %v975 = vsub.s32 2, %v974
    %v976 = vrot.slane %v963, %v975
    %v977 = vlaneseq
    %v978 = vshrl.u32 %v977, 7
    %v979 = vsub.s32 3, %v978
    %v980 = vrot.slane %v963, %v979
    %v981 = vlaneseq
    %v982 = vshrl.u32 %v981, 7
    %v983 = vsub.s32 4, %v982
    %v984 = vrot.slane %v963, %v983
    %v985 = vlaneseq
    %v986 = vshrl.u32 %v985, 7
    %v987 = vsub.s32 5, %v986
    %v988 = vrot.slane %v963, %v987
    %v989 = vlaneseq
    %v990 = vshrl.u32 %v989, 7
    %v991 = vsub.s32 6, %v990
    %v992 = vrot.slane %v963, %v991
    %v993 = vlaneseq
    %v994 = vshrl.u32 %v993, 7
    %v995 = vsub.s32 7, %v994
    %v996 = vrot.slane %v963, %v995
    %v1149 = vunpack.c.l.b16 %v819
    %v1150 = vunpack.c.h.b16 %v819
    %v1151 = vunpack.c.l.b16 %v820
    %v1152 = vunpack.c.h.b16 %v820
    %v1153 = vunpack.c.l.b16 %v821
    %v1154 = vunpack.c.h.b16 %v821
    %v1155 = vunpack.c.l.b16 %v822
    %v1156 = vunpack.c.h.b16 %v822
    %v1157 = vunpack.c.l.b16 %v823
    %v1158 = vunpack.c.h.b16 %v823
    %v1159 = vunpack.c.l.b16 %v824
    %v1160 = vunpack.c.h.b16 %v824
    %v1161 = vunpack.c.l.b16 %v825
    %v1162 = vunpack.c.h.b16 %v825
    %v1163 = vunpack.c.l.b16 %v826
    %v1164 = vunpack.c.h.b16 %v826
    %v1165 = vunpack.c.l.b16 %v827
    %v1166 = vunpack.c.h.b16 %v827
    %v1167 = vunpack.c.l.b16 %v828
    %v1168 = vunpack.c.h.b16 %v828
    %v1169 = vunpack.c.l.b16 %v829
    %v1170 = vunpack.c.h.b16 %v829
    %v1171 = vunpack.c.l.b16 %v830
    %v1172 = vunpack.c.h.b16 %v830
    %v1173 = vunpack.c.l.b16 %v831
    %v1174 = vunpack.c.h.b16 %v831
    %v1175 = vunpack.c.l.b16 %v832
    %v1176 = vunpack.c.h.b16 %v832
    %v1177 = vunpack.c.l.b16 %v833
    %v1178 = vunpack.c.h.b16 %v833
    %v1179 = vunpack.c.l.b16 %v834
    %v1180 = vunpack.c.h.b16 %v834
    %v1181 = vunpack.c.l.b16 %v835
    %v1182 = vunpack.c.h.b16 %v835
    %v1183 = vunpack.c.l.b16 %v836
    %v1184 = vunpack.c.h.b16 %v836
    %v1185 = vunpack.c.l.b16 %v837
    %v1186 = vunpack.c.h.b16 %v837
    %v1187 = vunpack.c.l.b16 %v838
    %v1188 = vunpack.c.h.b16 %v838
    %v1189 = vunpack.c.l.b16 %v839
    %v1190 = vunpack.c.h.b16 %v839
    %v1191 = vunpack.c.l.b16 %v840
    %v1192 = vunpack.c.h.b16 %v840
    %v1193 = vunpack.c.l.b16 %v841
    %v1194 = vunpack.c.h.b16 %v841
    %v1195 = vunpack.c.l.b16 %v842
    %v1196 = vunpack.c.h.b16 %v842
    %v1197 = vunpack.c.l.b16 %v843
    %v1198 = vunpack.c.h.b16 %v843
    %v1199 = vunpack.c.l.b16 %v844
    %v1200 = vunpack.c.h.b16 %v844
    %v1201 = vunpack.c.l.b16 %v845
    %v1202 = vunpack.c.h.b16 %v845
    %v1203 = vunpack.c.l.b16 %v846
    %v1204 = vunpack.c.h.b16 %v846
    %v1205 = vunpack.c.l.b16 %v847
    %v1206 = vunpack.c.h.b16 %v847
    %v1207 = vunpack.c.l.b16 %v848
    %v1208 = vunpack.c.h.b16 %v848
    %v1209 = vunpack.c.l.b16 %v849
    %v1210 = vunpack.c.h.b16 %v849
    %v1211 = vunpack.c.l.b16 %v850
    %v1212 = vunpack.c.h.b16 %v850
    %v1213 = vunpack.c.l.b16 %v851
    %v1214 = vunpack.c.h.b16 %v851
    %v1215 = vunpack.c.l.b16 %v852
    %v1216 = vunpack.c.h.b16 %v852
    %v1217 = vunpack.c.l.b16 %v853
    %v1218 = vunpack.c.h.b16 %v853
    %v1219 = vunpack.c.l.b16 %v854
    %v1220 = vunpack.c.h.b16 %v854
    %v1221 = vunpack.c.l.b16 %v855
    %v1222 = vunpack.c.h.b16 %v855
    %v1223 = vunpack.c.l.b16 %v856
    %v1224 = vunpack.c.h.b16 %v856
    %v1225 = vunpack.c.l.b16 %v857
    %v1226 = vunpack.c.h.b16 %v857
    %v1227 = vunpack.c.l.b16 %v858
    %v1228 = vunpack.c.h.b16 %v858
    %v1229 = vunpack.c.l.b16 %v859
    %v1230 = vunpack.c.h.b16 %v859
    %v1231 = vunpack.c.l.b16 %v860
    %v1232 = vunpack.c.h.b16 %v860
    %v1233 = vunpack.c.l.b16 %v861
    %v1234 = vunpack.c.h.b16 %v861
    %v1235 = vunpack.c.l.b16 %v862
    %v1236 = vunpack.c.h.b16 %v862
    %v1237 = vunpack.c.l.b16 %v863
    %v1238 = vunpack.c.h.b16 %v863
    %v1239 = vunpack.c.l.b16 %v864
    %v1240 = vunpack.c.h.b16 %v864
    %v1241 = vunpack.c.l.b16 %v865
    %v1242 = vunpack.c.h.b16 %v865
    %v1243 = vunpack.c.l.b16 %v866
    %v1244 = vunpack.c.h.b16 %v866
    %v1245 = vunpack.c.l.b16 %v867
    %v1246 = vunpack.c.h.b16 %v867
    %v1247 = vunpack.c.l.b16 %v868
    %v1248 = vunpack.c.h.b16 %v868
    %v1249 = vunpack.c.l.b16 %v869
    %v1250 = vunpack.c.h.b16 %v869
    %v1251 = vunpack.c.l.b16 %v870
    %v1252 = vunpack.c.h.b16 %v870
    %v1253 = vunpack.c.l.b16 %v871
    %v1254 = vunpack.c.h.b16 %v871
    %v1255 = vunpack.c.l.b16 %v872
    %v1256 = vunpack.c.h.b16 %v872
    %v1257 = vunpack.c.l.b16 %v873
    %v1258 = vunpack.c.h.b16 %v873
    %v1259 = vunpack.c.l.b16 %v874
    %v1260 = vunpack.c.h.b16 %v874
    %v1261 = vunpack.c.l.b16 %v875
    %v1262 = vunpack.c.h.b16 %v875
    %v1263 = vunpack.c.l.b16 %v876
    %v1264 = vunpack.c.h.b16 %v876
    %v1265 = vunpack.c.l.b16 %v877
    %v1266 = vunpack.c.h.b16 %v877
    %v1267 = vunpack.c.l.b16 %v878
    %v1268 = vunpack.c.h.b16 %v878
    %v1269 = vunpack.c.l.b16 %v879
    %v1270 = vunpack.c.h.b16 %v879
    %v1271 = vunpack.c.l.b16 %v880
    %v1272 = vunpack.c.h.b16 %v880
    %v1273 = vunpack.c.l.b16 %v881
    %v1274 = vunpack.c.h.b16 %v881
    %v1275 = vunpack.c.l.b16 %v882
    %v1276 = vunpack.c.h.b16 %v882
    %v1277 = vunpack.c.l.b16 %v883
    %v1278 = vunpack.c.h.b16 %v883
    %v1279 = vunpack.c.l.b16 %v884
    %v1280 = vunpack.c.h.b16 %v884
    %v1281 = vunpack.c.l.b16 %v885
    %v1282 = vunpack.c.h.b16 %v885
    %v1283 = vunpack.c.l.b16 %v886
    %v1284 = vunpack.c.h.b16 %v886
    %v1285 = vunpack.c.l.b16 %v887
    %v1286 = vunpack.c.h.b16 %v887
    %v1287 = vunpack.c.l.b16 %v888
    %v1288 = vunpack.c.h.b16 %v888
    %v1289 = vunpack.c.l.b16 %v889
    %v1290 = vunpack.c.h.b16 %v889
    %v1291 = vunpack.c.l.b16 %v890
    %v1292 = vunpack.c.h.b16 %v890
    %v1293 = vunpack.c.l.b16 %v891
    %v1294 = vunpack.c.h.b16 %v891
    %v1295 = vunpack.c.l.b16 %v892
    %v1296 = vunpack.c.h.b16 %v892
    %v1297 = vunpack.c.l.b16 %v893
    %v1298 = vunpack.c.h.b16 %v893
    %v1299 = vunpack.c.l.b16 %v894
    %v1300 = vunpack.c.h.b16 %v894
    %v1301 = vunpack.c.l.b16 %v895
    %v1302 = vunpack.c.h.b16 %v895
    %v1303 = vunpack.c.l.b16 %v896
    %v1304 = vunpack.c.h.b16 %v896
    %v1305 = vunpack.c.l.b16 %v897
    %v1306 = vunpack.c.h.b16 %v897
    %v1307 = vunpack.c.l.b16 %v898
    %v1308 = vunpack.c.h.b16 %v898
    %v1309 = vunpack.c.l.b16 %v899
    %v1310 = vunpack.c.h.b16 %v899
    %v1311 = vunpack.c.l.b16 %v900
    %v1312 = vunpack.c.h.b16 %v900
    %v1313 = vunpack.c.l.b16 %v901
    %v1314 = vunpack.c.h.b16 %v901
    %v1315 = vunpack.c.l.b16 %v902
    %v1316 = vunpack.c.h.b16 %v902
    %v1317 = vunpack.c.l.b16 %v903
    %v1318 = vunpack.c.h.b16 %v903
    %v1319 = vunpack.c.l.b16 %v904
    %v1320 = vunpack.c.h.b16 %v904
    %v1321 = vunpack.c.l.b16 %v905
    %v1322 = vunpack.c.h.b16 %v905
    %v1323 = vunpack.c.l.b16 %v906
    %v1324 = vunpack.c.h.b16 %v906
    %v1325 = vunpack.c.l.b16 %v907
    %v1326 = vunpack.c.h.b16 %v907
    %v1327 = vunpack.c.l.b16 %v908
    %v1328 = vunpack.c.h.b16 %v908
    %v1329 = vunpack.c.l.b16 %v909
    %v1330 = vunpack.c.h.b16 %v909
    %v1331 = vunpack.c.l.b16 %v910
    %v1332 = vunpack.c.h.b16 %v910
    %v1333 = vunpack.c.l.b16 %v911
    %v1334 = vunpack.c.h.b16 %v911
    %v1335 = vunpack.c.l.b16 %v912
    %v1336 = vunpack.c.h.b16 %v912
    %v1337 = vunpack.c.l.b16 %v913
    %v1338 = vunpack.c.h.b16 %v913
    %v1339 = vunpack.c.l.b16 %v914
    %v1340 = vunpack.c.h.b16 %v914
    %v1341 = vunpack.c.l.b16 %v915
    %v1342 = vunpack.c.h.b16 %v915
    %v1343 = vunpack.c.l.b16 %v916
    %v1344 = vunpack.c.h.b16 %v916
    %v1345 = vunpack.c.l.b16 %v917
    %v1346 = vunpack.c.h.b16 %v917
    %v1347 = vunpack.c.l.b16 %v918
    %v1348 = vunpack.c.h.b16 %v918
    %v1349 = vunpack.c.l.b16 %v919
    %v1350 = vunpack.c.h.b16 %v919
    %v1351 = vunpack.c.l.b16 %v920
    %v1352 = vunpack.c.h.b16 %v920
    %v1353 = vunpack.c.l.b16 %v921
    %v1354 = vunpack.c.h.b16 %v921
    %v1355 = vunpack.c.l.b16 %v922
    %v1356 = vunpack.c.h.b16 %v922
    %v1357 = vunpack.c.l.b16 %v923
    %v1358 = vunpack.c.h.b16 %v923
    %v1359 = vunpack.c.l.b16 %v924
    %v1360 = vunpack.c.h.b16 %v924
    %v1361 = vunpack.c.l.b16 %v925
    %v1362 = vunpack.c.h.b16 %v925
    %v1363 = vunpack.c.l.b16 %v926
    %v1364 = vunpack.c.h.b16 %v926
    %v1365 = vunpack.c.l.b16 %v927
    %v1366 = vunpack.c.h.b16 %v927
    %v1367 = vunpack.c.l.b16 %v928
    %v1368 = vunpack.c.h.b16 %v928
    %v1369 = vunpack.c.l.b16 %v929
    %v1370 = vunpack.c.h.b16 %v929
    %v1371 = vunpack.c.l.b16 %v930
    %v1372 = vunpack.c.h.b16 %v930
    %v1373 = vunpack.c.l.b16 %v931
    %v1374 = vunpack.c.h.b16 %v931
    %v1375 = vunpack.c.l.b16 %v932
    %v1376 = vunpack.c.h.b16 %v932
    %v1377 = vunpack.c.l.b16 %v933
    %v1378 = vunpack.c.h.b16 %v933
    %v1379 = vunpack.c.l.b16 %v934
    %v1380 = vunpack.c.h.b16 %v934
    %v1381 = vunpack.c.l.b16 %v935
    %v1382 = vunpack.c.h.b16 %v935
    %v1383 = vunpack.c.l.b16 %v936
    %v1384 = vunpack.c.h.b16 %v936
    %v1385 = vunpack.c.l.b16 %v937
    %v1386 = vunpack.c.h.b16 %v937
    %v1387 = vunpack.c.l.b16 %v938
    %v1388 = vunpack.c.h.b16 %v938
    %v1389 = vunpack.c.l.b16 %v939
    %v1390 = vunpack.c.h.b16 %v939
    %v1391 = vunpack.c.l.b16 %v940
    %v1392 = vunpack.c.h.b16 %v940
    %v1393 = vunpack.c.l.b16 %v941
    %v1394 = vunpack.c.h.b16 %v941
    %v1395 = vunpack.c.l.b16 %v942
    %v1396 = vunpack.c.h.b16 %v942
    %v1397 = vunpack.c.l.b16 %v943
    %v1398 = vunpack.c.h.b16 %v943
    %v1399 = vunpack.c.l.b16 %v944
    %v1400 = vunpack.c.h.b16 %v944
    %v1401 = vunpack.c.l.b16 %v945
    %v1402 = vunpack.c.h.b16 %v945
    %v1403 = vunpack.c.l.b16 %v946
    %v1404 = vunpack.c.h.b16 %v946
    %v1405 = vunpack.c.l.b16 %v947
    %v1406 = vunpack.c.h.b16 %v947
    %v1407 = vunpack.c.l.b16 %v948
    %v1408 = vunpack.c.h.b16 %v948
    %v1409 = vunpack.c.l.b16 %v949
    %v1410 = vunpack.c.h.b16 %v949
    %v1411 = vunpack.c.l.b16 %v950
    %v1412 = vunpack.c.h.b16 %v950
    %v1413 = vunpack.c.l.b16 %v951
    %v1414 = vunpack.c.h.b16 %v951
    %v1415 = vunpack.c.l.b16 %v952
    %v1416 = vunpack.c.h.b16 %v952
    %v1417 = vunpack.c.l.b16 %v953
    %v1418 = vunpack.c.h.b16 %v953
    %v1419 = vunpack.c.l.b16 %v954
    %v1420 = vunpack.c.h.b16 %v954
    %v1421 = vunpack.c.l.b16 %v955
    %v1422 = vunpack.c.h.b16 %v955
    %v1423 = vunpack.c.l.b16 %v956
    %v1424 = vunpack.c.h.b16 %v956
    %v1425 = vunpack.c.l.b16 %v957
    %v1426 = vunpack.c.h.b16 %v957
    %v1427 = vunpack.c.l.b16 %v958
    %v1428 = vunpack.c.h.b16 %v958
    %v1429 = vunpack.c.l.b16 %v959
    %v1430 = vunpack.c.h.b16 %v959
    %v1431 = vunpack.c.l.b16 %v960
    %v1432 = vunpack.c.h.b16 %v960
    %v1433 = vunpack.c.l.b16 %v961
    %v1434 = vunpack.c.h.b16 %v961
    %v1435 = vunpack.c.l.b16 %v962
    %v1436 = vunpack.c.h.b16 %v962
    %v1437 = vpack.c.b16 %v1157, %v1149
    %v1438 = vpack.c.b16 %v1158, %v1150
    %v1439 = vpack.c.b16 %v1159, %v1151
    %v1440 = vpack.c.b16 %v1160, %v1152
    %v1441 = vpack.c.b16 %v1161, %v1153
    %v1442 = vpack.c.b16 %v1162, %v1154
    %v1443 = vpack.c.b16 %v1163, %v1155
    %v1444 = vpack.c.b16 %v1164, %v1156
    %v1445 = vpack.c.b16 %v1173, %v1165
    %v1446 = vpack.c.b16 %v1174, %v1166
    %v1447 = vpack.c.b16 %v1175, %v1167
    %v1448 = vpack.c.b16 %v1176, %v1168
    %v1449 = vpack.c.b16 %v1177, %v1169
    %v1450 = vpack.c.b16 %v1178, %v1170
    %v1451 = vpack.c.b16 %v1179, %v1171
    %v1452 = vpack.c.b16 %v1180, %v1172
    %v1453 = vpack.c.b16 %v1189, %v1181
    %v1454 = vpack.c.b16 %v1190, %v1182
    %v1455 = vpack.c.b16 %v1191, %v1183
    %v1456 = vpack.c.b16 %v1192, %v1184
    %v1457 = vpack.c.b16 %v1193, %v1185
    %v1458 = vpack.c.b16 %v1194, %v1186
    %v1459 = vpack.c.b16 %v1195, %v1187
    %v1460 = vpack.c.b16 %v1196, %v1188
    %v1461 = vpack.c.b16 %v1205, %v1197
    %v1462 = vpack.c.b16 %v1206, %v1198
    %v1463 = vpack.c.b16 %v1207, %v1199
    %v1464 = vpack.c.b16 %v1208, %v1200
    %v1465 = vpack.c.b16 %v1209, %v1201
    %v1466 = vpack.c.b16 %v1210, %v1202
    %v1467 = vpack.c.b16 %v1211, %v1203
    %v1468 = vpack.c.b16 %v1212, %v1204
    %v1469 = vpack.c.b16 %v1221, %v1213
    %v1470 = vpack.c.b16 %v1222, %v1214
    %v1471 = vpack.c.b16 %v1223, %v1215
    %v1472 = vpack.c.b16 %v1224, %v1216
    %v1473 = vpack.c.b16 %v1225, %v1217
    %v1474 = vpack.c.b16 %v1226, %v1218
    %v1475 = vpack.c.b16 %v1227, %v1219
    %v1476 = vpack.c.b16 %v1228, %v1220
    %v1477 = vpack.c.b16 %v1237, %v1229
    %v1478 = vpack.c.b16 %v1238, %v1230
    %v1479 = vpack.c.b16 %v1239, %v1231
    %v1480 = vpack.c.b16 %v1240, %v1232
    %v1481 = vpack.c.b16 %v1241, %v1233
    %v1482 = vpack.c.b16 %v1242, %v1234
    %v1483 = vpack.c.b16 %v1243, %v1235
    %v1484 = vpack.c.b16 %v1244, %v1236
    %v1485 = vpack.c.b16 %v1253, %v1245
    %v1486 = vpack.c.b16 %v1254, %v1246
    %v1487 = vpack.c.b16 %v1255, %v1247
    %v1488 = vpack.c.b16 %v1256, %v1248
    %v1489 = vpack.c.b16 %v1257, %v1249
    %v1490 = vpack.c.b16 %v1258, %v1250
    %v1491 = vpack.c.b16 %v1259, %v1251
    %v1492 = vpack.c.b16 %v1260, %v1252
    %v1493 = vpack.c.b16 %v1269, %v1261
    %v1494 = vpack.c.b16 %v1270, %v1262
    %v1495 = vpack.c.b16 %v1271, %v1263
    %v1496 = vpack.c.b16 %v1272, %v1264
    %v1497 = vpack.c.b16 %v1273, %v1265
    %v1498 = vpack.c.b16 %v1274, %v1266
    %v1499 = vpack.c.b16 %v1275, %v1267
    %v1500 = vpack.c.b16 %v1276, %v1268
    %v1501 = vpack.c.b16 %v1285, %v1277
    %v1502 = vpack.c.b16 %v1286, %v1278
    %v1503 = vpack.c.b16 %v1287, %v1279
    %v1504 = vpack.c.b16 %v1288, %v1280
    %v1505 = vpack.c.b16 %v1289, %v1281
    %v1506 = vpack.c.b16 %v1290, %v1282
    %v1507 = vpack.c.b16 %v1291, %v1283
    %v1508 = vpack.c.b16 %v1292, %v1284
    %v1509 = vpack.c.b16 %v1301, %v1293
    %v1510 = vpack.c.b16 %v1302, %v1294
    %v1511 = vpack.c.b16 %v1303, %v1295
    %v1512 = vpack.c.b16 %v1304, %v1296
    %v1513 = vpack.c.b16 %v1305, %v1297
    %v1514 = vpack.c.b16 %v1306, %v1298
    %v1515 = vpack.c.b16 %v1307, %v1299
    %v1516 = vpack.c.b16 %v1308, %v1300
    %v1517 = vpack.c.b16 %v1317, %v1309
    %v1518 = vpack.c.b16 %v1318, %v1310
    %v1519 = vpack.c.b16 %v1319, %v1311
    %v1520 = vpack.c.b16 %v1320, %v1312
    %v1521 = vpack.c.b16 %v1321, %v1313
    %v1522 = vpack.c.b16 %v1322, %v1314
    %v1523 = vpack.c.b16 %v1323, %v1315
    %v1524 = vpack.c.b16 %v1324, %v1316
    %v1525 = vpack.c.b16 %v1333, %v1325
    %v1526 = vpack.c.b16 %v1334, %v1326
    %v1527 = vpack.c.b16 %v1335, %v1327
    %v1528 = vpack.c.b16 %v1336, %v1328
    %v1529 = vpack.c.b16 %v1337, %v1329
    %v1530 = vpack.c.b16 %v1338, %v1330
    %v1531 = vpack.c.b16 %v1339, %v1331
    %v1532 = vpack.c.b16 %v1340, %v1332
    %v1533 = vpack.c.b16 %v1349, %v1341
    %v1534 = vpack.c.b16 %v1350, %v1342
    %v1535 = vpack.c.b16 %v1351, %v1343
    %v1536 = vpack.c.b16 %v1352, %v1344
    %v1537 = vpack.c.b16 %v1353, %v1345
    %v1538 = vpack.c.b16 %v1354, %v1346
    %v1539 = vpack.c.b16 %v1355, %v1347
    %v1540 = vpack.c.b16 %v1356, %v1348
    %v1541 = vpack.c.b16 %v1365, %v1357
    %v1542 = vpack.c.b16 %v1366, %v1358
    %v1543 = vpack.c.b16 %v1367, %v1359
    %v1544 = vpack.c.b16 %v1368, %v1360
    %v1545 = vpack.c.b16 %v1369, %v1361
    %v1546 = vpack.c.b16 %v1370, %v1362
    %v1547 = vpack.c.b16 %v1371, %v1363
    %v1548 = vpack.c.b16 %v1372, %v1364
    %v1549 = vpack.c.b16 %v1381, %v1373
    %v1550 = vpack.c.b16 %v1382, %v1374
    %v1551 = vpack.c.b16 %v1383, %v1375
    %v1552 = vpack.c.b16 %v1384, %v1376
    %v1553 = vpack.c.b16 %v1385, %v1377
    %v1554 = vpack.c.b16 %v1386, %v1378
    %v1555 = vpack.c.b16 %v1387, %v1379
    %v1556 = vpack.c.b16 %v1388, %v1380
    %v1557 = vpack.c.b16 %v1397, %v1389
    %v1558 = vpack.c.b16 %v1398, %v1390
    %v1559 = vpack.c.b16 %v1399, %v1391
    %v1560 = vpack.c.b16 %v1400, %v1392
    %v1561 = vpack.c.b16 %v1401, %v1393
    %v1562 = vpack.c.b16 %v1402, %v1394
    %v1563 = vpack.c.b16 %v1403, %v1395
    %v1564 = vpack.c.b16 %v1404, %v1396
    %v1565 = vpack.c.b16 %v1413, %v1405
    %v1566 = vpack.c.b16 %v1414, %v1406
    %v1567 = vpack.c.b16 %v1415, %v1407
    %v1568 = vpack.c.b16 %v1416, %v1408
    %v1569 = vpack.c.b16 %v1417, %v1409
    %v1570 = vpack.c.b16 %v1418, %v1410
    %v1571 = vpack.c.b16 %v1419, %v1411
    %v1572 = vpack.c.b16 %v1420, %v1412
    %v1573 = vpack.c.b16 %v1429, %v1421
    %v1574 = vpack.c.b16 %v1430, %v1422
    %v1575 = vpack.c.b16 %v1431, %v1423
    %v1576 = vpack.c.b16 %v1432, %v1424
    %v1577 = vpack.c.b16 %v1433, %v1425
    %v1578 = vpack.c.b16 %v1434, %v1426
    %v1579 = vpack.c.b16 %v1435, %v1427
    %v1580 = vpack.c.b16 %v1436, %v1428
    %v1726 = vsel %vm647, %v818, 0
    %1728 = vmatprep.subr.bf16.mxu0 %v1438
    %1729 = vmatpush1.bf16.msra.mxu0 %v1437
    %1730 = vmatprep.subr.bf16.mxu0 %v1446
    %1731 = vmatpush1.bf16.msra.mxu0 %v1445
    %1732 = vmatprep.subr.bf16.mxu0 %v1454
    %1733 = vmatpush1.bf16.msra.mxu0 %v1453
    %1734 = vmatprep.subr.bf16.mxu0 %v1462
    %1735 = vmatpush1.bf16.msra.mxu0 %v1461
    %1736 = vmatprep.subr.bf16.mxu0 %v1470
    %1737 = vmatpush1.bf16.msra.mxu0 %v1469
    %1738 = vmatprep.subr.bf16.mxu0 %v1478
    %1739 = vmatpush1.bf16.msra.mxu0 %v1477
    %1740 = vmatprep.subr.bf16.mxu0 %v1486
    %1741 = vmatpush1.bf16.msra.mxu0 %v1485
    %1742 = vmatprep.subr.bf16.mxu0 %v1494
    %1743 = vmatpush1.bf16.msra.mxu0 %v1493
    %1744 = vmatprep.subr.bf16.mxu0 %v1502
    %1745 = vmatpush1.bf16.msra.mxu0 %v1501
    %1746 = vmatprep.subr.bf16.mxu0 %v1510
    %1747 = vmatpush1.bf16.msra.mxu0 %v1509
    %1748 = vmatprep.subr.bf16.mxu0 %v1518
    %1749 = vmatpush1.bf16.msra.mxu0 %v1517
    %1750 = vmatprep.subr.bf16.mxu0 %v1526
    %1751 = vmatpush1.bf16.msra.mxu0 %v1525
    %1752 = vmatprep.subr.bf16.mxu0 %v1534
    %1753 = vmatpush1.bf16.msra.mxu0 %v1533
    %1754 = vmatprep.subr.bf16.mxu0 %v1542
    %1755 = vmatpush1.bf16.msra.mxu0 %v1541
    %1756 = vmatprep.subr.bf16.mxu0 %v1550
    %1757 = vmatpush1.bf16.msra.mxu0 %v1549
    %1758 = vmatprep.subr.bf16.mxu0 %v1558
    %1759 = vmatpush1.bf16.msra.mxu0 %v1557
    %1760 = vmatprep.mubr.bf16.mxu0 %v817
    %1761 = vmatmul.mubr.bf16.gmra.mrb[0].mxu0 %v816
    %v1762 = vpop.f32.mrb[0].mxu0
    %v1763 = vadd.f32 %v968, %v1762
    %v1764 = vpop.f32.mrb[0].mxu0
    %v1765 = vadd.f32 %v972, %v1764
    %v1766 = vpop.f32.mrb[0].mxu0
    %v1767 = vpop.f32.mrb[0].mxu0
    %1768 = vdwg.mxu0
    %1769 = vmatprep.subr.bf16.mxu0 %v1566
    %1770 = vmatpush1.bf16.msra.mxu0 %v1565
    %1771 = vmatprep.subr.bf16.mxu0 %v1574
    %1772 = vmatpush1.bf16.msra.mxu0 %v1573
    %1773 = vmatprep.subr.bf16.mxu0 0
    %1774 = vmatpush1.bf16.msra.mxu0 0
    %1775 = vmatprep.subr.bf16.mxu0 0
    %1776 = vmatpush1.bf16.msra.mxu0 0
    %1777 = vmatprep.subr.bf16.mxu0 0
    %1778 = vmatpush1.bf16.msra.mxu0 0
    %1779 = vmatprep.subr.bf16.mxu0 0
    %1780 = vmatpush1.bf16.msra.mxu0 0
    %1781 = vmatprep.subr.bf16.mxu0 0
    %1782 = vmatpush1.bf16.msra.mxu0 0
    %1783 = vmatprep.subr.bf16.mxu0 0
    %1784 = vmatpush1.bf16.msra.mxu0 0
    %1785 = vmatprep.subr.bf16.mxu0 0
    %1786 = vmatpush1.bf16.msra.mxu0 0
    %1787 = vmatprep.subr.bf16.mxu0 0
    %1788 = vmatpush1.bf16.msra.mxu0 0
    %1789 = vmatprep.subr.bf16.mxu0 0
    %1790 = vmatpush1.bf16.msra.mxu0 0
    %1791 = vmatprep.subr.bf16.mxu0 0
    %1792 = vmatpush1.bf16.msra.mxu0 0
    %1793 = vmatprep.subr.bf16.mxu0 0
    %1794 = vmatpush1.bf16.msra.mxu0 0
    %1795 = vmatprep.subr.bf16.mxu0 0
    %1796 = vmatpush1.bf16.msra.mxu0 0
    %1797 = vmatprep.subr.bf16.mxu0 0
    %1798 = vmatpush1.bf16.msra.mxu0 0
    %1799 = vmatprep.subr.bf16.mxu0 0
    %1800 = vmatpush1.bf16.msra.mxu0 0
    %1801 = vmatprep.mubr.bf16.mxu0 0
    %1802 = vmatmul.mubr.bf16.gmra.mrb[0].mxu0 %v1726
    %v1803 = vpop.f32.mrb[0].mxu0
    %v1804 = vadd.f32 %v1763, %v1803
    %v1805 = vpop.f32.mrb[0].mxu0
    %v1806 = vadd.f32 %v1765, %v1805
    %v1807 = vpop.f32.mrb[0].mxu0
    %v1808 = vpop.f32.mrb[0].mxu0
    %1809 = vdwg.mxu0
    %1810 = vmatprep.subr.bf16.mxu0 %v1440
    %1811 = vmatpush1.bf16.msra.mxu0 %v1439
    %1812 = vmatprep.subr.bf16.mxu0 %v1448
    %1813 = vmatpush1.bf16.msra.mxu0 %v1447
    %1814 = vmatprep.subr.bf16.mxu0 %v1456
    %1815 = vmatpush1.bf16.msra.mxu0 %v1455
    %1816 = vmatprep.subr.bf16.mxu0 %v1464
    %1817 = vmatpush1.bf16.msra.mxu0 %v1463
    %1818 = vmatprep.subr.bf16.mxu0 %v1472
    %1819 = vmatpush1.bf16.msra.mxu0 %v1471
    %1820 = vmatprep.subr.bf16.mxu0 %v1480
    %1821 = vmatpush1.bf16.msra.mxu0 %v1479
    %1822 = vmatprep.subr.bf16.mxu0 %v1488
    %1823 = vmatpush1.bf16.msra.mxu0 %v1487
    %1824 = vmatprep.subr.bf16.mxu0 %v1496
    %1825 = vmatpush1.bf16.msra.mxu0 %v1495
    %1826 = vmatprep.subr.bf16.mxu0 %v1504
    %1827 = vmatpush1.bf16.msra.mxu0 %v1503
    %1828 = vmatprep.subr.bf16.mxu0 %v1512
    %1829 = vmatpush1.bf16.msra.mxu0 %v1511
    %1830 = vmatprep.subr.bf16.mxu0 %v1520
    %1831 = vmatpush1.bf16.msra.mxu0 %v1519
    %1832 = vmatprep.subr.bf16.mxu0 %v1528
    %1833 = vmatpush1.bf16.msra.mxu0 %v1527
    %1834 = vmatprep.subr.bf16.mxu0 %v1536
    %1835 = vmatpush1.bf16.msra.mxu0 %v1535
    %1836 = vmatprep.subr.bf16.mxu0 %v1544
    %1837 = vmatpush1.bf16.msra.mxu0 %v1543
    %1838 = vmatprep.subr.bf16.mxu0 %v1552
    %1839 = vmatpush1.bf16.msra.mxu0 %v1551
    %1840 = vmatprep.subr.bf16.mxu0 %v1560
    %1841 = vmatpush1.bf16.msra.mxu0 %v1559
    %1842 = vmatprep.mubr.bf16.mxu0 %v817
    %1843 = vmatmul.mubr.bf16.gmra.mrb[0].mxu0 %v816
    %v1844 = vpop.f32.mrb[0].mxu0
    %v1845 = vadd.f32 %v976, %v1844
    %v1846 = vpop.f32.mrb[0].mxu0
    %v1847 = vadd.f32 %v980, %v1846
    %v1848 = vpop.f32.mrb[0].mxu0
    %v1849 = vpop.f32.mrb[0].mxu0
    %1850 = vdwg.mxu0
    %1851 = vmatprep.subr.bf16.mxu0 %v1568
    %1852 = vmatpush1.bf16.msra.mxu0 %v1567
    %1853 = vmatprep.subr.bf16.mxu0 %v1576
    %1854 = vmatpush1.bf16.msra.mxu0 %v1575
    %1855 = vmatprep.subr.bf16.mxu0 0
    %1856 = vmatpush1.bf16.msra.mxu0 0
    %1857 = vmatprep.subr.bf16.mxu0 0
    %1858 = vmatpush1.bf16.msra.mxu0 0
    %1859 = vmatprep.subr.bf16.mxu0 0
    %1860 = vmatpush1.bf16.msra.mxu0 0
    %1861 = vmatprep.subr.bf16.mxu0 0
    %1862 = vmatpush1.bf16.msra.mxu0 0
    %1863 = vmatprep.subr.bf16.mxu0 0
    %1864 = vmatpush1.bf16.msra.mxu0 0
    %1865 = vmatprep.subr.bf16.mxu0 0
    %1866 = vmatpush1.bf16.msra.mxu0 0
    %1867 = vmatprep.subr.bf16.mxu0 0
    %1868 = vmatpush1.bf16.msra.mxu0 0
    %1869 = vmatprep.subr.bf16.mxu0 0
    %1870 = vmatpush1.bf16.msra.mxu0 0
    %1871 = vmatprep.subr.bf16.mxu0 0
    %1872 = vmatpush1.bf16.msra.mxu0 0
    %1873 = vmatprep.subr.bf16.mxu0 0
    %1874 = vmatpush1.bf16.msra.mxu0 0
    %1875 = vmatprep.subr.bf16.mxu0 0
    %1876 = vmatpush1.bf16.msra.mxu0 0
    %1877 = vmatprep.subr.bf16.mxu0 0
    %1878 = vmatpush1.bf16.msra.mxu0 0
    %1879 = vmatprep.subr.bf16.mxu0 0
    %1880 = vmatpush1.bf16.msra.mxu0 0
    %1881 = vmatprep.subr.bf16.mxu0 0
    %1882 = vmatpush1.bf16.msra.mxu0 0
    %1883 = vmatprep.mubr.bf16.mxu0 0
    %1884 = vmatmul.mubr.bf16.gmra.mrb[0].mxu0 %v1726
    %v1885 = vpop.f32.mrb[0].mxu0
    %v1886 = vadd.f32 %v1845, %v1885
    %v1887 = vpop.f32.mrb[0].mxu0
    %v1888 = vadd.f32 %v1847, %v1887
    %v1889 = vpop.f32.mrb[0].mxu0
    %v1890 = vpop.f32.mrb[0].mxu0
    %1891 = vdwg.mxu0
    %1892 = vmatprep.subr.bf16.mxu0 %v1442
    %1893 = vmatpush1.bf16.msra.mxu0 %v1441
    %1894 = vmatprep.subr.bf16.mxu0 %v1450
    %1895 = vmatpush1.bf16.msra.mxu0 %v1449
    %1896 = vmatprep.subr.bf16.mxu0 %v1458
    %1897 = vmatpush1.bf16.msra.mxu0 %v1457
    %1898 = vmatprep.subr.bf16.mxu0 %v1466
    %1899 = vmatpush1.bf16.msra.mxu0 %v1465
    %1900 = vmatprep.subr.bf16.mxu0 %v1474
    %1901 = vmatpush1.bf16.msra.mxu0 %v1473
    %1902 = vmatprep.subr.bf16.mxu0 %v1482
    %1903 = vmatpush1.bf16.msra.mxu0 %v1481
    %1904 = vmatprep.subr.bf16.mxu0 %v1490
    %1905 = vmatpush1.bf16.msra.mxu0 %v1489
    %1906 = vmatprep.subr.bf16.mxu0 %v1498
    %1907 = vmatpush1.bf16.msra.mxu0 %v1497
    %1908 = vmatprep.subr.bf16.mxu0 %v1506
    %1909 = vmatpush1.bf16.msra.mxu0 %v1505
    %1910 = vmatprep.subr.bf16.mxu0 %v1514
    %1911 = vmatpush1.bf16.msra.mxu0 %v1513
    %1912 = vmatprep.subr.bf16.mxu0 %v1522
    %1913 = vmatpush1.bf16.msra.mxu0 %v1521
    %1914 = vmatprep.subr.bf16.mxu0 %v1530
    %1915 = vmatpush1.bf16.msra.mxu0 %v1529
    %1916 = vmatprep.subr.bf16.mxu0 %v1538
    %1917 = vmatpush1.bf16.msra.mxu0 %v1537
    %1918 = vmatprep.subr.bf16.mxu0 %v1546
    %1919 = vmatpush1.bf16.msra.mxu0 %v1545
    %1920 = vmatprep.subr.bf16.mxu0 %v1554
    %1921 = vmatpush1.bf16.msra.mxu0 %v1553
    %1922 = vmatprep.subr.bf16.mxu0 %v1562
    %1923 = vmatpush1.bf16.msra.mxu0 %v1561
    %1924 = vmatprep.mubr.bf16.mxu0 %v817
    %1925 = vmatmul.mubr.bf16.gmra.mrb[0].mxu0 %v816
    %v1926 = vpop.f32.mrb[0].mxu0
    %v1927 = vadd.f32 %v984, %v1926
    %v1928 = vpop.f32.mrb[0].mxu0
    %v1929 = vadd.f32 %v988, %v1928
    %v1930 = vpop.f32.mrb[0].mxu0
    %v1931 = vpop.f32.mrb[0].mxu0
    %1932 = vdwg.mxu0
    %1933 = vmatprep.subr.bf16.mxu0 %v1570
    %1934 = vmatpush1.bf16.msra.mxu0 %v1569
    %1935 = vmatprep.subr.bf16.mxu0 %v1578
    %1936 = vmatpush1.bf16.msra.mxu0 %v1577
    %1937 = vmatprep.subr.bf16.mxu0 0
    %1938 = vmatpush1.bf16.msra.mxu0 0
    %1939 = vmatprep.subr.bf16.mxu0 0
    %1940 = vmatpush1.bf16.msra.mxu0 0
    %1941 = vmatprep.subr.bf16.mxu0 0
    %1942 = vmatpush1.bf16.msra.mxu0 0
    %1943 = vmatprep.subr.bf16.mxu0 0
    %1944 = vmatpush1.bf16.msra.mxu0 0
    %1945 = vmatprep.subr.bf16.mxu0 0
    %1946 = vmatpush1.bf16.msra.mxu0 0
    %1947 = vmatprep.subr.bf16.mxu0 0
    %1948 = vmatpush1.bf16.msra.mxu0 0
    %1949 = vmatprep.subr.bf16.mxu0 0
    %1950 = vmatpush1.bf16.msra.mxu0 0
    %1951 = vmatprep.subr.bf16.mxu0 0
    %1952 = vmatpush1.bf16.msra.mxu0 0
    %1953 = vmatprep.subr.bf16.mxu0 0
    %1954 = vmatpush1.bf16.msra.mxu0 0
    %1955 = vmatprep.subr.bf16.mxu0 0
    %1956 = vmatpush1.bf16.msra.mxu0 0
    %1957 = vmatprep.subr.bf16.mxu0 0
    %1958 = vmatpush1.bf16.msra.mxu0 0
    %1959 = vmatprep.subr.bf16.mxu0 0
    %1960 = vmatpush1.bf16.msra.mxu0 0
    %1961 = vmatprep.subr.bf16.mxu0 0
    %1962 = vmatpush1.bf16.msra.mxu0 0
    %1963 = vmatprep.subr.bf16.mxu0 0
    %1964 = vmatpush1.bf16.msra.mxu0 0
    %1965 = vmatprep.mubr.bf16.mxu0 0
    %1966 = vmatmul.mubr.bf16.gmra.mrb[0].mxu0 %v1726
    %v1967 = vpop.f32.mrb[0].mxu0
    %v1968 = vadd.f32 %v1927, %v1967
    %v1969 = vpop.f32.mrb[0].mxu0
    %v1970 = vadd.f32 %v1929, %v1969
    %v1971 = vpop.f32.mrb[0].mxu0
    %v1972 = vpop.f32.mrb[0].mxu0
    %1973 = vdwg.mxu0
    %1974 = vmatprep.subr.bf16.mxu0 %v1444
    %1975 = vmatpush1.bf16.msra.mxu0 %v1443
    %1976 = vmatprep.subr.bf16.mxu0 %v1452
    %1977 = vmatpush1.bf16.msra.mxu0 %v1451
    %1978 = vmatprep.subr.bf16.mxu0 %v1460
    %1979 = vmatpush1.bf16.msra.mxu0 %v1459
    %1980 = vmatprep.subr.bf16.mxu0 %v1468
    %1981 = vmatpush1.bf16.msra.mxu0 %v1467
    %1982 = vmatprep.subr.bf16.mxu0 %v1476
    %1983 = vmatpush1.bf16.msra.mxu0 %v1475
    %1984 = vmatprep.subr.bf16.mxu0 %v1484
    %1985 = vmatpush1.bf16.msra.mxu0 %v1483
    %1986 = vmatprep.subr.bf16.mxu0 %v1492
    %1987 = vmatpush1.bf16.msra.mxu0 %v1491
    %1988 = vmatprep.subr.bf16.mxu0 %v1500
    %1989 = vmatpush1.bf16.msra.mxu0 %v1499
    %1990 = vmatprep.subr.bf16.mxu0 %v1508
    %1991 = vmatpush1.bf16.msra.mxu0 %v1507
    %1992 = vmatprep.subr.bf16.mxu0 %v1516
    %1993 = vmatpush1.bf16.msra.mxu0 %v1515
    %1994 = vmatprep.subr.bf16.mxu0 %v1524
    %1995 = vmatpush1.bf16.msra.mxu0 %v1523
    %1996 = vmatprep.subr.bf16.mxu0 %v1532
    %1997 = vmatpush1.bf16.msra.mxu0 %v1531
    %1998 = vmatprep.subr.bf16.mxu0 %v1540
    %1999 = vmatpush1.bf16.msra.mxu0 %v1539
    %2000 = vmatprep.subr.bf16.mxu0 %v1548
    %2001 = vmatpush1.bf16.msra.mxu0 %v1547
    %2002 = vmatprep.subr.bf16.mxu0 %v1556
    %2003 = vmatpush1.bf16.msra.mxu0 %v1555
    %2004 = vmatprep.subr.bf16.mxu0 %v1564
    %2005 = vmatpush1.bf16.msra.mxu0 %v1563
    %2006 = vmatprep.mubr.bf16.mxu0 %v817
    %2007 = vmatmul.mubr.bf16.gmra.mrb[0].mxu0 %v816
    %v2008 = vpop.f32.mrb[0].mxu0
    %v2009 = vadd.f32 %v992, %v2008
    %v2010 = vpop.f32.mrb[0].mxu0
    %v2011 = vadd.f32 %v996, %v2010
    %v2012 = vpop.f32.mrb[0].mxu0
    %v2013 = vpop.f32.mrb[0].mxu0
    %2014 = vdwg.mxu0
    %2015 = vmatprep.subr.bf16.mxu0 %v1572
    %2016 = vmatpush1.bf16.msra.mxu0 %v1571
    %2017 = vmatprep.subr.bf16.mxu0 %v1580
    %2018 = vmatpush1.bf16.msra.mxu0 %v1579
    %2019 = vmatprep.subr.bf16.mxu0 0
    %2020 = vmatpush1.bf16.msra.mxu0 0
    %2021 = vmatprep.subr.bf16.mxu0 0
    %2022 = vmatpush1.bf16.msra.mxu0 0
    %2023 = vmatprep.subr.bf16.mxu0 0
    %2024 = vmatpush1.bf16.msra.mxu0 0
    %2025 = vmatprep.subr.bf16.mxu0 0
    %2026 = vmatpush1.bf16.msra.mxu0 0
    %2027 = vmatprep.subr.bf16.mxu0 0
    %2028 = vmatpush1.bf16.msra.mxu0 0
    %2029 = vmatprep.subr.bf16.mxu0 0
    %2030 = vmatpush1.bf16.msra.mxu0 0
    %2031 = vmatprep.subr.bf16.mxu0 0
    %2032 = vmatpush1.bf16.msra.mxu0 0
    %2033 = vmatprep.subr.bf16.mxu0 0
    %2034 = vmatpush1.bf16.msra.mxu0 0
    %2035 = vmatprep.subr.bf16.mxu0 0
    %2036 = vmatpush1.bf16.msra.mxu0 0
    %2037 = vmatprep.subr.bf16.mxu0 0
    %2038 = vmatpush1.bf16.msra.mxu0 0
    %2039 = vmatprep.subr.bf16.mxu0 0
    %2040 = vmatpush1.bf16.msra.mxu0 0
    %2041 = vmatprep.subr.bf16.mxu0 0
    %2042 = vmatpush1.bf16.msra.mxu0 0
    %2043 = vmatprep.subr.bf16.mxu0 0
    %2044 = vmatpush1.bf16.msra.mxu0 0
    %2045 = vmatprep.subr.bf16.mxu0 0
    %2046 = vmatpush1.bf16.msra.mxu0 0
    %2047 = vmatprep.mubr.bf16.mxu0 0
    %2048 = vmatmul.mubr.bf16.gmra.mrb[0].mxu0 %v1726
    %v2049 = vpop.f32.mrb[0].mxu0
    %v2050 = vadd.f32 %v2009, %v2049
    %v2051 = vpop.f32.mrb[0].mxu0
    %v2052 = vadd.f32 %v2011, %v2051
    %v2053 = vpop.f32.mrb[0].mxu0
    %v2054 = vpop.f32.mrb[0].mxu0
    %2055 = vdwg.mxu0
    %v2056 = vmax.f32 %v1804, 0.0
    %v2057 = vmax.f32 %v1806, 0.0
    %v2058 = vmax.f32 %v1886, 0.0
    %v2059 = vmax.f32 %v1888, 0.0
    %v2060 = vmax.f32 %v1968, 0.0
    %v2061 = vmax.f32 %v1970, 0.0
    %v2062 = vmax.f32 %v2050, 0.0
    %v2063 = vmax.f32 %v2052, 0.0
    %v2064 = vpack.c.bf16 %v2056, %v2056
    %v2065 = vpack.c.bf16 %v2057, %v2057
    %v2066 = vpack.c.bf16 %v2058, %v2058
    %v2067 = vpack.c.bf16 %v2059, %v2059
    %v2068 = vpack.c.bf16 %v2060, %v2060
    %v2069 = vpack.c.bf16 %v2061, %v2061
    %v2070 = vpack.c.bf16 %v2062, %v2062
    %v2071 = vpack.c.bf16 %v2063, %v2063
    %v2072 = vld [vmem:[#allocation11] sm:$0xff]
    %v2073 = vld [vmem:[#allocation11 + $0x8] sm:$0xff]
    %v2074 = vld [vmem:[#allocation11 + $0x10] sm:$0xff]
    %v2075 = vld [vmem:[#allocation11 + $0x18] sm:$0xff]
    %v2076 = vld [vmem:[#allocation11 + $0x20] sm:$0xff]
    %v2077 = vld [vmem:[#allocation11 + $0x28] sm:$0xff]
    %v2078 = vld [vmem:[#allocation11 + $0x30] sm:$0xff]
    %v2079 = vld [vmem:[#allocation11 + $0x38] sm:$0xff]
    %v2080 = vld [vmem:[#allocation11 + $0x40] sm:$0xff]
    %v2081 = vld [vmem:[#allocation11 + $0x48] sm:$0xff]
    %v2082 = vld [vmem:[#allocation11 + $0x50] sm:$0xff]
    %v2083 = vld [vmem:[#allocation11 + $0x58] sm:$0xff]
    %v2084 = vld [vmem:[#allocation11 + $0x60] sm:$0xff]
    %v2085 = vld [vmem:[#allocation11 + $0x68] sm:$0xff]
    %v2086 = vld [vmem:[#allocation11 + $0x70] sm:$0xff]
    %v2087 = vld [vmem:[#allocation11 + $0x78] sm:$0xff]
    %v2088 = vld [vmem:[#allocation11 + $0x80] sm:$0xff]
    %v2089 = vld [vmem:[#allocation11 + $0x88] sm:$0xff]
    %v2090 = vld [vmem:[#allocation11 + $0x90] sm:$0xff]
    %v2091 = vld [vmem:[#allocation11 + $0x98] sm:$0xff]
    %v2092 = vld [vmem:[#allocation11 + $0xa0] sm:$0xff]
    %v2093 = vld [vmem:[#allocation11 + $0xa8] sm:$0xff]
    %v2094 = vld [vmem:[#allocation11 + $0xb0] sm:$0xff]
    %v2095 = vld [vmem:[#allocation11 + $0xb8] sm:$0xff]
    %v2096 = vld [vmem:[#allocation11 + $0xc0] sm:$0xff]
    %v2097 = vld [vmem:[#allocation11 + $0xc8] sm:$0xff]
    %v2098 = vld [vmem:[#allocation11 + $0xd0] sm:$0xff]
    %v2099 = vld [vmem:[#allocation11 + $0xd8] sm:$0xff]
    %v2100 = vld [vmem:[#allocation11 + $0xe0] sm:$0xff]
    %v2101 = vld [vmem:[#allocation11 + $0xe8] sm:$0xff]
    %v2102 = vld [vmem:[#allocation11 + $0xf0] sm:$0xff]
    %v2103 = vld [vmem:[#allocation11 + $0xf8] sm:$0xff]
    %v2104 = vld [vmem:[#allocation11 + $0x100] sm:$0xff]
    %v2105 = vld [vmem:[#allocation11 + $0x108] sm:$0xff]
    %v2106 = vld [vmem:[#allocation11 + $0x110] sm:$0xff]
    %v2107 = vld [vmem:[#allocation11 + $0x118] sm:$0xff]
    %v2108 = vld [vmem:[#allocation11 + $0x120] sm:$0xff]
    %v2109 = vld [vmem:[#allocation11 + $0x128] sm:$0xff]
    %v2110 = vld [vmem:[#allocation11 + $0x130] sm:$0xff]
    %v2111 = vld [vmem:[#allocation11 + $0x138] sm:$0xff]
    %v2112 = vld [vmem:[#allocation11 + $0x140] sm:$0xff]
    %v2113 = vld [vmem:[#allocation11 + $0x148] sm:$0xff]
    %v2114 = vld [vmem:[#allocation11 + $0x150] sm:$0xff]
    %v2115 = vld [vmem:[#allocation11 + $0x158] sm:$0xff]
    %v2116 = vld [vmem:[#allocation11 + $0x160] sm:$0xff]
    %v2117 = vld [vmem:[#allocation11 + $0x168] sm:$0xff]
    %v2118 = vld [vmem:[#allocation11 + $0x170] sm:$0xff]
    %v2119 = vld [vmem:[#allocation11 + $0x178] sm:$0xff]
    %v2120 = vld [vmem:[#allocation11 + $0x180] sm:$0xff]
    %v2121 = vld [vmem:[#allocation11 + $0x188] sm:$0xff]
    %v2122 = vld [vmem:[#allocation11 + $0x190] sm:$0xff]
    %v2123 = vld [vmem:[#allocation11 + $0x198] sm:$0xff]
    %v2124 = vld [vmem:[#allocation11 + $0x1a0] sm:$0xff]
    %v2125 = vld [vmem:[#allocation11 + $0x1a8] sm:$0xff]
    %v2126 = vld [vmem:[#allocation11 + $0x1b0] sm:$0xff]
    %v2127 = vld [vmem:[#allocation11 + $0x1b8] sm:$0xff]
    %v2128 = vld [vmem:[#allocation11 + $0x1c0] sm:$0xff]
    %v2129 = vld [vmem:[#allocation11 + $0x1c8] sm:$0xff]
    %v2130 = vld [vmem:[#allocation11 + $0x1d0] sm:$0xff]
    %v2131 = vld [vmem:[#allocation11 + $0x1d8] sm:$0xff]
    %v2132 = vld [vmem:[#allocation11 + $0x1e0] sm:$0xff]
    %v2133 = vld [vmem:[#allocation11 + $0x1e8] sm:$0xff]
    %v2134 = vld [vmem:[#allocation11 + $0x1f0] sm:$0xff]
    %v2135 = vld [vmem:[#allocation11 + $0x1f8] sm:$0xff]
    %v2136 = vld [vmem:[#allocation11 + $0x200] sm:$0xff]
    %v2137 = vld [vmem:[#allocation11 + $0x208] sm:$0xff]
    %v2138 = vld [vmem:[#allocation11 + $0x210] sm:$0xff]
    %v2139 = vld [vmem:[#allocation11 + $0x218] sm:$0xff]
    %v2140 = vld [vmem:[#allocation11 + $0x220] sm:$0xff]
    %v2141 = vld [vmem:[#allocation11 + $0x228] sm:$0xff]
    %v2142 = vld [vmem:[#allocation11 + $0x230] sm:$0xff]
    %v2143 = vld [vmem:[#allocation11 + $0x238] sm:$0xff]
    %v2144 = vld [vmem:[#allocation11 + $0x240] sm:$0xff]
    %v2145 = vld [vmem:[#allocation11 + $0x248] sm:$0xff]
    %v2146 = vld [vmem:[#allocation11 + $0x250] sm:$0xff]
    %v2147 = vld [vmem:[#allocation11 + $0x258] sm:$0xff]
    %v2148 = vld [vmem:[#allocation11 + $0x260] sm:$0xff]
    %v2149 = vld [vmem:[#allocation11 + $0x268] sm:$0xff]
    %v2150 = vld [vmem:[#allocation11 + $0x270] sm:$0xff]
    %v2151 = vld [vmem:[#allocation11 + $0x278] sm:$0xff]
    %v2152 = vld [vmem:[#allocation11 + $0x280] sm:$0xff]
    %v2153 = vld [vmem:[#allocation11 + $0x288] sm:$0xff]
    %v2154 = vld [vmem:[#allocation11 + $0x290] sm:$0xff]
    %v2155 = vld [vmem:[#allocation11 + $0x298] sm:$0xff]
    %v2156 = vld [vmem:[#allocation11 + $0x2a0] sm:$0xff]
    %v2157 = vld [vmem:[#allocation11 + $0x2a8] sm:$0xff]
    %v2158 = vld [vmem:[#allocation11 + $0x2b0] sm:$0xff]
    %v2159 = vld [vmem:[#allocation11 + $0x2b8] sm:$0xff]
    %v2160 = vld [vmem:[#allocation11 + $0x2c0] sm:$0xff]
    %v2161 = vld [vmem:[#allocation11 + $0x2c8] sm:$0xff]
    %v2162 = vld [vmem:[#allocation11 + $0x2d0] sm:$0xff]
    %v2163 = vld [vmem:[#allocation11 + $0x2d8] sm:$0xff]
    %v2164 = vld [vmem:[#allocation11 + $0x2e0] sm:$0xff]
    %v2165 = vld [vmem:[#allocation11 + $0x2e8] sm:$0xff]
    %v2166 = vld [vmem:[#allocation11 + $0x2f0] sm:$0xff]
    %v2167 = vld [vmem:[#allocation11 + $0x2f8] sm:$0xff]
    %v2168 = vld [vmem:[#allocation11 + $0x300] sm:$0xff]
    %v2169 = vld [vmem:[#allocation11 + $0x308] sm:$0xff]
    %v2170 = vld [vmem:[#allocation11 + $0x310] sm:$0xff]
    %v2171 = vld [vmem:[#allocation11 + $0x318] sm:$0xff]
    %v2172 = vld [vmem:[#allocation11 + $0x320] sm:$0xff]
    %v2173 = vld [vmem:[#allocation11 + $0x328] sm:$0xff]
    %v2174 = vld [vmem:[#allocation11 + $0x330] sm:$0xff]
    %v2175 = vld [vmem:[#allocation11 + $0x338] sm:$0xff]
    %v2176 = vld [vmem:[#allocation11 + $0x340] sm:$0xff]
    %v2177 = vld [vmem:[#allocation11 + $0x348] sm:$0xff]
    %v2178 = vld [vmem:[#allocation11 + $0x350] sm:$0xff]
    %v2179 = vld [vmem:[#allocation11 + $0x358] sm:$0xff]
    %v2180 = vld [vmem:[#allocation11 + $0x360] sm:$0xff]
    %v2181 = vld [vmem:[#allocation11 + $0x368] sm:$0xff]
    %v2182 = vld [vmem:[#allocation11 + $0x370] sm:$0xff]
    %v2183 = vld [vmem:[#allocation11 + $0x378] sm:$0xff]
    %v2184 = vld [vmem:[#allocation11 + $0x380] sm:$0xff]
    %v2185 = vld [vmem:[#allocation11 + $0x388] sm:$0xff]
    %v2186 = vld [vmem:[#allocation11 + $0x390] sm:$0xff]
    %v2187 = vld [vmem:[#allocation11 + $0x398] sm:$0xff]
    %v2188 = vld [vmem:[#allocation11 + $0x3a0] sm:$0xff]
    %v2189 = vld [vmem:[#allocation11 + $0x3a8] sm:$0xff]
    %v2190 = vld [vmem:[#allocation11 + $0x3b0] sm:$0xff]
    %v2191 = vld [vmem:[#allocation11 + $0x3b8] sm:$0xff]
    %v2192 = vld [vmem:[#allocation11 + $0x3c0] sm:$0xff]
    %v2193 = vld [vmem:[#allocation11 + $0x3c8] sm:$0xff]
    %v2194 = vld [vmem:[#allocation11 + $0x3d0] sm:$0xff]
    %v2195 = vld [vmem:[#allocation11 + $0x3d8] sm:$0xff]
    %v2196 = vld [vmem:[#allocation11 + $0x3e0] sm:$0xff]
    %v2197 = vld [vmem:[#allocation11 + $0x3e8] sm:$0xff]
    %v2198 = vld [vmem:[#allocation11 + $0x3f0] sm:$0xff]
    %v2199 = vld [vmem:[#allocation11 + $0x3f8] sm:$0xff]
    %v2200 = vld [vmem:[#allocation11 + $0x400] sm:$0xff]
    %v2201 = vld [vmem:[#allocation11 + $0x408] sm:$0xff]
    %v2202 = vld [vmem:[#allocation11 + $0x410] sm:$0xff]
    %v2203 = vld [vmem:[#allocation11 + $0x418] sm:$0xff]
    %v2204 = vld [vmem:[#allocation11 + $0x420] sm:$0xff]
    %v2205 = vld [vmem:[#allocation11 + $0x428] sm:$0xff]
    %v2206 = vld [vmem:[#allocation11 + $0x430] sm:$0xff]
    %v2207 = vld [vmem:[#allocation11 + $0x438] sm:$0xff]
    %v2208 = vld [vmem:[#allocation11 + $0x440] sm:$0xff]
    %v2209 = vld [vmem:[#allocation11 + $0x448] sm:$0xff]
    %v2210 = vld [vmem:[#allocation11 + $0x450] sm:$0xff]
    %v2211 = vld [vmem:[#allocation11 + $0x458] sm:$0xff]
    %v2212 = vld [vmem:[#allocation11 + $0x460] sm:$0xff]
    %v2213 = vld [vmem:[#allocation11 + $0x468] sm:$0xff]
    %v2214 = vld [vmem:[#allocation11 + $0x470] sm:$0xff]
    %v2215 = vld [vmem:[#allocation11 + $0x478] sm:$0xff]
    %v2216 = vld [vmem:[#allocation11 + $0x480] sm:$0xff]
    %v2217 = vld [vmem:[#allocation11 + $0x488] sm:$0xff]
    %v2218 = vld [vmem:[#allocation11 + $0x490] sm:$0xff]
    %v2219 = vld [vmem:[#allocation11 + $0x498] sm:$0xff]
    %v2220 = vld [vmem:[#allocation11 + $0x4a0] sm:$0xff]
    %v2221 = vld [vmem:[#allocation11 + $0x4a8] sm:$0xff]
    %v2222 = vld [vmem:[#allocation11 + $0x4b0] sm:$0xff]
    %v2223 = vld [vmem:[#allocation11 + $0x4b8] sm:$0xff]
    %v2224 = vld [vmem:[#allocation11 + $0x4c0] sm:$0xff]
    %v2225 = vld [vmem:[#allocation11 + $0x4c8] sm:$0xff]
    %v2226 = vld [vmem:[#allocation11 + $0x4d0] sm:$0xff]
    %v2227 = vld [vmem:[#allocation11 + $0x4d8] sm:$0xff]
    %v2228 = vld [vmem:[#allocation11 + $0x4e0] sm:$0xff]
    %v2229 = vld [vmem:[#allocation11 + $0x4e8] sm:$0xff]
    %v2230 = vld [vmem:[#allocation11 + $0x4f0] sm:$0xff]
    %v2231 = vld [vmem:[#allocation11 + $0x4f8] sm:$0xff]
    %v2232 = vld [vmem:[#allocation11 + $0x500] sm:$0xff]
    %v2233 = vld [vmem:[#allocation11 + $0x508] sm:$0xff]
    %v2234 = vld [vmem:[#allocation11 + $0x510] sm:$0xff]
    %v2235 = vld [vmem:[#allocation11 + $0x518] sm:$0xff]
    %v2236 = vld [vmem:[#allocation11 + $0x520] sm:$0xff]
    %v2237 = vld [vmem:[#allocation11 + $0x528] sm:$0xff]
    %v2238 = vld [vmem:[#allocation11 + $0x530] sm:$0xff]
    %v2239 = vld [vmem:[#allocation11 + $0x538] sm:$0xff]
    %v2240 = vld [vmem:[#allocation11 + $0x540] sm:$0xff]
    %v2241 = vld [vmem:[#allocation11 + $0x548] sm:$0xff]
    %v2242 = vld [vmem:[#allocation11 + $0x550] sm:$0xff]
    %v2243 = vld [vmem:[#allocation11 + $0x558] sm:$0xff]
    %v2244 = vld [vmem:[#allocation11 + $0x560] sm:$0xff]
    %v2245 = vld [vmem:[#allocation11 + $0x568] sm:$0xff]
    %v2246 = vld [vmem:[#allocation11 + $0x570] sm:$0xff]
    %v2247 = vld [vmem:[#allocation11 + $0x578] sm:$0xff]
    %v2248 = vld [vmem:[#allocation11 + $0x580] sm:$0xff]
    %v2249 = vld [vmem:[#allocation11 + $0x588] sm:$0xff]
    %v2250 = vld [vmem:[#allocation11 + $0x590] sm:$0xff]
    %v2251 = vld [vmem:[#allocation11 + $0x598] sm:$0xff]
    %v2252 = vld [vmem:[#allocation11 + $0x5a0] sm:$0xff]
    %v2253 = vld [vmem:[#allocation11 + $0x5a8] sm:$0xff]
    %v2254 = vld [vmem:[#allocation11 + $0x5b0] sm:$0xff]
    %v2255 = vld [vmem:[#allocation11 + $0x5b8] sm:$0xff]
    %v2256 = vld [vmem:[#allocation11 + $0x5c0] sm:$0xff]
    %v2257 = vld [vmem:[#allocation11 + $0x5c8] sm:$0xff]
    %v2258 = vld [vmem:[#allocation11 + $0x5d0] sm:$0xff]
    %v2259 = vld [vmem:[#allocation11 + $0x5d8] sm:$0xff]
    %v2260 = vld [vmem:[#allocation11 + $0x5e0] sm:$0xff]
    %v2261 = vld [vmem:[#allocation11 + $0x5e8] sm:$0xff]
    %v2262 = vld [vmem:[#allocation11 + $0x5f0] sm:$0xff]
    %v2263 = vld [vmem:[#allocation11 + $0x5f8] sm:$0xff]
    %v2264 = vld [vmem:[#allocation11 + $0x600] sm:$0xff]
    %v2265 = vld [vmem:[#allocation11 + $0x608] sm:$0xff]
    %v2266 = vld [vmem:[#allocation11 + $0x610] sm:$0xff]
    %v2267 = vld [vmem:[#allocation11 + $0x618] sm:$0xff]
    %v2268 = vld [vmem:[#allocation11 + $0x620] sm:$0xff]
    %v2269 = vld [vmem:[#allocation11 + $0x628] sm:$0xff]
    %v2270 = vld [vmem:[#allocation11 + $0x630] sm:$0xff]
    %v2271 = vld [vmem:[#allocation11 + $0x638] sm:$0xff]
    %v2272 = vld [vmem:[#allocation11 + $0x640] sm:$0xff]
    %v2273 = vld [vmem:[#allocation11 + $0x648] sm:$0xff]
    %v2274 = vld [vmem:[#allocation11 + $0x650] sm:$0xff]
    %v2275 = vld [vmem:[#allocation11 + $0x658] sm:$0xff]
    %v2276 = vld [vmem:[#allocation11 + $0x660] sm:$0xff]
    %v2277 = vld [vmem:[#allocation11 + $0x668] sm:$0xff]
    %v2278 = vld [vmem:[#allocation11 + $0x670] sm:$0xff]
    %v2279 = vld [vmem:[#allocation11 + $0x678] sm:$0xff]
    %v2280 = vld [vmem:[#allocation11 + $0x680] sm:$0xff]
    %v2281 = vld [vmem:[#allocation11 + $0x688] sm:$0xff]
    %v2282 = vld [vmem:[#allocation11 + $0x690] sm:$0xff]
    %v2283 = vld [vmem:[#allocation11 + $0x698] sm:$0xff]
    %v2284 = vld [vmem:[#allocation11 + $0x6a0] sm:$0xff]
    %v2285 = vld [vmem:[#allocation11 + $0x6a8] sm:$0xff]
    %v2286 = vld [vmem:[#allocation11 + $0x6b0] sm:$0xff]
    %v2287 = vld [vmem:[#allocation11 + $0x6b8] sm:$0xff]
    %v2288 = vld [vmem:[#allocation11 + $0x6c0] sm:$0xff]
    %v2289 = vld [vmem:[#allocation11 + $0x6c8] sm:$0xff]
    %v2290 = vld [vmem:[#allocation11 + $0x6d0] sm:$0xff]
    %v2291 = vld [vmem:[#allocation11 + $0x6d8] sm:$0xff]
    %v2292 = vld [vmem:[#allocation11 + $0x6e0] sm:$0xff]
    %v2293 = vld [vmem:[#allocation11 + $0x6e8] sm:$0xff]
    %v2294 = vld [vmem:[#allocation11 + $0x6f0] sm:$0xff]
    %v2295 = vld [vmem:[#allocation11 + $0x6f8] sm:$0xff]
    %v2296 = vld [vmem:[#allocation11 + $0x700] sm:$0xff]
    %v2297 = vld [vmem:[#allocation11 + $0x708] sm:$0xff]
    %v2298 = vld [vmem:[#allocation11 + $0x710] sm:$0xff]
    %v2299 = vld [vmem:[#allocation11 + $0x718] sm:$0xff]
    %v2300 = vld [vmem:[#allocation11 + $0x720] sm:$0xff]
    %v2301 = vld [vmem:[#allocation11 + $0x728] sm:$0xff]
    %v2302 = vld [vmem:[#allocation11 + $0x730] sm:$0xff]
    %v2303 = vld [vmem:[#allocation11 + $0x738] sm:$0xff]
    %v2304 = vld [vmem:[#allocation11 + $0x740] sm:$0xff]
    %v2305 = vld [vmem:[#allocation11 + $0x748] sm:$0xff]
    %v2306 = vld [vmem:[#allocation11 + $0x750] sm:$0xff]
    %v2307 = vld [vmem:[#allocation11 + $0x758] sm:$0xff]
    %v2308 = vld [vmem:[#allocation11 + $0x760] sm:$0xff]
    %v2309 = vld [vmem:[#allocation11 + $0x768] sm:$0xff]
    %v2310 = vld [vmem:[#allocation11 + $0x770] sm:$0xff]
    %v2311 = vld [vmem:[#allocation11 + $0x778] sm:$0xff]
    %v2312 = vld [vmem:[#allocation11 + $0x780] sm:$0xff]
    %v2313 = vld [vmem:[#allocation11 + $0x788] sm:$0xff]
    %v2314 = vld [vmem:[#allocation11 + $0x790] sm:$0xff]
    %v2315 = vld [vmem:[#allocation11 + $0x798] sm:$0xff]
    %v2316 = vld [vmem:[#allocation11 + $0x7a0] sm:$0xff]
    %v2317 = vld [vmem:[#allocation11 + $0x7a8] sm:$0xff]
    %v2318 = vld [vmem:[#allocation11 + $0x7b0] sm:$0xff]
    %v2319 = vld [vmem:[#allocation11 + $0x7b8] sm:$0xff]
    %v2320 = vld [vmem:[#allocation11 + $0x7c0] sm:$0xff]
    %v2321 = vld [vmem:[#allocation11 + $0x7c8] sm:$0xff]
    %v2322 = vld [vmem:[#allocation11 + $0x7d0] sm:$0xff]
    %v2323 = vld [vmem:[#allocation11 + $0x7d8] sm:$0xff]
    %v2324 = vld [vmem:[#allocation11 + $0x7e0] sm:$0xff]
    %v2325 = vld [vmem:[#allocation11 + $0x7e8] sm:$0xff]
    %v2326 = vld [vmem:[#allocation11 + $0x7f0] sm:$0xff]
    %v2327 = vld [vmem:[#allocation11 + $0x7f8] sm:$0xff]
    %v2328 = vld [vmem:[%s8] sm:$0xf]
    %v2330 = vlaneseq
    %v2331 = vshrl.u32 %v2330, 7
    %v2332 = vsub.s32 0, %v2331
    %v2333 = vrot.slane %v2328, %v2332
    %v2334 = vlaneseq
    %v2335 = vshrl.u32 %v2334, 7
    %v2336 = vsub.s32 1, %v2335
    %v2337 = vrot.slane %v2328, %v2336
    %v2338 = vlaneseq
    %v2339 = vshrl.u32 %v2338, 7
    %v2340 = vsub.s32 2, %v2339
    %v2341 = vrot.slane %v2328, %v2340
    %v2342 = vlaneseq
    %v2343 = vshrl.u32 %v2342, 7
    %v2344 = vsub.s32 3, %v2343
    %v2345 = vrot.slane %v2328, %v2344
    %v2606 = vunpack.c.l.b16 %v2072
    %v2607 = vunpack.c.h.b16 %v2072
    %v2608 = vunpack.c.l.b16 %v2073
    %v2609 = vunpack.c.h.b16 %v2073
    %v2610 = vunpack.c.l.b16 %v2074
    %v2611 = vunpack.c.h.b16 %v2074
    %v2612 = vunpack.c.l.b16 %v2075
    %v2613 = vunpack.c.h.b16 %v2075
    %v2614 = vunpack.c.l.b16 %v2076
    %v2615 = vunpack.c.h.b16 %v2076
    %v2616 = vunpack.c.l.b16 %v2077
    %v2617 = vunpack.c.h.b16 %v2077
    %v2618 = vunpack.c.l.b16 %v2078
    %v2619 = vunpack.c.h.b16 %v2078
    %v2620 = vunpack.c.l.b16 %v2079
    %v2621 = vunpack.c.h.b16 %v2079
    %v2622 = vunpack.c.l.b16 %v2080
    %v2623 = vunpack.c.h.b16 %v2080
    %v2624 = vunpack.c.l.b16 %v2081
    %v2625 = vunpack.c.h.b16 %v2081
    %v2626 = vunpack.c.l.b16 %v2082
    %v2627 = vunpack.c.h.b16 %v2082
    %v2628 = vunpack.c.l.b16 %v2083
    %v2629 = vunpack.c.h.b16 %v2083
    %v2630 = vunpack.c.l.b16 %v2084
    %v2631 = vunpack.c.h.b16 %v2084
    %v2632 = vunpack.c.l.b16 %v2085
    %v2633 = vunpack.c.h.b16 %v2085
    %v2634 = vunpack.c.l.b16 %v2086
    %v2635 = vunpack.c.h.b16 %v2086
    %v2636 = vunpack.c.l.b16 %v2087
    %v2637 = vunpack.c.h.b16 %v2087
    %v2638 = vunpack.c.l.b16 %v2088
    %v2639 = vunpack.c.h.b16 %v2088
    %v2640 = vunpack.c.l.b16 %v2089
    %v2641 = vunpack.c.h.b16 %v2089
    %v2642 = vunpack.c.l.b16 %v2090
    %v2643 = vunpack.c.h.b16 %v2090
    %v2644 = vunpack.c.l.b16 %v2091
    %v2645 = vunpack.c.h.b16 %v2091
    %v2646 = vunpack.c.l.b16 %v2092
    %v2647 = vunpack.c.h.b16 %v2092
    %v2648 = vunpack.c.l.b16 %v2093
    %v2649 = vunpack.c.h.b16 %v2093
    %v2650 = vunpack.c.l.b16 %v2094
    %v2651 = vunpack.c.h.b16 %v2094
    %v2652 = vunpack.c.l.b16 %v2095
    %v2653 = vunpack.c.h.b16 %v2095
    %v2654 = vunpack.c.l.b16 %v2096
    %v2655 = vunpack.c.h.b16 %v2096
    %v2656 = vunpack.c.l.b16 %v2097
    %v2657 = vunpack.c.h.b16 %v2097
    %v2658 = vunpack.c.l.b16 %v2098
    %v2659 = vunpack.c.h.b16 %v2098
    %v2660 = vunpack.c.l.b16 %v2099
    %v2661 = vunpack.c.h.b16 %v2099
    %v2662 = vunpack.c.l.b16 %v2100
    %v2663 = vunpack.c.h.b16 %v2100
    %v2664 = vunpack.c.l.b16 %v2101
    %v2665 = vunpack.c.h.b16 %v2101
    %v2666 = vunpack.c.l.b16 %v2102
    %v2667 = vunpack.c.h.b16 %v2102
    %v2668 = vunpack.c.l.b16 %v2103
    %v2669 = vunpack.c.h.b16 %v2103
    %v2670 = vunpack.c.l.b16 %v2104
    %v2671 = vunpack.c.h.b16 %v2104
    %v2672 = vunpack.c.l.b16 %v2105
    %v2673 = vunpack.c.h.b16 %v2105
    %v2674 = vunpack.c.l.b16 %v2106
    %v2675 = vunpack.c.h.b16 %v2106
    %v2676 = vunpack.c.l.b16 %v2107
    %v2677 = vunpack.c.h.b16 %v2107
    %v2678 = vunpack.c.l.b16 %v2108
    %v2679 = vunpack.c.h.b16 %v2108
    %v2680 = vunpack.c.l.b16 %v2109
    %v2681 = vunpack.c.h.b16 %v2109
    %v2682 = vunpack.c.l.b16 %v2110
    %v2683 = vunpack.c.h.b16 %v2110
    %v2684 = vunpack.c.l.b16 %v2111
    %v2685 = vunpack.c.h.b16 %v2111
    %v2686 = vunpack.c.l.b16 %v2112
    %v2687 = vunpack.c.h.b16 %v2112
    %v2688 = vunpack.c.l.b16 %v2113
    %v2689 = vunpack.c.h.b16 %v2113
    %v2690 = vunpack.c.l.b16 %v2114
    %v2691 = vunpack.c.h.b16 %v2114
    %v2692 = vunpack.c.l.b16 %v2115
    %v2693 = vunpack.c.h.b16 %v2115
    %v2694 = vunpack.c.l.b16 %v2116
    %v2695 = vunpack.c.h.b16 %v2116
    %v2696 = vunpack.c.l.b16 %v2117
    %v2697 = vunpack.c.h.b16 %v2117
    %v2698 = vunpack.c.l.b16 %v2118
    %v2699 = vunpack.c.h.b16 %v2118
    %v2700 = vunpack.c.l.b16 %v2119
    %v2701 = vunpack.c.h.b16 %v2119
    %v2702 = vunpack.c.l.b16 %v2120
    %v2703 = vunpack.c.h.b16 %v2120
    %v2704 = vunpack.c.l.b16 %v2121
    %v2705 = vunpack.c.h.b16 %v2121
    %v2706 = vunpack.c.l.b16 %v2122
    %v2707 = vunpack.c.h.b16 %v2122
    %v2708 = vunpack.c.l.b16 %v2123
    %v2709 = vunpack.c.h.b16 %v2123
    %v2710 = vunpack.c.l.b16 %v2124
    %v2711 = vunpack.c.h.b16 %v2124
    %v2712 = vunpack.c.l.b16 %v2125
    %v2713 = vunpack.c.h.b16 %v2125
    %v2714 = vunpack.c.l.b16 %v2126
    %v2715 = vunpack.c.h.b16 %v2126
    %v2716 = vunpack.c.l.b16 %v2127
    %v2717 = vunpack.c.h.b16 %v2127
    %v2718 = vunpack.c.l.b16 %v2128
    %v2719 = vunpack.c.h.b16 %v2128
    %v2720 = vunpack.c.l.b16 %v2129
    %v2721 = vunpack.c.h.b16 %v2129
    %v2722 = vunpack.c.l.b16 %v2130
    %v2723 = vunpack.c.h.b16 %v2130
    %v2724 = vunpack.c.l.b16 %v2131
    %v2725 = vunpack.c.h.b16 %v2131
    %v2726 = vunpack.c.l.b16 %v2132
    %v2727 = vunpack.c.h.b16 %v2132
    %v2728 = vunpack.c.l.b16 %v2133
    %v2729 = vunpack.c.h.b16 %v2133
    %v2730 = vunpack.c.l.b16 %v2134
    %v2731 = vunpack.c.h.b16 %v2134
    %v2732 = vunpack.c.l.b16 %v2135
    %v2733 = vunpack.c.h.b16 %v2135
    %v2734 = vunpack.c.l.b16 %v2136
    %v2735 = vunpack.c.h.b16 %v2136
    %v2736 = vunpack.c.l.b16 %v2137
    %v2737 = vunpack.c.h.b16 %v2137
    %v2738 = vunpack.c.l.b16 %v2138
    %v2739 = vunpack.c.h.b16 %v2138
    %v2740 = vunpack.c.l.b16 %v2139
    %v2741 = vunpack.c.h.b16 %v2139
    %v2742 = vunpack.c.l.b16 %v2140
    %v2743 = vunpack.c.h.b16 %v2140
    %v2744 = vunpack.c.l.b16 %v2141
    %v2745 = vunpack.c.h.b16 %v2141
    %v2746 = vunpack.c.l.b16 %v2142
    %v2747 = vunpack.c.h.b16 %v2142
    %v2748 = vunpack.c.l.b16 %v2143
    %v2749 = vunpack.c.h.b16 %v2143
    %v2750 = vunpack.c.l.b16 %v2144
    %v2751 = vunpack.c.h.b16 %v2144
    %v2752 = vunpack.c.l.b16 %v2145
    %v2753 = vunpack.c.h.b16 %v2145
    %v2754 = vunpack.c.l.b16 %v2146
    %v2755 = vunpack.c.h.b16 %v2146
    %v2756 = vunpack.c.l.b16 %v2147
    %v2757 = vunpack.c.h.b16 %v2147
    %v2758 = vunpack.c.l.b16 %v2148
    %v2759 = vunpack.c.h.b16 %v2148
    %v2760 = vunpack.c.l.b16 %v2149
    %v2761 = vunpack.c.h.b16 %v2149
    %v2762 = vunpack.c.l.b16 %v2150
    %v2763 = vunpack.c.h.b16 %v2150
    %v2764 = vunpack.c.l.b16 %v2151
    %v2765 = vunpack.c.h.b16 %v2151
    %v2766 = vunpack.c.l.b16 %v2152
    %v2767 = vunpack.c.h.b16 %v2152
    %v2768 = vunpack.c.l.b16 %v2153
    %v2769 = vunpack.c.h.b16 %v2153
    %v2770 = vunpack.c.l.b16 %v2154
    %v2771 = vunpack.c.h.b16 %v2154
    %v2772 = vunpack.c.l.b16 %v2155
    %v2773 = vunpack.c.h.b16 %v2155
    %v2774 = vunpack.c.l.b16 %v2156
    %v2775 = vunpack.c.h.b16 %v2156
    %v2776 = vunpack.c.l.b16 %v2157
    %v2777 = vunpack.c.h.b16 %v2157
    %v2778 = vunpack.c.l.b16 %v2158
    %v2779 = vunpack.c.h.b16 %v2158
    %v2780 = vunpack.c.l.b16 %v2159
    %v2781 = vunpack.c.h.b16 %v2159
    %v2782 = vunpack.c.l.b16 %v2160
    %v2783 = vunpack.c.h.b16 %v2160
    %v2784 = vunpack.c.l.b16 %v2161
    %v2785 = vunpack.c.h.b16 %v2161
    %v2786 = vunpack.c.l.b16 %v2162
    %v2787 = vunpack.c.h.b16 %v2162
    %v2788 = vunpack.c.l.b16 %v2163
    %v2789 = vunpack.c.h.b16 %v2163
    %v2790 = vunpack.c.l.b16 %v2164
    %v2791 = vunpack.c.h.b16 %v2164
    %v2792 = vunpack.c.l.b16 %v2165
    %v2793 = vunpack.c.h.b16 %v2165
    %v2794 = vunpack.c.l.b16 %v2166
    %v2795 = vunpack.c.h.b16 %v2166
    %v2796 = vunpack.c.l.b16 %v2167
    %v2797 = vunpack.c.h.b16 %v2167
    %v2798 = vunpack.c.l.b16 %v2168
    %v2799 = vunpack.c.h.b16 %v2168
    %v2800 = vunpack.c.l.b16 %v2169
    %v2801 = vunpack.c.h.b16 %v2169
    %v2802 = vunpack.c.l.b16 %v2170
    %v2803 = vunpack.c.h.b16 %v2170
    %v2804 = vunpack.c.l.b16 %v2171
    %v2805 = vunpack.c.h.b16 %v2171
    %v2806 = vunpack.c.l.b16 %v2172
    %v2807 = vunpack.c.h.b16 %v2172
    %v2808 = vunpack.c.l.b16 %v2173
    %v2809 = vunpack.c.h.b16 %v2173
    %v2810 = vunpack.c.l.b16 %v2174
    %v2811 = vunpack.c.h.b16 %v2174
    %v2812 = vunpack.c.l.b16 %v2175
    %v2813 = vunpack.c.h.b16 %v2175
    %v2814 = vunpack.c.l.b16 %v2176
    %v2815 = vunpack.c.h.b16 %v2176
    %v2816 = vunpack.c.l.b16 %v2177
    %v2817 = vunpack.c.h.b16 %v2177
    %v2818 = vunpack.c.l.b16 %v2178
    %v2819 = vunpack.c.h.b16 %v2178
    %v2820 = vunpack.c.l.b16 %v2179
    %v2821 = vunpack.c.h.b16 %v2179
    %v2822 = vunpack.c.l.b16 %v2180
    %v2823 = vunpack.c.h.b16 %v2180
    %v2824 = vunpack.c.l.b16 %v2181
    %v2825 = vunpack.c.h.b16 %v2181
    %v2826 = vunpack.c.l.b16 %v2182
    %v2827 = vunpack.c.h.b16 %v2182
    %v2828 = vunpack.c.l.b16 %v2183
    %v2829 = vunpack.c.h.b16 %v2183
    %v2830 = vunpack.c.l.b16 %v2184
    %v2831 = vunpack.c.h.b16 %v2184
    %v2832 = vunpack.c.l.b16 %v2185
    %v2833 = vunpack.c.h.b16 %v2185
    %v2834 = vunpack.c.l.b16 %v2186
    %v2835 = vunpack.c.h.b16 %v2186
    %v2836 = vunpack.c.l.b16 %v2187
    %v2837 = vunpack.c.h.b16 %v2187
    %v2838 = vunpack.c.l.b16 %v2188
    %v2839 = vunpack.c.h.b16 %v2188
    %v2840 = vunpack.c.l.b16 %v2189
    %v2841 = vunpack.c.h.b16 %v2189
    %v2842 = vunpack.c.l.b16 %v2190
    %v2843 = vunpack.c.h.b16 %v2190
    %v2844 = vunpack.c.l.b16 %v2191
    %v2845 = vunpack.c.h.b16 %v2191
    %v2846 = vunpack.c.l.b16 %v2192
    %v2847 = vunpack.c.h.b16 %v2192
    %v2848 = vunpack.c.l.b16 %v2193
    %v2849 = vunpack.c.h.b16 %v2193
    %v2850 = vunpack.c.l.b16 %v2194
    %v2851 = vunpack.c.h.b16 %v2194
    %v2852 = vunpack.c.l.b16 %v2195
    %v2853 = vunpack.c.h.b16 %v2195
    %v2854 = vunpack.c.l.b16 %v2196
    %v2855 = vunpack.c.h.b16 %v2196
    %v2856 = vunpack.c.l.b16 %v2197
    %v2857 = vunpack.c.h.b16 %v2197
    %v2858 = vunpack.c.l.b16 %v2198
    %v2859 = vunpack.c.h.b16 %v2198
    %v2860 = vunpack.c.l.b16 %v2199
    %v2861 = vunpack.c.h.b16 %v2199
    %v2862 = vunpack.c.l.b16 %v2200
    %v2863 = vunpack.c.h.b16 %v2200
    %v2864 = vunpack.c.l.b16 %v2201
    %v2865 = vunpack.c.h.b16 %v2201
    %v2866 = vunpack.c.l.b16 %v2202
    %v2867 = vunpack.c.h.b16 %v2202
    %v2868 = vunpack.c.l.b16 %v2203
    %v2869 = vunpack.c.h.b16 %v2203
    %v2870 = vunpack.c.l.b16 %v2204
    %v2871 = vunpack.c.h.b16 %v2204
    %v2872 = vunpack.c.l.b16 %v2205
    %v2873 = vunpack.c.h.b16 %v2205
    %v2874 = vunpack.c.l.b16 %v2206
    %v2875 = vunpack.c.h.b16 %v2206
    %v2876 = vunpack.c.l.b16 %v2207
    %v2877 = vunpack.c.h.b16 %v2207
    %v2878 = vunpack.c.l.b16 %v2208
    %v2879 = vunpack.c.h.b16 %v2208
    %v2880 = vunpack.c.l.b16 %v2209
    %v2881 = vunpack.c.h.b16 %v2209
    %v2882 = vunpack.c.l.b16 %v2210
    %v2883 = vunpack.c.h.b16 %v2210
    %v2884 = vunpack.c.l.b16 %v2211
    %v2885 = vunpack.c.h.b16 %v2211
    %v2886 = vunpack.c.l.b16 %v2212
    %v2887 = vunpack.c.h.b16 %v2212
    %v2888 = vunpack.c.l.b16 %v2213
    %v2889 = vunpack.c.h.b16 %v2213
    %v2890 = vunpack.c.l.b16 %v2214
    %v2891 = vunpack.c.h.b16 %v2214
    %v2892 = vunpack.c.l.b16 %v2215
    %v2893 = vunpack.c.h.b16 %v2215
    %v2894 = vunpack.c.l.b16 %v2216
    %v2895 = vunpack.c.h.b16 %v2216
    %v2896 = vunpack.c.l.b16 %v2217
    %v2897 = vunpack.c.h.b16 %v2217
    %v2898 = vunpack.c.l.b16 %v2218
    %v2899 = vunpack.c.h.b16 %v2218
    %v2900 = vunpack.c.l.b16 %v2219
    %v2901 = vunpack.c.h.b16 %v2219
    %v2902 = vunpack.c.l.b16 %v2220
    %v2903 = vunpack.c.h.b16 %v2220
    %v2904 = vunpack.c.l.b16 %v2221
    %v2905 = vunpack.c.h.b16 %v2221
    %v2906 = vunpack.c.l.b16 %v2222
    %v2907 = vunpack.c.h.b16 %v2222
    %v2908 = vunpack.c.l.b16 %v2223
    %v2909 = vunpack.c.h.b16 %v2223
    %v2910 = vunpack.c.l.b16 %v2224
    %v2911 = vunpack.c.h.b16 %v2224
    %v2912 = vunpack.c.l.b16 %v2225
    %v2913 = vunpack.c.h.b16 %v2225
    %v2914 = vunpack.c.l.b16 %v2226
    %v2915 = vunpack.c.h.b16 %v2226
    %v2916 = vunpack.c.l.b16 %v2227
    %v2917 = vunpack.c.h.b16 %v2227
    %v2918 = vunpack.c.l.b16 %v2228
    %v2919 = vunpack.c.h.b16 %v2228
    %v2920 = vunpack.c.l.b16 %v2229
    %v2921 = vunpack.c.h.b16 %v2229
    %v2922 = vunpack.c.l.b16 %v2230
    %v2923 = vunpack.c.h.b16 %v2230
    %v2924 = vunpack.c.l.b16 %v2231
    %v2925 = vunpack.c.h.b16 %v2231
    %v2926 = vunpack.c.l.b16 %v2232
    %v2927 = vunpack.c.h.b16 %v2232
    %v2928 = vunpack.c.l.b16 %v2233
    %v2929 = vunpack.c.h.b16 %v2233
    %v2930 = vunpack.c.l.b16 %v2234
    %v2931 = vunpack.c.h.b16 %v2234
    %v2932 = vunpack.c.l.b16 %v2235
    %v2933 = vunpack.c.h.b16 %v2235
    %v2934 = vunpack.c.l.b16 %v2236
    %v2935 = vunpack.c.h.b16 %v2236
    %v2936 = vunpack.c.l.b16 %v2237
    %v2937 = vunpack.c.h.b16 %v2237
    %v2938 = vunpack.c.l.b16 %v2238
    %v2939 = vunpack.c.h.b16 %v2238
    %v2940 = vunpack.c.l.b16 %v2239
    %v2941 = vunpack.c.h.b16 %v2239
    %v2942 = vunpack.c.l.b16 %v2240
    %v2943 = vunpack.c.h.b16 %v2240
    %v2944 = vunpack.c.l.b16 %v2241
    %v2945 = vunpack.c.h.b16 %v2241
    %v2946 = vunpack.c.l.b16 %v2242
    %v2947 = vunpack.c.h.b16 %v2242
    %v2948 = vunpack.c.l.b16 %v2243
    %v2949 = vunpack.c.h.b16 %v2243
    %v2950 = vunpack.c.l.b16 %v2244
    %v2951 = vunpack.c.h.b16 %v2244
    %v2952 = vunpack.c.l.b16 %v2245
    %v2953 = vunpack.c.h.b16 %v2245
    %v2954 = vunpack.c.l.b16 %v2246
    %v2955 = vunpack.c.h.b16 %v2246
    %v2956 = vunpack.c.l.b16 %v2247
    %v2957 = vunpack.c.h.b16 %v2247
    %v2958 = vunpack.c.l.b16 %v2248
    %v2959 = vunpack.c.h.b16 %v2248
    %v2960 = vunpack.c.l.b16 %v2249
    %v2961 = vunpack.c.h.b16 %v2249
    %v2962 = vunpack.c.l.b16 %v2250
    %v2963 = vunpack.c.h.b16 %v2250
    %v2964 = vunpack.c.l.b16 %v2251
    %v2965 = vunpack.c.h.b16 %v2251
    %v2966 = vunpack.c.l.b16 %v2252
    %v2967 = vunpack.c.h.b16 %v2252
    %v2968 = vunpack.c.l.b16 %v2253
    %v2969 = vunpack.c.h.b16 %v2253
    %v2970 = vunpack.c.l.b16 %v2254
    %v2971 = vunpack.c.h.b16 %v2254
    %v2972 = vunpack.c.l.b16 %v2255
    %v2973 = vunpack.c.h.b16 %v2255
    %v2974 = vunpack.c.l.b16 %v2256
    %v2975 = vunpack.c.h.b16 %v2256
    %v2976 = vunpack.c.l.b16 %v2257
    %v2977 = vunpack.c.h.b16 %v2257
    %v2978 = vunpack.c.l.b16 %v2258
    %v2979 = vunpack.c.h.b16 %v2258
    %v2980 = vunpack.c.l.b16 %v2259
    %v2981 = vunpack.c.h.b16 %v2259
    %v2982 = vunpack.c.l.b16 %v2260
    %v2983 = vunpack.c.h.b16 %v2260
    %v2984 = vunpack.c.l.b16 %v2261
    %v2985 = vunpack.c.h.b16 %v2261
    %v2986 = vunpack.c.l.b16 %v2262
    %v2987 = vunpack.c.h.b16 %v2262
    %v2988 = vunpack.c.l.b16 %v2263
    %v2989 = vunpack.c.h.b16 %v2263
    %v2990 = vunpack.c.l.b16 %v2264
    %v2991 = vunpack.c.h.b16 %v2264
    %v2992 = vunpack.c.l.b16 %v2265
    %v2993 = vunpack.c.h.b16 %v2265
    %v2994 = vunpack.c.l.b16 %v2266
    %v2995 = vunpack.c.h.b16 %v2266
    %v2996 = vunpack.c.l.b16 %v2267
    %v2997 = vunpack.c.h.b16 %v2267
    %v2998 = vunpack.c.l.b16 %v2268
    %v2999 = vunpack.c.h.b16 %v2268
    %v3000 = vunpack.c.l.b16 %v2269
    %v3001 = vunpack.c.h.b16 %v2269
    %v3002 = vunpack.c.l.b16 %v2270
    %v3003 = vunpack.c.h.b16 %v2270
    %v3004 = vunpack.c.l.b16 %v2271
    %v3005 = vunpack.c.h.b16 %v2271
    %v3006 = vunpack.c.l.b16 %v2272
    %v3007 = vunpack.c.h.b16 %v2272
    %v3008 = vunpack.c.l.b16 %v2273
    %v3009 = vunpack.c.h.b16 %v2273
    %v3010 = vunpack.c.l.b16 %v2274
    %v3011 = vunpack.c.h.b16 %v2274
    %v3012 = vunpack.c.l.b16 %v2275
    %v3013 = vunpack.c.h.b16 %v2275
    %v3014 = vunpack.c.l.b16 %v2276
    %v3015 = vunpack.c.h.b16 %v2276
    %v3016 = vunpack.c.l.b16 %v2277
    %v3017 = vunpack.c.h.b16 %v2277
    %v3018 = vunpack.c.l.b16 %v2278
    %v3019 = vunpack.c.h.b16 %v2278
    %v3020 = vunpack.c.l.b16 %v2279
    %v3021 = vunpack.c.h.b16 %v2279
    %v3022 = vunpack.c.l.b16 %v2280
    %v3023 = vunpack.c.h.b16 %v2280
    %v3024 = vunpack.c.l.b16 %v2281
    %v3025 = vunpack.c.h.b16 %v2281
    %v3026 = vunpack.c.l.b16 %v2282
    %v3027 = vunpack.c.h.b16 %v2282
    %v3028 = vunpack.c.l.b16 %v2283
    %v3029 = vunpack.c.h.b16 %v2283
    %v3030 = vunpack.c.l.b16 %v2284
    %v3031 = vunpack.c.h.b16 %v2284
    %v3032 = vunpack.c.l.b16 %v2285
    %v3033 = vunpack.c.h.b16 %v2285
    %v3034 = vunpack.c.l.b16 %v2286
    %v3035 = vunpack.c.h.b16 %v2286
    %v3036 = vunpack.c.l.b16 %v2287
    %v3037 = vunpack.c.h.b16 %v2287
    %v3038 = vunpack.c.l.b16 %v2288
    %v3039 = vunpack.c.h.b16 %v2288
    %v3040 = vunpack.c.l.b16 %v2289
    %v3041 = vunpack.c.h.b16 %v2289
    %v3042 = vunpack.c.l.b16 %v2290
    %v3043 = vunpack.c.h.b16 %v2290
    %v3044 = vunpack.c.l.b16 %v2291
    %v3045 = vunpack.c.h.b16 %v2291
    %v3046 = vunpack.c.l.b16 %v2292
    %v3047 = vunpack.c.h.b16 %v2292
    %v3048 = vunpack.c.l.b16 %v2293
    %v3049 = vunpack.c.h.b16 %v2293
    %v3050 = vunpack.c.l.b16 %v2294
    %v3051 = vunpack.c.h.b16 %v2294
    %v3052 = vunpack.c.l.b16 %v2295
    %v3053 = vunpack.c.h.b16 %v2295
    %v3054 = vunpack.c.l.b16 %v2296
    %v3055 = vunpack.c.h.b16 %v2296
    %v3056 = vunpack.c.l.b16 %v2297
    %v3057 = vunpack.c.h.b16 %v2297
    %v3058 = vunpack.c.l.b16 %v2298
    %v3059 = vunpack.c.h.b16 %v2298
    %v3060 = vunpack.c.l.b16 %v2299
    %v3061 = vunpack.c.h.b16 %v2299
    %v3062 = vunpack.c.l.b16 %v2300
    %v3063 = vunpack.c.h.b16 %v2300
    %v3064 = vunpack.c.l.b16 %v2301
    %v3065 = vunpack.c.h.b16 %v2301
    %v3066 = vunpack.c.l.b16 %v2302
    %v3067 = vunpack.c.h.b16 %v2302
    %v3068 = vunpack.c.l.b16 %v2303
    %v3069 = vunpack.c.h.b16 %v2303
    %v3070 = vunpack.c.l.b16 %v2304
    %v3071 = vunpack.c.h.b16 %v2304
    %v3072 = vunpack.c.l.b16 %v2305
    %v3073 = vunpack.c.h.b16 %v2305
    %v3074 = vunpack.c.l.b16 %v2306
    %v3075 = vunpack.c.h.b16 %v2306
    %v3076 = vunpack.c.l.b16 %v2307
    %v3077 = vunpack.c.h.b16 %v2307
    %v3078 = vunpack.c.l.b16 %v2308
    %v3079 = vunpack.c.h.b16 %v2308
    %v3080 = vunpack.c.l.b16 %v2309
    %v3081 = vunpack.c.h.b16 %v2309
    %v3082 = vunpack.c.l.b16 %v2310
    %v3083 = vunpack.c.h.b16 %v2310
    %v3084 = vunpack.c.l.b16 %v2311
    %v3085 = vunpack.c.h.b16 %v2311
    %v3086 = vunpack.c.l.b16 %v2312
    %v3087 = vunpack.c.h.b16 %v2312
    %v3088 = vunpack.c.l.b16 %v2313
    %v3089 = vunpack.c.h.b16 %v2313
    %v3090 = vunpack.c.l.b16 %v2314
    %v3091 = vunpack.c.h.b16 %v2314
    %v3092 = vunpack.c.l.b16 %v2315
    %v3093 = vunpack.c.h.b16 %v2315
    %v3094 = vunpack.c.l.b16 %v2316
    %v3095 = vunpack.c.h.b16 %v2316
    %v3096 = vunpack.c.l.b16 %v2317
    %v3097 = vunpack.c.h.b16 %v2317
    %v3098 = vunpack.c.l.b16 %v2318
    %v3099 = vunpack.c.h.b16 %v2318
    %v3100 = vunpack.c.l.b16 %v2319
    %v3101 = vunpack.c.h.b16 %v2319
    %v3102 = vunpack.c.l.b16 %v2320
    %v3103 = vunpack.c.h.b16 %v2320
    %v3104 = vunpack.c.l.b16 %v2321
    %v3105 = vunpack.c.h.b16 %v2321
    %v3106 = vunpack.c.l.b16 %v2322
    %v3107 = vunpack.c.h.b16 %v2322
    %v3108 = vunpack.c.l.b16 %v2323
    %v3109 = vunpack.c.h.b16 %v2323
    %v3110 = vunpack.c.l.b16 %v2324
    %v3111 = vunpack.c.h.b16 %v2324
    %v3112 = vunpack.c.l.b16 %v2325
    %v3113 = vunpack.c.h.b16 %v2325
    %v3114 = vunpack.c.l.b16 %v2326
    %v3115 = vunpack.c.h.b16 %v2326
    %v3116 = vunpack.c.l.b16 %v2327
    %v3117 = vunpack.c.h.b16 %v2327
    %v3118 = vpack.c.b16 %v2610, %v2606
    %v3119 = vpack.c.b16 %v2611, %v2607
    %v3120 = vpack.c.b16 %v2612, %v2608
    %v3121 = vpack.c.b16 %v2613, %v2609
    %v3122 = vpack.c.b16 %v2618, %v2614
    %v3123 = vpack.c.b16 %v2619, %v2615
    %v3124 = vpack.c.b16 %v2620, %v2616
    %v3125 = vpack.c.b16 %v2621, %v2617
    %v3126 = vpack.c.b16 %v2626, %v2622
    %v3127 = vpack.c.b16 %v2627, %v2623
    %v3128 = vpack.c.b16 %v2628, %v2624
    %v3129 = vpack.c.b16 %v2629, %v2625
    %v3130 = vpack.c.b16 %v2634, %v2630
    %v3131 = vpack.c.b16 %v2635, %v2631
    %v3132 = vpack.c.b16 %v2636, %v2632
    %v3133 = vpack.c.b16 %v2637, %v2633
    %v3134 = vpack.c.b16 %v2642, %v2638
    %v3135 = vpack.c.b16 %v2643, %v2639
    %v3136 = vpack.c.b16 %v2644, %v2640
    %v3137 = vpack.c.b16 %v2645, %v2641
    %v3138 = vpack.c.b16 %v2650, %v2646
    %v3139 = vpack.c.b16 %v2651, %v2647
    %v3140 = vpack.c.b16 %v2652, %v2648
    %v3141 = vpack.c.b16 %v2653, %v2649
    %v3142 = vpack.c.b16 %v2658, %v2654
    %v3143 = vpack.c.b16 %v2659, %v2655
    %v3144 = vpack.c.b16 %v2660, %v2656
    %v3145 = vpack.c.b16 %v2661, %v2657
    %v3146 = vpack.c.b16 %v2666, %v2662
    %v3147 = vpack.c.b16 %v2667, %v2663
    %v3148 = vpack.c.b16 %v2668, %v2664
    %v3149 = vpack.c.b16 %v2669, %v2665
    %v3150 = vpack.c.b16 %v2674, %v2670
    %v3151 = vpack.c.b16 %v2675, %v2671
    %v3152 = vpack.c.b16 %v2676, %v2672
    %v3153 = vpack.c.b16 %v2677, %v2673
    %v3154 = vpack.c.b16 %v2682, %v2678
    %v3155 = vpack.c.b16 %v2683, %v2679
    %v3156 = vpack.c.b16 %v2684, %v2680
    %v3157 = vpack.c.b16 %v2685, %v2681
    %v3158 = vpack.c.b16 %v2690, %v2686
    %v3159 = vpack.c.b16 %v2691, %v2687
    %v3160 = vpack.c.b16 %v2692, %v2688
    %v3161 = vpack.c.b16 %v2693, %v2689
    %v3162 = vpack.c.b16 %v2698, %v2694
    %v3163 = vpack.c.b16 %v2699, %v2695
    %v3164 = vpack.c.b16 %v2700, %v2696
    %v3165 = vpack.c.b16 %v2701, %v2697
    %v3166 = vpack.c.b16 %v2706, %v2702
    %v3167 = vpack.c.b16 %v2707, %v2703
    %v3168 = vpack.c.b16 %v2708, %v2704
    %v3169 = vpack.c.b16 %v2709, %v2705
    %v3170 = vpack.c.b16 %v2714, %v2710
    %v3171 = vpack.c.b16 %v2715, %v2711
    %v3172 = vpack.c.b16 %v2716, %v2712
    %v3173 = vpack.c.b16 %v2717, %v2713
    %v3174 = vpack.c.b16 %v2722, %v2718
    %v3175 = vpack.c.b16 %v2723, %v2719
    %v3176 = vpack.c.b16 %v2724, %v2720
    %v3177 = vpack.c.b16 %v2725, %v2721
    %v3178 = vpack.c.b16 %v2730, %v2726
    %v3179 = vpack.c.b16 %v2731, %v2727
    %v3180 = vpack.c.b16 %v2732, %v2728
    %v3181 = vpack.c.b16 %v2733, %v2729
    %v3182 = vpack.c.b16 %v2738, %v2734
    %v3183 = vpack.c.b16 %v2739, %v2735
    %v3184 = vpack.c.b16 %v2740, %v2736
    %v3185 = vpack.c.b16 %v2741, %v2737
    %v3186 = vpack.c.b16 %v2746, %v2742
    %v3187 = vpack.c.b16 %v2747, %v2743
    %v3188 = vpack.c.b16 %v2748, %v2744
    %v3189 = vpack.c.b16 %v2749, %v2745
    %v3190 = vpack.c.b16 %v2754, %v2750
    %v3191 = vpack.c.b16 %v2755, %v2751
    %v3192 = vpack.c.b16 %v2756, %v2752
    %v3193 = vpack.c.b16 %v2757, %v2753
    %v3194 = vpack.c.b16 %v2762, %v2758
    %v3195 = vpack.c.b16 %v2763, %v2759
    %v3196 = vpack.c.b16 %v2764, %v2760
    %v3197 = vpack.c.b16 %v2765, %v2761
    %v3198 = vpack.c.b16 %v2770, %v2766
    %v3199 = vpack.c.b16 %v2771, %v2767
    %v3200 = vpack.c.b16 %v2772, %v2768
    %v3201 = vpack.c.b16 %v2773, %v2769
    %v3202 = vpack.c.b16 %v2778, %v2774
    %v3203 = vpack.c.b16 %v2779, %v2775
    %v3204 = vpack.c.b16 %v2780, %v2776
    %v3205 = vpack.c.b16 %v2781, %v2777
    %v3206 = vpack.c.b16 %v2786, %v2782
    %v3207 = vpack.c.b16 %v2787, %v2783
    %v3208 = vpack.c.b16 %v2788, %v2784
    %v3209 = vpack.c.b16 %v2789, %v2785
    %v3210 = vpack.c.b16 %v2794, %v2790
    %v3211 = vpack.c.b16 %v2795, %v2791
    %v3212 = vpack.c.b16 %v2796, %v2792
    %v3213 = vpack.c.b16 %v2797, %v2793
    %v3214 = vpack.c.b16 %v2802, %v2798
    %v3215 = vpack.c.b16 %v2803, %v2799
    %v3216 = vpack.c.b16 %v2804, %v2800
    %v3217 = vpack.c.b16 %v2805, %v2801
    %v3218 = vpack.c.b16 %v2810, %v2806
    %v3219 = vpack.c.b16 %v2811, %v2807
    %v3220 = vpack.c.b16 %v2812, %v2808
    %v3221 = vpack.c.b16 %v2813, %v2809
    %v3222 = vpack.c.b16 %v2818, %v2814
    %v3223 = vpack.c.b16 %v2819, %v2815
    %v3224 = vpack.c.b16 %v2820, %v2816
    %v3225 = vpack.c.b16 %v2821, %v2817
    %v3226 = vpack.c.b16 %v2826, %v2822
    %v3227 = vpack.c.b16 %v2827, %v2823
    %v3228 = vpack.c.b16 %v2828, %v2824
    %v3229 = vpack.c.b16 %v2829, %v2825
    %v3230 = vpack.c.b16 %v2834, %v2830
    %v3231 = vpack.c.b16 %v2835, %v2831
    %v3232 = vpack.c.b16 %v2836, %v2832
    %v3233 = vpack.c.b16 %v2837, %v2833
    %v3234 = vpack.c.b16 %v2842, %v2838
    %v3235 = vpack.c.b16 %v2843, %v2839
    %v3236 = vpack.c.b16 %v2844, %v2840
    %v3237 = vpack.c.b16 %v2845, %v2841
    %v3238 = vpack.c.b16 %v2850, %v2846
    %v3239 = vpack.c.b16 %v2851, %v2847
    %v3240 = vpack.c.b16 %v2852, %v2848
    %v3241 = vpack.c.b16 %v2853, %v2849
    %v3242 = vpack.c.b16 %v2858, %v2854
    %v3243 = vpack.c.b16 %v2859, %v2855
    %v3244 = vpack.c.b16 %v2860, %v2856
    %v3245 = vpack.c.b16 %v2861, %v2857
    %v3246 = vpack.c.b16 %v2866, %v2862
    %v3247 = vpack.c.b16 %v2867, %v2863
    %v3248 = vpack.c.b16 %v2868, %v2864
    %v3249 = vpack.c.b16 %v2869, %v2865
    %v3250 = vpack.c.b16 %v2874, %v2870
    %v3251 = vpack.c.b16 %v2875, %v2871
    %v3252 = vpack.c.b16 %v2876, %v2872
    %v3253 = vpack.c.b16 %v2877, %v2873
    %v3254 = vpack.c.b16 %v2882, %v2878
    %v3255 = vpack.c.b16 %v2883, %v2879
    %v3256 = vpack.c.b16 %v2884, %v2880
    %v3257 = vpack.c.b16 %v2885, %v2881
    %v3258 = vpack.c.b16 %v2890, %v2886
    %v3259 = vpack.c.b16 %v2891, %v2887
    %v3260 = vpack.c.b16 %v2892, %v2888
    %v3261 = vpack.c.b16 %v2893, %v2889
    %v3262 = vpack.c.b16 %v2898, %v2894
    %v3263 = vpack.c.b16 %v2899, %v2895
    %v3264 = vpack.c.b16 %v2900, %v2896
    %v3265 = vpack.c.b16 %v2901, %v2897
    %v3266 = vpack.c.b16 %v2906, %v2902
    %v3267 = vpack.c.b16 %v2907, %v2903
    %v3268 = vpack.c.b16 %v2908, %v2904
    %v3269 = vpack.c.b16 %v2909, %v2905
    %v3270 = vpack.c.b16 %v2914, %v2910
    %v3271 = vpack.c.b16 %v2915, %v2911
    %v3272 = vpack.c.b16 %v2916, %v2912
    %v3273 = vpack.c.b16 %v2917, %v2913
    %v3274 = vpack.c.b16 %v2922, %v2918
    %v3275 = vpack.c.b16 %v2923, %v2919
    %v3276 = vpack.c.b16 %v2924, %v2920
    %v3277 = vpack.c.b16 %v2925, %v2921
    %v3278 = vpack.c.b16 %v2930, %v2926
    %v3279 = vpack.c.b16 %v2931, %v2927
    %v3280 = vpack.c.b16 %v2932, %v2928
    %v3281 = vpack.c.b16 %v2933, %v2929
    %v3282 = vpack.c.b16 %v2938, %v2934
    %v3283 = vpack.c.b16 %v2939, %v2935
    %v3284 = vpack.c.b16 %v2940, %v2936
    %v3285 = vpack.c.b16 %v2941, %v2937
    %v3286 = vpack.c.b16 %v2946, %v2942
    %v3287 = vpack.c.b16 %v2947, %v2943
    %v3288 = vpack.c.b16 %v2948, %v2944
    %v3289 = vpack.c.b16 %v2949, %v2945
    %v3290 = vpack.c.b16 %v2954, %v2950
    %v3291 = vpack.c.b16 %v2955, %v2951
    %v3292 = vpack.c.b16 %v2956, %v2952
    %v3293 = vpack.c.b16 %v2957, %v2953
    %v3294 = vpack.c.b16 %v2962, %v2958
    %v3295 = vpack.c.b16 %v2963, %v2959
    %v3296 = vpack.c.b16 %v2964, %v2960
    %v3297 = vpack.c.b16 %v2965, %v2961
    %v3298 = vpack.c.b16 %v2970, %v2966
    %v3299 = vpack.c.b16 %v2971, %v2967
    %v3300 = vpack.c.b16 %v2972, %v2968
    %v3301 = vpack.c.b16 %v2973, %v2969
    %v3302 = vpack.c.b16 %v2978, %v2974
    %v3303 = vpack.c.b16 %v2979, %v2975
    %v3304 = vpack.c.b16 %v2980, %v2976
    %v3305 = vpack.c.b16 %v2981, %v2977
    %v3306 = vpack.c.b16 %v2986, %v2982
    %v3307 = vpack.c.b16 %v2987, %v2983
    %v3308 = vpack.c.b16 %v2988, %v2984
    %v3309 = vpack.c.b16 %v2989, %v2985
    %v3310 = vpack.c.b16 %v2994, %v2990
    %v3311 = vpack.c.b16 %v2995, %v2991
    %v3312 = vpack.c.b16 %v2996, %v2992
    %v3313 = vpack.c.b16 %v2997, %v2993
    %v3314 = vpack.c.b16 %v3002, %v2998
    %v3315 = vpack.c.b16 %v3003, %v2999
    %v3316 = vpack.c.b16 %v3004, %v3000
    %v3317 = vpack.c.b16 %v3005, %v3001
    %v3318 = vpack.c.b16 %v3010, %v3006
    %v3319 = vpack.c.b16 %v3011, %v3007
    %v3320 = vpack.c.b16 %v3012, %v3008
    %v3321 = vpack.c.b16 %v3013, %v3009
    %v3322 = vpack.c.b16 %v3018, %v3014
    %v3323 = vpack.c.b16 %v3019, %v3015
    %v3324 = vpack.c.b16 %v3020, %v3016
    %v3325 = vpack.c.b16 %v3021, %v3017
    %v3326 = vpack.c.b16 %v3026, %v3022
    %v3327 = vpack.c.b16 %v3027, %v3023
    %v3328 = vpack.c.b16 %v3028, %v3024
    %v3329 = vpack.c.b16 %v3029, %v3025
    %v3330 = vpack.c.b16 %v3034, %v3030
    %v3331 = vpack.c.b16 %v3035, %v3031
    %v3332 = vpack.c.b16 %v3036, %v3032
    %v3333 = vpack.c.b16 %v3037, %v3033
    %v3334 = vpack.c.b16 %v3042, %v3038
    %v3335 = vpack.c.b16 %v3043, %v3039
    %v3336 = vpack.c.b16 %v3044, %v3040
    %v3337 = vpack.c.b16 %v3045, %v3041
    %v3338 = vpack.c.b16 %v3050, %v3046
    %v3339 = vpack.c.b16 %v3051, %v3047
    %v3340 = vpack.c.b16 %v3052, %v3048
    %v3341 = vpack.c.b16 %v3053, %v3049
    %v3342 = vpack.c.b16 %v3058, %v3054
    %v3343 = vpack.c.b16 %v3059, %v3055
    %v3344 = vpack.c.b16 %v3060, %v3056
    %v3345 = vpack.c.b16 %v3061, %v3057
    %v3346 = vpack.c.b16 %v3066, %v3062
    %v3347 = vpack.c.b16 %v3067, %v3063
    %v3348 = vpack.c.b16 %v3068, %v3064
    %v3349 = vpack.c.b16 %v3069, %v3065
    %v3350 = vpack.c.b16 %v3074, %v3070
    %v3351 = vpack.c.b16 %v3075, %v3071
    %v3352 = vpack.c.b16 %v3076, %v3072
    %v3353 = vpack.c.b16 %v3077, %v3073
    %v3354 = vpack.c.b16 %v3082, %v3078
    %v3355 = vpack.c.b16 %v3083, %v3079
    %v3356 = vpack.c.b16 %v3084, %v3080
    %v3357 = vpack.c.b16 %v3085, %v3081
    %v3358 = vpack.c.b16 %v3090, %v3086
    %v3359 = vpack.c.b16 %v3091, %v3087
    %v3360 = vpack.c.b16 %v3092, %v3088
    %v3361 = vpack.c.b16 %v3093, %v3089
    %v3362 = vpack.c.b16 %v3098, %v3094
    %v3363 = vpack.c.b16 %v3099, %v3095
    %v3364 = vpack.c.b16 %v3100, %v3096
    %v3365 = vpack.c.b16 %v3101, %v3097
    %v3366 = vpack.c.b16 %v3106, %v3102
    %v3367 = vpack.c.b16 %v3107, %v3103
    %v3368 = vpack.c.b16 %v3108, %v3104
    %v3369 = vpack.c.b16 %v3109, %v3105
    %v3370 = vpack.c.b16 %v3114, %v3110
    %v3371 = vpack.c.b16 %v3115, %v3111
    %v3372 = vpack.c.b16 %v3116, %v3112
    %v3373 = vpack.c.b16 %v3117, %v3113
    %3630 = vmatprep.subr.bf16.mxu0 %v3119
    %3631 = vmatpush1.bf16.msra.mxu0 %v3118
    %3632 = vmatprep.subr.bf16.mxu0 %v3123
    %3633 = vmatpush1.bf16.msra.mxu0 %v3122
    %3634 = vmatprep.subr.bf16.mxu0 %v3127
    %3635 = vmatpush1.bf16.msra.mxu0 %v3126
    %3636 = vmatprep.subr.bf16.mxu0 %v3131
    %3637 = vmatpush1.bf16.msra.mxu0 %v3130
    %3638 = vmatprep.subr.bf16.mxu0 %v3135
    %3639 = vmatpush1.bf16.msra.mxu0 %v3134
    %3640 = vmatprep.subr.bf16.mxu0 %v3139
    %3641 = vmatpush1.bf16.msra.mxu0 %v3138
    %3642 = vmatprep.subr.bf16.mxu0 %v3143
    %3643 = vmatpush1.bf16.msra.mxu0 %v3142
    %3644 = vmatprep.subr.bf16.mxu0 %v3147
    %3645 = vmatpush1.bf16.msra.mxu0 %v3146
    %3646 = vmatprep.subr.bf16.mxu0 %v3151
    %3647 = vmatpush1.bf16.msra.mxu0 %v3150
    %3648 = vmatprep.subr.bf16.mxu0 %v3155
    %3649 = vmatpush1.bf16.msra.mxu0 %v3154
    %3650 = vmatprep.subr.bf16.mxu0 %v3159
    %3651 = vmatpush1.bf16.msra.mxu0 %v3158
    %3652 = vmatprep.subr.bf16.mxu0 %v3163
    %3653 = vmatpush1.bf16.msra.mxu0 %v3162
    %3654 = vmatprep.subr.bf16.mxu0 %v3167
    %3655 = vmatpush1.bf16.msra.mxu0 %v3166
    %3656 = vmatprep.subr.bf16.mxu0 %v3171
    %3657 = vmatpush1.bf16.msra.mxu0 %v3170
    %3658 = vmatprep.subr.bf16.mxu0 %v3175
    %3659 = vmatpush1.bf16.msra.mxu0 %v3174
    %3660 = vmatprep.subr.bf16.mxu0 %v3179
    %3661 = vmatpush1.bf16.msra.mxu0 %v3178
    %3662 = vmatprep.mubr.bf16.mxu0 %v2065
    %3663 = vmatmul.mubr.bf16.gmra.mrb[0].mxu0 %v2064
    %v3664 = vpop.f32.mrb[0].mxu0
    %v3665 = vadd.f32 %v2333, %v3664
    %v3666 = vpop.f32.mrb[0].mxu0
    %v3667 = vadd.f32 %v2337, %v3666
    %v3668 = vpop.f32.mrb[0].mxu0
    %v3669 = vpop.f32.mrb[0].mxu0
    %3670 = vdwg.mxu0
    %3671 = vmatprep.subr.bf16.mxu0 %v3183
    %3672 = vmatpush1.bf16.msra.mxu0 %v3182
    %3673 = vmatprep.subr.bf16.mxu0 %v3187
    %3674 = vmatpush1.bf16.msra.mxu0 %v3186
    %3675 = vmatprep.subr.bf16.mxu0 %v3191
    %3676 = vmatpush1.bf16.msra.mxu0 %v3190
    %3677 = vmatprep.subr.bf16.mxu0 %v3195
    %3678 = vmatpush1.bf16.msra.mxu0 %v3194
    %3679 = vmatprep.subr.bf16.mxu0 %v3199
    %3680 = vmatpush1.bf16.msra.mxu0 %v3198
    %3681 = vmatprep.subr.bf16.mxu0 %v3203
    %3682 = vmatpush1.bf16.msra.mxu0 %v3202
    %3683 = vmatprep.subr.bf16.mxu0 %v3207
    %3684 = vmatpush1.bf16.msra.mxu0 %v3206
    %3685 = vmatprep.subr.bf16.mxu0 %v3211
    %3686 = vmatpush1.bf16.msra.mxu0 %v3210
    %3687 = vmatprep.subr.bf16.mxu0 %v3215
    %3688 = vmatpush1.bf16.msra.mxu0 %v3214
    %3689 = vmatprep.subr.bf16.mxu0 %v3219
    %3690 = vmatpush1.bf16.msra.mxu0 %v3218
    %3691 = vmatprep.subr.bf16.mxu0 %v3223
    %3692 = vmatpush1.bf16.msra.mxu0 %v3222
    %3693 = vmatprep.subr.bf16.mxu0 %v3227
    %3694 = vmatpush1.bf16.msra.mxu0 %v3226
    %3695 = vmatprep.subr.bf16.mxu0 %v3231
    %3696 = vmatpush1.bf16.msra.mxu0 %v3230
    %3697 = vmatprep.subr.bf16.mxu0 %v3235
    %3698 = vmatpush1.bf16.msra.mxu0 %v3234
    %3699 = vmatprep.subr.bf16.mxu0 %v3239
    %3700 = vmatpush1.bf16.msra.mxu0 %v3238
    %3701 = vmatprep.subr.bf16.mxu0 %v3243
    %3702 = vmatpush1.bf16.msra.mxu0 %v3242
    %3703 = vmatprep.mubr.bf16.mxu0 %v2067
    %3704 = vmatmul.mubr.bf16.gmra.mrb[0].mxu0 %v2066
    %v3705 = vpop.f32.mrb[0].mxu0
    %v3706 = vadd.f32 %v3665, %v3705
    %v3707 = vpop.f32.mrb[0].mxu0
    %v3708 = vadd.f32 %v3667, %v3707
    %v3709 = vpop.f32.mrb[0].mxu0
    %v3710 = vpop.f32.mrb[0].mxu0
    %3711 = vdwg.mxu0
    %3712 = vmatprep.subr.bf16.mxu0 %v3247
    %3713 = vmatpush1.bf16.msra.mxu0 %v3246
    %3714 = vmatprep.subr.bf16.mxu0 %v3251
    %3715 = vmatpush1.bf16.msra.mxu0 %v3250
    %3716 = vmatprep.subr.bf16.mxu0 %v3255
    %3717 = vmatpush1.bf16.msra.mxu0 %v3254
    %3718 = vmatprep.subr.bf16.mxu0 %v3259
    %3719 = vmatpush1.bf16.msra.mxu0 %v3258
    %3720 = vmatprep.subr.bf16.mxu0 %v3263
    %3721 = vmatpush1.bf16.msra.mxu0 %v3262
    %3722 = vmatprep.subr.bf16.mxu0 %v3267
    %3723 = vmatpush1.bf16.msra.mxu0 %v3266
    %3724 = vmatprep.subr.bf16.mxu0 %v3271
    %3725 = vmatpush1.bf16.msra.mxu0 %v3270
    %3726 = vmatprep.subr.bf16.mxu0 %v3275
    %3727 = vmatpush1.bf16.msra.mxu0 %v3274
    %3728 = vmatprep.subr.bf16.mxu0 %v3279
    %3729 = vmatpush1.bf16.msra.mxu0 %v3278
    %3730 = vmatprep.subr.bf16.mxu0 %v3283
    %3731 = vmatpush1.bf16.msra.mxu0 %v3282
    %3732 = vmatprep.subr.bf16.mxu0 %v3287
    %3733 = vmatpush1.bf16.msra.mxu0 %v3286
    %3734 = vmatprep.subr.bf16.mxu0 %v3291
    %3735 = vmatpush1.bf16.msra.mxu0 %v3290
    %3736 = vmatprep.subr.bf16.mxu0 %v3295
    %3737 = vmatpush1.bf16.msra.mxu0 %v3294
    %3738 = vmatprep.subr.bf16.mxu0 %v3299
    %3739 = vmatpush1.bf16.msra.mxu0 %v3298
    %3740 = vmatprep.subr.bf16.mxu0 %v3303
    %3741 = vmatpush1.bf16.msra.mxu0 %v3302
    %3742 = vmatprep.subr.bf16.mxu0 %v3307
    %3743 = vmatpush1.bf16.msra.mxu0 %v3306
    %3744 = vmatprep.mubr.bf16.mxu0 %v2069
    %3745 = vmatmul.mubr.bf16.gmra.mrb[0].mxu0 %v2068
    %v3746 = vpop.f32.mrb[0].mxu0
    %v3747 = vadd.f32 %v3706, %v3746
    %v3748 = vpop.f32.mrb[0].mxu0
    %v3749 = vadd.f32 %v3708, %v3748
    %v3750 = vpop.f32.mrb[0].mxu0
    %v3751 = vpop.f32.mrb[0].mxu0
    %3752 = vdwg.mxu0
    %3753 = vmatprep.subr.bf16.mxu0 %v3311
    %3754 = vmatpush1.bf16.msra.mxu0 %v3310
    %3755 = vmatprep.subr.bf16.mxu0 %v3315
    %3756 = vmatpush1.bf16.msra.mxu0 %v3314
    %3757 = vmatprep.subr.bf16.mxu0 %v3319
    %3758 = vmatpush1.bf16.msra.mxu0 %v3318
    %3759 = vmatprep.subr.bf16.mxu0 %v3323
    %3760 = vmatpush1.bf16.msra.mxu0 %v3322
    %3761 = vmatprep.subr.bf16.mxu0 %v3327
    %3762 = vmatpush1.bf16.msra.mxu0 %v3326
    %3763 = vmatprep.subr.bf16.mxu0 %v3331
    %3764 = vmatpush1.bf16.msra.mxu0 %v3330
    %3765 = vmatprep.subr.bf16.mxu0 %v3335
    %3766 = vmatpush1.bf16.msra.mxu0 %v3334
    %3767 = vmatprep.subr.bf16.mxu0 %v3339
    %3768 = vmatpush1.bf16.msra.mxu0 %v3338
    %3769 = vmatprep.subr.bf16.mxu0 %v3343
    %3770 = vmatpush1.bf16.msra.mxu0 %v3342
    %3771 = vmatprep.subr.bf16.mxu0 %v3347
    %3772 = vmatpush1.bf16.msra.mxu0 %v3346
    %3773 = vmatprep.subr.bf16.mxu0 %v3351
    %3774 = vmatpush1.bf16.msra.mxu0 %v3350
    %3775 = vmatprep.subr.bf16.mxu0 %v3355
    %3776 = vmatpush1.bf16.msra.mxu0 %v3354
    %3777 = vmatprep.subr.bf16.mxu0 %v3359
    %3778 = vmatpush1.bf16.msra.mxu0 %v3358
    %3779 = vmatprep.subr.bf16.mxu0 %v3363
    %3780 = vmatpush1.bf16.msra.mxu0 %v3362
    %3781 = vmatprep.subr.bf16.mxu0 %v3367
    %3782 = vmatpush1.bf16.msra.mxu0 %v3366
    %3783 = vmatprep.subr.bf16.mxu0 %v3371
    %3784 = vmatpush1.bf16.msra.mxu0 %v3370
    %3785 = vmatprep.mubr.bf16.mxu0 %v2071
    %3786 = vmatmul.mubr.bf16.gmra.mrb[0].mxu0 %v2070
    %v3787 = vpop.f32.mrb[0].mxu0
    %v3788 = vadd.f32 %v3747, %v3787
    %v3789 = vpop.f32.mrb[0].mxu0
    %v3790 = vadd.f32 %v3749, %v3789
    %v3791 = vpop.f32.mrb[0].mxu0
    %v3792 = vpop.f32.mrb[0].mxu0
    %3793 = vdwg.mxu0
    %3794 = vmatprep.subr.bf16.mxu0 %v3121
    %3795 = vmatpush1.bf16.msra.mxu0 %v3120
    %3796 = vmatprep.subr.bf16.mxu0 %v3125
    %3797 = vmatpush1.bf16.msra.mxu0 %v3124
    %3798 = vmatprep.subr.bf16.mxu0 %v3129
    %3799 = vmatpush1.bf16.msra.mxu0 %v3128
    %3800 = vmatprep.subr.bf16.mxu0 %v3133
    %3801 = vmatpush1.bf16.msra.mxu0 %v3132
    %3802 = vmatprep.subr.bf16.mxu0 %v3137
    %3803 = vmatpush1.bf16.msra.mxu0 %v3136
    %3804 = vmatprep.subr.bf16.mxu0 %v3141
    %3805 = vmatpush1.bf16.msra.mxu0 %v3140
    %3806 = vmatprep.subr.bf16.mxu0 %v3145
    %3807 = vmatpush1.bf16.msra.mxu0 %v3144
    %3808 = vmatprep.subr.bf16.mxu0 %v3149
    %3809 = vmatpush1.bf16.msra.mxu0 %v3148
    %3810 = vmatprep.subr.bf16.mxu0 %v3153
    %3811 = vmatpush1.bf16.msra.mxu0 %v3152
    %3812 = vmatprep.subr.bf16.mxu0 %v3157
    %3813 = vmatpush1.bf16.msra.mxu0 %v3156
    %3814 = vmatprep.subr.bf16.mxu0 %v3161
    %3815 = vmatpush1.bf16.msra.mxu0 %v3160
    %3816 = vmatprep.subr.bf16.mxu0 %v3165
    %3817 = vmatpush1.bf16.msra.mxu0 %v3164
    %3818 = vmatprep.subr.bf16.mxu0 %v3169
    %3819 = vmatpush1.bf16.msra.mxu0 %v3168
    %3820 = vmatprep.subr.bf16.mxu0 %v3173
    %3821 = vmatpush1.bf16.msra.mxu0 %v3172
    %3822 = vmatprep.subr.bf16.mxu0 %v3177
    %3823 = vmatpush1.bf16.msra.mxu0 %v3176
    %3824 = vmatprep.subr.bf16.mxu0 %v3181
    %3825 = vmatpush1.bf16.msra.mxu0 %v3180
    %3826 = vmatprep.mubr.bf16.mxu0 %v2065
    %3827 = vmatmul.mubr.bf16.gmra.mrb[0].mxu0 %v2064
    %v3828 = vpop.f32.mrb[0].mxu0
    %v3829 = vadd.f32 %v2341, %v3828
    %v3830 = vpop.f32.mrb[0].mxu0
    %v3831 = vadd.f32 %v2345, %v3830
    %v3832 = vpop.f32.mrb[0].mxu0
    %v3833 = vpop.f32.mrb[0].mxu0
    %3834 = vdwg.mxu0
    %3835 = vmatprep.subr.bf16.mxu0 %v3185
    %3836 = vmatpush1.bf16.msra.mxu0 %v3184
    %3837 = vmatprep.subr.bf16.mxu0 %v3189
    %3838 = vmatpush1.bf16.msra.mxu0 %v3188
    %3839 = vmatprep.subr.bf16.mxu0 %v3193
    %3840 = vmatpush1.bf16.msra.mxu0 %v3192
    %3841 = vmatprep.subr.bf16.mxu0 %v3197
    %3842 = vmatpush1.bf16.msra.mxu0 %v3196
    %3843 = vmatprep.subr.bf16.mxu0 %v3201
    %3844 = vmatpush1.bf16.msra.mxu0 %v3200
    %3845 = vmatprep.subr.bf16.mxu0 %v3205
    %3846 = vmatpush1.bf16.msra.mxu0 %v3204
    %3847 = vmatprep.subr.bf16.mxu0 %v3209
    %3848 = vmatpush1.bf16.msra.mxu0 %v3208
    %3849 = vmatprep.subr.bf16.mxu0 %v3213
    %3850 = vmatpush1.bf16.msra.mxu0 %v3212
    %3851 = vmatprep.subr.bf16.mxu0 %v3217
    %3852 = vmatpush1.bf16.msra.mxu0 %v3216
    %3853 = vmatprep.subr.bf16.mxu0 %v3221
    %3854 = vmatpush1.bf16.msra.mxu0 %v3220
    %3855 = vmatprep.subr.bf16.mxu0 %v3225
    %3856 = vmatpush1.bf16.msra.mxu0 %v3224
    %3857 = vmatprep.subr.bf16.mxu0 %v3229
    %3858 = vmatpush1.bf16.msra.mxu0 %v3228
    %3859 = vmatprep.subr.bf16.mxu0 %v3233
    %3860 = vmatpush1.bf16.msra.mxu0 %v3232
    %3861 = vmatprep.subr.bf16.mxu0 %v3237
    %3862 = vmatpush1.bf16.msra.mxu0 %v3236
    %3863 = vmatprep.subr.bf16.mxu0 %v3241
    %3864 = vmatpush1.bf16.msra.mxu0 %v3240
    %3865 = vmatprep.subr.bf16.mxu0 %v3245
    %3866 = vmatpush1.bf16.msra.mxu0 %v3244
    %3867 = vmatprep.mubr.bf16.mxu0 %v2067
    %3868 = vmatmul.mubr.bf16.gmra.mrb[0].mxu0 %v2066
    %v3869 = vpop.f32.mrb[0].mxu0
    %v3870 = vadd.f32 %v3829, %v3869
    %v3871 = vpop.f32.mrb[0].mxu0
    %v3872 = vadd.f32 %v3831, %v3871
    %v3873 = vpop.f32.mrb[0].mxu0
    %v3874 = vpop.f32.mrb[0].mxu0
    %3875 = vdwg.mxu0
    %3876 = vmatprep.subr.bf16.mxu0 %v3249
    %3877 = vmatpush1.bf16.msra.mxu0 %v3248
    %3878 = vmatprep.subr.bf16.mxu0 %v3253
    %3879 = vmatpush1.bf16.msra.mxu0 %v3252
    %3880 = vmatprep.subr.bf16.mxu0 %v3257
    %3881 = vmatpush1.bf16.msra.mxu0 %v3256
    %3882 = vmatprep.subr.bf16.mxu0 %v3261
    %3883 = vmatpush1.bf16.msra.mxu0 %v3260
    %3884 = vmatprep.subr.bf16.mxu0 %v3265
    %3885 = vmatpush1.bf16.msra.mxu0 %v3264
    %3886 = vmatprep.subr.bf16.mxu0 %v3269
    %3887 = vmatpush1.bf16.msra.mxu0 %v3268
    %3888 = vmatprep.subr.bf16.mxu0 %v3273
    %3889 = vmatpush1.bf16.msra.mxu0 %v3272
    %3890 = vmatprep.subr.bf16.mxu0 %v3277
    %3891 = vmatpush1.bf16.msra.mxu0 %v3276
    %3892 = vmatprep.subr.bf16.mxu0 %v3281
    %3893 = vmatpush1.bf16.msra.mxu0 %v3280
    %3894 = vmatprep.subr.bf16.mxu0 %v3285
    %3895 = vmatpush1.bf16.msra.mxu0 %v3284
    %3896 = vmatprep.subr.bf16.mxu0 %v3289
    %3897 = vmatpush1.bf16.msra.mxu0 %v3288
    %3898 = vmatprep.subr.bf16.mxu0 %v3293
    %3899 = vmatpush1.bf16.msra.mxu0 %v3292
    %3900 = vmatprep.subr.bf16.mxu0 %v3297
    %3901 = vmatpush1.bf16.msra.mxu0 %v3296
    %3902 = vmatprep.subr.bf16.mxu0 %v3301
    %3903 = vmatpush1.bf16.msra.mxu0 %v3300
    %3904 = vmatprep.subr.bf16.mxu0 %v3305
    %3905 = vmatpush1.bf16.msra.mxu0 %v3304
    %3906 = vmatprep.subr.bf16.mxu0 %v3309
    %3907 = vmatpush1.bf16.msra.mxu0 %v3308
    %3908 = vmatprep.mubr.bf16.mxu0 %v2069
    %3909 = vmatmul.mubr.bf16.gmra.mrb[0].mxu0 %v2068
    %v3910 = vpop.f32.mrb[0].mxu0
    %v3911 = vadd.f32 %v3870, %v3910
    %v3912 = vpop.f32.mrb[0].mxu0
    %v3913 = vadd.f32 %v3872, %v3912
    %v3914 = vpop.f32.mrb[0].mxu0
    %v3915 = vpop.f32.mrb[0].mxu0
    %3916 = vdwg.mxu0
    %3917 = vmatprep.subr.bf16.mxu0 %v3313
    %3918 = vmatpush1.bf16.msra.mxu0 %v3312
    %3919 = vmatprep.subr.bf16.mxu0 %v3317
    %3920 = vmatpush1.bf16.msra.mxu0 %v3316
    %3921 = vmatprep.subr.bf16.mxu0 %v3321
    %3922 = vmatpush1.bf16.msra.mxu0 %v3320
    %3923 = vmatprep.subr.bf16.mxu0 %v3325
    %3924 = vmatpush1.bf16.msra.mxu0 %v3324
    %3925 = vmatprep.subr.bf16.mxu0 %v3329
    %3926 = vmatpush1.bf16.msra.mxu0 %v3328
    %3927 = vmatprep.subr.bf16.mxu0 %v3333
    %3928 = vmatpush1.bf16.msra.mxu0 %v3332
    %3929 = vmatprep.subr.bf16.mxu0 %v3337
    %3930 = vmatpush1.bf16.msra.mxu0 %v3336
    %3931 = vmatprep.subr.bf16.mxu0 %v3341
    %3932 = vmatpush1.bf16.msra.mxu0 %v3340
    %3933 = vmatprep.subr.bf16.mxu0 %v3345
    %3934 = vmatpush1.bf16.msra.mxu0 %v3344
    %3935 = vmatprep.subr.bf16.mxu0 %v3349
    %3936 = vmatpush1.bf16.msra.mxu0 %v3348
    %3937 = vmatprep.subr.bf16.mxu0 %v3353
    %3938 = vmatpush1.bf16.msra.mxu0 %v3352
    %3939 = vmatprep.subr.bf16.mxu0 %v3357
    %3940 = vmatpush1.bf16.msra.mxu0 %v3356
    %3941 = vmatprep.subr.bf16.mxu0 %v3361
    %3942 = vmatpush1.bf16.msra.mxu0 %v3360
    %3943 = vmatprep.subr.bf16.mxu0 %v3365
    %3944 = vmatpush1.bf16.msra.mxu0 %v3364
    %3945 = vmatprep.subr.bf16.mxu0 %v3369
    %3946 = vmatpush1.bf16.msra.mxu0 %v3368
    %3947 = vmatprep.subr.bf16.mxu0 %v3373
    %3948 = vmatpush1.bf16.msra.mxu0 %v3372
    %3949 = vmatprep.mubr.bf16.mxu0 %v2071
    %3950 = vmatmul.mubr.bf16.gmra.mrb[0].mxu0 %v2070
    %v3951 = vpop.f32.mrb[0].mxu0
    %v3952 = vadd.f32 %v3911, %v3951
    %v3953 = vpop.f32.mrb[0].mxu0
    %v3954 = vadd.f32 %v3913, %v3953
    %v3955 = vpop.f32.mrb[0].mxu0
    %v3956 = vpop.f32.mrb[0].mxu0
    %3957 = vdwg.mxu0
    %v3958 = vmax.f32 %v3788, 0.0
    %v3959 = vmax.f32 %v3790, 0.0
    %v3960 = vmax.f32 %v3952, 0.0
    %v3961 = vmax.f32 %v3954, 0.0
    %v3962 = vpack.c.bf16 %v3958, %v3958
    %v3963 = vpack.c.bf16 %v3959, %v3959
    %v3964 = vpack.c.bf16 %v3960, %v3960
    %v3965 = vpack.c.bf16 %v3961, %v3961
    %v3966 = vld [vmem:[#allocation13] sm:$0xf]
    %v3967 = vld [vmem:[#allocation13 + $0x4] sm:$0xf]
    %v3968 = vld [vmem:[#allocation13 + $0x8] sm:$0xf]
    %v3969 = vld [vmem:[#allocation13 + $0xc] sm:$0xf]
    %v3970 = vld [vmem:[#allocation13 + $0x10] sm:$0xf]
    %v3971 = vld [vmem:[#allocation13 + $0x14] sm:$0xf]
    %v3972 = vld [vmem:[#allocation13 + $0x18] sm:$0xf]
    %v3973 = vld [vmem:[#allocation13 + $0x1c] sm:$0xf]
    %v3974 = vld [vmem:[#allocation13 + $0x20] sm:$0xf]
    %v3975 = vld [vmem:[#allocation13 + $0x24] sm:$0xf]
    %v3976 = vld [vmem:[#allocation13 + $0x28] sm:$0xf]
    %v3977 = vld [vmem:[#allocation13 + $0x2c] sm:$0xf]
    %v3978 = vld [vmem:[#allocation13 + $0x30] sm:$0xf]
    %v3979 = vld [vmem:[#allocation13 + $0x34] sm:$0xf]
    %v3980 = vld [vmem:[#allocation13 + $0x38] sm:$0xf]
    %v3981 = vld [vmem:[#allocation13 + $0x3c] sm:$0xf]
    %v3982 = vld [vmem:[#allocation13 + $0x40] sm:$0xf]
    %v3983 = vld [vmem:[#allocation13 + $0x44] sm:$0xf]
    %v3984 = vld [vmem:[#allocation13 + $0x48] sm:$0xf]
    %v3985 = vld [vmem:[#allocation13 + $0x4c] sm:$0xf]
    %v3986 = vld [vmem:[#allocation13 + $0x50] sm:$0xf]
    %v3987 = vld [vmem:[#allocation13 + $0x54] sm:$0xf]
    %v3988 = vld [vmem:[#allocation13 + $0x58] sm:$0xf]
    %v3989 = vld [vmem:[#allocation13 + $0x5c] sm:$0xf]
    %v3990 = vld [vmem:[#allocation13 + $0x60] sm:$0xf]
    %v3991 = vld [vmem:[#allocation13 + $0x64] sm:$0xf]
    %v3992 = vld [vmem:[#allocation13 + $0x68] sm:$0xf]
    %v3993 = vld [vmem:[#allocation13 + $0x6c] sm:$0xf]
    %v3994 = vld [vmem:[#allocation13 + $0x70] sm:$0xf]
    %v3995 = vld [vmem:[#allocation13 + $0x74] sm:$0xf]
    %v3996 = vld [vmem:[#allocation13 + $0x78] sm:$0xf]
    %v3997 = vld [vmem:[#allocation13 + $0x7c] sm:$0xf]
    %v3998 = vld [vmem:[#allocation13 + $0x80] sm:$0xf]
    %v3999 = vld [vmem:[#allocation13 + $0x84] sm:$0xf]
    %v4000 = vld [vmem:[#allocation13 + $0x88] sm:$0xf]
    %v4001 = vld [vmem:[#allocation13 + $0x8c] sm:$0xf]
    %v4002 = vld [vmem:[#allocation13 + $0x90] sm:$0xf]
    %v4003 = vld [vmem:[#allocation13 + $0x94] sm:$0xf]
    %v4004 = vld [vmem:[#allocation13 + $0x98] sm:$0xf]
    %v4005 = vld [vmem:[#allocation13 + $0x9c] sm:$0xf]
    %v4006 = vld [vmem:[#allocation13 + $0xa0] sm:$0xf]
    %v4007 = vld [vmem:[#allocation13 + $0xa4] sm:$0xf]
    %v4008 = vld [vmem:[#allocation13 + $0xa8] sm:$0xf]
    %v4009 = vld [vmem:[#allocation13 + $0xac] sm:$0xf]
    %v4010 = vld [vmem:[#allocation13 + $0xb0] sm:$0xf]
    %v4011 = vld [vmem:[#allocation13 + $0xb4] sm:$0xf]
    %v4012 = vld [vmem:[#allocation13 + $0xb8] sm:$0xf]
    %v4013 = vld [vmem:[#allocation13 + $0xbc] sm:$0xf]
    %v4014 = vld [vmem:[#allocation13 + $0xc0] sm:$0xf]
    %v4015 = vld [vmem:[#allocation13 + $0xc4] sm:$0xf]
    %v4016 = vld [vmem:[#allocation13 + $0xc8] sm:$0xf]
    %v4017 = vld [vmem:[#allocation13 + $0xcc] sm:$0xf]
    %v4018 = vld [vmem:[#allocation13 + $0xd0] sm:$0xf]
    %v4019 = vld [vmem:[#allocation13 + $0xd4] sm:$0xf]
    %v4020 = vld [vmem:[#allocation13 + $0xd8] sm:$0xf]
    %v4021 = vld [vmem:[#allocation13 + $0xdc] sm:$0xf]
    %v4022 = vld [vmem:[#allocation13 + $0xe0] sm:$0xf]
    %v4023 = vld [vmem:[#allocation13 + $0xe4] sm:$0xf]
    %v4024 = vld [vmem:[#allocation13 + $0xe8] sm:$0xf]
    %v4025 = vld [vmem:[#allocation13 + $0xec] sm:$0xf]
    %v4026 = vld [vmem:[#allocation13 + $0xf0] sm:$0xf]
    %v4027 = vld [vmem:[#allocation13 + $0xf4] sm:$0xf]
    %v4028 = vld [vmem:[#allocation13 + $0xf8] sm:$0xf]
    %v4029 = vld [vmem:[#allocation13 + $0xfc] sm:$0xf]
    %v4030 = vld [vmem:[%s10] sm:$0x1]
    %v4032 = vlaneseq
    %v4033 = vshrl.u32 %v4032, 7
    %v4034 = vsub.s32 0, %v4033
    %v4035 = vrot.slane %v4030, %v4034
    %v4101 = vunpack.c.l.b16 %v3966
    %v4102 = vunpack.c.l.b16 %v3967
    %v4103 = vunpack.c.l.b16 %v3968
    %v4104 = vunpack.c.l.b16 %v3969
    %v4105 = vunpack.c.l.b16 %v3970
    %v4106 = vunpack.c.l.b16 %v3971
    %v4107 = vunpack.c.l.b16 %v3972
    %v4108 = vunpack.c.l.b16 %v3973
    %v4109 = vunpack.c.l.b16 %v3974
    %v4110 = vunpack.c.l.b16 %v3975
    %v4111 = vunpack.c.l.b16 %v3976
    %v4112 = vunpack.c.l.b16 %v3977
    %v4113 = vunpack.c.l.b16 %v3978
    %v4114 = vunpack.c.l.b16 %v3979
    %v4115 = vunpack.c.l.b16 %v3980
    %v4116 = vunpack.c.l.b16 %v3981
    %v4117 = vunpack.c.l.b16 %v3982
    %v4118 = vunpack.c.l.b16 %v3983
    %v4119 = vunpack.c.l.b16 %v3984
    %v4120 = vunpack.c.l.b16 %v3985
    %v4121 = vunpack.c.l.b16 %v3986
    %v4122 = vunpack.c.l.b16 %v3987
    %v4123 = vunpack.c.l.b16 %v3988
    %v4124 = vunpack.c.l.b16 %v3989
    %v4125 = vunpack.c.l.b16 %v3990
    %v4126 = vunpack.c.l.b16 %v3991
    %v4127 = vunpack.c.l.b16 %v3992
    %v4128 = vunpack.c.l.b16 %v3993
    %v4129 = vunpack.c.l.b16 %v3994
    %v4130 = vunpack.c.l.b16 %v3995
    %v4131 = vunpack.c.l.b16 %v3996
    %v4132 = vunpack.c.l.b16 %v3997
    %v4133 = vunpack.c.l.b16 %v3998
    %v4134 = vunpack.c.l.b16 %v3999
    %v4135 = vunpack.c.l.b16 %v4000
    %v4136 = vunpack.c.l.b16 %v4001
    %v4137 = vunpack.c.l.b16 %v4002
    %v4138 = vunpack.c.l.b16 %v4003
    %v4139 = vunpack.c.l.b16 %v4004
    %v4140 = vunpack.c.l.b16 %v4005
    %v4141 = vunpack.c.l.b16 %v4006
    %v4142 = vunpack.c.l.b16 %v4007
    %v4143 = vunpack.c.l.b16 %v4008
    %v4144 = vunpack.c.l.b16 %v4009
    %v4145 = vunpack.c.l.b16 %v4010
    %v4146 = vunpack.c.l.b16 %v4011
    %v4147 = vunpack.c.l.b16 %v4012
    %v4148 = vunpack.c.l.b16 %v4013
    %v4149 = vunpack.c.l.b16 %v4014
    %v4150 = vunpack.c.l.b16 %v4015
    %v4151 = vunpack.c.l.b16 %v4016
    %v4152 = vunpack.c.l.b16 %v4017
    %v4153 = vunpack.c.l.b16 %v4018
    %v4154 = vunpack.c.l.b16 %v4019
    %v4155 = vunpack.c.l.b16 %v4020
    %v4156 = vunpack.c.l.b16 %v4021
    %v4157 = vunpack.c.l.b16 %v4022
    %v4158 = vunpack.c.l.b16 %v4023
    %v4159 = vunpack.c.l.b16 %v4024
    %v4160 = vunpack.c.l.b16 %v4025
    %v4161 = vunpack.c.l.b16 %v4026
    %v4162 = vunpack.c.l.b16 %v4027
    %v4163 = vunpack.c.l.b16 %v4028
    %v4164 = vunpack.c.l.b16 %v4029
    %v4165 = vpack.c.b16 %v4102, %v4101
    %v4166 = vpack.c.b16 %v4104, %v4103
    %v4167 = vpack.c.b16 %v4106, %v4105
    %v4168 = vpack.c.b16 %v4108, %v4107
    %v4169 = vpack.c.b16 %v4110, %v4109
    %v4170 = vpack.c.b16 %v4112, %v4111
    %v4171 = vpack.c.b16 %v4114, %v4113
    %v4172 = vpack.c.b16 %v4116, %v4115
    %v4173 = vpack.c.b16 %v4118, %v4117
    %v4174 = vpack.c.b16 %v4120, %v4119
    %v4175 = vpack.c.b16 %v4122, %v4121
    %v4176 = vpack.c.b16 %v4124, %v4123
    %v4177 = vpack.c.b16 %v4126, %v4125
    %v4178 = vpack.c.b16 %v4128, %v4127
    %v4179 = vpack.c.b16 %v4130, %v4129
    %v4180 = vpack.c.b16 %v4132, %v4131
    %v4181 = vpack.c.b16 %v4134, %v4133
    %v4182 = vpack.c.b16 %v4136, %v4135
    %v4183 = vpack.c.b16 %v4138, %v4137
    %v4184 = vpack.c.b16 %v4140, %v4139
    %v4185 = vpack.c.b16 %v4142, %v4141
    %v4186 = vpack.c.b16 %v4144, %v4143
    %v4187 = vpack.c.b16 %v4146, %v4145
    %v4188 = vpack.c.b16 %v4148, %v4147
    %v4189 = vpack.c.b16 %v4150, %v4149
    %v4190 = vpack.c.b16 %v4152, %v4151
    %v4191 = vpack.c.b16 %v4154, %v4153
    %v4192 = vpack.c.b16 %v4156, %v4155
    %v4193 = vpack.c.b16 %v4158, %v4157
    %v4194 = vpack.c.b16 %v4160, %v4159
    %v4195 = vpack.c.b16 %v4162, %v4161
    %v4196 = vpack.c.b16 %v4164, %v4163
    %4229 = vmatprep.subr.bf16.mxu0 0
    %4230 = vmatpush1.bf16.msra.mxu0 %v4165
    %4231 = vmatprep.subr.bf16.mxu0 0
    %4232 = vmatpush1.bf16.msra.mxu0 %v4166
    %4233 = vmatprep.subr.bf16.mxu0 0
    %4234 = vmatpush1.bf16.msra.mxu0 %v4167
    %4235 = vmatprep.subr.bf16.mxu0 0
    %4236 = vmatpush1.bf16.msra.mxu0 %v4168
    %4237 = vmatprep.subr.bf16.mxu0 0
    %4238 = vmatpush1.bf16.msra.mxu0 %v4169
    %4239 = vmatprep.subr.bf16.mxu0 0
    %4240 = vmatpush1.bf16.msra.mxu0 %v4170
    %4241 = vmatprep.subr.bf16.mxu0 0
    %4242 = vmatpush1.bf16.msra.mxu0 %v4171
    %4243 = vmatprep.subr.bf16.mxu0 0
    %4244 = vmatpush1.bf16.msra.mxu0 %v4172
    %4245 = vmatprep.subr.bf16.mxu0 0
    %4246 = vmatpush1.bf16.msra.mxu0 %v4173
    %4247 = vmatprep.subr.bf16.mxu0 0
    %4248 = vmatpush1.bf16.msra.mxu0 %v4174
    %4249 = vmatprep.subr.bf16.mxu0 0
    %4250 = vmatpush1.bf16.msra.mxu0 %v4175
    %4251 = vmatprep.subr.bf16.mxu0 0
    %4252 = vmatpush1.bf16.msra.mxu0 %v4176
    %4253 = vmatprep.subr.bf16.mxu0 0
    %4254 = vmatpush1.bf16.msra.mxu0 %v4177
    %4255 = vmatprep.subr.bf16.mxu0 0
    %4256 = vmatpush1.bf16.msra.mxu0 %v4178
    %4257 = vmatprep.subr.bf16.mxu0 0
    %4258 = vmatpush1.bf16.msra.mxu0 %v4179
    %4259 = vmatprep.subr.bf16.mxu0 0
    %4260 = vmatpush1.bf16.msra.mxu0 %v4180
    %4261 = vmatprep.mubr.bf16.mxu0 %v3963
    %4262 = vmatmul.mubr.bf16.gmra.mrb[0].mxu0 %v3962
    %v4263 = vpop.f32.mrb[0].mxu0
    %v4264 = vadd.f32 %v4035, %v4263
    %v4265 = vpop.f32.mrb[0].mxu0
    %v4266 = vpop.f32.mrb[0].mxu0
    %v4267 = vpop.f32.mrb[0].mxu0
    %4268 = vdwg.mxu0
    %4269 = vmatprep.subr.bf16.mxu0 0
    %4270 = vmatpush1.bf16.msra.mxu0 %v4181
    %4271 = vmatprep.subr.bf16.mxu0 0
    %4272 = vmatpush1.bf16.msra.mxu0 %v4182
    %4273 = vmatprep.subr.bf16.mxu0 0
    %4274 = vmatpush1.bf16.msra.mxu0 %v4183
    %4275 = vmatprep.subr.bf16.mxu0 0
    %4276 = vmatpush1.bf16.msra.mxu0 %v4184
    %4277 = vmatprep.subr.bf16.mxu0 0
    %4278 = vmatpush1.bf16.msra.mxu0 %v4185
    %4279 = vmatprep.subr.bf16.mxu0 0
    %4280 = vmatpush1.bf16.msra.mxu0 %v4186
    %4281 = vmatprep.subr.bf16.mxu0 0
    %4282 = vmatpush1.bf16.msra.mxu0 %v4187
    %4283 = vmatprep.subr.bf16.mxu0 0
    %4284 = vmatpush1.bf16.msra.mxu0 %v4188
    %4285 = vmatprep.subr.bf16.mxu0 0
    %4286 = vmatpush1.bf16.msra.mxu0 %v4189
    %4287 = vmatprep.subr.bf16.mxu0 0
    %4288 = vmatpush1.bf16.msra.mxu0 %v4190
    %4289 = vmatprep.subr.bf16.mxu0 0
    %4290 = vmatpush1.bf16.msra.mxu0 %v4191
    %4291 = vmatprep.subr.bf16.mxu0 0
    %4292 = vmatpush1.bf16.msra.mxu0 %v4192
    %4293 = vmatprep.subr.bf16.mxu0 0
    %4294 = vmatpush1.bf16.msra.mxu0 %v4193
    %4295 = vmatprep.subr.bf16.mxu0 0
    %4296 = vmatpush1.bf16.msra.mxu0 %v4194
    %4297 = vmatprep.subr.bf16.mxu0 0
    %4298 = vmatpush1.bf16.msra.mxu0 %v4195
    %4299 = vmatprep.subr.bf16.mxu0 0
    %4300 = vmatpush1.bf16.msra.mxu0 %v4196
    %4301 = vmatprep.mubr.bf16.mxu0 %v3965
    %4302 = vmatmul.mubr.bf16.gmra.mrb[0].mxu0 %v3964
    %v4303 = vpop.f32.mrb[0].mxu0
    %v4304 = vadd.f32 %v4264, %v4303
    %v4305 = vpop.f32.mrb[0].mxu0
    %v4306 = vpop.f32.mrb[0].mxu0
    %v4307 = vpop.f32.mrb[0].mxu0
    %4308 = vdwg.mxu0
    %v4309 = vlaneseq
    %v4310 = vand.u32 %v4309, 127
    %vm4311 = vcmp.lt.s32.totalorder %v4310, 10
    %v4312 = vsel %vm4311, %v4304, -1e+30
    %4313 = vmax.xlane.f32.xlu0 %v4312
    %v4314 = vpop.xlane.xlu0 %4313
    %v4315 = vsub.f32 %v4304, %v4314
    %v4316 = vsel %vm4311, %v4315, -1e+30
    %v4317 = vmul.f32 %v4316, 1.442695
    %v4318 = vpow.pop %v4317
    %4319 = vadd.xlane.f32.xlu0 %v4318
    %v4320 = vpop.xlane.xlu0 %4319
    %v4321 = vlog2.pop %v4320
    %v4322 = vmul.f32 %v4321, 0.6931472
    %v4323 = vsub.f32 %v4316, %v4322
    %vm4324 = vcmp.eq.s32.totalorder %v4310, 10
    %v4325 = vsel %vm4324, %v4304, 0.0
    %4326 = vadd.xlane.f32.xlu0 %v4325
    %v4327 = vpop.xlane.xlu0 %4326
    %v4328 = vtanh.pop %v4327
    %v4329 = vsel %vm4324, %v4328, 0.0
    %v4330 = vsel %vm4311, %v4323, %v4329
    %4331 = vst [vmem:[#allocation14] sm:$0xff] %v4330
    // Predicated region
    $region74: #{tpu_custom_call.1} parent=1 // pred_check
      _
    $region75: #{tpu_custom_call.1} parent=1 // pred_check_branch
      %4333 = sbr.rel (0) target = $region77
    $region76: #{tpu_custom_call.1} parent=1 // pred_region
      %s4335 = ssub.s32 128, 128
      %4336 = vsyncadd [#allocation4], %s4335
      %s4338 = sshll.u32 [#allocation14], 4
      %s4339 = int_to_ptr.vmem [resolvable:$true] %s4338
      %4341 = dma.vmem_to_hbm [thread:$0]  %s4339, 128, %s11, [#allocation4]
    $region77: #{tpu_custom_call.1} parent=1 // pred_fallthru
      _
    // Predicated region
    $region78: #{tpu_custom_call.1} parent=1 // pred_check
      _
    $region79: #{tpu_custom_call.1} parent=1 // pred_check_branch
      %4343 = sbr.rel (0) target = $region81
    $region80: #{tpu_custom_call.1} parent=1 // pred_region
      %4344 = dma.done [#allocation4], 128
    $region81: #{tpu_custom_call.1} parent=1 // pred_fallthru
      _
    %4345 = vsyncpa [#allocation3], 1
    %4346 = vsyncpa [#allocation6], 1
    %4347 = vsyncpa [#allocation9], 1
    %4348 = vsyncpa [#allocation12], 1
    %4349 = vsyncpa [#allocation4], 1

</llo_original>
